<compile_context>
chip_gen: v7x
topology: tpu7x:2x2x1
jax: 0.10.0
libtpu: 0.0.40
codegen_flags: <defaults>
</compile_context>

<pallas_src>
import functools

import jax
import jax.numpy as jnp
from jax.experimental import pallas as pl
from jax.experimental.pallas import tpu as pltpu

# 3x3 spatial taps in row-major (kh, kw) order -- must match the weight reshape.
_TAPS = tuple((dh, dw) for dh in (-1, 0, 1) for dw in (-1, 0, 1))


# ----------------------------------------------------------------------------
# Kernel
# ----------------------------------------------------------------------------
def _mict_kernel(x_ref, mask_ref, w3d_ref, b3d_ref, wblk_ref, bblk_ref,
                 o_ref, p_ref, *, C, T, H, W, blocks):
    """Fused MiCTBlock forward for one clip (one grid step = one batch item)."""
    HW = H * W
    L = T * HW                       # frame-major, all frames along lanes
    K2 = 9 * C                       # im2col depth of a 3x3 conv
    f32 = jnp.float32
    bf16 = jnp.bfloat16

    # Constant zero tails of the kt=1 / kt=2 temporal-tap blocks (temporal
    # padding (0, 2)).  Rewritten every grid step on purpose: scratch is
    # per-core under megacore partitioning, so a program_id()==0 guard would
    # skip the init on the second core; the stores are only a handful of vregs.
    p_ref[K2:2 * K2, L - HW:L] = jnp.zeros((K2, HW), bf16)
    p_ref[2 * K2:3 * K2, L - 2 * HW:L] = jnp.zeros((K2, 2 * HW), bf16)

    def im2col(xw, temporal):
        """3x3 zero-padded im2col of xw (f32 (C, L)) into p_ref rows [0, 9C).

        Each tap is a lane rotation (XLU) of xw; out-of-image pixels are zeroed
        by the pre-broadcast mask (which also covers any roll wrap-around).
        If `temporal`, the kt=1 / kt=2 blocks (rows [9C,18C) / [18C,27C)) are
        also filled with whole-frame-shifted copies -- a frame shift is HW
        lanes, i.e. a lane-tile aligned slice, so no roll and no extra mask.
        """
        for k, (dh, dw) in enumerate(_TAPS):
            s = dh * W + dw
            piece = xw if s == 0 else pltpu.roll(xw, shift=(-s) % L, axis=1)
            if s != 0:                                   # centre tap: all-ones mask
                piece = piece * mask_ref[k * C:(k + 1) * C, :]
            pb = piece.astype(bf16)
            r0 = k * C
            p_ref[r0:r0 + C, :] = pb
            if temporal:
                p_ref[K2 + r0:K2 + r0 + C, 0:L - HW] = pb[:, HW:]
                p_ref[2 * K2 + r0:2 * K2 + r0 + C, 0:L - 2 * HW] = pb[:, 2 * HW:]

    def conv2d(blk, j):
        """(C, 9C) @ (9C, L) MXU matmul (bf16 in, f32 acc) + folded-BN bias."""
        return (jnp.dot(wblk_ref[blk, j], p_ref[0:K2, :],
                        preferred_element_type=f32) + bblk_ref[blk, j])

    # --- 27C-row im2col of the input clip, shared by BasicBlock-0 conv1
    # --- (rows [0, 9C)) and the fused 3-D conv (all rows).
    im2col(x_ref[0], temporal=True)

    # --- 3-D branch: conv3x3x3 (+ folded BN) as ONE K=27C matmul, then ReLU.
    o_ref[0] = jnp.maximum(
        jnp.dot(w3d_ref[...], p_ref[...], preferred_element_type=f32)
        + b3d_ref[...], 0.0)

    # --- 2-D branch, BasicBlock 0: conv1->BN->ReLU, conv2->BN, +identity
    # --- (re-read from VMEM), ReLU; cross-domain merge accumulates into o_ref.
    h = jnp.maximum(conv2d(0, 0), 0.0)
    im2col(h, temporal=False)
    o_ref[0] = o_ref[0] + jnp.maximum(conv2d(0, 1) + x_ref[0], 0.0)

    # --- Remaining BasicBlocks; the residual lives in o_ref (VMEM), not vregs.
    # TODO(synk): switch to lax.fori_loop(..., unroll=True) if `blocks` grows.
    for blk in range(1, blocks):
        im2col(o_ref[0], temporal=False)
        h = jnp.maximum(conv2d(blk, 0), 0.0)
        im2col(h, temporal=False)
        o_ref[0] = jnp.maximum(conv2d(blk, 1) + o_ref[0], 0.0)


# ----------------------------------------------------------------------------
# Wrapper / parameter preparation
# ----------------------------------------------------------------------------
def _fold_bn(gamma, beta, mean, var, eps=1e-5):
    scale = gamma / jnp.sqrt(var + eps)
    return scale, beta - mean * scale


def _prep_params(params, C, blocks):
    """Fold eval-mode BN into the conv weights; reshape to matmul LHS layout."""
    s3, b3 = _fold_bn(params["bn3d_gamma"], params["bn3d_beta"],
                      params["bn3d_mean"], params["bn3d_var"])
    w3 = params["w3d"] * s3[:, None, None, None, None]          # (O, I, kt, kh, kw)
    # K ordering must match the slab rows: kt*9C + (kh*3 + kw)*C + cin.
    w3_mat = jnp.transpose(w3, (0, 2, 3, 4, 1)).reshape(C, 27 * C)
    w3_mat = w3_mat.astype(jnp.bfloat16)
    b3_col = b3.reshape(C, 1).astype(jnp.float32)

    wmats, bcols = [], []
    for i in range(blocks):
        for j in (1, 2):
            s, b = _fold_bn(params[f"blk{i}_bn{j}_gamma"],
                            params[f"blk{i}_bn{j}_beta"],
                            params[f"blk{i}_bn{j}_mean"],
                            params[f"blk{i}_bn{j}_var"])
            w = params[f"blk{i}_conv{j}_w"] * s[:, None, None, None]  # (O, I, kh, kw)
            wmats.append(jnp.transpose(w, (0, 2, 3, 1)).reshape(C, 9 * C))
            bcols.append(b.reshape(C, 1))
    wblk = jnp.stack(wmats).reshape(blocks, 2, C, 9 * C).astype(jnp.bfloat16)
    bblk = jnp.stack(bcols).reshape(blocks, 2, C, 1).astype(jnp.float32)
    return w3_mat, b3_col, wblk, bblk


def _tap_masks(C, T, H, W):
    """(9C, T*H*W) f32 {0,1} masks; rows k*C + c = in-bounds mask of tap k."""
    idx = jnp.arange(H * W)
    hh, ww = idx // W, idx % W
    rows = []
    for dh, dw in _TAPS:
        rows.append((hh + dh >= 0) & (hh + dh < H) &
                    (ww + dw >= 0) & (ww + dw < W))
    m = jnp.stack(rows, axis=0).astype(jnp.float32)             # (9, H*W)
    m = jnp.tile(m, (1, T))                                     # (9, L)
    return jnp.repeat(m, C, axis=0)                             # (9C, L)


def mict_block_forward(x, params, *, blocks):
    """MiCTBlock forward (BasicBlock, inplanes==planes, stride=(1,1), eval BN).

    x: (N, C, T, H, W) float32  ->  (N, C, T, H, W) float32
    """
    N, C, T, H, W = x.shape
    L = T * H * W
    assert T >= 3, "temporal padding (0, 2) assumes at least 3 frames"

    w3d_mat, b3d_col, wblk, bblk = _prep_params(params, C, blocks)
    taps_mask = _tap_masks(C, T, H, W)
    x_flat = x.reshape(N, C, L).astype(jnp.float32)   # free minor-dim reshape

    kernel = functools.partial(_mict_kernel, C=C, T=T, H=H, W=W, blocks=blocks)
    out = pl.pallas_call(
        kernel,
        out_shape=jax.ShapeDtypeStruct((N, C, L), jnp.float32),
        grid=(N,),
        in_specs=[
            pl.BlockSpec((1, C, L), lambda n: (n, 0, 0)),            # clip
            pl.BlockSpec((9 * C, L), lambda n: (0, 0)),              # tap masks
            pl.BlockSpec((C, 27 * C), lambda n: (0, 0)),             # fused 3D w
            pl.BlockSpec((C, 1), lambda n: (0, 0)),                  # 3D bias
            pl.BlockSpec((blocks, 2, C, 9 * C), lambda n: (0, 0, 0, 0)),
            pl.BlockSpec((blocks, 2, C, 1), lambda n: (0, 0, 0, 0)),
        ],
        out_specs=pl.BlockSpec((1, C, L), lambda n: (n, 0, 0)),
        scratch_shapes=[
            pltpu.VMEM((27 * C, L), jnp.bfloat16),                   # im2col slab
        ],
        compiler_params=pltpu.CompilerParams(
            dimension_semantics=("parallel",)),
    )(x_flat, taps_mask, w3d_mat, b3d_col, wblk, bblk)
    return out.reshape(N, C, T, H, W)


# ----------------------------------------------------------------------------
# Pure-JAX reference (same bf16-weight / f32-accumulate numerics)
# ----------------------------------------------------------------------------
def _ref_forward(x, params, *, blocks):
    N, C, T, H, W = x.shape

    def conv2d(a, w):
        return jax.lax.conv_general_dilated(
            a.astype(jnp.bfloat16), w, window_strides=(1, 1),
            padding=((1, 1), (1, 1)),
            dimension_numbers=("NCHW", "OIHW", "NCHW"),
            preferred_element_type=jnp.float32)

    def fold2d(i, j):
        s, b = _fold_bn(params[f"blk{i}_bn{j}_gamma"], params[f"blk{i}_bn{j}_beta"],
                        params[f"blk{i}_bn{j}_mean"], params[f"blk{i}_bn{j}_var"])
        w = (params[f"blk{i}_conv{j}_w"] * s[:, None, None, None]).astype(jnp.bfloat16)
        return w, b

    # 3-D branch: pad T by (0,2), H/W by (1,1), conv3d -> BN -> ReLU.
    s3, b3 = _fold_bn(params["bn3d_gamma"], params["bn3d_beta"],
                      params["bn3d_mean"], params["bn3d_var"])
    w3 = (params["w3d"] * s3[:, None, None, None, None]).astype(jnp.bfloat16)
    out1 = jax.lax.conv_general_dilated(
        x.astype(jnp.bfloat16), w3, window_strides=(1, 1, 1),
        padding=((0, 2), (1, 1), (1, 1)),
        dimension_numbers=("NCDHW", "OIDHW", "NCDHW"),
        preferred_element_type=jnp.float32)
    out1 = jnp.maximum(out1 + b3[None, :, None, None, None], 0.0)

    # 2-D branch: first BasicBlock on the stacked (N*T) frames.
    x4 = x.transpose(0, 2, 1, 3, 4).reshape(N * T, C, H, W)
    w1, b1 = fold2d(0, 1)
    w2, b2 = fold2d(0, 2)
    h = jnp.maximum(conv2d(x4, w1) + b1[None, :, None, None], 0.0)
    h = conv2d(h, w2) + b2[None, :, None, None]
    out2 = jnp.maximum(h + x4, 0.0).reshape(N, T, C, H, W).transpose(0, 2, 1, 3, 4)

    out = out1 + out2

    # Remaining BasicBlocks.
    o4 = out.transpose(0, 2, 1, 3, 4).reshape(N * T, C, H, W)
    for i in range(1, blocks):
        wa, ba = fold2d(i, 1)
        wb, bb = fold2d(i, 2)
        h = jnp.maximum(conv2d(o4, wa) + ba[None, :, None, None], 0.0)
        h = conv2d(h, wb) + bb[None, :, None, None]
        o4 = jnp.maximum(h + o4, 0.0)
    return o4.reshape(N, T, C, H, W).transpose(0, 2, 1, 3, 4)


# ----------------------------------------------------------------------------
# Main
# ----------------------------------------------------------------------------
if __name__ == "__main__":
    N, C, T, H, W = 2, 4, 8, 16, 16       # inplanes = planes = 4, stride = (1, 1)
    BLOCKS = 2

    keys = iter(jax.random.split(jax.random.PRNGKey(0), 64))
    x = jax.random.normal(next(keys), (N, C, T, H, W), jnp.float32)

    def bn_params(prefix):
        return {
            f"{prefix}_gamma": 1.0 + 0.1 * jax.random.normal(next(keys), (C,), jnp.float32),
            f"{prefix}_beta": 0.1 * jax.random.normal(next(keys), (C,), jnp.float32),
            f"{prefix}_mean": 0.05 * jax.random.normal(next(keys), (C,), jnp.float32),
            f"{prefix}_var": jnp.abs(jax.random.normal(next(keys), (C,), jnp.float32)) + 0.5,
        }

    params = {"w3d": 0.1 * jax.random.normal(next(keys), (C, C, 3, 3, 3), jnp.float32)}
    params.update(bn_params("bn3d"))
    for i in range(BLOCKS):
        for j in (1, 2):
            params[f"blk{i}_conv{j}_w"] = 0.1 * jax.random.normal(
                next(keys), (C, C, 3, 3), jnp.float32)
            params.update(bn_params(f"blk{i}_bn{j}"))

    out = jax.block_until_ready(mict_block_forward(x, params, blocks=BLOCKS))
    ref = jax.block_until_ready(_ref_forward(x, params, blocks=BLOCKS))

    assert out.shape == (N, C, T, H, W), out.shape
    err = float(jnp.max(jnp.abs(out - ref)))
    assert err < 1e-3, f"max abs diff {err}"
    print("KERNEL_OK")
</pallas_src>

<mosaic_0001>
module attributes {stable_mosaic.version = 11 : i64} {
  func.func @_mict_kernel(%arg0: i32, %arg1: memref<1x4x2048xf32, #tpu.memory_space<vmem>>, %arg2: memref<36x2048xf32, #tpu.memory_space<vmem>>, %arg3: memref<4x108xbf16, #tpu.memory_space<vmem>>, %arg4: memref<4x1xf32, #tpu.memory_space<vmem>>, %arg5: memref<2x2x4x36xbf16, #tpu.memory_space<vmem>>, %arg6: memref<2x2x4x1xf32, #tpu.memory_space<vmem>>, %arg7: memref<1x4x2048xf32, #tpu.memory_space<vmem>>, %arg8: memref<108x2048xbf16, #tpu.memory_space<vmem>>) attributes {dimension_semantics = [#tpu.dimension_semantics<parallel>], iteration_bounds = array<i64: 2>, scalar_prefetch = 0 : i64, scratch_operands = 1 : i64, tpu.core_type = #tpu.core_type<tc>, window_params = [{transform_indices = @transform_0, window_bounds = array<i64: 1, 4, 2048>}, {pipeline_mode = #tpu.pipeline_mode<synchronous>, transform_indices = @transform_1, window_bounds = array<i64: 36, 2048>}, {pipeline_mode = #tpu.pipeline_mode<synchronous>, transform_indices = @transform_2, window_bounds = array<i64: 4, 108>}, {pipeline_mode = #tpu.pipeline_mode<synchronous>, transform_indices = @transform_3, window_bounds = array<i64: 4, 1>}, {pipeline_mode = #tpu.pipeline_mode<synchronous>, transform_indices = @transform_4, window_bounds = array<i64: 2, 2, 4, 36>}, {pipeline_mode = #tpu.pipeline_mode<synchronous>, transform_indices = @transform_5, window_bounds = array<i64: 2, 2, 4, 1>}, {transform_indices = @transform_6, window_bounds = array<i64: 1, 4, 2048>}]} {
    %cst = arith.constant 0.000000e+00 : bf16
    %0 = vector.broadcast %cst : bf16 to vector<36x256xbf16>
    %c36 = arith.constant 36 : index
    %c1792 = arith.constant 1792 : index
    %1 = vector.load %arg8[%c36, %c1792] : memref<108x2048xbf16, #tpu.memory_space<vmem>>, vector<36x256xbf16>
    tpu.vector_store %arg8[%c36, %c1792], %0 {strides = array<i32>} : memref<108x2048xbf16, #tpu.memory_space<vmem>>, vector<36x256xbf16>,
    %cst_0 = arith.constant 0.000000e+00 : bf16
    %2 = vector.broadcast %cst_0 : bf16 to vector<36x512xbf16>
    %c72 = arith.constant 72 : index
    %c1536 = arith.constant 1536 : index
    %3 = vector.load %arg8[%c72, %c1536] : memref<108x2048xbf16, #tpu.memory_space<vmem>>, vector<36x512xbf16>
    tpu.vector_store %arg8[%c72, %c1536], %2 {strides = array<i32>} : memref<108x2048xbf16, #tpu.memory_space<vmem>>, vector<36x512xbf16>,
    %c0 = arith.constant 0 : index
    %c0_1 = arith.constant 0 : index
    %c0_2 = arith.constant 0 : index
    %4 = vector.load %arg1[%c0, %c0_1, %c0_2] : memref<1x4x2048xf32, #tpu.memory_space<vmem>>, vector<1x4x2048xf32>
    %5 = vector.shape_cast %4 : vector<1x4x2048xf32> to vector<4x2048xf32>
    %c17_i32 = arith.constant 17 : i32
    %6 = tpu.dynamic_rotate %5 by %c17_i32 dim 1 : vector<4x2048xf32>, i32 -> vector<4x2048xf32>
    %c0_3 = arith.constant 0 : index
    %c0_4 = arith.constant 0 : index
    %7 = vector.load %arg2[%c0_3, %c0_4] : memref<36x2048xf32, #tpu.memory_space<vmem>>, vector<4x2048xf32>
    %8 = arith.mulf %6, %7 : vector<4x2048xf32>
    %9 = arith.truncf %8 : vector<4x2048xf32> to vector<4x2048xbf16>
    %c0_5 = arith.constant 0 : index
    %c0_6 = arith.constant 0 : index
    %10 = vector.load %arg8[%c0_5, %c0_6] : memref<108x2048xbf16, #tpu.memory_space<vmem>>, vector<4x2048xbf16>
    tpu.vector_store %arg8[%c0_5, %c0_6], %9 {strides = array<i32>} : memref<108x2048xbf16, #tpu.memory_space<vmem>>, vector<4x2048xbf16>,
    %11 = vector.extract_strided_slice %9 {offsets = [0, 256], sizes = [4, 1792], strides = [1, 1]} : vector<4x2048xbf16> to vector<4x1792xbf16>
    %c36_7 = arith.constant 36 : index
    %c0_8 = arith.constant 0 : index
    %12 = vector.load %arg8[%c36_7, %c0_8] : memref<108x2048xbf16, #tpu.memory_space<vmem>>, vector<4x1792xbf16>
    tpu.vector_store %arg8[%c36_7, %c0_8], %11 {strides = array<i32>} : memref<108x2048xbf16, #tpu.memory_space<vmem>>, vector<4x1792xbf16>,
    %13 = vector.extract_strided_slice %9 {offsets = [0, 512], sizes = [4, 1536], strides = [1, 1]} : vector<4x2048xbf16> to vector<4x1536xbf16>
    %c72_9 = arith.constant 72 : index
    %c0_10 = arith.constant 0 : index
    %14 = vector.load %arg8[%c72_9, %c0_10] : memref<108x2048xbf16, #tpu.memory_space<vmem>>, vector<4x1536xbf16>
    tpu.vector_store %arg8[%c72_9, %c0_10], %13 {strides = array<i32>} : memref<108x2048xbf16, #tpu.memory_space<vmem>>, vector<4x1536xbf16>,
    %c16_i32 = arith.constant 16 : i32
    %15 = tpu.dynamic_rotate %5 by %c16_i32 dim 1 : vector<4x2048xf32>, i32 -> vector<4x2048xf32>
    %c4 = arith.constant 4 : index
    %c0_11 = arith.constant 0 : index
    %16 = vector.load %arg2[%c4, %c0_11] : memref<36x2048xf32, #tpu.memory_space<vmem>>, vector<4x2048xf32>
    %17 = arith.mulf %15, %16 : vector<4x2048xf32>
    %18 = arith.truncf %17 : vector<4x2048xf32> to vector<4x2048xbf16>
    %c4_12 = arith.constant 4 : index
    %c0_13 = arith.constant 0 : index
    %19 = vector.load %arg8[%c4_12, %c0_13] : memref<108x2048xbf16, #tpu.memory_space<vmem>>, vector<4x2048xbf16>
    tpu.vector_store %arg8[%c4_12, %c0_13], %18 {strides = array<i32>} : memref<108x2048xbf16, #tpu.memory_space<vmem>>, vector<4x2048xbf16>,
    %20 = vector.extract_strided_slice %18 {offsets = [0, 256], sizes = [4, 1792], strides = [1, 1]} : vector<4x2048xbf16> to vector<4x1792xbf16>
    %c40 = arith.constant 40 : index
    %c0_14 = arith.constant 0 : index
    %21 = vector.load %arg8[%c40, %c0_14] : memref<108x2048xbf16, #tpu.memory_space<vmem>>, vector<4x1792xbf16>
    tpu.vector_store %arg8[%c40, %c0_14], %20 {strides = array<i32>} : memref<108x2048xbf16, #tpu.memory_space<vmem>>, vector<4x1792xbf16>,
    %22 = vector.extract_strided_slice %18 {offsets = [0, 512], sizes = [4, 1536], strides = [1, 1]} : vector<4x2048xbf16> to vector<4x1536xbf16>
    %c76 = arith.constant 76 : index
    %c0_15 = arith.constant 0 : index
    %23 = vector.load %arg8[%c76, %c0_15] : memref<108x2048xbf16, #tpu.memory_space<vmem>>, vector<4x1536xbf16>
    tpu.vector_store %arg8[%c76, %c0_15], %22 {strides = array<i32>} : memref<108x2048xbf16, #tpu.memory_space<vmem>>, vector<4x1536xbf16>,
    %c15_i32 = arith.constant 15 : i32
    %24 = tpu.dynamic_rotate %5 by %c15_i32 dim 1 : vector<4x2048xf32>, i32 -> vector<4x2048xf32>
    %c8 = arith.constant 8 : index
    %c0_16 = arith.constant 0 : index
    %25 = vector.load %arg2[%c8, %c0_16] : memref<36x2048xf32, #tpu.memory_space<vmem>>, vector<4x2048xf32>
    %26 = arith.mulf %24, %25 : vector<4x2048xf32>
    %27 = arith.truncf %26 : vector<4x2048xf32> to vector<4x2048xbf16>
    %c8_17 = arith.constant 8 : index
    %c0_18 = arith.constant 0 : index
    %28 = vector.load %arg8[%c8_17, %c0_18] : memref<108x2048xbf16, #tpu.memory_space<vmem>>, vector<4x2048xbf16>
    tpu.vector_store %arg8[%c8_17, %c0_18], %27 {strides = array<i32>} : memref<108x2048xbf16, #tpu.memory_space<vmem>>, vector<4x2048xbf16>,
    %29 = vector.extract_strided_slice %27 {offsets = [0, 256], sizes = [4, 1792], strides = [1, 1]} : vector<4x2048xbf16> to vector<4x1792xbf16>
    %c44 = arith.constant 44 : index
    %c0_19 = arith.constant 0 : index
    %30 = vector.load %arg8[%c44, %c0_19] : memref<108x2048xbf16, #tpu.memory_space<vmem>>, vector<4x1792xbf16>
    tpu.vector_store %arg8[%c44, %c0_19], %29 {strides = array<i32>} : memref<108x2048xbf16, #tpu.memory_space<vmem>>, vector<4x1792xbf16>,
    %31 = vector.extract_strided_slice %27 {offsets = [0, 512], sizes = [4, 1536], strides = [1, 1]} : vector<4x2048xbf16> to vector<4x1536xbf16>
    %c80 = arith.constant 80 : index
    %c0_20 = arith.constant 0 : index
    %32 = vector.load %arg8[%c80, %c0_20] : memref<108x2048xbf16, #tpu.memory_space<vmem>>, vector<4x1536xbf16>
    tpu.vector_store %arg8[%c80, %c0_20], %31 {strides = array<i32>} : memref<108x2048xbf16, #tpu.memory_space<vmem>>, vector<4x1536xbf16>,
    %c1_i32 = arith.constant 1 : i32
    %33 = tpu.dynamic_rotate %5 by %c1_i32 dim 1 : vector<4x2048xf32>, i32 -> vector<4x2048xf32>
    %c12 = arith.constant 12 : index
    %c0_21 = arith.constant 0 : index
    %34 = vector.load %arg2[%c12, %c0_21] : memref<36x2048xf32, #tpu.memory_space<vmem>>, vector<4x2048xf32>
    %35 = arith.mulf %33, %34 : vector<4x2048xf32>
    %36 = arith.truncf %35 : vector<4x2048xf32> to vector<4x2048xbf16>
    %c12_22 = arith.constant 12 : index
    %c0_23 = arith.constant 0 : index
    %37 = vector.load %arg8[%c12_22, %c0_23] : memref<108x2048xbf16, #tpu.memory_space<vmem>>, vector<4x2048xbf16>
    tpu.vector_store %arg8[%c12_22, %c0_23], %36 {strides = array<i32>} : memref<108x2048xbf16, #tpu.memory_space<vmem>>, vector<4x2048xbf16>,
    %38 = vector.extract_strided_slice %36 {offsets = [0, 256], sizes = [4, 1792], strides = [1, 1]} : vector<4x2048xbf16> to vector<4x1792xbf16>
    %c48 = arith.constant 48 : index
    %c0_24 = arith.constant 0 : index
    %39 = vector.load %arg8[%c48, %c0_24] : memref<108x2048xbf16, #tpu.memory_space<vmem>>, vector<4x1792xbf16>
    tpu.vector_store %arg8[%c48, %c0_24], %38 {strides = array<i32>} : memref<108x2048xbf16, #tpu.memory_space<vmem>>, vector<4x1792xbf16>,
    %40 = vector.extract_strided_slice %36 {offsets = [0, 512], sizes = [4, 1536], strides = [1, 1]} : vector<4x2048xbf16> to vector<4x1536xbf16>
    %c84 = arith.constant 84 : index
    %c0_25 = arith.constant 0 : index
    %41 = vector.load %arg8[%c84, %c0_25] : memref<108x2048xbf16, #tpu.memory_space<vmem>>, vector<4x1536xbf16>
    tpu.vector_store %arg8[%c84, %c0_25], %40 {strides = array<i32>} : memref<108x2048xbf16, #tpu.memory_space<vmem>>, vector<4x1536xbf16>,
    %42 = arith.truncf %5 : vector<4x2048xf32> to vector<4x2048xbf16>
    %c16 = arith.constant 16 : index
    %c0_26 = arith.constant 0 : index
    %43 = vector.load %arg8[%c16, %c0_26] : memref<108x2048xbf16, #tpu.memory_space<vmem>>, vector<4x2048xbf16>
    tpu.vector_store %arg8[%c16, %c0_26], %42 {strides = array<i32>} : memref<108x2048xbf16, #tpu.memory_space<vmem>>, vector<4x2048xbf16>,
    %44 = vector.extract_strided_slice %42 {offsets = [0, 256], sizes = [4, 1792], strides = [1, 1]} : vector<4x2048xbf16> to vector<4x1792xbf16>
    %c52 = arith.constant 52 : index
    %c0_27 = arith.constant 0 : index
    %45 = vector.load %arg8[%c52, %c0_27] : memref<108x2048xbf16, #tpu.memory_space<vmem>>, vector<4x1792xbf16>
    tpu.vector_store %arg8[%c52, %c0_27], %44 {strides = array<i32>} : memref<108x2048xbf16, #tpu.memory_space<vmem>>, vector<4x1792xbf16>,
    %46 = vector.extract_strided_slice %42 {offsets = [0, 512], sizes = [4, 1536], strides = [1, 1]} : vector<4x2048xbf16> to vector<4x1536xbf16>
    %c88 = arith.constant 88 : index
    %c0_28 = arith.constant 0 : index
    %47 = vector.load %arg8[%c88, %c0_28] : memref<108x2048xbf16, #tpu.memory_space<vmem>>, vector<4x1536xbf16>
    tpu.vector_store %arg8[%c88, %c0_28], %46 {strides = array<i32>} : memref<108x2048xbf16, #tpu.memory_space<vmem>>, vector<4x1536xbf16>,
    %c2047_i32 = arith.constant 2047 : i32
    %48 = tpu.dynamic_rotate %5 by %c2047_i32 dim 1 : vector<4x2048xf32>, i32 -> vector<4x2048xf32>
    %c20 = arith.constant 20 : index
    %c0_29 = arith.constant 0 : index
    %49 = vector.load %arg2[%c20, %c0_29] : memref<36x2048xf32, #tpu.memory_space<vmem>>, vector<4x2048xf32>
    %50 = arith.mulf %48, %49 : vector<4x2048xf32>
    %51 = arith.truncf %50 : vector<4x2048xf32> to vector<4x2048xbf16>
    %c20_30 = arith.constant 20 : index
    %c0_31 = arith.constant 0 : index
    %52 = vector.load %arg8[%c20_30, %c0_31] : memref<108x2048xbf16, #tpu.memory_space<vmem>>, vector<4x2048xbf16>
    tpu.vector_store %arg8[%c20_30, %c0_31], %51 {strides = array<i32>} : memref<108x2048xbf16, #tpu.memory_space<vmem>>, vector<4x2048xbf16>,
    %53 = vector.extract_strided_slice %51 {offsets = [0, 256], sizes = [4, 1792], strides = [1, 1]} : vector<4x2048xbf16> to vector<4x1792xbf16>
    %c56 = arith.constant 56 : index
    %c0_32 = arith.constant 0 : index
    %54 = vector.load %arg8[%c56, %c0_32] : memref<108x2048xbf16, #tpu.memory_space<vmem>>, vector<4x1792xbf16>
    tpu.vector_store %arg8[%c56, %c0_32], %53 {strides = array<i32>} : memref<108x2048xbf16, #tpu.memory_space<vmem>>, vector<4x1792xbf16>,
    %55 = vector.extract_strided_slice %51 {offsets = [0, 512], sizes = [4, 1536], strides = [1, 1]} : vector<4x2048xbf16> to vector<4x1536xbf16>
    %c92 = arith.constant 92 : index
    %c0_33 = arith.constant 0 : index
    %56 = vector.load %arg8[%c92, %c0_33] : memref<108x2048xbf16, #tpu.memory_space<vmem>>, vector<4x1536xbf16>
    tpu.vector_store %arg8[%c92, %c0_33], %55 {strides = array<i32>} : memref<108x2048xbf16, #tpu.memory_space<vmem>>, vector<4x1536xbf16>,
    %c2033_i32 = arith.constant 2033 : i32
    %57 = tpu.dynamic_rotate %5 by %c2033_i32 dim 1 : vector<4x2048xf32>, i32 -> vector<4x2048xf32>
    %c24 = arith.constant 24 : index
    %c0_34 = arith.constant 0 : index
    %58 = vector.load %arg2[%c24, %c0_34] : memref<36x2048xf32, #tpu.memory_space<vmem>>, vector<4x2048xf32>
    %59 = arith.mulf %57, %58 : vector<4x2048xf32>
    %60 = arith.truncf %59 : vector<4x2048xf32> to vector<4x2048xbf16>
    %c24_35 = arith.constant 24 : index
    %c0_36 = arith.constant 0 : index
    %61 = vector.load %arg8[%c24_35, %c0_36] : memref<108x2048xbf16, #tpu.memory_space<vmem>>, vector<4x2048xbf16>
    tpu.vector_store %arg8[%c24_35, %c0_36], %60 {strides = array<i32>} : memref<108x2048xbf16, #tpu.memory_space<vmem>>, vector<4x2048xbf16>,
    %62 = vector.extract_strided_slice %60 {offsets = [0, 256], sizes = [4, 1792], strides = [1, 1]} : vector<4x2048xbf16> to vector<4x1792xbf16>
    %c60 = arith.constant 60 : index
    %c0_37 = arith.constant 0 : index
    %63 = vector.load %arg8[%c60, %c0_37] : memref<108x2048xbf16, #tpu.memory_space<vmem>>, vector<4x1792xbf16>
    tpu.vector_store %arg8[%c60, %c0_37], %62 {strides = array<i32>} : memref<108x2048xbf16, #tpu.memory_space<vmem>>, vector<4x1792xbf16>,
    %64 = vector.extract_strided_slice %60 {offsets = [0, 512], sizes = [4, 1536], strides = [1, 1]} : vector<4x2048xbf16> to vector<4x1536xbf16>
    %c96 = arith.constant 96 : index
    %c0_38 = arith.constant 0 : index
    %65 = vector.load %arg8[%c96, %c0_38] : memref<108x2048xbf16, #tpu.memory_space<vmem>>, vector<4x1536xbf16>
    tpu.vector_store %arg8[%c96, %c0_38], %64 {strides = array<i32>} : memref<108x2048xbf16, #tpu.memory_space<vmem>>, vector<4x1536xbf16>,
    %c2032_i32 = arith.constant 2032 : i32
    %66 = tpu.dynamic_rotate %5 by %c2032_i32 dim 1 : vector<4x2048xf32>, i32 -> vector<4x2048xf32>
    %c28 = arith.constant 28 : index
    %c0_39 = arith.constant 0 : index
    %67 = vector.load %arg2[%c28, %c0_39] : memref<36x2048xf32, #tpu.memory_space<vmem>>, vector<4x2048xf32>
    %68 = arith.mulf %66, %67 : vector<4x2048xf32>
    %69 = arith.truncf %68 : vector<4x2048xf32> to vector<4x2048xbf16>
    %c28_40 = arith.constant 28 : index
    %c0_41 = arith.constant 0 : index
    %70 = vector.load %arg8[%c28_40, %c0_41] : memref<108x2048xbf16, #tpu.memory_space<vmem>>, vector<4x2048xbf16>
    tpu.vector_store %arg8[%c28_40, %c0_41], %69 {strides = array<i32>} : memref<108x2048xbf16, #tpu.memory_space<vmem>>, vector<4x2048xbf16>,
    %71 = vector.extract_strided_slice %69 {offsets = [0, 256], sizes = [4, 1792], strides = [1, 1]} : vector<4x2048xbf16> to vector<4x1792xbf16>
    %c64 = arith.constant 64 : index
    %c0_42 = arith.constant 0 : index
    %72 = vector.load %arg8[%c64, %c0_42] : memref<108x2048xbf16, #tpu.memory_space<vmem>>, vector<4x1792xbf16>
    tpu.vector_store %arg8[%c64, %c0_42], %71 {strides = array<i32>} : memref<108x2048xbf16, #tpu.memory_space<vmem>>, vector<4x1792xbf16>,
    %73 = vector.extract_strided_slice %69 {offsets = [0, 512], sizes = [4, 1536], strides = [1, 1]} : vector<4x2048xbf16> to vector<4x1536xbf16>
    %c100 = arith.constant 100 : index
    %c0_43 = arith.constant 0 : index
    %74 = vector.load %arg8[%c100, %c0_43] : memref<108x2048xbf16, #tpu.memory_space<vmem>>, vector<4x1536xbf16>
    tpu.vector_store %arg8[%c100, %c0_43], %73 {strides = array<i32>} : memref<108x2048xbf16, #tpu.memory_space<vmem>>, vector<4x1536xbf16>,
    %c2031_i32 = arith.constant 2031 : i32
    %75 = tpu.dynamic_rotate %5 by %c2031_i32 dim 1 : vector<4x2048xf32>, i32 -> vector<4x2048xf32>
    %c32 = arith.constant 32 : index
    %c0_44 = arith.constant 0 : index
    %76 = vector.load %arg2[%c32, %c0_44] : memref<36x2048xf32, #tpu.memory_space<vmem>>, vector<4x2048xf32>
    %77 = arith.mulf %75, %76 : vector<4x2048xf32>
    %78 = arith.truncf %77 : vector<4x2048xf32> to vector<4x2048xbf16>
    %c32_45 = arith.constant 32 : index
    %c0_46 = arith.constant 0 : index
    %79 = vector.load %arg8[%c32_45, %c0_46] : memref<108x2048xbf16, #tpu.memory_space<vmem>>, vector<4x2048xbf16>
    tpu.vector_store %arg8[%c32_45, %c0_46], %78 {strides = array<i32>} : memref<108x2048xbf16, #tpu.memory_space<vmem>>, vector<4x2048xbf16>,
    %80 = vector.extract_strided_slice %78 {offsets = [0, 256], sizes = [4, 1792], strides = [1, 1]} : vector<4x2048xbf16> to vector<4x1792xbf16>
    %c68 = arith.constant 68 : index
    %c0_47 = arith.constant 0 : index
    %81 = vector.load %arg8[%c68, %c0_47] : memref<108x2048xbf16, #tpu.memory_space<vmem>>, vector<4x1792xbf16>
    tpu.vector_store %arg8[%c68, %c0_47], %80 {strides = array<i32>} : memref<108x2048xbf16, #tpu.memory_space<vmem>>, vector<4x1792xbf16>,
    %82 = vector.extract_strided_slice %78 {offsets = [0, 512], sizes = [4, 1536], strides = [1, 1]} : vector<4x2048xbf16> to vector<4x1536xbf16>
    %c104 = arith.constant 104 : index
    %c0_48 = arith.constant 0 : index
    %83 = vector.load %arg8[%c104, %c0_48] : memref<108x2048xbf16, #tpu.memory_space<vmem>>, vector<4x1536xbf16>
    tpu.vector_store %arg8[%c104, %c0_48], %82 {strides = array<i32>} : memref<108x2048xbf16, #tpu.memory_space<vmem>>, vector<4x1536xbf16>,
    %c0_49 = arith.constant 0 : index
    %c0_50 = arith.constant 0 : index
    %84 = vector.load %arg3[%c0_49, %c0_50] : memref<4x108xbf16, #tpu.memory_space<vmem>>, vector<4x108xbf16>
    %c0_51 = arith.constant 0 : index
    %c0_52 = arith.constant 0 : index
    %85 = vector.load %arg8[%c0_51, %c0_52] : memref<108x2048xbf16, #tpu.memory_space<vmem>>, vector<108x2048xbf16>
    %cst_53 = arith.constant dense<0.000000e+00> : vector<4x2048xf32>
    %86 = tpu.matmul %84, %85, %cst_53 {dimension_numbers = #tpu.dot_dimension_numbers<[1], [0], [0], [1], [0, 0, 1, 1], [], []>} : vector<4x108xbf16>, vector<108x2048xbf16>, vector<4x2048xf32> -> vector<4x2048xf32>
    %c0_54 = arith.constant 0 : index
    %c0_55 = arith.constant 0 : index
    %87 = vector.load %arg4[%c0_54, %c0_55] : memref<4x1xf32, #tpu.memory_space<vmem>>, vector<4x1xf32>
    %88 = vector.broadcast %87 : vector<4x1xf32> to vector<4x2048xf32>
    %89 = arith.addf %86, %88 : vector<4x2048xf32>
    %cst_56 = arith.constant 0.000000e+00 : f32
    %90 = vector.broadcast %cst_56 : f32 to vector<4x2048xf32>
    %91 = arith.maximumf %89, %90 : vector<4x2048xf32>
    %c0_57 = arith.constant 0 : index
    %c0_58 = arith.constant 0 : index
    %c0_59 = arith.constant 0 : index
    %92 = vector.load %arg7[%c0_57, %c0_58, %c0_59] : memref<1x4x2048xf32, #tpu.memory_space<vmem>>, vector<1x4x2048xf32>
    %93 = vector.shape_cast %92 : vector<1x4x2048xf32> to vector<4x2048xf32>
    %94 = vector.shape_cast %91 : vector<4x2048xf32> to vector<1x4x2048xf32>
    tpu.vector_store %arg7[%c0_57, %c0_58, %c0_59], %94 {strides = array<i32>} : memref<1x4x2048xf32, #tpu.memory_space<vmem>>, vector<1x4x2048xf32>,
    %c0_60 = arith.constant 0 : index
    %c0_61 = arith.constant 0 : index
    %c0_62 = arith.constant 0 : index
    %c0_63 = arith.constant 0 : index
    %95 = vector.load %arg5[%c0_60, %c0_61, %c0_62, %c0_63] : memref<2x2x4x36xbf16, #tpu.memory_space<vmem>>, vector<1x1x4x36xbf16>
    %96 = vector.shape_cast %95 : vector<1x1x4x36xbf16> to vector<4x36xbf16>
    %c0_64 = arith.constant 0 : index
    %c0_65 = arith.constant 0 : index
    %97 = vector.load %arg8[%c0_64, %c0_65] : memref<108x2048xbf16, #tpu.memory_space<vmem>>, vector<36x2048xbf16>
    %cst_66 = arith.constant dense<0.000000e+00> : vector<4x2048xf32>
    %98 = tpu.matmul %96, %97, %cst_66 {dimension_numbers = #tpu.dot_dimension_numbers<[1], [0], [0], [1], [0, 0, 1, 1], [], []>} : vector<4x36xbf16>, vector<36x2048xbf16>, vector<4x2048xf32> -> vector<4x2048xf32>
    %c0_67 = arith.constant 0 : index
    %c0_68 = arith.constant 0 : index
    %c0_69 = arith.constant 0 : index
    %c0_70 = arith.constant 0 : index
    %99 = vector.load %arg6[%c0_67, %c0_68, %c0_69, %c0_70] : memref<2x2x4x1xf32, #tpu.memory_space<vmem>>, vector<1x1x4x1xf32>
    %100 = vector.shape_cast %99 : vector<1x1x4x1xf32> to vector<4x1xf32>
    %101 = vector.broadcast %100 : vector<4x1xf32> to vector<4x2048xf32>
    %102 = arith.addf %98, %101 : vector<4x2048xf32>
    %cst_71 = arith.constant 0.000000e+00 : f32
    %103 = vector.broadcast %cst_71 : f32 to vector<4x2048xf32>
    %104 = arith.maximumf %102, %103 : vector<4x2048xf32>
    %c17_i32_72 = arith.constant 17 : i32
    %105 = tpu.dynamic_rotate %104 by %c17_i32_72 dim 1 : vector<4x2048xf32>, i32 -> vector<4x2048xf32>
    %c0_73 = arith.constant 0 : index
    %c0_74 = arith.constant 0 : index
    %106 = vector.load %arg2[%c0_73, %c0_74] : memref<36x2048xf32, #tpu.memory_space<vmem>>, vector<4x2048xf32>
    %107 = arith.mulf %105, %106 : vector<4x2048xf32>
    %108 = arith.truncf %107 : vector<4x2048xf32> to vector<4x2048xbf16>
    %c0_75 = arith.constant 0 : index
    %c0_76 = arith.constant 0 : index
    %109 = vector.load %arg8[%c0_75, %c0_76] : memref<108x2048xbf16, #tpu.memory_space<vmem>>, vector<4x2048xbf16>
    tpu.vector_store %arg8[%c0_75, %c0_76], %108 {strides = array<i32>} : memref<108x2048xbf16, #tpu.memory_space<vmem>>, vector<4x2048xbf16>,
    %c16_i32_77 = arith.constant 16 : i32
    %110 = tpu.dynamic_rotate %104 by %c16_i32_77 dim 1 : vector<4x2048xf32>, i32 -> vector<4x2048xf32>
    %c4_78 = arith.constant 4 : index
    %c0_79 = arith.constant 0 : index
    %111 = vector.load %arg2[%c4_78, %c0_79] : memref<36x2048xf32, #tpu.memory_space<vmem>>, vector<4x2048xf32>
    %112 = arith.mulf %110, %111 : vector<4x2048xf32>
    %113 = arith.truncf %112 : vector<4x2048xf32> to vector<4x2048xbf16>
    %c4_80 = arith.constant 4 : index
    %c0_81 = arith.constant 0 : index
    %114 = vector.load %arg8[%c4_80, %c0_81] : memref<108x2048xbf16, #tpu.memory_space<vmem>>, vector<4x2048xbf16>
    tpu.vector_store %arg8[%c4_80, %c0_81], %113 {strides = array<i32>} : memref<108x2048xbf16, #tpu.memory_space<vmem>>, vector<4x2048xbf16>,
    %c15_i32_82 = arith.constant 15 : i32
    %115 = tpu.dynamic_rotate %104 by %c15_i32_82 dim 1 : vector<4x2048xf32>, i32 -> vector<4x2048xf32>
    %c8_83 = arith.constant 8 : index
    %c0_84 = arith.constant 0 : index
    %116 = vector.load %arg2[%c8_83, %c0_84] : memref<36x2048xf32, #tpu.memory_space<vmem>>, vector<4x2048xf32>
    %117 = arith.mulf %115, %116 : vector<4x2048xf32>
    %118 = arith.truncf %117 : vector<4x2048xf32> to vector<4x2048xbf16>
    %c8_85 = arith.constant 8 : index
    %c0_86 = arith.constant 0 : index
    %119 = vector.load %arg8[%c8_85, %c0_86] : memref<108x2048xbf16, #tpu.memory_space<vmem>>, vector<4x2048xbf16>
    tpu.vector_store %arg8[%c8_85, %c0_86], %118 {strides = array<i32>} : memref<108x2048xbf16, #tpu.memory_space<vmem>>, vector<4x2048xbf16>,
    %c1_i32_87 = arith.constant 1 : i32
    %120 = tpu.dynamic_rotate %104 by %c1_i32_87 dim 1 : vector<4x2048xf32>, i32 -> vector<4x2048xf32>
    %c12_88 = arith.constant 12 : index
    %c0_89 = arith.constant 0 : index
    %121 = vector.load %arg2[%c12_88, %c0_89] : memref<36x2048xf32, #tpu.memory_space<vmem>>, vector<4x2048xf32>
    %122 = arith.mulf %120, %121 : vector<4x2048xf32>
    %123 = arith.truncf %122 : vector<4x2048xf32> to vector<4x2048xbf16>
    %c12_90 = arith.constant 12 : index
    %c0_91 = arith.constant 0 : index
    %124 = vector.load %arg8[%c12_90, %c0_91] : memref<108x2048xbf16, #tpu.memory_space<vmem>>, vector<4x2048xbf16>
    tpu.vector_store %arg8[%c12_90, %c0_91], %123 {strides = array<i32>} : memref<108x2048xbf16, #tpu.memory_space<vmem>>, vector<4x2048xbf16>,
    %125 = arith.truncf %104 : vector<4x2048xf32> to vector<4x2048xbf16>
    %c16_92 = arith.constant 16 : index
    %c0_93 = arith.constant 0 : index
    %126 = vector.load %arg8[%c16_92, %c0_93] : memref<108x2048xbf16, #tpu.memory_space<vmem>>, vector<4x2048xbf16>
    tpu.vector_store %arg8[%c16_92, %c0_93], %125 {strides = array<i32>} : memref<108x2048xbf16, #tpu.memory_space<vmem>>, vector<4x2048xbf16>,
    %c2047_i32_94 = arith.constant 2047 : i32
    %127 = tpu.dynamic_rotate %104 by %c2047_i32_94 dim 1 : vector<4x2048xf32>, i32 -> vector<4x2048xf32>
    %c20_95 = arith.constant 20 : index
    %c0_96 = arith.constant 0 : index
    %128 = vector.load %arg2[%c20_95, %c0_96] : memref<36x2048xf32, #tpu.memory_space<vmem>>, vector<4x2048xf32>
    %129 = arith.mulf %127, %128 : vector<4x2048xf32>
    %130 = arith.truncf %129 : vector<4x2048xf32> to vector<4x2048xbf16>
    %c20_97 = arith.constant 20 : index
    %c0_98 = arith.constant 0 : index
    %131 = vector.load %arg8[%c20_97, %c0_98] : memref<108x2048xbf16, #tpu.memory_space<vmem>>, vector<4x2048xbf16>
    tpu.vector_store %arg8[%c20_97, %c0_98], %130 {strides = array<i32>} : memref<108x2048xbf16, #tpu.memory_space<vmem>>, vector<4x2048xbf16>,
    %c2033_i32_99 = arith.constant 2033 : i32
    %132 = tpu.dynamic_rotate %104 by %c2033_i32_99 dim 1 : vector<4x2048xf32>, i32 -> vector<4x2048xf32>
    %c24_100 = arith.constant 24 : index
    %c0_101 = arith.constant 0 : index
    %133 = vector.load %arg2[%c24_100, %c0_101] : memref<36x2048xf32, #tpu.memory_space<vmem>>, vector<4x2048xf32>
    %134 = arith.mulf %132, %133 : vector<4x2048xf32>
    %135 = arith.truncf %134 : vector<4x2048xf32> to vector<4x2048xbf16>
    %c24_102 = arith.constant 24 : index
    %c0_103 = arith.constant 0 : index
    %136 = vector.load %arg8[%c24_102, %c0_103] : memref<108x2048xbf16, #tpu.memory_space<vmem>>, vector<4x2048xbf16>
    tpu.vector_store %arg8[%c24_102, %c0_103], %135 {strides = array<i32>} : memref<108x2048xbf16, #tpu.memory_space<vmem>>, vector<4x2048xbf16>,
    %c2032_i32_104 = arith.constant 2032 : i32
    %137 = tpu.dynamic_rotate %104 by %c2032_i32_104 dim 1 : vector<4x2048xf32>, i32 -> vector<4x2048xf32>
    %c28_105 = arith.constant 28 : index
    %c0_106 = arith.constant 0 : index
    %138 = vector.load %arg2[%c28_105, %c0_106] : memref<36x2048xf32, #tpu.memory_space<vmem>>, vector<4x2048xf32>
    %139 = arith.mulf %137, %138 : vector<4x2048xf32>
    %140 = arith.truncf %139 : vector<4x2048xf32> to vector<4x2048xbf16>
    %c28_107 = arith.constant 28 : index
    %c0_108 = arith.constant 0 : index
    %141 = vector.load %arg8[%c28_107, %c0_108] : memref<108x2048xbf16, #tpu.memory_space<vmem>>, vector<4x2048xbf16>
    tpu.vector_store %arg8[%c28_107, %c0_108], %140 {strides = array<i32>} : memref<108x2048xbf16, #tpu.memory_space<vmem>>, vector<4x2048xbf16>,
    %c2031_i32_109 = arith.constant 2031 : i32
    %142 = tpu.dynamic_rotate %104 by %c2031_i32_109 dim 1 : vector<4x2048xf32>, i32 -> vector<4x2048xf32>
    %c32_110 = arith.constant 32 : index
    %c0_111 = arith.constant 0 : index
    %143 = vector.load %arg2[%c32_110, %c0_111] : memref<36x2048xf32, #tpu.memory_space<vmem>>, vector<4x2048xf32>
    %144 = arith.mulf %142, %143 : vector<4x2048xf32>
    %145 = arith.truncf %144 : vector<4x2048xf32> to vector<4x2048xbf16>
    %c32_112 = arith.constant 32 : index
    %c0_113 = arith.constant 0 : index
    %146 = vector.load %arg8[%c32_112, %c0_113] : memref<108x2048xbf16, #tpu.memory_space<vmem>>, vector<4x2048xbf16>
    tpu.vector_store %arg8[%c32_112, %c0_113], %145 {strides = array<i32>} : memref<108x2048xbf16, #tpu.memory_space<vmem>>, vector<4x2048xbf16>,
    %c0_114 = arith.constant 0 : index
    %c0_115 = arith.constant 0 : index
    %c0_116 = arith.constant 0 : index
    %147 = vector.load %arg7[%c0_114, %c0_115, %c0_116] : memref<1x4x2048xf32, #tpu.memory_space<vmem>>, vector<1x4x2048xf32>
    %148 = vector.shape_cast %147 : vector<1x4x2048xf32> to vector<4x2048xf32>
    %c0_117 = arith.constant 0 : index
    %c1 = arith.constant 1 : index
    %c0_118 = arith.constant 0 : index
    %c0_119 = arith.constant 0 : index
    %149 = vector.load %arg5[%c0_117, %c1, %c0_118, %c0_119] : memref<2x2x4x36xbf16, #tpu.memory_space<vmem>>, vector<1x1x4x36xbf16>
    %150 = vector.shape_cast %149 : vector<1x1x4x36xbf16> to vector<4x36xbf16>
    %c0_120 = arith.constant 0 : index
    %c0_121 = arith.constant 0 : index
    %151 = vector.load %arg8[%c0_120, %c0_121] : memref<108x2048xbf16, #tpu.memory_space<vmem>>, vector<36x2048xbf16>
    %cst_122 = arith.constant dense<0.000000e+00> : vector<4x2048xf32>
    %152 = tpu.matmul %150, %151, %cst_122 {dimension_numbers = #tpu.dot_dimension_numbers<[1], [0], [0], [1], [0, 0, 1, 1], [], []>} : vector<4x36xbf16>, vector<36x2048xbf16>, vector<4x2048xf32> -> vector<4x2048xf32>
    %c0_123 = arith.constant 0 : index
    %c1_124 = arith.constant 1 : index
    %c0_125 = arith.constant 0 : index
    %c0_126 = arith.constant 0 : index
    %153 = vector.load %arg6[%c0_123, %c1_124, %c0_125, %c0_126] : memref<2x2x4x1xf32, #tpu.memory_space<vmem>>, vector<1x1x4x1xf32>
    %154 = vector.shape_cast %153 : vector<1x1x4x1xf32> to vector<4x1xf32>
    %155 = vector.broadcast %154 : vector<4x1xf32> to vector<4x2048xf32>
    %156 = arith.addf %152, %155 : vector<4x2048xf32>
    %c0_127 = arith.constant 0 : index
    %c0_128 = arith.constant 0 : index
    %c0_129 = arith.constant 0 : index
    %157 = vector.load %arg1[%c0_127, %c0_128, %c0_129] : memref<1x4x2048xf32, #tpu.memory_space<vmem>>, vector<1x4x2048xf32>
    %158 = vector.shape_cast %157 : vector<1x4x2048xf32> to vector<4x2048xf32>
    %159 = arith.addf %156, %158 : vector<4x2048xf32>
    %cst_130 = arith.constant 0.000000e+00 : f32
    %160 = vector.broadcast %cst_130 : f32 to vector<4x2048xf32>
    %161 = arith.maximumf %159, %160 : vector<4x2048xf32>
    %162 = arith.addf %148, %161 : vector<4x2048xf32>
    %c0_131 = arith.constant 0 : index
    %c0_132 = arith.constant 0 : index
    %c0_133 = arith.constant 0 : index
    %163 = vector.load %arg7[%c0_131, %c0_132, %c0_133] : memref<1x4x2048xf32, #tpu.memory_space<vmem>>, vector<1x4x2048xf32>
    %164 = vector.shape_cast %163 : vector<1x4x2048xf32> to vector<4x2048xf32>
    %165 = vector.shape_cast %162 : vector<4x2048xf32> to vector<1x4x2048xf32>
    tpu.vector_store %arg7[%c0_131, %c0_132, %c0_133], %165 {strides = array<i32>} : memref<1x4x2048xf32, #tpu.memory_space<vmem>>, vector<1x4x2048xf32>,
    %c0_134 = arith.constant 0 : index
    %c0_135 = arith.constant 0 : index
    %c0_136 = arith.constant 0 : index
    %166 = vector.load %arg7[%c0_134, %c0_135, %c0_136] : memref<1x4x2048xf32, #tpu.memory_space<vmem>>, vector<1x4x2048xf32>
    %167 = vector.shape_cast %166 : vector<1x4x2048xf32> to vector<4x2048xf32>
    %c17_i32_137 = arith.constant 17 : i32
    %168 = tpu.dynamic_rotate %167 by %c17_i32_137 dim 1 : vector<4x2048xf32>, i32 -> vector<4x2048xf32>
    %c0_138 = arith.constant 0 : index
    %c0_139 = arith.constant 0 : index
    %169 = vector.load %arg2[%c0_138, %c0_139] : memref<36x2048xf32, #tpu.memory_space<vmem>>, vector<4x2048xf32>
    %170 = arith.mulf %168, %169 : vector<4x2048xf32>
    %171 = arith.truncf %170 : vector<4x2048xf32> to vector<4x2048xbf16>
    %c0_140 = arith.constant 0 : index
    %c0_141 = arith.constant 0 : index
    %172 = vector.load %arg8[%c0_140, %c0_141] : memref<108x2048xbf16, #tpu.memory_space<vmem>>, vector<4x2048xbf16>
    tpu.vector_store %arg8[%c0_140, %c0_141], %171 {strides = array<i32>} : memref<108x2048xbf16, #tpu.memory_space<vmem>>, vector<4x2048xbf16>,
    %c16_i32_142 = arith.constant 16 : i32
    %173 = tpu.dynamic_rotate %167 by %c16_i32_142 dim 1 : vector<4x2048xf32>, i32 -> vector<4x2048xf32>
    %c4_143 = arith.constant 4 : index
    %c0_144 = arith.constant 0 : index
    %174 = vector.load %arg2[%c4_143, %c0_144] : memref<36x2048xf32, #tpu.memory_space<vmem>>, vector<4x2048xf32>
    %175 = arith.mulf %173, %174 : vector<4x2048xf32>
    %176 = arith.truncf %175 : vector<4x2048xf32> to vector<4x2048xbf16>
    %c4_145 = arith.constant 4 : index
    %c0_146 = arith.constant 0 : index
    %177 = vector.load %arg8[%c4_145, %c0_146] : memref<108x2048xbf16, #tpu.memory_space<vmem>>, vector<4x2048xbf16>
    tpu.vector_store %arg8[%c4_145, %c0_146], %176 {strides = array<i32>} : memref<108x2048xbf16, #tpu.memory_space<vmem>>, vector<4x2048xbf16>,
    %c15_i32_147 = arith.constant 15 : i32
    %178 = tpu.dynamic_rotate %167 by %c15_i32_147 dim 1 : vector<4x2048xf32>, i32 -> vector<4x2048xf32>
    %c8_148 = arith.constant 8 : index
    %c0_149 = arith.constant 0 : index
    %179 = vector.load %arg2[%c8_148, %c0_149] : memref<36x2048xf32, #tpu.memory_space<vmem>>, vector<4x2048xf32>
    %180 = arith.mulf %178, %179 : vector<4x2048xf32>
    %181 = arith.truncf %180 : vector<4x2048xf32> to vector<4x2048xbf16>
    %c8_150 = arith.constant 8 : index
    %c0_151 = arith.constant 0 : index
    %182 = vector.load %arg8[%c8_150, %c0_151] : memref<108x2048xbf16, #tpu.memory_space<vmem>>, vector<4x2048xbf16>
    tpu.vector_store %arg8[%c8_150, %c0_151], %181 {strides = array<i32>} : memref<108x2048xbf16, #tpu.memory_space<vmem>>, vector<4x2048xbf16>,
    %c1_i32_152 = arith.constant 1 : i32
    %183 = tpu.dynamic_rotate %167 by %c1_i32_152 dim 1 : vector<4x2048xf32>, i32 -> vector<4x2048xf32>
    %c12_153 = arith.constant 12 : index
    %c0_154 = arith.constant 0 : index
    %184 = vector.load %arg2[%c12_153, %c0_154] : memref<36x2048xf32, #tpu.memory_space<vmem>>, vector<4x2048xf32>
    %185 = arith.mulf %183, %184 : vector<4x2048xf32>
    %186 = arith.truncf %185 : vector<4x2048xf32> to vector<4x2048xbf16>
    %c12_155 = arith.constant 12 : index
    %c0_156 = arith.constant 0 : index
    %187 = vector.load %arg8[%c12_155, %c0_156] : memref<108x2048xbf16, #tpu.memory_space<vmem>>, vector<4x2048xbf16>
    tpu.vector_store %arg8[%c12_155, %c0_156], %186 {strides = array<i32>} : memref<108x2048xbf16, #tpu.memory_space<vmem>>, vector<4x2048xbf16>,
    %188 = arith.truncf %167 : vector<4x2048xf32> to vector<4x2048xbf16>
    %c16_157 = arith.constant 16 : index
    %c0_158 = arith.constant 0 : index
    %189 = vector.load %arg8[%c16_157, %c0_158] : memref<108x2048xbf16, #tpu.memory_space<vmem>>, vector<4x2048xbf16>
    tpu.vector_store %arg8[%c16_157, %c0_158], %188 {strides = array<i32>} : memref<108x2048xbf16, #tpu.memory_space<vmem>>, vector<4x2048xbf16>,
    %c2047_i32_159 = arith.constant 2047 : i32
    %190 = tpu.dynamic_rotate %167 by %c2047_i32_159 dim 1 : vector<4x2048xf32>, i32 -> vector<4x2048xf32>
    %c20_160 = arith.constant 20 : index
    %c0_161 = arith.constant 0 : index
    %191 = vector.load %arg2[%c20_160, %c0_161] : memref<36x2048xf32, #tpu.memory_space<vmem>>, vector<4x2048xf32>
    %192 = arith.mulf %190, %191 : vector<4x2048xf32>
    %193 = arith.truncf %192 : vector<4x2048xf32> to vector<4x2048xbf16>
    %c20_162 = arith.constant 20 : index
    %c0_163 = arith.constant 0 : index
    %194 = vector.load %arg8[%c20_162, %c0_163] : memref<108x2048xbf16, #tpu.memory_space<vmem>>, vector<4x2048xbf16>
    tpu.vector_store %arg8[%c20_162, %c0_163], %193 {strides = array<i32>} : memref<108x2048xbf16, #tpu.memory_space<vmem>>, vector<4x2048xbf16>,
    %c2033_i32_164 = arith.constant 2033 : i32
    %195 = tpu.dynamic_rotate %167 by %c2033_i32_164 dim 1 : vector<4x2048xf32>, i32 -> vector<4x2048xf32>
    %c24_165 = arith.constant 24 : index
    %c0_166 = arith.constant 0 : index
    %196 = vector.load %arg2[%c24_165, %c0_166] : memref<36x2048xf32, #tpu.memory_space<vmem>>, vector<4x2048xf32>
    %197 = arith.mulf %195, %196 : vector<4x2048xf32>
    %198 = arith.truncf %197 : vector<4x2048xf32> to vector<4x2048xbf16>
    %c24_167 = arith.constant 24 : index
    %c0_168 = arith.constant 0 : index
    %199 = vector.load %arg8[%c24_167, %c0_168] : memref<108x2048xbf16, #tpu.memory_space<vmem>>, vector<4x2048xbf16>
    tpu.vector_store %arg8[%c24_167, %c0_168], %198 {strides = array<i32>} : memref<108x2048xbf16, #tpu.memory_space<vmem>>, vector<4x2048xbf16>,
    %c2032_i32_169 = arith.constant 2032 : i32
    %200 = tpu.dynamic_rotate %167 by %c2032_i32_169 dim 1 : vector<4x2048xf32>, i32 -> vector<4x2048xf32>
    %c28_170 = arith.constant 28 : index
    %c0_171 = arith.constant 0 : index
    %201 = vector.load %arg2[%c28_170, %c0_171] : memref<36x2048xf32, #tpu.memory_space<vmem>>, vector<4x2048xf32>
    %202 = arith.mulf %200, %201 : vector<4x2048xf32>
    %203 = arith.truncf %202 : vector<4x2048xf32> to vector<4x2048xbf16>
    %c28_172 = arith.constant 28 : index
    %c0_173 = arith.constant 0 : index
    %204 = vector.load %arg8[%c28_172, %c0_173] : memref<108x2048xbf16, #tpu.memory_space<vmem>>, vector<4x2048xbf16>
    tpu.vector_store %arg8[%c28_172, %c0_173], %203 {strides = array<i32>} : memref<108x2048xbf16, #tpu.memory_space<vmem>>, vector<4x2048xbf16>,
    %c2031_i32_174 = arith.constant 2031 : i32
    %205 = tpu.dynamic_rotate %167 by %c2031_i32_174 dim 1 : vector<4x2048xf32>, i32 -> vector<4x2048xf32>
    %c32_175 = arith.constant 32 : index
    %c0_176 = arith.constant 0 : index
    %206 = vector.load %arg2[%c32_175, %c0_176] : memref<36x2048xf32, #tpu.memory_space<vmem>>, vector<4x2048xf32>
    %207 = arith.mulf %205, %206 : vector<4x2048xf32>
    %208 = arith.truncf %207 : vector<4x2048xf32> to vector<4x2048xbf16>
    %c32_177 = arith.constant 32 : index
    %c0_178 = arith.constant 0 : index
    %209 = vector.load %arg8[%c32_177, %c0_178] : memref<108x2048xbf16, #tpu.memory_space<vmem>>, vector<4x2048xbf16>
    tpu.vector_store %arg8[%c32_177, %c0_178], %208 {strides = array<i32>} : memref<108x2048xbf16, #tpu.memory_space<vmem>>, vector<4x2048xbf16>,
    %c1_179 = arith.constant 1 : index
    %c0_180 = arith.constant 0 : index
    %c0_181 = arith.constant 0 : index
    %c0_182 = arith.constant 0 : index
    %210 = vector.load %arg5[%c1_179, %c0_180, %c0_181, %c0_182] : memref<2x2x4x36xbf16, #tpu.memory_space<vmem>>, vector<1x1x4x36xbf16>
    %211 = vector.shape_cast %210 : vector<1x1x4x36xbf16> to vector<4x36xbf16>
    %c0_183 = arith.constant 0 : index
    %c0_184 = arith.constant 0 : index
    %212 = vector.load %arg8[%c0_183, %c0_184] : memref<108x2048xbf16, #tpu.memory_space<vmem>>, vector<36x2048xbf16>
    %cst_185 = arith.constant dense<0.000000e+00> : vector<4x2048xf32>
    %213 = tpu.matmul %211, %212, %cst_185 {dimension_numbers = #tpu.dot_dimension_numbers<[1], [0], [0], [1], [0, 0, 1, 1], [], []>} : vector<4x36xbf16>, vector<36x2048xbf16>, vector<4x2048xf32> -> vector<4x2048xf32>
    %c1_186 = arith.constant 1 : index
    %c0_187 = arith.constant 0 : index
    %c0_188 = arith.constant 0 : index
    %c0_189 = arith.constant 0 : index
    %214 = vector.load %arg6[%c1_186, %c0_187, %c0_188, %c0_189] : memref<2x2x4x1xf32, #tpu.memory_space<vmem>>, vector<1x1x4x1xf32>
    %215 = vector.shape_cast %214 : vector<1x1x4x1xf32> to vector<4x1xf32>
    %216 = vector.broadcast %215 : vector<4x1xf32> to vector<4x2048xf32>
    %217 = arith.addf %213, %216 : vector<4x2048xf32>
    %cst_190 = arith.constant 0.000000e+00 : f32
    %218 = vector.broadcast %cst_190 : f32 to vector<4x2048xf32>
    %219 = arith.maximumf %217, %218 : vector<4x2048xf32>
    %c17_i32_191 = arith.constant 17 : i32
    %220 = tpu.dynamic_rotate %219 by %c17_i32_191 dim 1 : vector<4x2048xf32>, i32 -> vector<4x2048xf32>
    %c0_192 = arith.constant 0 : index
    %c0_193 = arith.constant 0 : index
    %221 = vector.load %arg2[%c0_192, %c0_193] : memref<36x2048xf32, #tpu.memory_space<vmem>>, vector<4x2048xf32>
    %222 = arith.mulf %220, %221 : vector<4x2048xf32>
    %223 = arith.truncf %222 : vector<4x2048xf32> to vector<4x2048xbf16>
    %c0_194 = arith.constant 0 : index
    %c0_195 = arith.constant 0 : index
    %224 = vector.load %arg8[%c0_194, %c0_195] : memref<108x2048xbf16, #tpu.memory_space<vmem>>, vector<4x2048xbf16>
    tpu.vector_store %arg8[%c0_194, %c0_195], %223 {strides = array<i32>} : memref<108x2048xbf16, #tpu.memory_space<vmem>>, vector<4x2048xbf16>,
    %c16_i32_196 = arith.constant 16 : i32
    %225 = tpu.dynamic_rotate %219 by %c16_i32_196 dim 1 : vector<4x2048xf32>, i32 -> vector<4x2048xf32>
    %c4_197 = arith.constant 4 : index
    %c0_198 = arith.constant 0 : index
    %226 = vector.load %arg2[%c4_197, %c0_198] : memref<36x2048xf32, #tpu.memory_space<vmem>>, vector<4x2048xf32>
    %227 = arith.mulf %225, %226 : vector<4x2048xf32>
    %228 = arith.truncf %227 : vector<4x2048xf32> to vector<4x2048xbf16>
    %c4_199 = arith.constant 4 : index
    %c0_200 = arith.constant 0 : index
    %229 = vector.load %arg8[%c4_199, %c0_200] : memref<108x2048xbf16, #tpu.memory_space<vmem>>, vector<4x2048xbf16>
    tpu.vector_store %arg8[%c4_199, %c0_200], %228 {strides = array<i32>} : memref<108x2048xbf16, #tpu.memory_space<vmem>>, vector<4x2048xbf16>,
    %c15_i32_201 = arith.constant 15 : i32
    %230 = tpu.dynamic_rotate %219 by %c15_i32_201 dim 1 : vector<4x2048xf32>, i32 -> vector<4x2048xf32>
    %c8_202 = arith.constant 8 : index
    %c0_203 = arith.constant 0 : index
    %231 = vector.load %arg2[%c8_202, %c0_203] : memref<36x2048xf32, #tpu.memory_space<vmem>>, vector<4x2048xf32>
    %232 = arith.mulf %230, %231 : vector<4x2048xf32>
    %233 = arith.truncf %232 : vector<4x2048xf32> to vector<4x2048xbf16>
    %c8_204 = arith.constant 8 : index
    %c0_205 = arith.constant 0 : index
    %234 = vector.load %arg8[%c8_204, %c0_205] : memref<108x2048xbf16, #tpu.memory_space<vmem>>, vector<4x2048xbf16>
    tpu.vector_store %arg8[%c8_204, %c0_205], %233 {strides = array<i32>} : memref<108x2048xbf16, #tpu.memory_space<vmem>>, vector<4x2048xbf16>,
    %c1_i32_206 = arith.constant 1 : i32
    %235 = tpu.dynamic_rotate %219 by %c1_i32_206 dim 1 : vector<4x2048xf32>, i32 -> vector<4x2048xf32>
    %c12_207 = arith.constant 12 : index
    %c0_208 = arith.constant 0 : index
    %236 = vector.load %arg2[%c12_207, %c0_208] : memref<36x2048xf32, #tpu.memory_space<vmem>>, vector<4x2048xf32>
    %237 = arith.mulf %235, %236 : vector<4x2048xf32>
    %238 = arith.truncf %237 : vector<4x2048xf32> to vector<4x2048xbf16>
    %c12_209 = arith.constant 12 : index
    %c0_210 = arith.constant 0 : index
    %239 = vector.load %arg8[%c12_209, %c0_210] : memref<108x2048xbf16, #tpu.memory_space<vmem>>, vector<4x2048xbf16>
    tpu.vector_store %arg8[%c12_209, %c0_210], %238 {strides = array<i32>} : memref<108x2048xbf16, #tpu.memory_space<vmem>>, vector<4x2048xbf16>,
    %240 = arith.truncf %219 : vector<4x2048xf32> to vector<4x2048xbf16>
    %c16_211 = arith.constant 16 : index
    %c0_212 = arith.constant 0 : index
    %241 = vector.load %arg8[%c16_211, %c0_212] : memref<108x2048xbf16, #tpu.memory_space<vmem>>, vector<4x2048xbf16>
    tpu.vector_store %arg8[%c16_211, %c0_212], %240 {strides = array<i32>} : memref<108x2048xbf16, #tpu.memory_space<vmem>>, vector<4x2048xbf16>,
    %c2047_i32_213 = arith.constant 2047 : i32
    %242 = tpu.dynamic_rotate %219 by %c2047_i32_213 dim 1 : vector<4x2048xf32>, i32 -> vector<4x2048xf32>
    %c20_214 = arith.constant 20 : index
    %c0_215 = arith.constant 0 : index
    %243 = vector.load %arg2[%c20_214, %c0_215] : memref<36x2048xf32, #tpu.memory_space<vmem>>, vector<4x2048xf32>
    %244 = arith.mulf %242, %243 : vector<4x2048xf32>
    %245 = arith.truncf %244 : vector<4x2048xf32> to vector<4x2048xbf16>
    %c20_216 = arith.constant 20 : index
    %c0_217 = arith.constant 0 : index
    %246 = vector.load %arg8[%c20_216, %c0_217] : memref<108x2048xbf16, #tpu.memory_space<vmem>>, vector<4x2048xbf16>
    tpu.vector_store %arg8[%c20_216, %c0_217], %245 {strides = array<i32>} : memref<108x2048xbf16, #tpu.memory_space<vmem>>, vector<4x2048xbf16>,
    %c2033_i32_218 = arith.constant 2033 : i32
    %247 = tpu.dynamic_rotate %219 by %c2033_i32_218 dim 1 : vector<4x2048xf32>, i32 -> vector<4x2048xf32>
    %c24_219 = arith.constant 24 : index
    %c0_220 = arith.constant 0 : index
    %248 = vector.load %arg2[%c24_219, %c0_220] : memref<36x2048xf32, #tpu.memory_space<vmem>>, vector<4x2048xf32>
    %249 = arith.mulf %247, %248 : vector<4x2048xf32>
    %250 = arith.truncf %249 : vector<4x2048xf32> to vector<4x2048xbf16>
    %c24_221 = arith.constant 24 : index
    %c0_222 = arith.constant 0 : index
    %251 = vector.load %arg8[%c24_221, %c0_222] : memref<108x2048xbf16, #tpu.memory_space<vmem>>, vector<4x2048xbf16>
    tpu.vector_store %arg8[%c24_221, %c0_222], %250 {strides = array<i32>} : memref<108x2048xbf16, #tpu.memory_space<vmem>>, vector<4x2048xbf16>,
    %c2032_i32_223 = arith.constant 2032 : i32
    %252 = tpu.dynamic_rotate %219 by %c2032_i32_223 dim 1 : vector<4x2048xf32>, i32 -> vector<4x2048xf32>
    %c28_224 = arith.constant 28 : index
    %c0_225 = arith.constant 0 : index
    %253 = vector.load %arg2[%c28_224, %c0_225] : memref<36x2048xf32, #tpu.memory_space<vmem>>, vector<4x2048xf32>
    %254 = arith.mulf %252, %253 : vector<4x2048xf32>
    %255 = arith.truncf %254 : vector<4x2048xf32> to vector<4x2048xbf16>
    %c28_226 = arith.constant 28 : index
    %c0_227 = arith.constant 0 : index
    %256 = vector.load %arg8[%c28_226, %c0_227] : memref<108x2048xbf16, #tpu.memory_space<vmem>>, vector<4x2048xbf16>
    tpu.vector_store %arg8[%c28_226, %c0_227], %255 {strides = array<i32>} : memref<108x2048xbf16, #tpu.memory_space<vmem>>, vector<4x2048xbf16>,
    %c2031_i32_228 = arith.constant 2031 : i32
    %257 = tpu.dynamic_rotate %219 by %c2031_i32_228 dim 1 : vector<4x2048xf32>, i32 -> vector<4x2048xf32>
    %c32_229 = arith.constant 32 : index
    %c0_230 = arith.constant 0 : index
    %258 = vector.load %arg2[%c32_229, %c0_230] : memref<36x2048xf32, #tpu.memory_space<vmem>>, vector<4x2048xf32>
    %259 = arith.mulf %257, %258 : vector<4x2048xf32>
    %260 = arith.truncf %259 : vector<4x2048xf32> to vector<4x2048xbf16>
    %c32_231 = arith.constant 32 : index
    %c0_232 = arith.constant 0 : index
    %261 = vector.load %arg8[%c32_231, %c0_232] : memref<108x2048xbf16, #tpu.memory_space<vmem>>, vector<4x2048xbf16>
    tpu.vector_store %arg8[%c32_231, %c0_232], %260 {strides = array<i32>} : memref<108x2048xbf16, #tpu.memory_space<vmem>>, vector<4x2048xbf16>,
    %c1_233 = arith.constant 1 : index
    %c1_234 = arith.constant 1 : index
    %c0_235 = arith.constant 0 : index
    %c0_236 = arith.constant 0 : index
    %262 = vector.load %arg5[%c1_233, %c1_234, %c0_235, %c0_236] : memref<2x2x4x36xbf16, #tpu.memory_space<vmem>>, vector<1x1x4x36xbf16>
    %263 = vector.shape_cast %262 : vector<1x1x4x36xbf16> to vector<4x36xbf16>
    %c0_237 = arith.constant 0 : index
    %c0_238 = arith.constant 0 : index
    %264 = vector.load %arg8[%c0_237, %c0_238] : memref<108x2048xbf16, #tpu.memory_space<vmem>>, vector<36x2048xbf16>
    %cst_239 = arith.constant dense<0.000000e+00> : vector<4x2048xf32>
    %265 = tpu.matmul %263, %264, %cst_239 {dimension_numbers = #tpu.dot_dimension_numbers<[1], [0], [0], [1], [0, 0, 1, 1], [], []>} : vector<4x36xbf16>, vector<36x2048xbf16>, vector<4x2048xf32> -> vector<4x2048xf32>
    %c1_240 = arith.constant 1 : index
    %c1_241 = arith.constant 1 : index
    %c0_242 = arith.constant 0 : index
    %c0_243 = arith.constant 0 : index
    %266 = vector.load %arg6[%c1_240, %c1_241, %c0_242, %c0_243] : memref<2x2x4x1xf32, #tpu.memory_space<vmem>>, vector<1x1x4x1xf32>
    %267 = vector.shape_cast %266 : vector<1x1x4x1xf32> to vector<4x1xf32>
    %268 = vector.broadcast %267 : vector<4x1xf32> to vector<4x2048xf32>
    %269 = arith.addf %265, %268 : vector<4x2048xf32>
    %c0_244 = arith.constant 0 : index
    %c0_245 = arith.constant 0 : index
    %c0_246 = arith.constant 0 : index
    %270 = vector.load %arg7[%c0_244, %c0_245, %c0_246] : memref<1x4x2048xf32, #tpu.memory_space<vmem>>, vector<1x4x2048xf32>
    %271 = vector.shape_cast %270 : vector<1x4x2048xf32> to vector<4x2048xf32>
    %272 = arith.addf %269, %271 : vector<4x2048xf32>
    %cst_247 = arith.constant 0.000000e+00 : f32
    %273 = vector.broadcast %cst_247 : f32 to vector<4x2048xf32>
    %274 = arith.maximumf %272, %273 : vector<4x2048xf32>
    %c0_248 = arith.constant 0 : index
    %c0_249 = arith.constant 0 : index
    %c0_250 = arith.constant 0 : index
    %275 = vector.load %arg7[%c0_248, %c0_249, %c0_250] : memref<1x4x2048xf32, #tpu.memory_space<vmem>>, vector<1x4x2048xf32>
    %276 = vector.shape_cast %275 : vector<1x4x2048xf32> to vector<4x2048xf32>
    %277 = vector.shape_cast %274 : vector<4x2048xf32> to vector<1x4x2048xf32>
    tpu.vector_store %arg7[%c0_248, %c0_249, %c0_250], %277 {strides = array<i32>} : memref<1x4x2048xf32, #tpu.memory_space<vmem>>, vector<1x4x2048xf32>,
    return
  }
  func.func @transform_0(%arg0: i32) -> (i32, i32, i32) {
    %c0_i32 = arith.constant 0 : i32
    %c0_i32_0 = arith.constant 0 : i32
    %c0_i32_1 = arith.constant 0 : i32
    return %arg0, %c0_i32, %c0_i32_0 : i32, i32, i32
  }
  func.func @transform_1(%arg0: i32) -> (i32, i32) {
    %c0_i32 = arith.constant 0 : i32
    %c0_i32_0 = arith.constant 0 : i32
    %c0_i32_1 = arith.constant 0 : i32
    return %c0_i32, %c0_i32_0 : i32, i32
  }
  func.func @transform_2(%arg0: i32) -> (i32, i32) {
    %c0_i32 = arith.constant 0 : i32
    %c0_i32_0 = arith.constant 0 : i32
    %c0_i32_1 = arith.constant 0 : i32
    return %c0_i32, %c0_i32_0 : i32, i32
  }
  func.func @transform_3(%arg0: i32) -> (i32, i32) {
    %c0_i32 = arith.constant 0 : i32
    %c0_i32_0 = arith.constant 0 : i32
    %c0_i32_1 = arith.constant 0 : i32
    return %c0_i32, %c0_i32_0 : i32, i32
  }
  func.func @transform_4(%arg0: i32) -> (i32, i32, i32, i32) {
    %c0_i32 = arith.constant 0 : i32
    %c0_i32_0 = arith.constant 0 : i32
    %c0_i32_1 = arith.constant 0 : i32
    %c0_i32_2 = arith.constant 0 : i32
    %c0_i32_3 = arith.constant 0 : i32
    return %c0_i32, %c0_i32_0, %c0_i32_1, %c0_i32_2 : i32, i32, i32, i32
  }
  func.func @transform_5(%arg0: i32) -> (i32, i32, i32, i32) {
    %c0_i32 = arith.constant 0 : i32
    %c0_i32_0 = arith.constant 0 : i32
    %c0_i32_1 = arith.constant 0 : i32
    %c0_i32_2 = arith.constant 0 : i32
    %c0_i32_3 = arith.constant 0 : i32
    return %c0_i32, %c0_i32_0, %c0_i32_1, %c0_i32_2 : i32, i32, i32, i32
  }
  func.func @transform_6(%arg0: i32) -> (i32, i32, i32) {
    %c0_i32 = arith.constant 0 : i32
    %c0_i32_0 = arith.constant 0 : i32
    %c0_i32_1 = arith.constant 0 : i32
    return %arg0, %c0_i32, %c0_i32_0 : i32, i32, i32
  }
}

</mosaic_0001>

<llo_original>
// kernel: tpu_custom_call.1
$region0: #{tpu_custom_call.1}
  #allocation0 [shape = 'u32[]', space=smem, size = 0x4, offset = 0x4, fixed_abs, tag = 'smem constant byte address 0x4 - core index']
  #allocation1 [shape = 'u32[144,128]{1,0:T(1,128)}', space=vmem, size = 0x12000, scoped, tag = 'internal scratch']
  #allocation2 [shape = 'bf16[108,2048]{1,0:T(8,128)(2,1)}', space=vmem, size = 0x70000, scoped, tag = 'scratch operand']
  %s0 = inlined_call_operand.hbm [shape: f32[2,4,2048], index: 0, kind: input, shape index: {}]
  %s1 = inlined_call_operand.hbm [shape: f32[36,2048], index: 1, kind: input, shape index: {}]
  %s2 = inlined_call_operand.vmem [shape: bf16[4,108], index: 2, kind: input, shape index: {}]
  %s3 = inlined_call_operand.vmem [shape: f32[4,1], index: 3, kind: input, shape index: {}]
  %s4 = inlined_call_operand.vmem [shape: bf16[2,2,4,36], index: 4, kind: input, shape index: {}]
  %s5 = inlined_call_operand.vmem [shape: f32[2,2,4,1], index: 5, kind: input, shape index: {}]
  %s6 = inlined_call_operand.hbm [shape: f32[2,4,2048], index: 6, kind: output, shape index: {}]
  %s7 = sld [smem:[#allocation0]]
  $region65: #{tpu_custom_call.1} parent=0
    _
  %s9 = ssub.s32 1, %s7
  %s10 = scalar_select 0, %s9, %s7
  $region1: #{tpu_custom_call.1} parent=0
    #allocation3 [shape = 'u8[65536]{0}', space=vmem, size = 0x10000, scoped, tag = 'input window, operand 0']
    #allocation4 [shape = 's32[2]{0}', space=sflag, size = 0x8, scoped, tag = 'scoped memory for tpu_custom_call.1']
    #allocation5 [shape = 's32[2]{0}', space=sflag, size = 0x8, scoped, tag = 'scoped memory for tpu_custom_call.1']
    #allocation6 [shape = 'u8[327680]{0}', space=vmem, size = 0x50000, scoped, tag = 'input window, operand 1, single buffered']
    #allocation7 [shape = 's32[1]{0}', space=sflag, size = 0x4, scoped, tag = 'scoped memory for tpu_custom_call.1']
    #allocation8 [shape = 'u8[65536]{0}', space=vmem, size = 0x10000, scoped, tag = 'output window, operand 0']
    %11 = vsyncpa [#allocation4], 0
    %s12 = scalar_lea.sflag [#allocation4], 1
    %13 = vsyncpa %s12, 0
    %14 = vsyncpa [#allocation7], 0
    %15 = vsyncpa [#allocation5], 0
    %s16 = scalar_lea.sflag [#allocation5], 1
    %17 = vsyncpa %s16, 0
    loop: start=0, step=1, limit=4
    $region2: #{tpu_custom_call.1} parent=1 // loop_pre_header
      _
    $region3: #{tpu_custom_call.1} parent=1 // loop_header
      %s19 = sphi 0, %s23
      %p20 = scmp.ge.s32.totalorder %s19, 4
      %s29 = sphi 0, %s31
      %s32 = sphi 0, %s29
      %s33 = sphi 0, %s32
      %s49 = sphi 0, %s33
      %s53 = sphi 0, %s53
      %s55 = sphi 0, %s53
      %s56 = sphi 0, %s55
      %s70 = sphi 0, %s56
      %s74 = sphi 0, %s74
      %s76 = sphi 0, %s74
      %s77 = sphi 0, %s76
      %s91 = sphi 0, %s77
      %s95 = sphi 0, %s95
      %s97 = sphi 0, %s95
      %s98 = sphi 0, %s97
      %s112 = sphi 0, %s98
      %s116 = sphi 0, %s116
      %s118 = sphi 0, %s116
      %s119 = sphi 0, %s118
      %s133 = sphi 0, %s119
      %s137 = sphi 0, %s137
      %s139 = sphi 0, %s137
      %s140 = sphi 0, %s139
      %s154 = sphi 0, %s140
      %s160 = sphi 0, %s162
      %s163 = sphi 0, %s160
      %s164 = sphi 0, %s163
      %s180 = sphi 0, %s164
    $region4: #{tpu_custom_call.1} parent=1 // loop_header_branch
      %22 = sbr.rel (%p20) target = $region8
    $region5: #{tpu_custom_call.1} parent=1 // loop_body
      %s24 = ssub.s32 %s19, 1
      %s25 = ssub.s32 %s19, 2
      %s26 = sadd.s32 %s19, 1
      %s27 = ssub.s32 %s19, %s26
      %p28 = scmp.eq.s32.totalorder %s27, 0
      %s30 = sadd.s32 %s29, 1
      %s31 = scalar_select %p28, %s29, %s30
      %p34 = pneg %p28
      %p35 = scmp.eq.s32.totalorder %s19, 1
      %p36 = por %p34, %p35
      %p37 = scmp.ne.s32.totalorder %s29, %s32
      %p38 = scmp.eq.s32.totalorder %s19, 0
      %p39 = por %p37, %p38
      %p40 = scmp.ne.s32.totalorder %s29, %s32
      %p41 = scmp.eq.s32.totalorder %s24, 1
      %p42 = por %p40, %p41
      %p43 = scmp.ne.s32.totalorder %s32, %s33
      %p44 = scmp.eq.s32.totalorder %s24, 0
      %p45 = por %p43, %p44
      %p46 = scmp.ne.s32.totalorder %s32, %s33
      %p47 = scmp.eq.s32.totalorder %s25, 1
      %p48 = por %p46, %p47
      %p50 = scmp.ne.s32.totalorder %s33, %s49
      %p51 = scmp.eq.s32.totalorder %s25, 0
      %p52 = por %p50, %p51
      %s54 = sadd.s32 %s53, 1
      %p57 = scmp.eq.s32.totalorder %s19, 1
      %p58 = scmp.ne.s32.totalorder %s53, %s55
      %p59 = scmp.eq.s32.totalorder %s19, 0
      %p60 = por %p58, %p59
      %p61 = scmp.ne.s32.totalorder %s53, %s55
      %p62 = scmp.eq.s32.totalorder %s24, 1
      %p63 = por %p61, %p62
      %p64 = scmp.ne.s32.totalorder %s55, %s56
      %p65 = scmp.eq.s32.totalorder %s24, 0
      %p66 = por %p64, %p65
      %p67 = scmp.ne.s32.totalorder %s55, %s56
      %p68 = scmp.eq.s32.totalorder %s25, 1
      %p69 = por %p67, %p68
      %p71 = scmp.ne.s32.totalorder %s56, %s70
      %p72 = scmp.eq.s32.totalorder %s25, 0
      %p73 = por %p71, %p72
      %s75 = sadd.s32 %s74, 1
      %p78 = scmp.eq.s32.totalorder %s19, 1
      %p79 = scmp.ne.s32.totalorder %s74, %s76
      %p80 = scmp.eq.s32.totalorder %s19, 0
      %p81 = por %p79, %p80
      %p82 = scmp.ne.s32.totalorder %s74, %s76
      %p83 = scmp.eq.s32.totalorder %s24, 1
      %p84 = por %p82, %p83
      %p85 = scmp.ne.s32.totalorder %s76, %s77
      %p86 = scmp.eq.s32.totalorder %s24, 0
      %p87 = por %p85, %p86
      %p88 = scmp.ne.s32.totalorder %s76, %s77
      %p89 = scmp.eq.s32.totalorder %s25, 1
      %p90 = por %p88, %p89
      %p92 = scmp.ne.s32.totalorder %s77, %s91
      %p93 = scmp.eq.s32.totalorder %s25, 0
      %p94 = por %p92, %p93
      %s96 = sadd.s32 %s95, 1
      %p99 = scmp.eq.s32.totalorder %s19, 1
      %p100 = scmp.ne.s32.totalorder %s95, %s97
      %p101 = scmp.eq.s32.totalorder %s19, 0
      %p102 = por %p100, %p101
      %p103 = scmp.ne.s32.totalorder %s95, %s97
      %p104 = scmp.eq.s32.totalorder %s24, 1
      %p105 = por %p103, %p104
      %p106 = scmp.ne.s32.totalorder %s97, %s98
      %p107 = scmp.eq.s32.totalorder %s24, 0
      %p108 = por %p106, %p107
      %p109 = scmp.ne.s32.totalorder %s97, %s98
      %p110 = scmp.eq.s32.totalorder %s25, 1
      %p111 = por %p109, %p110
      %p113 = scmp.ne.s32.totalorder %s98, %s112
      %p114 = scmp.eq.s32.totalorder %s25, 0
      %p115 = por %p113, %p114
      %s117 = sadd.s32 %s116, 1
      %p120 = scmp.eq.s32.totalorder %s19, 1
      %p121 = scmp.ne.s32.totalorder %s116, %s118
      %p122 = scmp.eq.s32.totalorder %s19, 0
      %p123 = por %p121, %p122
      %p124 = scmp.ne.s32.totalorder %s116, %s118
      %p125 = scmp.eq.s32.totalorder %s24, 1
      %p126 = por %p124, %p125
      %p127 = scmp.ne.s32.totalorder %s118, %s119
      %p128 = scmp.eq.s32.totalorder %s24, 0
      %p129 = por %p127, %p128
      %p130 = scmp.ne.s32.totalorder %s118, %s119
      %p131 = scmp.eq.s32.totalorder %s25, 1
      %p132 = por %p130, %p131
      %p134 = scmp.ne.s32.totalorder %s119, %s133
      %p135 = scmp.eq.s32.totalorder %s25, 0
      %p136 = por %p134, %p135
      %s138 = sadd.s32 %s137, 1
      %p141 = scmp.eq.s32.totalorder %s19, 1
      %p142 = scmp.ne.s32.totalorder %s137, %s139
      %p143 = scmp.eq.s32.totalorder %s19, 0
      %p144 = por %p142, %p143
      %p145 = scmp.ne.s32.totalorder %s137, %s139
      %p146 = scmp.eq.s32.totalorder %s24, 1
      %p147 = por %p145, %p146
      %p148 = scmp.ne.s32.totalorder %s139, %s140
      %p149 = scmp.eq.s32.totalorder %s24, 0
      %p150 = por %p148, %p149
      %p151 = scmp.ne.s32.totalorder %s139, %s140
      %p152 = scmp.eq.s32.totalorder %s25, 1
      %p153 = por %p151, %p152
      %p155 = scmp.ne.s32.totalorder %s140, %s154
      %p156 = scmp.eq.s32.totalorder %s25, 0
      %p157 = por %p155, %p156
      %s158 = ssub.s32 %s19, %s26
      %p159 = scmp.eq.s32.totalorder %s158, 0
      %s161 = sadd.s32 %s160, 1
      %s162 = scalar_select %p159, %s160, %s161
      %p165 = pneg %p159
      %p166 = scmp.eq.s32.totalorder %s19, 1
      %p167 = por %p165, %p166
      %p168 = scmp.ne.s32.totalorder %s160, %s163
      %p169 = scmp.eq.s32.totalorder %s19, 0
      %p170 = por %p168, %p169
      %p171 = scmp.ne.s32.totalorder %s160, %s163
      %p172 = scmp.eq.s32.totalorder %s24, 1
      %p173 = por %p171, %p172
      %p174 = scmp.ne.s32.totalorder %s163, %s164
      %p175 = scmp.eq.s32.totalorder %s24, 0
      %p176 = por %p174, %p175
      %p177 = scmp.ne.s32.totalorder %s163, %s164
      %p178 = scmp.eq.s32.totalorder %s25, 1
      %p179 = por %p177, %p178
      %p181 = scmp.ne.s32.totalorder %s164, %s180
      %p182 = scmp.eq.s32.totalorder %s25, 0
      %p183 = por %p181, %p182
      %p184 = scmp.le.s32.totalorder 1, %s19
      %p185 = scmp.lt.s32.totalorder %s19, 3
      %p186 = pnand %p184, %p185
      %p187 = pneg %p186
      // Predicated region
      $region9: #{tpu_custom_call.1} parent=5 // pred_check
        _
      $region10: #{tpu_custom_call.1} parent=5 // pred_check_branch
        %189 = sbr.rel (%p186) target = $region12
      $region11: #{tpu_custom_call.1} parent=5 // pred_region
        %s190 = ssub.s32 %s19, 1
        // Predicated region
        $region13: #{tpu_custom_call.1} parent=11 // pred_check
          %p191 = pneg %p66
        $region14: #{tpu_custom_call.1} parent=11 // pred_check_branch
          %193 = sbr.rel (%p191) target = $region16
        $region15: #{tpu_custom_call.1} parent=11 // pred_region
          %s195 = ssub.s32 10240, 10240
          %196 = vsyncadd [#allocation7], %s195
          %s197 = sshll.u32 [#allocation6], 4
          %s198 = int_to_ptr.vmem [resolvable:$true] %s197
          %203 = dma.hbm_to_vmem [thread:$0]  %s1, 10240, %s198, [#allocation7], 2048, 2048, 128
        $region16: #{tpu_custom_call.1} parent=11 // pred_fallthru
          _
        // Predicated region
        $region17: #{tpu_custom_call.1} parent=11 // pred_check
          %p204 = pneg %p87
        $region18: #{tpu_custom_call.1} parent=11 // pred_check_branch
          %206 = sbr.rel (%p204) target = $region20
        $region19: #{tpu_custom_call.1} parent=11 // pred_region
          _
        $region20: #{tpu_custom_call.1} parent=11 // pred_fallthru
          _
        // Predicated region
        $region21: #{tpu_custom_call.1} parent=11 // pred_check
          %p207 = pneg %p108
        $region22: #{tpu_custom_call.1} parent=11 // pred_check_branch
          %209 = sbr.rel (%p207) target = $region24
        $region23: #{tpu_custom_call.1} parent=11 // pred_region
          _
        $region24: #{tpu_custom_call.1} parent=11 // pred_fallthru
          _
        // Predicated region
        $region25: #{tpu_custom_call.1} parent=11 // pred_check
          %p210 = pneg %p129
        $region26: #{tpu_custom_call.1} parent=11 // pred_check_branch
          %212 = sbr.rel (%p210) target = $region28
        $region27: #{tpu_custom_call.1} parent=11 // pred_region
          _
        $region28: #{tpu_custom_call.1} parent=11 // pred_fallthru
          _
        // Predicated region
        $region29: #{tpu_custom_call.1} parent=11 // pred_check
          %p213 = pneg %p150
        $region30: #{tpu_custom_call.1} parent=11 // pred_check_branch
          %215 = sbr.rel (%p213) target = $region32
        $region31: #{tpu_custom_call.1} parent=11 // pred_region
          _
        $region32: #{tpu_custom_call.1} parent=11 // pred_fallthru
          _
      $region12: #{tpu_custom_call.1} parent=5 // pred_fallthru
        _
      %p216 = scmp.lt.s32.totalorder %s19, 2
      // Predicated region
      $region33: #{tpu_custom_call.1} parent=5 // pred_check
        %p217 = pneg %p216
      $region34: #{tpu_custom_call.1} parent=5 // pred_check_branch
        %219 = sbr.rel (%p217) target = $region36
      $region35: #{tpu_custom_call.1} parent=5 // pred_region
        // Predicated region
        $region37: #{tpu_custom_call.1} parent=35 // pred_check
          %p220 = pneg %p39
        $region38: #{tpu_custom_call.1} parent=35 // pred_check_branch
          %222 = sbr.rel (%p220) target = $region40
        $region39: #{tpu_custom_call.1} parent=35 // pred_region
          %s223 = sand.u32 %s29, 1
          %s224 = scalar_lea.sflag [#allocation4], %s223
          %s225 = sand.u32 %s29, 1
          %s226 = smul.addr %s225, 64
          %s227 = scalar_lea.vmem [#allocation3], %s226
          %s229 = ssub.s32 1024, 1024
          %230 = vsyncadd %s224, %s229
          %s231 = smul.addr %s19, 16
          %s232 = smul.addr %s231, 64
          %s233 = scalar_lea.hbm %s0, %s232
          %s235 = sshll.u32 %s227, 4
          %s236 = int_to_ptr.vmem [resolvable:$true] %s235
          %238 = dma.hbm_to_vmem [thread:$0]  %s233, 1024, %s236, %s224
        $region40: #{tpu_custom_call.1} parent=35 // pred_fallthru
          _
      $region36: #{tpu_custom_call.1} parent=5 // pred_fallthru
        _
      %p239 = scmp.le.s32.totalorder 1, %s19
      %p240 = scmp.lt.s32.totalorder %s19, 3
      %p241 = pnand %p239, %p240
      %p242 = pneg %p241
      // Predicated region
      $region41: #{tpu_custom_call.1} parent=5 // pred_check
        _
      $region42: #{tpu_custom_call.1} parent=5 // pred_check_branch
        %244 = sbr.rel (%p241) target = $region44
      $region43: #{tpu_custom_call.1} parent=5 // pred_region
        %s245 = ssub.s32 %s19, 1
        %s246 = sand.u32 %s32, 1
        %s247 = scalar_lea.sflag [#allocation4], %s246
        %s248 = sand.u32 %s32, 1
        %s249 = smul.addr %s248, 64
        %s250 = scalar_lea.vmem [#allocation3], %s249
        // Predicated region
        $region45: #{tpu_custom_call.1} parent=43 // pred_check
          %p251 = pneg %p45
        $region46: #{tpu_custom_call.1} parent=43 // pred_check_branch
          %253 = sbr.rel (%p251) target = $region48
        $region47: #{tpu_custom_call.1} parent=43 // pred_region
          %254 = dma.done %s247, 1024
        $region48: #{tpu_custom_call.1} parent=43 // pred_fallthru
          _
        // Predicated region
        $region49: #{tpu_custom_call.1} parent=43 // pred_check
          %p255 = pneg %p66
        $region50: #{tpu_custom_call.1} parent=43 // pred_check_branch
          %257 = sbr.rel (%p255) target = $region52
        $region51: #{tpu_custom_call.1} parent=43 // pred_region
          %258 = dma.done [#allocation7], 10240
        $region52: #{tpu_custom_call.1} parent=43 // pred_fallthru
          _
        %s259 = sand.u32 %s32, 1
        %s260 = scalar_lea.sflag [#allocation4], %s259
        %s261 = sand.u32 %s32, 1
        %s262 = smul.addr %s261, 64
        %s263 = scalar_lea.vmem [#allocation3], %s262
        %p264 = pneg %p45
        %p265 = pneg %p42
        %p266 = pneg %p66
        %p267 = pneg %p63
        %p268 = pneg %p87
        %p269 = pneg %p84
        %p270 = pneg %p108
        %p271 = pneg %p105
        %p272 = pneg %p129
        %p273 = pneg %p126
        %p274 = pneg %p150
        %p275 = pneg %p147
        %p276 = pneg %p176
        %p277 = pneg %p173
        %s278 = sand.u32 %s163, 1
        %s279 = scalar_lea.sflag [#allocation5], %s278
        %s280 = sand.u32 %s163, 1
        %s281 = smul.addr %s280, 64
        %s282 = scalar_lea.vmem [#allocation8], %s281
        %284 = vst [vmem:[#allocation2 + $0x138] sm:$0xcc] 0
        %285 = vst [vmem:[#allocation2 + $0x178] sm:$0xff] 0
        %286 = vst [vmem:[#allocation2 + $0x1b8] sm:$0xff] 0
        %287 = vst [vmem:[#allocation2 + $0x1f8] sm:$0xff] 0
        %288 = vst [vmem:[#allocation2 + $0x238] sm:$0xff] 0
        %289 = vst [vmem:[#allocation2 + $0x270] sm:$0xff] 0
        %290 = vst [vmem:[#allocation2 + $0x278] sm:$0xff] 0
        %291 = vst [vmem:[#allocation2 + $0x2b0] sm:$0xff] 0
        %292 = vst [vmem:[#allocation2 + $0x2b8] sm:$0xff] 0
        %293 = vst [vmem:[#allocation2 + $0x2f0] sm:$0xff] 0
        %294 = vst [vmem:[#allocation2 + $0x2f8] sm:$0xff] 0
        %295 = vst [vmem:[#allocation2 + $0x330] sm:$0xff] 0
        %296 = vst [vmem:[#allocation2 + $0x338] sm:$0xff] 0
        %297 = vst [vmem:[#allocation2 + $0x370] sm:$0x33] 0
        %298 = vst [vmem:[#allocation2 + $0x378] sm:$0x33] 0
        %v299 = vld [vmem:[%s250] sm:$0xff]
        %v300 = vld [vmem:[%s250 + $0x8] sm:$0xff]
        %v301 = vld [vmem:[%s250 + $0x10] sm:$0xff]
        %v302 = vld [vmem:[%s250 + $0x18] sm:$0xff]
        %v303 = vld [vmem:[%s250 + $0x20] sm:$0xff]
        %v304 = vld [vmem:[%s250 + $0x28] sm:$0xff]
        %v305 = vld [vmem:[%s250 + $0x30] sm:$0xff]
        %v306 = vld [vmem:[%s250 + $0x38] sm:$0xff]
        %v315 = vcombine.high %v299, %v299
        %v316 = vcombine.high %v300, %v300
        %v317 = vcombine.high %v301, %v301
        %v318 = vcombine.high %v302, %v302
        %v319 = vcombine.high %v303, %v303
        %v320 = vcombine.high %v304, %v304
        %v321 = vcombine.high %v305, %v305
        %v322 = vcombine.high %v306, %v306
        %331 = vrot.lane.b32.xlu0 %v299, 17
        %v332 = vpop.permute.xlu0 %331
        %333 = vrot.lane.b32.xlu0 %v315, 17
        %v334 = vpop.permute.xlu0 %333
        %335 = vrot.lane.b32.xlu0 %v300, 17
        %v336 = vpop.permute.xlu0 %335
        %337 = vrot.lane.b32.xlu0 %v316, 17
        %v338 = vpop.permute.xlu0 %337
        %339 = vrot.lane.b32.xlu0 %v301, 17
        %v340 = vpop.permute.xlu0 %339
        %341 = vrot.lane.b32.xlu0 %v317, 17
        %v342 = vpop.permute.xlu0 %341
        %343 = vrot.lane.b32.xlu0 %v302, 17
        %v344 = vpop.permute.xlu0 %343
        %345 = vrot.lane.b32.xlu0 %v318, 17
        %v346 = vpop.permute.xlu0 %345
        %347 = vrot.lane.b32.xlu0 %v303, 17
        %v348 = vpop.permute.xlu0 %347
        %349 = vrot.lane.b32.xlu0 %v319, 17
        %v350 = vpop.permute.xlu0 %349
        %351 = vrot.lane.b32.xlu0 %v304, 17
        %v352 = vpop.permute.xlu0 %351
        %353 = vrot.lane.b32.xlu0 %v320, 17
        %v354 = vpop.permute.xlu0 %353
        %355 = vrot.lane.b32.xlu0 %v305, 17
        %v356 = vpop.permute.xlu0 %355
        %357 = vrot.lane.b32.xlu0 %v321, 17
        %v358 = vpop.permute.xlu0 %357
        %359 = vrot.lane.b32.xlu0 %v306, 17
        %v360 = vpop.permute.xlu0 %359
        %361 = vrot.lane.b32.xlu0 %v322, 17
        %v362 = vpop.permute.xlu0 %361
        %v363 = vlaneseq
        %v364 = vand.u32 %v363, 127
        %vm365 = vcmp.lt.s32.totalorder %v364, 17
        %v366 = vsel %vm365, %v360, %v362
        %v367 = vsel %vm365, %v358, %v360
        %v368 = vsel %vm365, %v356, %v358
        %v369 = vsel %vm365, %v354, %v356
        %v370 = vsel %vm365, %v352, %v354
        %v371 = vsel %vm365, %v350, %v352
        %v372 = vsel %vm365, %v348, %v350
        %v373 = vsel %vm365, %v346, %v348
        %v374 = vsel %vm365, %v344, %v346
        %v375 = vsel %vm365, %v342, %v344
        %v376 = vsel %vm365, %v340, %v342
        %v377 = vsel %vm365, %v338, %v340
        %v378 = vsel %vm365, %v336, %v338
        %v379 = vsel %vm365, %v334, %v336
        %v380 = vsel %vm365, %v332, %v334
        %v381 = vsel %vm365, %v362, %v332
        %v382 = vld [vmem:[#allocation6] sm:$0xf]
        %v383 = vld [vmem:[#allocation6 + $0x8] sm:$0xf]
        %v384 = vld [vmem:[#allocation6 + $0x10] sm:$0xf]
        %v385 = vld [vmem:[#allocation6 + $0x18] sm:$0xf]
        %v386 = vld [vmem:[#allocation6 + $0x20] sm:$0xf]
        %v387 = vld [vmem:[#allocation6 + $0x28] sm:$0xf]
        %v388 = vld [vmem:[#allocation6 + $0x30] sm:$0xf]
        %v389 = vld [vmem:[#allocation6 + $0x38] sm:$0xf]
        %v390 = vld [vmem:[#allocation6 + $0x40] sm:$0xf]
        %v391 = vld [vmem:[#allocation6 + $0x48] sm:$0xf]
        %v392 = vld [vmem:[#allocation6 + $0x50] sm:$0xf]
        %v393 = vld [vmem:[#allocation6 + $0x58] sm:$0xf]
        %v394 = vld [vmem:[#allocation6 + $0x60] sm:$0xf]
        %v395 = vld [vmem:[#allocation6 + $0x68] sm:$0xf]
        %v396 = vld [vmem:[#allocation6 + $0x70] sm:$0xf]
        %v397 = vld [vmem:[#allocation6 + $0x78] sm:$0xf]
        %v398 = vmul.f32 %v381, %v382
        %v399 = vmul.f32 %v380, %v383
        %v400 = vmul.f32 %v379, %v384
        %v401 = vmul.f32 %v378, %v385
        %v402 = vmul.f32 %v377, %v386
        %v403 = vmul.f32 %v376, %v387
        %v404 = vmul.f32 %v375, %v388
        %v405 = vmul.f32 %v374, %v389
        %v406 = vmul.f32 %v373, %v390
        %v407 = vmul.f32 %v372, %v391
        %v408 = vmul.f32 %v371, %v392
        %v409 = vmul.f32 %v370, %v393
        %v410 = vmul.f32 %v369, %v394
        %v411 = vmul.f32 %v368, %v395
        %v412 = vmul.f32 %v367, %v396
        %v413 = vmul.f32 %v366, %v397
        %v414 = vpack.c.bf16 %v398, %v398
        %v415 = vpack.c.bf16 %v399, %v399
        %v416 = vpack.c.bf16 %v400, %v400
        %v417 = vpack.c.bf16 %v401, %v401
        %v418 = vpack.c.bf16 %v402, %v402
        %v419 = vpack.c.bf16 %v403, %v403
        %v420 = vpack.c.bf16 %v404, %v404
        %v421 = vpack.c.bf16 %v405, %v405
        %v422 = vpack.c.bf16 %v406, %v406
        %v423 = vpack.c.bf16 %v407, %v407
        %v424 = vpack.c.bf16 %v408, %v408
        %v425 = vpack.c.bf16 %v409, %v409
        %v426 = vpack.c.bf16 %v410, %v410
        %v427 = vpack.c.bf16 %v411, %v411
        %v428 = vpack.c.bf16 %v412, %v412
        %v429 = vpack.c.bf16 %v413, %v413
        %v446 = vunpack.c.l.b16 %v414
        %v447 = vunpack.c.l.b16 %v415
        %v448 = vunpack.c.l.b16 %v416
        %v449 = vunpack.c.l.b16 %v417
        %v450 = vunpack.c.l.b16 %v418
        %v451 = vunpack.c.l.b16 %v419
        %v452 = vunpack.c.l.b16 %v420
        %v453 = vunpack.c.l.b16 %v421
        %v454 = vunpack.c.l.b16 %v422
        %v455 = vunpack.c.l.b16 %v423
        %v456 = vunpack.c.l.b16 %v424
        %v457 = vunpack.c.l.b16 %v425
        %v458 = vunpack.c.l.b16 %v426
        %v459 = vunpack.c.l.b16 %v427
        %v460 = vunpack.c.l.b16 %v428
        %v461 = vunpack.c.l.b16 %v429
        %v462 = vpack.c.b16 %v447, %v446
        %v463 = vpack.c.b16 %v449, %v448
        %v464 = vpack.c.b16 %v451, %v450
        %v465 = vpack.c.b16 %v453, %v452
        %v466 = vpack.c.b16 %v455, %v454
        %v467 = vpack.c.b16 %v457, %v456
        %v468 = vpack.c.b16 %v459, %v458
        %v469 = vpack.c.b16 %v461, %v460
        %478 = vst [vmem:[#allocation2] sm:$0x33] %v462
        %479 = vst [vmem:[#allocation2 + $0x8] sm:$0x33] %v463
        %480 = vst [vmem:[#allocation2 + $0x10] sm:$0x33] %v464
        %481 = vst [vmem:[#allocation2 + $0x18] sm:$0x33] %v465
        %482 = vst [vmem:[#allocation2 + $0x20] sm:$0x33] %v466
        %483 = vst [vmem:[#allocation2 + $0x28] sm:$0x33] %v467
        %484 = vst [vmem:[#allocation2 + $0x30] sm:$0x33] %v468
        %485 = vst [vmem:[#allocation2 + $0x38] sm:$0x33] %v469
        %v486 = vrot.slane %v463, 6
        %v487 = vrot.slane %v464, 6
        %v488 = vrot.slane %v465, 6
        %v489 = vrot.slane %v466, 6
        %v490 = vrot.slane %v467, 6
        %v491 = vrot.slane %v468, 6
        %v492 = vrot.slane %v469, 6
        %500 = vst [vmem:[#allocation2 + $0x100] sm:$0xcc] %v486
        %501 = vst [vmem:[#allocation2 + $0x108] sm:$0xcc] %v487
        %502 = vst [vmem:[#allocation2 + $0x110] sm:$0xcc] %v488
        %503 = vst [vmem:[#allocation2 + $0x118] sm:$0xcc] %v489
        %504 = vst [vmem:[#allocation2 + $0x120] sm:$0xcc] %v490
        %505 = vst [vmem:[#allocation2 + $0x128] sm:$0xcc] %v491
        %506 = vst [vmem:[#allocation2 + $0x130] sm:$0xcc] %v492
        %507 = vst [vmem:[#allocation2 + $0x240] sm:$0x33] %v464
        %508 = vst [vmem:[#allocation2 + $0x248] sm:$0x33] %v465
        %509 = vst [vmem:[#allocation2 + $0x250] sm:$0x33] %v466
        %510 = vst [vmem:[#allocation2 + $0x258] sm:$0x33] %v467
        %511 = vst [vmem:[#allocation2 + $0x260] sm:$0x33] %v468
        %512 = vst [vmem:[#allocation2 + $0x268] sm:$0x33] %v469
        %513 = vrot.lane.b32.xlu0 %v299, 16
        %v514 = vpop.permute.xlu0 %513
        %515 = vrot.lane.b32.xlu0 %v315, 16
        %v516 = vpop.permute.xlu0 %515
        %517 = vrot.lane.b32.xlu0 %v300, 16
        %v518 = vpop.permute.xlu0 %517
        %519 = vrot.lane.b32.xlu0 %v316, 16
        %v520 = vpop.permute.xlu0 %519
        %521 = vrot.lane.b32.xlu0 %v301, 16
        %v522 = vpop.permute.xlu0 %521
        %523 = vrot.lane.b32.xlu0 %v317, 16
        %v524 = vpop.permute.xlu0 %523
        %525 = vrot.lane.b32.xlu0 %v302, 16
        %v526 = vpop.permute.xlu0 %525
        %527 = vrot.lane.b32.xlu0 %v318, 16
        %v528 = vpop.permute.xlu0 %527
        %529 = vrot.lane.b32.xlu0 %v303, 16
        %v530 = vpop.permute.xlu0 %529
        %531 = vrot.lane.b32.xlu0 %v319, 16
        %v532 = vpop.permute.xlu0 %531
        %533 = vrot.lane.b32.xlu0 %v304, 16
        %v534 = vpop.permute.xlu0 %533
        %535 = vrot.lane.b32.xlu0 %v320, 16
        %v536 = vpop.permute.xlu0 %535
        %537 = vrot.lane.b32.xlu0 %v305, 16
        %v538 = vpop.permute.xlu0 %537
        %539 = vrot.lane.b32.xlu0 %v321, 16
        %v540 = vpop.permute.xlu0 %539
        %541 = vrot.lane.b32.xlu0 %v306, 16
        %v542 = vpop.permute.xlu0 %541
        %543 = vrot.lane.b32.xlu0 %v322, 16
        %v544 = vpop.permute.xlu0 %543
        %vm545 = vcmp.lt.s32.totalorder %v364, 16
        %v546 = vsel %vm545, %v542, %v544
        %v547 = vsel %vm545, %v540, %v542
        %v548 = vsel %vm545, %v538, %v540
        %v549 = vsel %vm545, %v536, %v538
        %v550 = vsel %vm545, %v534, %v536
        %v551 = vsel %vm545, %v532, %v534
        %v552 = vsel %vm545, %v530, %v532
        %v553 = vsel %vm545, %v528, %v530
        %v554 = vsel %vm545, %v526, %v528
        %v555 = vsel %vm545, %v524, %v526
        %v556 = vsel %vm545, %v522, %v524
        %v557 = vsel %vm545, %v520, %v522
        %v558 = vsel %vm545, %v518, %v520
        %v559 = vsel %vm545, %v516, %v518
        %v560 = vsel %vm545, %v514, %v516
        %v561 = vsel %vm545, %v544, %v514
        %v562 = vld [vmem:[#allocation6] sm:$0xf0]
        %v563 = vld [vmem:[#allocation6 + $0x8] sm:$0xf0]
        %v564 = vld [vmem:[#allocation6 + $0x10] sm:$0xf0]
        %v565 = vld [vmem:[#allocation6 + $0x18] sm:$0xf0]
        %v566 = vld [vmem:[#allocation6 + $0x20] sm:$0xf0]
        %v567 = vld [vmem:[#allocation6 + $0x28] sm:$0xf0]
        %v568 = vld [vmem:[#allocation6 + $0x30] sm:$0xf0]
        %v569 = vld [vmem:[#allocation6 + $0x38] sm:$0xf0]
        %v570 = vld [vmem:[#allocation6 + $0x40] sm:$0xf0]
        %v571 = vld [vmem:[#allocation6 + $0x48] sm:$0xf0]
        %v572 = vld [vmem:[#allocation6 + $0x50] sm:$0xf0]
        %v573 = vld [vmem:[#allocation6 + $0x58] sm:$0xf0]
        %v574 = vld [vmem:[#allocation6 + $0x60] sm:$0xf0]
        %v575 = vld [vmem:[#allocation6 + $0x68] sm:$0xf0]
        %v576 = vld [vmem:[#allocation6 + $0x70] sm:$0xf0]
        %v577 = vld [vmem:[#allocation6 + $0x78] sm:$0xf0]
        %v594 = vrot.slane %v562, 4
        %v595 = vrot.slane %v563, 4
        %v596 = vrot.slane %v564, 4
        %v597 = vrot.slane %v565, 4
        %v598 = vrot.slane %v566, 4
        %v599 = vrot.slane %v567, 4
        %v600 = vrot.slane %v568, 4
        %v601 = vrot.slane %v569, 4
        %v602 = vrot.slane %v570, 4
        %v603 = vrot.slane %v571, 4
        %v604 = vrot.slane %v572, 4
        %v605 = vrot.slane %v573, 4
        %v606 = vrot.slane %v574, 4
        %v607 = vrot.slane %v575, 4
        %v608 = vrot.slane %v576, 4
        %v609 = vrot.slane %v577, 4
        %v626 = vmul.f32 %v561, %v594
        %v627 = vmul.f32 %v560, %v595
        %v628 = vmul.f32 %v559, %v596
        %v629 = vmul.f32 %v558, %v597
        %v630 = vmul.f32 %v557, %v598
        %v631 = vmul.f32 %v556, %v599
        %v632 = vmul.f32 %v555, %v600
        %v633 = vmul.f32 %v554, %v601
        %v634 = vmul.f32 %v553, %v602
        %v635 = vmul.f32 %v552, %v603
        %v636 = vmul.f32 %v551, %v604
        %v637 = vmul.f32 %v550, %v605
        %v638 = vmul.f32 %v549, %v606
        %v639 = vmul.f32 %v548, %v607
        %v640 = vmul.f32 %v547, %v608
        %v641 = vmul.f32 %v546, %v609
        %v642 = vpack.c.bf16 %v626, %v626
        %v643 = vpack.c.bf16 %v627, %v627
        %v644 = vpack.c.bf16 %v628, %v628
        %v645 = vpack.c.bf16 %v629, %v629
        %v646 = vpack.c.bf16 %v630, %v630
        %v647 = vpack.c.bf16 %v631, %v631
        %v648 = vpack.c.bf16 %v632, %v632
        %v649 = vpack.c.bf16 %v633, %v633
        %v650 = vpack.c.bf16 %v634, %v634
        %v651 = vpack.c.bf16 %v635, %v635
        %v652 = vpack.c.bf16 %v636, %v636
        %v653 = vpack.c.bf16 %v637, %v637
        %v654 = vpack.c.bf16 %v638, %v638
        %v655 = vpack.c.bf16 %v639, %v639
        %v656 = vpack.c.bf16 %v640, %v640
        %v657 = vpack.c.bf16 %v641, %v641
        %v674 = vunpack.c.l.b16 %v642
        %v675 = vunpack.c.l.b16 %v643
        %v676 = vunpack.c.l.b16 %v644
        %v677 = vunpack.c.l.b16 %v645
        %v678 = vunpack.c.l.b16 %v646
        %v679 = vunpack.c.l.b16 %v647
        %v680 = vunpack.c.l.b16 %v648
        %v681 = vunpack.c.l.b16 %v649
        %v682 = vunpack.c.l.b16 %v650
        %v683 = vunpack.c.l.b16 %v651
        %v684 = vunpack.c.l.b16 %v652
        %v685 = vunpack.c.l.b16 %v653
        %v686 = vunpack.c.l.b16 %v654
        %v687 = vunpack.c.l.b16 %v655
        %v688 = vunpack.c.l.b16 %v656
        %v689 = vunpack.c.l.b16 %v657
        %v690 = vpack.c.b16 %v675, %v674
        %v691 = vpack.c.b16 %v677, %v676
        %v692 = vpack.c.b16 %v679, %v678
        %v693 = vpack.c.b16 %v681, %v680
        %v694 = vpack.c.b16 %v683, %v682
        %v695 = vpack.c.b16 %v685, %v684
        %v696 = vpack.c.b16 %v687, %v686
        %v697 = vpack.c.b16 %v689, %v688
        %v698 = vrot.slane %v690, 6
        %v699 = vrot.slane %v691, 6
        %v700 = vrot.slane %v692, 6
        %v701 = vrot.slane %v693, 6
        %v702 = vrot.slane %v694, 6
        %v703 = vrot.slane %v695, 6
        %v704 = vrot.slane %v696, 6
        %v705 = vrot.slane %v697, 6
        %714 = vst [vmem:[#allocation2] sm:$0xcc] %v698
        %715 = vst [vmem:[#allocation2 + $0x8] sm:$0xcc] %v699
        %716 = vst [vmem:[#allocation2 + $0x10] sm:$0xcc] %v700
        %717 = vst [vmem:[#allocation2 + $0x18] sm:$0xcc] %v701
        %718 = vst [vmem:[#allocation2 + $0x20] sm:$0xcc] %v702
        %719 = vst [vmem:[#allocation2 + $0x28] sm:$0xcc] %v703
        %720 = vst [vmem:[#allocation2 + $0x30] sm:$0xcc] %v704
        %721 = vst [vmem:[#allocation2 + $0x38] sm:$0xcc] %v705
        %729 = vst [vmem:[#allocation2 + $0x140] sm:$0x33] %v691
        %730 = vst [vmem:[#allocation2 + $0x148] sm:$0x33] %v692
        %731 = vst [vmem:[#allocation2 + $0x150] sm:$0x33] %v693
        %732 = vst [vmem:[#allocation2 + $0x158] sm:$0x33] %v694
        %733 = vst [vmem:[#allocation2 + $0x160] sm:$0x33] %v695
        %734 = vst [vmem:[#allocation2 + $0x168] sm:$0x33] %v696
        %735 = vst [vmem:[#allocation2 + $0x170] sm:$0x33] %v697
        %736 = vst [vmem:[#allocation2 + $0x240] sm:$0xcc] %v700
        %737 = vst [vmem:[#allocation2 + $0x248] sm:$0xcc] %v701
        %738 = vst [vmem:[#allocation2 + $0x250] sm:$0xcc] %v702
        %739 = vst [vmem:[#allocation2 + $0x258] sm:$0xcc] %v703
        %740 = vst [vmem:[#allocation2 + $0x260] sm:$0xcc] %v704
        %741 = vst [vmem:[#allocation2 + $0x268] sm:$0xcc] %v705
        %742 = vrot.lane.b32.xlu0 %v299, 15
        %v743 = vpop.permute.xlu0 %742
        %744 = vrot.lane.b32.xlu0 %v315, 15
        %v745 = vpop.permute.xlu0 %744
        %746 = vrot.lane.b32.xlu0 %v300, 15
        %v747 = vpop.permute.xlu0 %746
        %748 = vrot.lane.b32.xlu0 %v316, 15
        %v749 = vpop.permute.xlu0 %748
        %750 = vrot.lane.b32.xlu0 %v301, 15
        %v751 = vpop.permute.xlu0 %750
        %752 = vrot.lane.b32.xlu0 %v317, 15
        %v753 = vpop.permute.xlu0 %752
        %754 = vrot.lane.b32.xlu0 %v302, 15
        %v755 = vpop.permute.xlu0 %754
        %756 = vrot.lane.b32.xlu0 %v318, 15
        %v757 = vpop.permute.xlu0 %756
        %758 = vrot.lane.b32.xlu0 %v303, 15
        %v759 = vpop.permute.xlu0 %758
        %760 = vrot.lane.b32.xlu0 %v319, 15
        %v761 = vpop.permute.xlu0 %760
        %762 = vrot.lane.b32.xlu0 %v304, 15
        %v763 = vpop.permute.xlu0 %762
        %764 = vrot.lane.b32.xlu0 %v320, 15
        %v765 = vpop.permute.xlu0 %764
        %766 = vrot.lane.b32.xlu0 %v305, 15
        %v767 = vpop.permute.xlu0 %766
        %768 = vrot.lane.b32.xlu0 %v321, 15
        %v769 = vpop.permute.xlu0 %768
        %770 = vrot.lane.b32.xlu0 %v306, 15
        %v771 = vpop.permute.xlu0 %770
        %772 = vrot.lane.b32.xlu0 %v322, 15
        %v773 = vpop.permute.xlu0 %772
        %vm774 = vcmp.lt.s32.totalorder %v364, 15
        %v775 = vsel %vm774, %v771, %v773
        %v776 = vsel %vm774, %v769, %v771
        %v777 = vsel %vm774, %v767, %v769
        %v778 = vsel %vm774, %v765, %v767
        %v779 = vsel %vm774, %v763, %v765
        %v780 = vsel %vm774, %v761, %v763
        %v781 = vsel %vm774, %v759, %v761
        %v782 = vsel %vm774, %v757, %v759
        %v783 = vsel %vm774, %v755, %v757
        %v784 = vsel %vm774, %v753, %v755
        %v785 = vsel %vm774, %v751, %v753
        %v786 = vsel %vm774, %v749, %v751
        %v787 = vsel %vm774, %v747, %v749
        %v788 = vsel %vm774, %v745, %v747
        %v789 = vsel %vm774, %v743, %v745
        %v790 = vsel %vm774, %v773, %v743
        %v791 = vld [vmem:[#allocation6 + $0x80] sm:$0xf]
        %v792 = vld [vmem:[#allocation6 + $0x88] sm:$0xf]
        %v793 = vld [vmem:[#allocation6 + $0x90] sm:$0xf]
        %v794 = vld [vmem:[#allocation6 + $0x98] sm:$0xf]
        %v795 = vld [vmem:[#allocation6 + $0xa0] sm:$0xf]
        %v796 = vld [vmem:[#allocation6 + $0xa8] sm:$0xf]
        %v797 = vld [vmem:[#allocation6 + $0xb0] sm:$0xf]
        %v798 = vld [vmem:[#allocation6 + $0xb8] sm:$0xf]
        %v799 = vld [vmem:[#allocation6 + $0xc0] sm:$0xf]
        %v800 = vld [vmem:[#allocation6 + $0xc8] sm:$0xf]
        %v801 = vld [vmem:[#allocation6 + $0xd0] sm:$0xf]
        %v802 = vld [vmem:[#allocation6 + $0xd8] sm:$0xf]
        %v803 = vld [vmem:[#allocation6 + $0xe0] sm:$0xf]
        %v804 = vld [vmem:[#allocation6 + $0xe8] sm:$0xf]
        %v805 = vld [vmem:[#allocation6 + $0xf0] sm:$0xf]
        %v806 = vld [vmem:[#allocation6 + $0xf8] sm:$0xf]
        %v807 = vmul.f32 %v790, %v791
        %v808 = vmul.f32 %v789, %v792
        %v809 = vmul.f32 %v788, %v793
        %v810 = vmul.f32 %v787, %v794
        %v811 = vmul.f32 %v786, %v795
        %v812 = vmul.f32 %v785, %v796
        %v813 = vmul.f32 %v784, %v797
        %v814 = vmul.f32 %v783, %v798
        %v815 = vmul.f32 %v782, %v799
        %v816 = vmul.f32 %v781, %v800
        %v817 = vmul.f32 %v780, %v801
        %v818 = vmul.f32 %v779, %v802
        %v819 = vmul.f32 %v778, %v803
        %v820 = vmul.f32 %v777, %v804
        %v821 = vmul.f32 %v776, %v805
        %v822 = vmul.f32 %v775, %v806
        %v823 = vpack.c.bf16 %v807, %v807
        %v824 = vpack.c.bf16 %v808, %v808
        %v825 = vpack.c.bf16 %v809, %v809
        %v826 = vpack.c.bf16 %v810, %v810
        %v827 = vpack.c.bf16 %v811, %v811
        %v828 = vpack.c.bf16 %v812, %v812
        %v829 = vpack.c.bf16 %v813, %v813
        %v830 = vpack.c.bf16 %v814, %v814
        %v831 = vpack.c.bf16 %v815, %v815
        %v832 = vpack.c.bf16 %v816, %v816
        %v833 = vpack.c.bf16 %v817, %v817
        %v834 = vpack.c.bf16 %v818, %v818
        %v835 = vpack.c.bf16 %v819, %v819
        %v836 = vpack.c.bf16 %v820, %v820
        %v837 = vpack.c.bf16 %v821, %v821
        %v838 = vpack.c.bf16 %v822, %v822
        %v855 = vunpack.c.l.b16 %v823
        %v856 = vunpack.c.l.b16 %v824
        %v857 = vunpack.c.l.b16 %v825
        %v858 = vunpack.c.l.b16 %v826
        %v859 = vunpack.c.l.b16 %v827
        %v860 = vunpack.c.l.b16 %v828
        %v861 = vunpack.c.l.b16 %v829
        %v862 = vunpack.c.l.b16 %v830
        %v863 = vunpack.c.l.b16 %v831
        %v864 = vunpack.c.l.b16 %v832
        %v865 = vunpack.c.l.b16 %v833
        %v866 = vunpack.c.l.b16 %v834
        %v867 = vunpack.c.l.b16 %v835
        %v868 = vunpack.c.l.b16 %v836
        %v869 = vunpack.c.l.b16 %v837
        %v870 = vunpack.c.l.b16 %v838
        %v871 = vpack.c.b16 %v856, %v855
        %v872 = vpack.c.b16 %v858, %v857
        %v873 = vpack.c.b16 %v860, %v859
        %v874 = vpack.c.b16 %v862, %v861
        %v875 = vpack.c.b16 %v864, %v863
        %v876 = vpack.c.b16 %v866, %v865
        %v877 = vpack.c.b16 %v868, %v867
        %v878 = vpack.c.b16 %v870, %v869
        %887 = vst [vmem:[#allocation2 + $0x40] sm:$0x33] %v871
        %888 = vst [vmem:[#allocation2 + $0x48] sm:$0x33] %v872
        %889 = vst [vmem:[#allocation2 + $0x50] sm:$0x33] %v873
        %890 = vst [vmem:[#allocation2 + $0x58] sm:$0x33] %v874
        %891 = vst [vmem:[#allocation2 + $0x60] sm:$0x33] %v875
        %892 = vst [vmem:[#allocation2 + $0x68] sm:$0x33] %v876
        %893 = vst [vmem:[#allocation2 + $0x70] sm:$0x33] %v877
        %894 = vst [vmem:[#allocation2 + $0x78] sm:$0x33] %v878
        %v895 = vrot.slane %v872, 6
        %v896 = vrot.slane %v873, 6
        %v897 = vrot.slane %v874, 6
        %v898 = vrot.slane %v875, 6
        %v899 = vrot.slane %v876, 6
        %v900 = vrot.slane %v877, 6
        %v901 = vrot.slane %v878, 6
        %909 = vst [vmem:[#allocation2 + $0x140] sm:$0xcc] %v895
        %910 = vst [vmem:[#allocation2 + $0x148] sm:$0xcc] %v896
        %911 = vst [vmem:[#allocation2 + $0x150] sm:$0xcc] %v897
        %912 = vst [vmem:[#allocation2 + $0x158] sm:$0xcc] %v898
        %913 = vst [vmem:[#allocation2 + $0x160] sm:$0xcc] %v899
        %914 = vst [vmem:[#allocation2 + $0x168] sm:$0xcc] %v900
        %915 = vst [vmem:[#allocation2 + $0x170] sm:$0xcc] %v901
        %916 = vst [vmem:[#allocation2 + $0x280] sm:$0x33] %v873
        %917 = vst [vmem:[#allocation2 + $0x288] sm:$0x33] %v874
        %918 = vst [vmem:[#allocation2 + $0x290] sm:$0x33] %v875
        %919 = vst [vmem:[#allocation2 + $0x298] sm:$0x33] %v876
        %920 = vst [vmem:[#allocation2 + $0x2a0] sm:$0x33] %v877
        %921 = vst [vmem:[#allocation2 + $0x2a8] sm:$0x33] %v878
        %922 = vrot.lane.b32.xlu0 %v299, 1
        %v923 = vpop.permute.xlu0 %922
        %924 = vrot.lane.b32.xlu0 %v315, 1
        %v925 = vpop.permute.xlu0 %924
        %926 = vrot.lane.b32.xlu0 %v300, 1
        %v927 = vpop.permute.xlu0 %926
        %928 = vrot.lane.b32.xlu0 %v316, 1
        %v929 = vpop.permute.xlu0 %928
        %930 = vrot.lane.b32.xlu0 %v301, 1
        %v931 = vpop.permute.xlu0 %930
        %932 = vrot.lane.b32.xlu0 %v317, 1
        %v933 = vpop.permute.xlu0 %932
        %934 = vrot.lane.b32.xlu0 %v302, 1
        %v935 = vpop.permute.xlu0 %934
        %936 = vrot.lane.b32.xlu0 %v318, 1
        %v937 = vpop.permute.xlu0 %936
        %938 = vrot.lane.b32.xlu0 %v303, 1
        %v939 = vpop.permute.xlu0 %938
        %940 = vrot.lane.b32.xlu0 %v319, 1
        %v941 = vpop.permute.xlu0 %940
        %942 = vrot.lane.b32.xlu0 %v304, 1
        %v943 = vpop.permute.xlu0 %942
        %944 = vrot.lane.b32.xlu0 %v320, 1
        %v945 = vpop.permute.xlu0 %944
        %946 = vrot.lane.b32.xlu0 %v305, 1
        %v947 = vpop.permute.xlu0 %946
        %948 = vrot.lane.b32.xlu0 %v321, 1
        %v949 = vpop.permute.xlu0 %948
        %950 = vrot.lane.b32.xlu0 %v306, 1
        %v951 = vpop.permute.xlu0 %950
        %952 = vrot.lane.b32.xlu0 %v322, 1
        %v953 = vpop.permute.xlu0 %952
        %vm954 = vcmp.lt.s32.totalorder %v364, 1
        %v955 = vsel %vm954, %v951, %v953
        %v956 = vsel %vm954, %v949, %v951
        %v957 = vsel %vm954, %v947, %v949
        %v958 = vsel %vm954, %v945, %v947
        %v959 = vsel %vm954, %v943, %v945
        %v960 = vsel %vm954, %v941, %v943
        %v961 = vsel %vm954, %v939, %v941
        %v962 = vsel %vm954, %v937, %v939
        %v963 = vsel %vm954, %v935, %v937
        %v964 = vsel %vm954, %v933, %v935
        %v965 = vsel %vm954, %v931, %v933
        %v966 = vsel %vm954, %v929, %v931
        %v967 = vsel %vm954, %v927, %v929
        %v968 = vsel %vm954, %v925, %v927
        %v969 = vsel %vm954, %v923, %v925
        %v970 = vsel %vm954, %v953, %v923
        %v971 = vld [vmem:[#allocation6 + $0x80] sm:$0xf0]
        %v972 = vld [vmem:[#allocation6 + $0x88] sm:$0xf0]
        %v973 = vld [vmem:[#allocation6 + $0x90] sm:$0xf0]
        %v974 = vld [vmem:[#allocation6 + $0x98] sm:$0xf0]
        %v975 = vld [vmem:[#allocation6 + $0xa0] sm:$0xf0]
        %v976 = vld [vmem:[#allocation6 + $0xa8] sm:$0xf0]
        %v977 = vld [vmem:[#allocation6 + $0xb0] sm:$0xf0]
        %v978 = vld [vmem:[#allocation6 + $0xb8] sm:$0xf0]
        %v979 = vld [vmem:[#allocation6 + $0xc0] sm:$0xf0]
        %v980 = vld [vmem:[#allocation6 + $0xc8] sm:$0xf0]
        %v981 = vld [vmem:[#allocation6 + $0xd0] sm:$0xf0]
        %v982 = vld [vmem:[#allocation6 + $0xd8] sm:$0xf0]
        %v983 = vld [vmem:[#allocation6 + $0xe0] sm:$0xf0]
        %v984 = vld [vmem:[#allocation6 + $0xe8] sm:$0xf0]
        %v985 = vld [vmem:[#allocation6 + $0xf0] sm:$0xf0]
        %v986 = vld [vmem:[#allocation6 + $0xf8] sm:$0xf0]
        %v1003 = vrot.slane %v971, 4
        %v1004 = vrot.slane %v972, 4
        %v1005 = vrot.slane %v973, 4
        %v1006 = vrot.slane %v974, 4
        %v1007 = vrot.slane %v975, 4
        %v1008 = vrot.slane %v976, 4
        %v1009 = vrot.slane %v977, 4
        %v1010 = vrot.slane %v978, 4
        %v1011 = vrot.slane %v979, 4
        %v1012 = vrot.slane %v980, 4
        %v1013 = vrot.slane %v981, 4
        %v1014 = vrot.slane %v982, 4
        %v1015 = vrot.slane %v983, 4
        %v1016 = vrot.slane %v984, 4
        %v1017 = vrot.slane %v985, 4
        %v1018 = vrot.slane %v986, 4
        %v1035 = vmul.f32 %v970, %v1003
        %v1036 = vmul.f32 %v969, %v1004
        %v1037 = vmul.f32 %v968, %v1005
        %v1038 = vmul.f32 %v967, %v1006
        %v1039 = vmul.f32 %v966, %v1007
        %v1040 = vmul.f32 %v965, %v1008
        %v1041 = vmul.f32 %v964, %v1009
        %v1042 = vmul.f32 %v963, %v1010
        %v1043 = vmul.f32 %v962, %v1011
        %v1044 = vmul.f32 %v961, %v1012
        %v1045 = vmul.f32 %v960, %v1013
        %v1046 = vmul.f32 %v959, %v1014
        %v1047 = vmul.f32 %v958, %v1015
        %v1048 = vmul.f32 %v957, %v1016
        %v1049 = vmul.f32 %v956, %v1017
        %v1050 = vmul.f32 %v955, %v1018
        %v1051 = vpack.c.bf16 %v1035, %v1035
        %v1052 = vpack.c.bf16 %v1036, %v1036
        %v1053 = vpack.c.bf16 %v1037, %v1037
        %v1054 = vpack.c.bf16 %v1038, %v1038
        %v1055 = vpack.c.bf16 %v1039, %v1039
        %v1056 = vpack.c.bf16 %v1040, %v1040
        %v1057 = vpack.c.bf16 %v1041, %v1041
        %v1058 = vpack.c.bf16 %v1042, %v1042
        %v1059 = vpack.c.bf16 %v1043, %v1043
        %v1060 = vpack.c.bf16 %v1044, %v1044
        %v1061 = vpack.c.bf16 %v1045, %v1045
        %v1062 = vpack.c.bf16 %v1046, %v1046
        %v1063 = vpack.c.bf16 %v1047, %v1047
        %v1064 = vpack.c.bf16 %v1048, %v1048
        %v1065 = vpack.c.bf16 %v1049, %v1049
        %v1066 = vpack.c.bf16 %v1050, %v1050
        %v1083 = vunpack.c.l.b16 %v1051
        %v1084 = vunpack.c.l.b16 %v1052
        %v1085 = vunpack.c.l.b16 %v1053
        %v1086 = vunpack.c.l.b16 %v1054
        %v1087 = vunpack.c.l.b16 %v1055
        %v1088 = vunpack.c.l.b16 %v1056
        %v1089 = vunpack.c.l.b16 %v1057
        %v1090 = vunpack.c.l.b16 %v1058
        %v1091 = vunpack.c.l.b16 %v1059
        %v1092 = vunpack.c.l.b16 %v1060
        %v1093 = vunpack.c.l.b16 %v1061
        %v1094 = vunpack.c.l.b16 %v1062
        %v1095 = vunpack.c.l.b16 %v1063
        %v1096 = vunpack.c.l.b16 %v1064
        %v1097 = vunpack.c.l.b16 %v1065
        %v1098 = vunpack.c.l.b16 %v1066
        %v1099 = vpack.c.b16 %v1084, %v1083
        %v1100 = vpack.c.b16 %v1086, %v1085
        %v1101 = vpack.c.b16 %v1088, %v1087
        %v1102 = vpack.c.b16 %v1090, %v1089
        %v1103 = vpack.c.b16 %v1092, %v1091
        %v1104 = vpack.c.b16 %v1094, %v1093
        %v1105 = vpack.c.b16 %v1096, %v1095
        %v1106 = vpack.c.b16 %v1098, %v1097
        %v1107 = vrot.slane %v1099, 6
        %v1108 = vrot.slane %v1100, 6
        %v1109 = vrot.slane %v1101, 6
        %v1110 = vrot.slane %v1102, 6
        %v1111 = vrot.slane %v1103, 6
        %v1112 = vrot.slane %v1104, 6
        %v1113 = vrot.slane %v1105, 6
        %v1114 = vrot.slane %v1106, 6
        %1123 = vst [vmem:[#allocation2 + $0x40] sm:$0xcc] %v1107
        %1124 = vst [vmem:[#allocation2 + $0x48] sm:$0xcc] %v1108
        %1125 = vst [vmem:[#allocation2 + $0x50] sm:$0xcc] %v1109
        %1126 = vst [vmem:[#allocation2 + $0x58] sm:$0xcc] %v1110
        %1127 = vst [vmem:[#allocation2 + $0x60] sm:$0xcc] %v1111
        %1128 = vst [vmem:[#allocation2 + $0x68] sm:$0xcc] %v1112
        %1129 = vst [vmem:[#allocation2 + $0x70] sm:$0xcc] %v1113
        %1130 = vst [vmem:[#allocation2 + $0x78] sm:$0xcc] %v1114
        %1138 = vst [vmem:[#allocation2 + $0x180] sm:$0x33] %v1100
        %1139 = vst [vmem:[#allocation2 + $0x188] sm:$0x33] %v1101
        %1140 = vst [vmem:[#allocation2 + $0x190] sm:$0x33] %v1102
        %1141 = vst [vmem:[#allocation2 + $0x198] sm:$0x33] %v1103
        %1142 = vst [vmem:[#allocation2 + $0x1a0] sm:$0x33] %v1104
        %1143 = vst [vmem:[#allocation2 + $0x1a8] sm:$0x33] %v1105
        %1144 = vst [vmem:[#allocation2 + $0x1b0] sm:$0x33] %v1106
        %1145 = vst [vmem:[#allocation2 + $0x280] sm:$0xcc] %v1109
        %1146 = vst [vmem:[#allocation2 + $0x288] sm:$0xcc] %v1110
        %1147 = vst [vmem:[#allocation2 + $0x290] sm:$0xcc] %v1111
        %1148 = vst [vmem:[#allocation2 + $0x298] sm:$0xcc] %v1112
        %1149 = vst [vmem:[#allocation2 + $0x2a0] sm:$0xcc] %v1113
        %1150 = vst [vmem:[#allocation2 + $0x2a8] sm:$0xcc] %v1114
        %v1151 = vpack.c.bf16 %v299, %v299
        %v1152 = vpack.c.bf16 %v315, %v315
        %v1153 = vpack.c.bf16 %v300, %v300
        %v1154 = vpack.c.bf16 %v316, %v316
        %v1155 = vpack.c.bf16 %v301, %v301
        %v1156 = vpack.c.bf16 %v317, %v317
        %v1157 = vpack.c.bf16 %v302, %v302
        %v1158 = vpack.c.bf16 %v318, %v318
        %v1159 = vpack.c.bf16 %v303, %v303
        %v1160 = vpack.c.bf16 %v319, %v319
        %v1161 = vpack.c.bf16 %v304, %v304
        %v1162 = vpack.c.bf16 %v320, %v320
        %v1163 = vpack.c.bf16 %v305, %v305
        %v1164 = vpack.c.bf16 %v321, %v321
        %v1165 = vpack.c.bf16 %v306, %v306
        %v1166 = vpack.c.bf16 %v322, %v322
        %v1183 = vunpack.c.l.b16 %v1151
        %v1184 = vunpack.c.l.b16 %v1152
        %v1185 = vunpack.c.l.b16 %v1153
        %v1186 = vunpack.c.l.b16 %v1154
        %v1187 = vunpack.c.l.b16 %v1155
        %v1188 = vunpack.c.l.b16 %v1156
        %v1189 = vunpack.c.l.b16 %v1157
        %v1190 = vunpack.c.l.b16 %v1158
        %v1191 = vunpack.c.l.b16 %v1159
        %v1192 = vunpack.c.l.b16 %v1160
        %v1193 = vunpack.c.l.b16 %v1161
        %v1194 = vunpack.c.l.b16 %v1162
        %v1195 = vunpack.c.l.b16 %v1163
        %v1196 = vunpack.c.l.b16 %v1164
        %v1197 = vunpack.c.l.b16 %v1165
        %v1198 = vunpack.c.l.b16 %v1166
        %v1199 = vpack.c.b16 %v1184, %v1183
        %v1200 = vpack.c.b16 %v1186, %v1185
        %v1201 = vpack.c.b16 %v1188, %v1187
        %v1202 = vpack.c.b16 %v1190, %v1189
        %v1203 = vpack.c.b16 %v1192, %v1191
        %v1204 = vpack.c.b16 %v1194, %v1193
        %v1205 = vpack.c.b16 %v1196, %v1195
        %v1206 = vpack.c.b16 %v1198, %v1197
        %1215 = vst [vmem:[#allocation2 + $0x80] sm:$0x33] %v1199
        %1216 = vst [vmem:[#allocation2 + $0x88] sm:$0x33] %v1200
        %1217 = vst [vmem:[#allocation2 + $0x90] sm:$0x33] %v1201
        %1218 = vst [vmem:[#allocation2 + $0x98] sm:$0x33] %v1202
        %1219 = vst [vmem:[#allocation2 + $0xa0] sm:$0x33] %v1203
        %1220 = vst [vmem:[#allocation2 + $0xa8] sm:$0x33] %v1204
        %1221 = vst [vmem:[#allocation2 + $0xb0] sm:$0x33] %v1205
        %1222 = vst [vmem:[#allocation2 + $0xb8] sm:$0x33] %v1206
        %v1223 = vrot.slane %v1200, 6
        %v1224 = vrot.slane %v1201, 6
        %v1225 = vrot.slane %v1202, 6
        %v1226 = vrot.slane %v1203, 6
        %v1227 = vrot.slane %v1204, 6
        %v1228 = vrot.slane %v1205, 6
        %v1229 = vrot.slane %v1206, 6
        %1237 = vst [vmem:[#allocation2 + $0x180] sm:$0xcc] %v1223
        %1238 = vst [vmem:[#allocation2 + $0x188] sm:$0xcc] %v1224
        %1239 = vst [vmem:[#allocation2 + $0x190] sm:$0xcc] %v1225
        %1240 = vst [vmem:[#allocation2 + $0x198] sm:$0xcc] %v1226
        %1241 = vst [vmem:[#allocation2 + $0x1a0] sm:$0xcc] %v1227
        %1242 = vst [vmem:[#allocation2 + $0x1a8] sm:$0xcc] %v1228
        %1243 = vst [vmem:[#allocation2 + $0x1b0] sm:$0xcc] %v1229
        %1244 = vst [vmem:[#allocation2 + $0x2c0] sm:$0x33] %v1201
        %1245 = vst [vmem:[#allocation2 + $0x2c8] sm:$0x33] %v1202
        %1246 = vst [vmem:[#allocation2 + $0x2d0] sm:$0x33] %v1203
        %1247 = vst [vmem:[#allocation2 + $0x2d8] sm:$0x33] %v1204
        %1248 = vst [vmem:[#allocation2 + $0x2e0] sm:$0x33] %v1205
        %1249 = vst [vmem:[#allocation2 + $0x2e8] sm:$0x33] %v1206
        %1250 = vrot.lane.b32.xlu0 %v299, 127
        %v1251 = vpop.permute.xlu0 %1250
        %1252 = vrot.lane.b32.xlu0 %v315, 127
        %v1253 = vpop.permute.xlu0 %1252
        %1254 = vrot.lane.b32.xlu0 %v300, 127
        %v1255 = vpop.permute.xlu0 %1254
        %1256 = vrot.lane.b32.xlu0 %v316, 127
        %v1257 = vpop.permute.xlu0 %1256
        %1258 = vrot.lane.b32.xlu0 %v301, 127
        %v1259 = vpop.permute.xlu0 %1258
        %1260 = vrot.lane.b32.xlu0 %v317, 127
        %v1261 = vpop.permute.xlu0 %1260
        %1262 = vrot.lane.b32.xlu0 %v302, 127
        %v1263 = vpop.permute.xlu0 %1262
        %1264 = vrot.lane.b32.xlu0 %v318, 127
        %v1265 = vpop.permute.xlu0 %1264
        %1266 = vrot.lane.b32.xlu0 %v303, 127
        %v1267 = vpop.permute.xlu0 %1266
        %1268 = vrot.lane.b32.xlu0 %v319, 127
        %v1269 = vpop.permute.xlu0 %1268
        %1270 = vrot.lane.b32.xlu0 %v304, 127
        %v1271 = vpop.permute.xlu0 %1270
        %1272 = vrot.lane.b32.xlu0 %v320, 127
        %v1273 = vpop.permute.xlu0 %1272
        %1274 = vrot.lane.b32.xlu0 %v305, 127
        %v1275 = vpop.permute.xlu0 %1274
        %1276 = vrot.lane.b32.xlu0 %v321, 127
        %v1277 = vpop.permute.xlu0 %1276
        %1278 = vrot.lane.b32.xlu0 %v306, 127
        %v1279 = vpop.permute.xlu0 %1278
        %1280 = vrot.lane.b32.xlu0 %v322, 127
        %v1281 = vpop.permute.xlu0 %1280
        %vm1282 = vcmp.lt.s32.totalorder %v364, 127
        %v1283 = vsel %vm1282, %v1279, %v1281
        %v1284 = vsel %vm1282, %v1277, %v1279
        %v1285 = vsel %vm1282, %v1275, %v1277
        %v1286 = vsel %vm1282, %v1273, %v1275
        %v1287 = vsel %vm1282, %v1271, %v1273
        %v1288 = vsel %vm1282, %v1269, %v1271
        %v1289 = vsel %vm1282, %v1267, %v1269
        %v1290 = vsel %vm1282, %v1265, %v1267
        %v1291 = vsel %vm1282, %v1263, %v1265
        %v1292 = vsel %vm1282, %v1261, %v1263
        %v1293 = vsel %vm1282, %v1259, %v1261
        %v1294 = vsel %vm1282, %v1257, %v1259
        %v1295 = vsel %vm1282, %v1255, %v1257
        %v1296 = vsel %vm1282, %v1253, %v1255
        %v1297 = vsel %vm1282, %v1251, %v1253
        %v1298 = vsel %vm1282, %v1281, %v1251
        %v1299 = vld [vmem:[#allocation6 + $0x100] sm:$0xf0]
        %v1300 = vld [vmem:[#allocation6 + $0x108] sm:$0xf0]
        %v1301 = vld [vmem:[#allocation6 + $0x110] sm:$0xf0]
        %v1302 = vld [vmem:[#allocation6 + $0x118] sm:$0xf0]
        %v1303 = vld [vmem:[#allocation6 + $0x120] sm:$0xf0]
        %v1304 = vld [vmem:[#allocation6 + $0x128] sm:$0xf0]
        %v1305 = vld [vmem:[#allocation6 + $0x130] sm:$0xf0]
        %v1306 = vld [vmem:[#allocation6 + $0x138] sm:$0xf0]
        %v1307 = vld [vmem:[#allocation6 + $0x140] sm:$0xf0]
        %v1308 = vld [vmem:[#allocation6 + $0x148] sm:$0xf0]
        %v1309 = vld [vmem:[#allocation6 + $0x150] sm:$0xf0]
        %v1310 = vld [vmem:[#allocation6 + $0x158] sm:$0xf0]
        %v1311 = vld [vmem:[#allocation6 + $0x160] sm:$0xf0]
        %v1312 = vld [vmem:[#allocation6 + $0x168] sm:$0xf0]
        %v1313 = vld [vmem:[#allocation6 + $0x170] sm:$0xf0]
        %v1314 = vld [vmem:[#allocation6 + $0x178] sm:$0xf0]
        %v1331 = vrot.slane %v1299, 4
        %v1332 = vrot.slane %v1300, 4
        %v1333 = vrot.slane %v1301, 4
        %v1334 = vrot.slane %v1302, 4
        %v1335 = vrot.slane %v1303, 4
        %v1336 = vrot.slane %v1304, 4
        %v1337 = vrot.slane %v1305, 4
        %v1338 = vrot.slane %v1306, 4
        %v1339 = vrot.slane %v1307, 4
        %v1340 = vrot.slane %v1308, 4
        %v1341 = vrot.slane %v1309, 4
        %v1342 = vrot.slane %v1310, 4
        %v1343 = vrot.slane %v1311, 4
        %v1344 = vrot.slane %v1312, 4
        %v1345 = vrot.slane %v1313, 4
        %v1346 = vrot.slane %v1314, 4
        %v1363 = vmul.f32 %v1297, %v1331
        %v1364 = vmul.f32 %v1296, %v1332
        %v1365 = vmul.f32 %v1295, %v1333
        %v1366 = vmul.f32 %v1294, %v1334
        %v1367 = vmul.f32 %v1293, %v1335
        %v1368 = vmul.f32 %v1292, %v1336
        %v1369 = vmul.f32 %v1291, %v1337
        %v1370 = vmul.f32 %v1290, %v1338
        %v1371 = vmul.f32 %v1289, %v1339
        %v1372 = vmul.f32 %v1288, %v1340
        %v1373 = vmul.f32 %v1287, %v1341
        %v1374 = vmul.f32 %v1286, %v1342
        %v1375 = vmul.f32 %v1285, %v1343
        %v1376 = vmul.f32 %v1284, %v1344
        %v1377 = vmul.f32 %v1283, %v1345
        %v1378 = vmul.f32 %v1298, %v1346
        %v1379 = vpack.c.bf16 %v1363, %v1363
        %v1380 = vpack.c.bf16 %v1364, %v1364
        %v1381 = vpack.c.bf16 %v1365, %v1365
        %v1382 = vpack.c.bf16 %v1366, %v1366
        %v1383 = vpack.c.bf16 %v1367, %v1367
        %v1384 = vpack.c.bf16 %v1368, %v1368
        %v1385 = vpack.c.bf16 %v1369, %v1369
        %v1386 = vpack.c.bf16 %v1370, %v1370
        %v1387 = vpack.c.bf16 %v1371, %v1371
        %v1388 = vpack.c.bf16 %v1372, %v1372
        %v1389 = vpack.c.bf16 %v1373, %v1373
        %v1390 = vpack.c.bf16 %v1374, %v1374
        %v1391 = vpack.c.bf16 %v1375, %v1375
        %v1392 = vpack.c.bf16 %v1376, %v1376
        %v1393 = vpack.c.bf16 %v1377, %v1377
        %v1394 = vpack.c.bf16 %v1378, %v1378
        %v1411 = vunpack.c.l.b16 %v1379
        %v1412 = vunpack.c.l.b16 %v1380
        %v1413 = vunpack.c.l.b16 %v1381
        %v1414 = vunpack.c.l.b16 %v1382
        %v1415 = vunpack.c.l.b16 %v1383
        %v1416 = vunpack.c.l.b16 %v1384
        %v1417 = vunpack.c.l.b16 %v1385
        %v1418 = vunpack.c.l.b16 %v1386
        %v1419 = vunpack.c.l.b16 %v1387
        %v1420 = vunpack.c.l.b16 %v1388
        %v1421 = vunpack.c.l.b16 %v1389
        %v1422 = vunpack.c.l.b16 %v1390
        %v1423 = vunpack.c.l.b16 %v1391
        %v1424 = vunpack.c.l.b16 %v1392
        %v1425 = vunpack.c.l.b16 %v1393
        %v1426 = vunpack.c.l.b16 %v1394
        %v1427 = vpack.c.b16 %v1412, %v1411
        %v1428 = vpack.c.b16 %v1414, %v1413
        %v1429 = vpack.c.b16 %v1416, %v1415
        %v1430 = vpack.c.b16 %v1418, %v1417
        %v1431 = vpack.c.b16 %v1420, %v1419
        %v1432 = vpack.c.b16 %v1422, %v1421
        %v1433 = vpack.c.b16 %v1424, %v1423
        %v1434 = vpack.c.b16 %v1426, %v1425
        %v1435 = vrot.slane %v1427, 6
        %v1436 = vrot.slane %v1428, 6
        %v1437 = vrot.slane %v1429, 6
        %v1438 = vrot.slane %v1430, 6
        %v1439 = vrot.slane %v1431, 6
        %v1440 = vrot.slane %v1432, 6
        %v1441 = vrot.slane %v1433, 6
        %v1442 = vrot.slane %v1434, 6
        %1451 = vst [vmem:[#allocation2 + $0x80] sm:$0xcc] %v1435
        %1452 = vst [vmem:[#allocation2 + $0x88] sm:$0xcc] %v1436
        %1453 = vst [vmem:[#allocation2 + $0x90] sm:$0xcc] %v1437
        %1454 = vst [vmem:[#allocation2 + $0x98] sm:$0xcc] %v1438
        %1455 = vst [vmem:[#allocation2 + $0xa0] sm:$0xcc] %v1439
        %1456 = vst [vmem:[#allocation2 + $0xa8] sm:$0xcc] %v1440
        %1457 = vst [vmem:[#allocation2 + $0xb0] sm:$0xcc] %v1441
        %1458 = vst [vmem:[#allocation2 + $0xb8] sm:$0xcc] %v1442
        %1466 = vst [vmem:[#allocation2 + $0x1c0] sm:$0x33] %v1428
        %1467 = vst [vmem:[#allocation2 + $0x1c8] sm:$0x33] %v1429
        %1468 = vst [vmem:[#allocation2 + $0x1d0] sm:$0x33] %v1430
        %1469 = vst [vmem:[#allocation2 + $0x1d8] sm:$0x33] %v1431
        %1470 = vst [vmem:[#allocation2 + $0x1e0] sm:$0x33] %v1432
        %1471 = vst [vmem:[#allocation2 + $0x1e8] sm:$0x33] %v1433
        %1472 = vst [vmem:[#allocation2 + $0x1f0] sm:$0x33] %v1434
        %1473 = vst [vmem:[#allocation2 + $0x2c0] sm:$0xcc] %v1437
        %1474 = vst [vmem:[#allocation2 + $0x2c8] sm:$0xcc] %v1438
        %1475 = vst [vmem:[#allocation2 + $0x2d0] sm:$0xcc] %v1439
        %1476 = vst [vmem:[#allocation2 + $0x2d8] sm:$0xcc] %v1440
        %1477 = vst [vmem:[#allocation2 + $0x2e0] sm:$0xcc] %v1441
        %1478 = vst [vmem:[#allocation2 + $0x2e8] sm:$0xcc] %v1442
        %1479 = vrot.lane.b32.xlu0 %v299, 113
        %v1480 = vpop.permute.xlu0 %1479
        %1481 = vrot.lane.b32.xlu0 %v315, 113
        %v1482 = vpop.permute.xlu0 %1481
        %1483 = vrot.lane.b32.xlu0 %v300, 113
        %v1484 = vpop.permute.xlu0 %1483
        %1485 = vrot.lane.b32.xlu0 %v316, 113
        %v1486 = vpop.permute.xlu0 %1485
        %1487 = vrot.lane.b32.xlu0 %v301, 113
        %v1488 = vpop.permute.xlu0 %1487
        %1489 = vrot.lane.b32.xlu0 %v317, 113
        %v1490 = vpop.permute.xlu0 %1489
        %1491 = vrot.lane.b32.xlu0 %v302, 113
        %v1492 = vpop.permute.xlu0 %1491
        %1493 = vrot.lane.b32.xlu0 %v318, 113
        %v1494 = vpop.permute.xlu0 %1493
        %1495 = vrot.lane.b32.xlu0 %v303, 113
        %v1496 = vpop.permute.xlu0 %1495
        %1497 = vrot.lane.b32.xlu0 %v319, 113
        %v1498 = vpop.permute.xlu0 %1497
        %1499 = vrot.lane.b32.xlu0 %v304, 113
        %v1500 = vpop.permute.xlu0 %1499
        %1501 = vrot.lane.b32.xlu0 %v320, 113
        %v1502 = vpop.permute.xlu0 %1501
        %1503 = vrot.lane.b32.xlu0 %v305, 113
        %v1504 = vpop.permute.xlu0 %1503
        %1505 = vrot.lane.b32.xlu0 %v321, 113
        %v1506 = vpop.permute.xlu0 %1505
        %1507 = vrot.lane.b32.xlu0 %v306, 113
        %v1508 = vpop.permute.xlu0 %1507
        %1509 = vrot.lane.b32.xlu0 %v322, 113
        %v1510 = vpop.permute.xlu0 %1509
        %vm1511 = vcmp.lt.s32.totalorder %v364, 113
        %v1512 = vsel %vm1511, %v1508, %v1510
        %v1513 = vsel %vm1511, %v1506, %v1508
        %v1514 = vsel %vm1511, %v1504, %v1506
        %v1515 = vsel %vm1511, %v1502, %v1504
        %v1516 = vsel %vm1511, %v1500, %v1502
        %v1517 = vsel %vm1511, %v1498, %v1500
        %v1518 = vsel %vm1511, %v1496, %v1498
        %v1519 = vsel %vm1511, %v1494, %v1496
        %v1520 = vsel %vm1511, %v1492, %v1494
        %v1521 = vsel %vm1511, %v1490, %v1492
        %v1522 = vsel %vm1511, %v1488, %v1490
        %v1523 = vsel %vm1511, %v1486, %v1488
        %v1524 = vsel %vm1511, %v1484, %v1486
        %v1525 = vsel %vm1511, %v1482, %v1484
        %v1526 = vsel %vm1511, %v1480, %v1482
        %v1527 = vsel %vm1511, %v1510, %v1480
        %v1528 = vld [vmem:[#allocation6 + $0x180] sm:$0xf]
        %v1529 = vld [vmem:[#allocation6 + $0x188] sm:$0xf]
        %v1530 = vld [vmem:[#allocation6 + $0x190] sm:$0xf]
        %v1531 = vld [vmem:[#allocation6 + $0x198] sm:$0xf]
        %v1532 = vld [vmem:[#allocation6 + $0x1a0] sm:$0xf]
        %v1533 = vld [vmem:[#allocation6 + $0x1a8] sm:$0xf]
        %v1534 = vld [vmem:[#allocation6 + $0x1b0] sm:$0xf]
        %v1535 = vld [vmem:[#allocation6 + $0x1b8] sm:$0xf]
        %v1536 = vld [vmem:[#allocation6 + $0x1c0] sm:$0xf]
        %v1537 = vld [vmem:[#allocation6 + $0x1c8] sm:$0xf]
        %v1538 = vld [vmem:[#allocation6 + $0x1d0] sm:$0xf]
        %v1539 = vld [vmem:[#allocation6 + $0x1d8] sm:$0xf]
        %v1540 = vld [vmem:[#allocation6 + $0x1e0] sm:$0xf]
        %v1541 = vld [vmem:[#allocation6 + $0x1e8] sm:$0xf]
        %v1542 = vld [vmem:[#allocation6 + $0x1f0] sm:$0xf]
        %v1543 = vld [vmem:[#allocation6 + $0x1f8] sm:$0xf]
        %v1544 = vmul.f32 %v1526, %v1528
        %v1545 = vmul.f32 %v1525, %v1529
        %v1546 = vmul.f32 %v1524, %v1530
        %v1547 = vmul.f32 %v1523, %v1531
        %v1548 = vmul.f32 %v1522, %v1532
        %v1549 = vmul.f32 %v1521, %v1533
        %v1550 = vmul.f32 %v1520, %v1534
        %v1551 = vmul.f32 %v1519, %v1535
        %v1552 = vmul.f32 %v1518, %v1536
        %v1553 = vmul.f32 %v1517, %v1537
        %v1554 = vmul.f32 %v1516, %v1538
        %v1555 = vmul.f32 %v1515, %v1539
        %v1556 = vmul.f32 %v1514, %v1540
        %v1557 = vmul.f32 %v1513, %v1541
        %v1558 = vmul.f32 %v1512, %v1542
        %v1559 = vmul.f32 %v1527, %v1543
        %v1560 = vpack.c.bf16 %v1544, %v1544
        %v1561 = vpack.c.bf16 %v1545, %v1545
        %v1562 = vpack.c.bf16 %v1546, %v1546
        %v1563 = vpack.c.bf16 %v1547, %v1547
        %v1564 = vpack.c.bf16 %v1548, %v1548
        %v1565 = vpack.c.bf16 %v1549, %v1549
        %v1566 = vpack.c.bf16 %v1550, %v1550
        %v1567 = vpack.c.bf16 %v1551, %v1551
        %v1568 = vpack.c.bf16 %v1552, %v1552
        %v1569 = vpack.c.bf16 %v1553, %v1553
        %v1570 = vpack.c.bf16 %v1554, %v1554
        %v1571 = vpack.c.bf16 %v1555, %v1555
        %v1572 = vpack.c.bf16 %v1556, %v1556
        %v1573 = vpack.c.bf16 %v1557, %v1557
        %v1574 = vpack.c.bf16 %v1558, %v1558
        %v1575 = vpack.c.bf16 %v1559, %v1559
        %v1592 = vunpack.c.l.b16 %v1560
        %v1593 = vunpack.c.l.b16 %v1561
        %v1594 = vunpack.c.l.b16 %v1562
        %v1595 = vunpack.c.l.b16 %v1563
        %v1596 = vunpack.c.l.b16 %v1564
        %v1597 = vunpack.c.l.b16 %v1565
        %v1598 = vunpack.c.l.b16 %v1566
        %v1599 = vunpack.c.l.b16 %v1567
        %v1600 = vunpack.c.l.b16 %v1568
        %v1601 = vunpack.c.l.b16 %v1569
        %v1602 = vunpack.c.l.b16 %v1570
        %v1603 = vunpack.c.l.b16 %v1571
        %v1604 = vunpack.c.l.b16 %v1572
        %v1605 = vunpack.c.l.b16 %v1573
        %v1606 = vunpack.c.l.b16 %v1574
        %v1607 = vunpack.c.l.b16 %v1575
        %v1608 = vpack.c.b16 %v1593, %v1592
        %v1609 = vpack.c.b16 %v1595, %v1594
        %v1610 = vpack.c.b16 %v1597, %v1596
        %v1611 = vpack.c.b16 %v1599, %v1598
        %v1612 = vpack.c.b16 %v1601, %v1600
        %v1613 = vpack.c.b16 %v1603, %v1602
        %v1614 = vpack.c.b16 %v1605, %v1604
        %v1615 = vpack.c.b16 %v1607, %v1606
        %1624 = vst [vmem:[#allocation2 + $0xc0] sm:$0x33] %v1608
        %1625 = vst [vmem:[#allocation2 + $0xc8] sm:$0x33] %v1609
        %1626 = vst [vmem:[#allocation2 + $0xd0] sm:$0x33] %v1610
        %1627 = vst [vmem:[#allocation2 + $0xd8] sm:$0x33] %v1611
        %1628 = vst [vmem:[#allocation2 + $0xe0] sm:$0x33] %v1612
        %1629 = vst [vmem:[#allocation2 + $0xe8] sm:$0x33] %v1613
        %1630 = vst [vmem:[#allocation2 + $0xf0] sm:$0x33] %v1614
        %1631 = vst [vmem:[#allocation2 + $0xf8] sm:$0x33] %v1615
        %v1632 = vrot.slane %v1609, 6
        %v1633 = vrot.slane %v1610, 6
        %v1634 = vrot.slane %v1611, 6
        %v1635 = vrot.slane %v1612, 6
        %v1636 = vrot.slane %v1613, 6
        %v1637 = vrot.slane %v1614, 6
        %v1638 = vrot.slane %v1615, 6
        %1646 = vst [vmem:[#allocation2 + $0x1c0] sm:$0xcc] %v1632
        %1647 = vst [vmem:[#allocation2 + $0x1c8] sm:$0xcc] %v1633
        %1648 = vst [vmem:[#allocation2 + $0x1d0] sm:$0xcc] %v1634
        %1649 = vst [vmem:[#allocation2 + $0x1d8] sm:$0xcc] %v1635
        %1650 = vst [vmem:[#allocation2 + $0x1e0] sm:$0xcc] %v1636
        %1651 = vst [vmem:[#allocation2 + $0x1e8] sm:$0xcc] %v1637
        %1652 = vst [vmem:[#allocation2 + $0x1f0] sm:$0xcc] %v1638
        %1653 = vst [vmem:[#allocation2 + $0x300] sm:$0x33] %v1610
        %1654 = vst [vmem:[#allocation2 + $0x308] sm:$0x33] %v1611
        %1655 = vst [vmem:[#allocation2 + $0x310] sm:$0x33] %v1612
        %1656 = vst [vmem:[#allocation2 + $0x318] sm:$0x33] %v1613
        %1657 = vst [vmem:[#allocation2 + $0x320] sm:$0x33] %v1614
        %1658 = vst [vmem:[#allocation2 + $0x328] sm:$0x33] %v1615
        %1659 = vrot.lane.b32.xlu0 %v299, 112
        %v1660 = vpop.permute.xlu0 %1659
        %1661 = vrot.lane.b32.xlu0 %v315, 112
        %v1662 = vpop.permute.xlu0 %1661
        %1663 = vrot.lane.b32.xlu0 %v300, 112
        %v1664 = vpop.permute.xlu0 %1663
        %1665 = vrot.lane.b32.xlu0 %v316, 112
        %v1666 = vpop.permute.xlu0 %1665
        %1667 = vrot.lane.b32.xlu0 %v301, 112
        %v1668 = vpop.permute.xlu0 %1667
        %1669 = vrot.lane.b32.xlu0 %v317, 112
        %v1670 = vpop.permute.xlu0 %1669
        %1671 = vrot.lane.b32.xlu0 %v302, 112
        %v1672 = vpop.permute.xlu0 %1671
        %1673 = vrot.lane.b32.xlu0 %v318, 112
        %v1674 = vpop.permute.xlu0 %1673
        %1675 = vrot.lane.b32.xlu0 %v303, 112
        %v1676 = vpop.permute.xlu0 %1675
        %1677 = vrot.lane.b32.xlu0 %v319, 112
        %v1678 = vpop.permute.xlu0 %1677
        %1679 = vrot.lane.b32.xlu0 %v304, 112
        %v1680 = vpop.permute.xlu0 %1679
        %1681 = vrot.lane.b32.xlu0 %v320, 112
        %v1682 = vpop.permute.xlu0 %1681
        %1683 = vrot.lane.b32.xlu0 %v305, 112
        %v1684 = vpop.permute.xlu0 %1683
        %1685 = vrot.lane.b32.xlu0 %v321, 112
        %v1686 = vpop.permute.xlu0 %1685
        %1687 = vrot.lane.b32.xlu0 %v306, 112
        %v1688 = vpop.permute.xlu0 %1687
        %1689 = vrot.lane.b32.xlu0 %v322, 112
        %v1690 = vpop.permute.xlu0 %1689
        %vm1691 = vcmp.lt.s32.totalorder %v364, 112
        %v1692 = vsel %vm1691, %v1688, %v1690
        %v1693 = vsel %vm1691, %v1686, %v1688
        %v1694 = vsel %vm1691, %v1684, %v1686
        %v1695 = vsel %vm1691, %v1682, %v1684
        %v1696 = vsel %vm1691, %v1680, %v1682
        %v1697 = vsel %vm1691, %v1678, %v1680
        %v1698 = vsel %vm1691, %v1676, %v1678
        %v1699 = vsel %vm1691, %v1674, %v1676
        %v1700 = vsel %vm1691, %v1672, %v1674
        %v1701 = vsel %vm1691, %v1670, %v1672
        %v1702 = vsel %vm1691, %v1668, %v1670
        %v1703 = vsel %vm1691, %v1666, %v1668
        %v1704 = vsel %vm1691, %v1664, %v1666
        %v1705 = vsel %vm1691, %v1662, %v1664
        %v1706 = vsel %vm1691, %v1660, %v1662
        %v1707 = vsel %vm1691, %v1690, %v1660
        %v1708 = vld [vmem:[#allocation6 + $0x180] sm:$0xf0]
        %v1709 = vld [vmem:[#allocation6 + $0x188] sm:$0xf0]
        %v1710 = vld [vmem:[#allocation6 + $0x190] sm:$0xf0]
        %v1711 = vld [vmem:[#allocation6 + $0x198] sm:$0xf0]
        %v1712 = vld [vmem:[#allocation6 + $0x1a0] sm:$0xf0]
        %v1713 = vld [vmem:[#allocation6 + $0x1a8] sm:$0xf0]
        %v1714 = vld [vmem:[#allocation6 + $0x1b0] sm:$0xf0]
        %v1715 = vld [vmem:[#allocation6 + $0x1b8] sm:$0xf0]
        %v1716 = vld [vmem:[#allocation6 + $0x1c0] sm:$0xf0]
        %v1717 = vld [vmem:[#allocation6 + $0x1c8] sm:$0xf0]
        %v1718 = vld [vmem:[#allocation6 + $0x1d0] sm:$0xf0]
        %v1719 = vld [vmem:[#allocation6 + $0x1d8] sm:$0xf0]
        %v1720 = vld [vmem:[#allocation6 + $0x1e0] sm:$0xf0]
        %v1721 = vld [vmem:[#allocation6 + $0x1e8] sm:$0xf0]
        %v1722 = vld [vmem:[#allocation6 + $0x1f0] sm:$0xf0]
        %v1723 = vld [vmem:[#allocation6 + $0x1f8] sm:$0xf0]
        %v1740 = vrot.slane %v1708, 4
        %v1741 = vrot.slane %v1709, 4
        %v1742 = vrot.slane %v1710, 4
        %v1743 = vrot.slane %v1711, 4
        %v1744 = vrot.slane %v1712, 4
        %v1745 = vrot.slane %v1713, 4
        %v1746 = vrot.slane %v1714, 4
        %v1747 = vrot.slane %v1715, 4
        %v1748 = vrot.slane %v1716, 4
        %v1749 = vrot.slane %v1717, 4
        %v1750 = vrot.slane %v1718, 4
        %v1751 = vrot.slane %v1719, 4
        %v1752 = vrot.slane %v1720, 4
        %v1753 = vrot.slane %v1721, 4
        %v1754 = vrot.slane %v1722, 4
        %v1755 = vrot.slane %v1723, 4
        %v1772 = vmul.f32 %v1706, %v1740
        %v1773 = vmul.f32 %v1705, %v1741
        %v1774 = vmul.f32 %v1704, %v1742
        %v1775 = vmul.f32 %v1703, %v1743
        %v1776 = vmul.f32 %v1702, %v1744
        %v1777 = vmul.f32 %v1701, %v1745
        %v1778 = vmul.f32 %v1700, %v1746
        %v1779 = vmul.f32 %v1699, %v1747
        %v1780 = vmul.f32 %v1698, %v1748
        %v1781 = vmul.f32 %v1697, %v1749
        %v1782 = vmul.f32 %v1696, %v1750
        %v1783 = vmul.f32 %v1695, %v1751
        %v1784 = vmul.f32 %v1694, %v1752
        %v1785 = vmul.f32 %v1693, %v1753
        %v1786 = vmul.f32 %v1692, %v1754
        %v1787 = vmul.f32 %v1707, %v1755
        %v1788 = vpack.c.bf16 %v1772, %v1772
        %v1789 = vpack.c.bf16 %v1773, %v1773
        %v1790 = vpack.c.bf16 %v1774, %v1774
        %v1791 = vpack.c.bf16 %v1775, %v1775
        %v1792 = vpack.c.bf16 %v1776, %v1776
        %v1793 = vpack.c.bf16 %v1777, %v1777
        %v1794 = vpack.c.bf16 %v1778, %v1778
        %v1795 = vpack.c.bf16 %v1779, %v1779
        %v1796 = vpack.c.bf16 %v1780, %v1780
        %v1797 = vpack.c.bf16 %v1781, %v1781
        %v1798 = vpack.c.bf16 %v1782, %v1782
        %v1799 = vpack.c.bf16 %v1783, %v1783
        %v1800 = vpack.c.bf16 %v1784, %v1784
        %v1801 = vpack.c.bf16 %v1785, %v1785
        %v1802 = vpack.c.bf16 %v1786, %v1786
        %v1803 = vpack.c.bf16 %v1787, %v1787
        %v1820 = vunpack.c.l.b16 %v1788
        %v1821 = vunpack.c.l.b16 %v1789
        %v1822 = vunpack.c.l.b16 %v1790
        %v1823 = vunpack.c.l.b16 %v1791
        %v1824 = vunpack.c.l.b16 %v1792
        %v1825 = vunpack.c.l.b16 %v1793
        %v1826 = vunpack.c.l.b16 %v1794
        %v1827 = vunpack.c.l.b16 %v1795
        %v1828 = vunpack.c.l.b16 %v1796
        %v1829 = vunpack.c.l.b16 %v1797
        %v1830 = vunpack.c.l.b16 %v1798
        %v1831 = vunpack.c.l.b16 %v1799
        %v1832 = vunpack.c.l.b16 %v1800
        %v1833 = vunpack.c.l.b16 %v1801
        %v1834 = vunpack.c.l.b16 %v1802
        %v1835 = vunpack.c.l.b16 %v1803
        %v1836 = vpack.c.b16 %v1821, %v1820
        %v1837 = vpack.c.b16 %v1823, %v1822
        %v1838 = vpack.c.b16 %v1825, %v1824
        %v1839 = vpack.c.b16 %v1827, %v1826
        %v1840 = vpack.c.b16 %v1829, %v1828
        %v1841 = vpack.c.b16 %v1831, %v1830
        %v1842 = vpack.c.b16 %v1833, %v1832
        %v1843 = vpack.c.b16 %v1835, %v1834
        %v1844 = vrot.slane %v1836, 6
        %v1845 = vrot.slane %v1837, 6
        %v1846 = vrot.slane %v1838, 6
        %v1847 = vrot.slane %v1839, 6
        %v1848 = vrot.slane %v1840, 6
        %v1849 = vrot.slane %v1841, 6
        %v1850 = vrot.slane %v1842, 6
        %v1851 = vrot.slane %v1843, 6
        %1860 = vst [vmem:[#allocation2 + $0xc0] sm:$0xcc] %v1844
        %1861 = vst [vmem:[#allocation2 + $0xc8] sm:$0xcc] %v1845
        %1862 = vst [vmem:[#allocation2 + $0xd0] sm:$0xcc] %v1846
        %1863 = vst [vmem:[#allocation2 + $0xd8] sm:$0xcc] %v1847
        %1864 = vst [vmem:[#allocation2 + $0xe0] sm:$0xcc] %v1848
        %1865 = vst [vmem:[#allocation2 + $0xe8] sm:$0xcc] %v1849
        %1866 = vst [vmem:[#allocation2 + $0xf0] sm:$0xcc] %v1850
        %1867 = vst [vmem:[#allocation2 + $0xf8] sm:$0xcc] %v1851
        %1875 = vst [vmem:[#allocation2 + $0x200] sm:$0x33] %v1837
        %1876 = vst [vmem:[#allocation2 + $0x208] sm:$0x33] %v1838
        %1877 = vst [vmem:[#allocation2 + $0x210] sm:$0x33] %v1839
        %1878 = vst [vmem:[#allocation2 + $0x218] sm:$0x33] %v1840
        %1879 = vst [vmem:[#allocation2 + $0x220] sm:$0x33] %v1841
        %1880 = vst [vmem:[#allocation2 + $0x228] sm:$0x33] %v1842
        %1881 = vst [vmem:[#allocation2 + $0x230] sm:$0x33] %v1843
        %1882 = vst [vmem:[#allocation2 + $0x300] sm:$0xcc] %v1846
        %1883 = vst [vmem:[#allocation2 + $0x308] sm:$0xcc] %v1847
        %1884 = vst [vmem:[#allocation2 + $0x310] sm:$0xcc] %v1848
        %1885 = vst [vmem:[#allocation2 + $0x318] sm:$0xcc] %v1849
        %1886 = vst [vmem:[#allocation2 + $0x320] sm:$0xcc] %v1850
        %1887 = vst [vmem:[#allocation2 + $0x328] sm:$0xcc] %v1851
        %1888 = vrot.lane.b32.xlu0 %v299, 111
        %v1889 = vpop.permute.xlu0 %1888
        %1890 = vrot.lane.b32.xlu0 %v315, 111
        %v1891 = vpop.permute.xlu0 %1890
        %1892 = vrot.lane.b32.xlu0 %v300, 111
        %v1893 = vpop.permute.xlu0 %1892
        %1894 = vrot.lane.b32.xlu0 %v316, 111
        %v1895 = vpop.permute.xlu0 %1894
        %1896 = vrot.lane.b32.xlu0 %v301, 111
        %v1897 = vpop.permute.xlu0 %1896
        %1898 = vrot.lane.b32.xlu0 %v317, 111
        %v1899 = vpop.permute.xlu0 %1898
        %1900 = vrot.lane.b32.xlu0 %v302, 111
        %v1901 = vpop.permute.xlu0 %1900
        %1902 = vrot.lane.b32.xlu0 %v318, 111
        %v1903 = vpop.permute.xlu0 %1902
        %1904 = vrot.lane.b32.xlu0 %v303, 111
        %v1905 = vpop.permute.xlu0 %1904
        %1906 = vrot.lane.b32.xlu0 %v319, 111
        %v1907 = vpop.permute.xlu0 %1906
        %1908 = vrot.lane.b32.xlu0 %v304, 111
        %v1909 = vpop.permute.xlu0 %1908
        %1910 = vrot.lane.b32.xlu0 %v320, 111
        %v1911 = vpop.permute.xlu0 %1910
        %1912 = vrot.lane.b32.xlu0 %v305, 111
        %v1913 = vpop.permute.xlu0 %1912
        %1914 = vrot.lane.b32.xlu0 %v321, 111
        %v1915 = vpop.permute.xlu0 %1914
        %1916 = vrot.lane.b32.xlu0 %v306, 111
        %v1917 = vpop.permute.xlu0 %1916
        %1918 = vrot.lane.b32.xlu0 %v322, 111
        %v1919 = vpop.permute.xlu0 %1918
        %vm1920 = vcmp.lt.s32.totalorder %v364, 111
        %v1921 = vsel %vm1920, %v1917, %v1919
        %v1922 = vsel %vm1920, %v1915, %v1917
        %v1923 = vsel %vm1920, %v1913, %v1915
        %v1924 = vsel %vm1920, %v1911, %v1913
        %v1925 = vsel %vm1920, %v1909, %v1911
        %v1926 = vsel %vm1920, %v1907, %v1909
        %v1927 = vsel %vm1920, %v1905, %v1907
        %v1928 = vsel %vm1920, %v1903, %v1905
        %v1929 = vsel %vm1920, %v1901, %v1903
        %v1930 = vsel %vm1920, %v1899, %v1901
        %v1931 = vsel %vm1920, %v1897, %v1899
        %v1932 = vsel %vm1920, %v1895, %v1897
        %v1933 = vsel %vm1920, %v1893, %v1895
        %v1934 = vsel %vm1920, %v1891, %v1893
        %v1935 = vsel %vm1920, %v1889, %v1891
        %v1936 = vsel %vm1920, %v1919, %v1889
        %v1937 = vld [vmem:[#allocation6 + $0x200] sm:$0xf]
        %v1938 = vld [vmem:[#allocation6 + $0x208] sm:$0xf]
        %v1939 = vld [vmem:[#allocation6 + $0x210] sm:$0xf]
        %v1940 = vld [vmem:[#allocation6 + $0x218] sm:$0xf]
        %v1941 = vld [vmem:[#allocation6 + $0x220] sm:$0xf]
        %v1942 = vld [vmem:[#allocation6 + $0x228] sm:$0xf]
        %v1943 = vld [vmem:[#allocation6 + $0x230] sm:$0xf]
        %v1944 = vld [vmem:[#allocation6 + $0x238] sm:$0xf]
        %v1945 = vld [vmem:[#allocation6 + $0x240] sm:$0xf]
        %v1946 = vld [vmem:[#allocation6 + $0x248] sm:$0xf]
        %v1947 = vld [vmem:[#allocation6 + $0x250] sm:$0xf]
        %v1948 = vld [vmem:[#allocation6 + $0x258] sm:$0xf]
        %v1949 = vld [vmem:[#allocation6 + $0x260] sm:$0xf]
        %v1950 = vld [vmem:[#allocation6 + $0x268] sm:$0xf]
        %v1951 = vld [vmem:[#allocation6 + $0x270] sm:$0xf]
        %v1952 = vld [vmem:[#allocation6 + $0x278] sm:$0xf]
        %v1953 = vmul.f32 %v1935, %v1937
        %v1954 = vmul.f32 %v1934, %v1938
        %v1955 = vmul.f32 %v1933, %v1939
        %v1956 = vmul.f32 %v1932, %v1940
        %v1957 = vmul.f32 %v1931, %v1941
        %v1958 = vmul.f32 %v1930, %v1942
        %v1959 = vmul.f32 %v1929, %v1943
        %v1960 = vmul.f32 %v1928, %v1944
        %v1961 = vmul.f32 %v1927, %v1945
        %v1962 = vmul.f32 %v1926, %v1946
        %v1963 = vmul.f32 %v1925, %v1947
        %v1964 = vmul.f32 %v1924, %v1948
        %v1965 = vmul.f32 %v1923, %v1949
        %v1966 = vmul.f32 %v1922, %v1950
        %v1967 = vmul.f32 %v1921, %v1951
        %v1968 = vmul.f32 %v1936, %v1952
        %v1969 = vpack.c.bf16 %v1953, %v1953
        %v1970 = vpack.c.bf16 %v1954, %v1954
        %v1971 = vpack.c.bf16 %v1955, %v1955
        %v1972 = vpack.c.bf16 %v1956, %v1956
        %v1973 = vpack.c.bf16 %v1957, %v1957
        %v1974 = vpack.c.bf16 %v1958, %v1958
        %v1975 = vpack.c.bf16 %v1959, %v1959
        %v1976 = vpack.c.bf16 %v1960, %v1960
        %v1977 = vpack.c.bf16 %v1961, %v1961
        %v1978 = vpack.c.bf16 %v1962, %v1962
        %v1979 = vpack.c.bf16 %v1963, %v1963
        %v1980 = vpack.c.bf16 %v1964, %v1964
        %v1981 = vpack.c.bf16 %v1965, %v1965
        %v1982 = vpack.c.bf16 %v1966, %v1966
        %v1983 = vpack.c.bf16 %v1967, %v1967
        %v1984 = vpack.c.bf16 %v1968, %v1968
        %v2001 = vunpack.c.l.b16 %v1969
        %v2002 = vunpack.c.l.b16 %v1970
        %v2003 = vunpack.c.l.b16 %v1971
        %v2004 = vunpack.c.l.b16 %v1972
        %v2005 = vunpack.c.l.b16 %v1973
        %v2006 = vunpack.c.l.b16 %v1974
        %v2007 = vunpack.c.l.b16 %v1975
        %v2008 = vunpack.c.l.b16 %v1976
        %v2009 = vunpack.c.l.b16 %v1977
        %v2010 = vunpack.c.l.b16 %v1978
        %v2011 = vunpack.c.l.b16 %v1979
        %v2012 = vunpack.c.l.b16 %v1980
        %v2013 = vunpack.c.l.b16 %v1981
        %v2014 = vunpack.c.l.b16 %v1982
        %v2015 = vunpack.c.l.b16 %v1983
        %v2016 = vunpack.c.l.b16 %v1984
        %v2017 = vpack.c.b16 %v2002, %v2001
        %v2018 = vpack.c.b16 %v2004, %v2003
        %v2019 = vpack.c.b16 %v2006, %v2005
        %v2020 = vpack.c.b16 %v2008, %v2007
        %v2021 = vpack.c.b16 %v2010, %v2009
        %v2022 = vpack.c.b16 %v2012, %v2011
        %v2023 = vpack.c.b16 %v2014, %v2013
        %v2024 = vpack.c.b16 %v2016, %v2015
        %2033 = vst [vmem:[#allocation2 + $0x100] sm:$0x33] %v2017
        %2034 = vst [vmem:[#allocation2 + $0x108] sm:$0x33] %v2018
        %2035 = vst [vmem:[#allocation2 + $0x110] sm:$0x33] %v2019
        %2036 = vst [vmem:[#allocation2 + $0x118] sm:$0x33] %v2020
        %2037 = vst [vmem:[#allocation2 + $0x120] sm:$0x33] %v2021
        %2038 = vst [vmem:[#allocation2 + $0x128] sm:$0x33] %v2022
        %2039 = vst [vmem:[#allocation2 + $0x130] sm:$0x33] %v2023
        %2040 = vst [vmem:[#allocation2 + $0x138] sm:$0x33] %v2024
        %v2041 = vrot.slane %v2018, 6
        %v2042 = vrot.slane %v2019, 6
        %v2043 = vrot.slane %v2020, 6
        %v2044 = vrot.slane %v2021, 6
        %v2045 = vrot.slane %v2022, 6
        %v2046 = vrot.slane %v2023, 6
        %v2047 = vrot.slane %v2024, 6
        %2055 = vst [vmem:[#allocation2 + $0x200] sm:$0xcc] %v2041
        %2056 = vst [vmem:[#allocation2 + $0x208] sm:$0xcc] %v2042
        %2057 = vst [vmem:[#allocation2 + $0x210] sm:$0xcc] %v2043
        %2058 = vst [vmem:[#allocation2 + $0x218] sm:$0xcc] %v2044
        %2059 = vst [vmem:[#allocation2 + $0x220] sm:$0xcc] %v2045
        %2060 = vst [vmem:[#allocation2 + $0x228] sm:$0xcc] %v2046
        %2061 = vst [vmem:[#allocation2 + $0x230] sm:$0xcc] %v2047
        %2062 = vst [vmem:[#allocation2 + $0x340] sm:$0x33] %v2019
        %2063 = vst [vmem:[#allocation2 + $0x348] sm:$0x33] %v2020
        %2064 = vst [vmem:[#allocation2 + $0x350] sm:$0x33] %v2021
        %2065 = vst [vmem:[#allocation2 + $0x358] sm:$0x33] %v2022
        %2066 = vst [vmem:[#allocation2 + $0x360] sm:$0x33] %v2023
        %2067 = vst [vmem:[#allocation2 + $0x368] sm:$0x33] %v2024
        %v2068 = vld [vmem:[%s2] sm:$0x3]
        %v2069 = vld [vmem:[#allocation2] sm:$0xff]
        %v2070 = vld [vmem:[#allocation2 + $0x8] sm:$0xff]
        %v2071 = vld [vmem:[#allocation2 + $0x10] sm:$0xff]
        %v2072 = vld [vmem:[#allocation2 + $0x18] sm:$0xff]
        %v2073 = vld [vmem:[#allocation2 + $0x20] sm:$0xff]
        %v2074 = vld [vmem:[#allocation2 + $0x28] sm:$0xff]
        %v2075 = vld [vmem:[#allocation2 + $0x30] sm:$0xff]
        %v2076 = vld [vmem:[#allocation2 + $0x38] sm:$0xff]
        %v2077 = vld [vmem:[#allocation2 + $0x40] sm:$0xff]
        %v2078 = vld [vmem:[#allocation2 + $0x48] sm:$0xff]
        %v2079 = vld [vmem:[#allocation2 + $0x50] sm:$0xff]
        %v2080 = vld [vmem:[#allocation2 + $0x58] sm:$0xff]
        %v2081 = vld [vmem:[#allocation2 + $0x60] sm:$0xff]
        %v2082 = vld [vmem:[#allocation2 + $0x68] sm:$0xff]
        %v2083 = vld [vmem:[#allocation2 + $0x70] sm:$0xff]
        %v2084 = vld [vmem:[#allocation2 + $0x78] sm:$0xff]
        %v2085 = vld [vmem:[#allocation2 + $0x80] sm:$0xff]
        %v2086 = vld [vmem:[#allocation2 + $0x88] sm:$0xff]
        %v2087 = vld [vmem:[#allocation2 + $0x90] sm:$0xff]
        %v2088 = vld [vmem:[#allocation2 + $0x98] sm:$0xff]
        %v2089 = vld [vmem:[#allocation2 + $0xa0] sm:$0xff]
        %v2090 = vld [vmem:[#allocation2 + $0xa8] sm:$0xff]
        %v2091 = vld [vmem:[#allocation2 + $0xb0] sm:$0xff]
        %v2092 = vld [vmem:[#allocation2 + $0xb8] sm:$0xff]
        %v2093 = vld [vmem:[#allocation2 + $0xc0] sm:$0xff]
        %v2094 = vld [vmem:[#allocation2 + $0xc8] sm:$0xff]
        %v2095 = vld [vmem:[#allocation2 + $0xd0] sm:$0xff]
        %v2096 = vld [vmem:[#allocation2 + $0xd8] sm:$0xff]
        %v2097 = vld [vmem:[#allocation2 + $0xe0] sm:$0xff]
        %v2098 = vld [vmem:[#allocation2 + $0xe8] sm:$0xff]
        %v2099 = vld [vmem:[#allocation2 + $0xf0] sm:$0xff]
        %v2100 = vld [vmem:[#allocation2 + $0xf8] sm:$0xff]
        %v2101 = vld [vmem:[#allocation2 + $0x100] sm:$0xff]
        %v2102 = vld [vmem:[#allocation2 + $0x108] sm:$0xff]
        %v2103 = vld [vmem:[#allocation2 + $0x110] sm:$0xff]
        %v2104 = vld [vmem:[#allocation2 + $0x118] sm:$0xff]
        %v2105 = vld [vmem:[#allocation2 + $0x120] sm:$0xff]
        %v2106 = vld [vmem:[#allocation2 + $0x128] sm:$0xff]
        %v2107 = vld [vmem:[#allocation2 + $0x130] sm:$0xff]
        %v2108 = vld [vmem:[#allocation2 + $0x138] sm:$0xff]
        %v2109 = vld [vmem:[#allocation2 + $0x140] sm:$0xff]
        %v2110 = vld [vmem:[#allocation2 + $0x148] sm:$0xff]
        %v2111 = vld [vmem:[#allocation2 + $0x150] sm:$0xff]
        %v2112 = vld [vmem:[#allocation2 + $0x158] sm:$0xff]
        %v2113 = vld [vmem:[#allocation2 + $0x160] sm:$0xff]
        %v2114 = vld [vmem:[#allocation2 + $0x168] sm:$0xff]
        %v2115 = vld [vmem:[#allocation2 + $0x170] sm:$0xff]
        %v2116 = vld [vmem:[#allocation2 + $0x178] sm:$0xff]
        %v2117 = vld [vmem:[#allocation2 + $0x180] sm:$0xff]
        %v2118 = vld [vmem:[#allocation2 + $0x188] sm:$0xff]
        %v2119 = vld [vmem:[#allocation2 + $0x190] sm:$0xff]
        %v2120 = vld [vmem:[#allocation2 + $0x198] sm:$0xff]
        %v2121 = vld [vmem:[#allocation2 + $0x1a0] sm:$0xff]
        %v2122 = vld [vmem:[#allocation2 + $0x1a8] sm:$0xff]
        %v2123 = vld [vmem:[#allocation2 + $0x1b0] sm:$0xff]
        %v2124 = vld [vmem:[#allocation2 + $0x1b8] sm:$0xff]
        %v2125 = vld [vmem:[#allocation2 + $0x1c0] sm:$0xff]
        %v2126 = vld [vmem:[#allocation2 + $0x1c8] sm:$0xff]
        %v2127 = vld [vmem:[#allocation2 + $0x1d0] sm:$0xff]
        %v2128 = vld [vmem:[#allocation2 + $0x1d8] sm:$0xff]
        %v2129 = vld [vmem:[#allocation2 + $0x1e0] sm:$0xff]
        %v2130 = vld [vmem:[#allocation2 + $0x1e8] sm:$0xff]
        %v2131 = vld [vmem:[#allocation2 + $0x1f0] sm:$0xff]
        %v2132 = vld [vmem:[#allocation2 + $0x1f8] sm:$0xff]
        %v2133 = vld [vmem:[#allocation2 + $0x200] sm:$0xff]
        %v2134 = vld [vmem:[#allocation2 + $0x208] sm:$0xff]
        %v2135 = vld [vmem:[#allocation2 + $0x210] sm:$0xff]
        %v2136 = vld [vmem:[#allocation2 + $0x218] sm:$0xff]
        %v2137 = vld [vmem:[#allocation2 + $0x220] sm:$0xff]
        %v2138 = vld [vmem:[#allocation2 + $0x228] sm:$0xff]
        %v2139 = vld [vmem:[#allocation2 + $0x230] sm:$0xff]
        %v2140 = vld [vmem:[#allocation2 + $0x238] sm:$0xff]
        %v2141 = vld [vmem:[#allocation2 + $0x240] sm:$0xff]
        %v2142 = vld [vmem:[#allocation2 + $0x248] sm:$0xff]
        %v2143 = vld [vmem:[#allocation2 + $0x250] sm:$0xff]
        %v2144 = vld [vmem:[#allocation2 + $0x258] sm:$0xff]
        %v2145 = vld [vmem:[#allocation2 + $0x260] sm:$0xff]
        %v2146 = vld [vmem:[#allocation2 + $0x268] sm:$0xff]
        %v2147 = vld [vmem:[#allocation2 + $0x270] sm:$0xff]
        %v2148 = vld [vmem:[#allocation2 + $0x278] sm:$0xff]
        %v2149 = vld [vmem:[#allocation2 + $0x280] sm:$0xff]
        %v2150 = vld [vmem:[#allocation2 + $0x288] sm:$0xff]
        %v2151 = vld [vmem:[#allocation2 + $0x290] sm:$0xff]
        %v2152 = vld [vmem:[#allocation2 + $0x298] sm:$0xff]
        %v2153 = vld [vmem:[#allocation2 + $0x2a0] sm:$0xff]
        %v2154 = vld [vmem:[#allocation2 + $0x2a8] sm:$0xff]
        %v2155 = vld [vmem:[#allocation2 + $0x2b0] sm:$0xff]
        %v2156 = vld [vmem:[#allocation2 + $0x2b8] sm:$0xff]
        %v2157 = vld [vmem:[#allocation2 + $0x2c0] sm:$0xff]
        %v2158 = vld [vmem:[#allocation2 + $0x2c8] sm:$0xff]
        %v2159 = vld [vmem:[#allocation2 + $0x2d0] sm:$0xff]
        %v2160 = vld [vmem:[#allocation2 + $0x2d8] sm:$0xff]
        %v2161 = vld [vmem:[#allocation2 + $0x2e0] sm:$0xff]
        %v2162 = vld [vmem:[#allocation2 + $0x2e8] sm:$0xff]
        %v2163 = vld [vmem:[#allocation2 + $0x2f0] sm:$0xff]
        %v2164 = vld [vmem:[#allocation2 + $0x2f8] sm:$0xff]
        %v2165 = vld [vmem:[#allocation2 + $0x300] sm:$0xff]
        %v2166 = vld [vmem:[#allocation2 + $0x308] sm:$0xff]
        %v2167 = vld [vmem:[#allocation2 + $0x310] sm:$0xff]
        %v2168 = vld [vmem:[#allocation2 + $0x318] sm:$0xff]
        %v2169 = vld [vmem:[#allocation2 + $0x320] sm:$0xff]
        %v2170 = vld [vmem:[#allocation2 + $0x328] sm:$0xff]
        %v2171 = vld [vmem:[#allocation2 + $0x330] sm:$0xff]
        %v2172 = vld [vmem:[#allocation2 + $0x338] sm:$0xff]
        %v2173 = vld [vmem:[#allocation2 + $0x340] sm:$0x33]
        %v2174 = vld [vmem:[#allocation2 + $0x348] sm:$0x33]
        %v2175 = vld [vmem:[#allocation2 + $0x350] sm:$0x33]
        %v2176 = vld [vmem:[#allocation2 + $0x358] sm:$0x33]
        %v2177 = vld [vmem:[#allocation2 + $0x360] sm:$0x33]
        %v2178 = vld [vmem:[#allocation2 + $0x368] sm:$0x33]
        %v2179 = vld [vmem:[#allocation2 + $0x370] sm:$0x33]
        %v2180 = vld [vmem:[#allocation2 + $0x378] sm:$0x33]
        %v2181 = vld [vmem:[%s3] sm:$0xf]
        %2183 = vset.pattern.permute.xlu0 0
        %2184 = vperm.xlu0 %2183, %v2181
        %v2185 = vpop.permute.xlu0 %2184
        %v2299 = vunpack.c.l.b16 %v2069
        %v2300 = vunpack.c.h.b16 %v2069
        %v2301 = vunpack.c.l.b16 %v2070
        %v2302 = vunpack.c.h.b16 %v2070
        %v2303 = vunpack.c.l.b16 %v2071
        %v2304 = vunpack.c.h.b16 %v2071
        %v2305 = vunpack.c.l.b16 %v2072
        %v2306 = vunpack.c.h.b16 %v2072
        %v2307 = vunpack.c.l.b16 %v2073
        %v2308 = vunpack.c.h.b16 %v2073
        %v2309 = vunpack.c.l.b16 %v2074
        %v2310 = vunpack.c.h.b16 %v2074
        %v2311 = vunpack.c.l.b16 %v2075
        %v2312 = vunpack.c.h.b16 %v2075
        %v2313 = vunpack.c.l.b16 %v2076
        %v2314 = vunpack.c.h.b16 %v2076
        %v2315 = vunpack.c.l.b16 %v2077
        %v2316 = vunpack.c.h.b16 %v2077
        %v2317 = vunpack.c.l.b16 %v2078
        %v2318 = vunpack.c.h.b16 %v2078
        %v2319 = vunpack.c.l.b16 %v2079
        %v2320 = vunpack.c.h.b16 %v2079
        %v2321 = vunpack.c.l.b16 %v2080
        %v2322 = vunpack.c.h.b16 %v2080
        %v2323 = vunpack.c.l.b16 %v2081
        %v2324 = vunpack.c.h.b16 %v2081
        %v2325 = vunpack.c.l.b16 %v2082
        %v2326 = vunpack.c.h.b16 %v2082
        %v2327 = vunpack.c.l.b16 %v2083
        %v2328 = vunpack.c.h.b16 %v2083
        %v2329 = vunpack.c.l.b16 %v2084
        %v2330 = vunpack.c.h.b16 %v2084
        %v2331 = vunpack.c.l.b16 %v2085
        %v2332 = vunpack.c.h.b16 %v2085
        %v2333 = vunpack.c.l.b16 %v2086
        %v2334 = vunpack.c.h.b16 %v2086
        %v2335 = vunpack.c.l.b16 %v2087
        %v2336 = vunpack.c.h.b16 %v2087
        %v2337 = vunpack.c.l.b16 %v2088
        %v2338 = vunpack.c.h.b16 %v2088
        %v2339 = vunpack.c.l.b16 %v2089
        %v2340 = vunpack.c.h.b16 %v2089
        %v2341 = vunpack.c.l.b16 %v2090
        %v2342 = vunpack.c.h.b16 %v2090
        %v2343 = vunpack.c.l.b16 %v2091
        %v2344 = vunpack.c.h.b16 %v2091
        %v2345 = vunpack.c.l.b16 %v2092
        %v2346 = vunpack.c.h.b16 %v2092
        %v2347 = vunpack.c.l.b16 %v2093
        %v2348 = vunpack.c.h.b16 %v2093
        %v2349 = vunpack.c.l.b16 %v2094
        %v2350 = vunpack.c.h.b16 %v2094
        %v2351 = vunpack.c.l.b16 %v2095
        %v2352 = vunpack.c.h.b16 %v2095
        %v2353 = vunpack.c.l.b16 %v2096
        %v2354 = vunpack.c.h.b16 %v2096
        %v2355 = vunpack.c.l.b16 %v2097
        %v2356 = vunpack.c.h.b16 %v2097
        %v2357 = vunpack.c.l.b16 %v2098
        %v2358 = vunpack.c.h.b16 %v2098
        %v2359 = vunpack.c.l.b16 %v2099
        %v2360 = vunpack.c.h.b16 %v2099
        %v2361 = vunpack.c.l.b16 %v2100
        %v2362 = vunpack.c.h.b16 %v2100
        %v2363 = vunpack.c.l.b16 %v2101
        %v2364 = vunpack.c.h.b16 %v2101
        %v2365 = vunpack.c.l.b16 %v2102
        %v2366 = vunpack.c.h.b16 %v2102
        %v2367 = vunpack.c.l.b16 %v2103
        %v2368 = vunpack.c.h.b16 %v2103
        %v2369 = vunpack.c.l.b16 %v2104
        %v2370 = vunpack.c.h.b16 %v2104
        %v2371 = vunpack.c.l.b16 %v2105
        %v2372 = vunpack.c.h.b16 %v2105
        %v2373 = vunpack.c.l.b16 %v2106
        %v2374 = vunpack.c.h.b16 %v2106
        %v2375 = vunpack.c.l.b16 %v2107
        %v2376 = vunpack.c.h.b16 %v2107
        %v2377 = vunpack.c.l.b16 %v2108
        %v2378 = vunpack.c.h.b16 %v2108
        %v2379 = vunpack.c.l.b16 %v2109
        %v2380 = vunpack.c.h.b16 %v2109
        %v2381 = vunpack.c.l.b16 %v2110
        %v2382 = vunpack.c.h.b16 %v2110
        %v2383 = vunpack.c.l.b16 %v2111
        %v2384 = vunpack.c.h.b16 %v2111
        %v2385 = vunpack.c.l.b16 %v2112
        %v2386 = vunpack.c.h.b16 %v2112
        %v2387 = vunpack.c.l.b16 %v2113
        %v2388 = vunpack.c.h.b16 %v2113
        %v2389 = vunpack.c.l.b16 %v2114
        %v2390 = vunpack.c.h.b16 %v2114
        %v2391 = vunpack.c.l.b16 %v2115
        %v2392 = vunpack.c.h.b16 %v2115
        %v2393 = vunpack.c.l.b16 %v2116
        %v2394 = vunpack.c.h.b16 %v2116
        %v2395 = vunpack.c.l.b16 %v2117
        %v2396 = vunpack.c.h.b16 %v2117
        %v2397 = vunpack.c.l.b16 %v2118
        %v2398 = vunpack.c.h.b16 %v2118
        %v2399 = vunpack.c.l.b16 %v2119
        %v2400 = vunpack.c.h.b16 %v2119
        %v2401 = vunpack.c.l.b16 %v2120
        %v2402 = vunpack.c.h.b16 %v2120
        %v2403 = vunpack.c.l.b16 %v2121
        %v2404 = vunpack.c.h.b16 %v2121
        %v2405 = vunpack.c.l.b16 %v2122
        %v2406 = vunpack.c.h.b16 %v2122
        %v2407 = vunpack.c.l.b16 %v2123
        %v2408 = vunpack.c.h.b16 %v2123
        %v2409 = vunpack.c.l.b16 %v2124
        %v2410 = vunpack.c.h.b16 %v2124
        %v2411 = vunpack.c.l.b16 %v2125
        %v2412 = vunpack.c.h.b16 %v2125
        %v2413 = vunpack.c.l.b16 %v2126
        %v2414 = vunpack.c.h.b16 %v2126
        %v2415 = vunpack.c.l.b16 %v2127
        %v2416 = vunpack.c.h.b16 %v2127
        %v2417 = vunpack.c.l.b16 %v2128
        %v2418 = vunpack.c.h.b16 %v2128
        %v2419 = vunpack.c.l.b16 %v2129
        %v2420 = vunpack.c.h.b16 %v2129
        %v2421 = vunpack.c.l.b16 %v2130
        %v2422 = vunpack.c.h.b16 %v2130
        %v2423 = vunpack.c.l.b16 %v2131
        %v2424 = vunpack.c.h.b16 %v2131
        %v2425 = vunpack.c.l.b16 %v2132
        %v2426 = vunpack.c.h.b16 %v2132
        %v2427 = vunpack.c.l.b16 %v2133
        %v2428 = vunpack.c.h.b16 %v2133
        %v2429 = vunpack.c.l.b16 %v2134
        %v2430 = vunpack.c.h.b16 %v2134
        %v2431 = vunpack.c.l.b16 %v2135
        %v2432 = vunpack.c.h.b16 %v2135
        %v2433 = vunpack.c.l.b16 %v2136
        %v2434 = vunpack.c.h.b16 %v2136
        %v2435 = vunpack.c.l.b16 %v2137
        %v2436 = vunpack.c.h.b16 %v2137
        %v2437 = vunpack.c.l.b16 %v2138
        %v2438 = vunpack.c.h.b16 %v2138
        %v2439 = vunpack.c.l.b16 %v2139
        %v2440 = vunpack.c.h.b16 %v2139
        %v2441 = vunpack.c.l.b16 %v2140
        %v2442 = vunpack.c.h.b16 %v2140
        %v2443 = vunpack.c.l.b16 %v2141
        %v2444 = vunpack.c.h.b16 %v2141
        %v2445 = vunpack.c.l.b16 %v2142
        %v2446 = vunpack.c.h.b16 %v2142
        %v2447 = vunpack.c.l.b16 %v2143
        %v2448 = vunpack.c.h.b16 %v2143
        %v2449 = vunpack.c.l.b16 %v2144
        %v2450 = vunpack.c.h.b16 %v2144
        %v2451 = vunpack.c.l.b16 %v2145
        %v2452 = vunpack.c.h.b16 %v2145
        %v2453 = vunpack.c.l.b16 %v2146
        %v2454 = vunpack.c.h.b16 %v2146
        %v2455 = vunpack.c.l.b16 %v2147
        %v2456 = vunpack.c.h.b16 %v2147
        %v2457 = vunpack.c.l.b16 %v2148
        %v2458 = vunpack.c.h.b16 %v2148
        %v2459 = vunpack.c.l.b16 %v2149
        %v2460 = vunpack.c.h.b16 %v2149
        %v2461 = vunpack.c.l.b16 %v2150
        %v2462 = vunpack.c.h.b16 %v2150
        %v2463 = vunpack.c.l.b16 %v2151
        %v2464 = vunpack.c.h.b16 %v2151
        %v2465 = vunpack.c.l.b16 %v2152
        %v2466 = vunpack.c.h.b16 %v2152
        %v2467 = vunpack.c.l.b16 %v2153
        %v2468 = vunpack.c.h.b16 %v2153
        %v2469 = vunpack.c.l.b16 %v2154
        %v2470 = vunpack.c.h.b16 %v2154
        %v2471 = vunpack.c.l.b16 %v2155
        %v2472 = vunpack.c.h.b16 %v2155
        %v2473 = vunpack.c.l.b16 %v2156
        %v2474 = vunpack.c.h.b16 %v2156
        %v2475 = vunpack.c.l.b16 %v2157
        %v2476 = vunpack.c.h.b16 %v2157
        %v2477 = vunpack.c.l.b16 %v2158
        %v2478 = vunpack.c.h.b16 %v2158
        %v2479 = vunpack.c.l.b16 %v2159
        %v2480 = vunpack.c.h.b16 %v2159
        %v2481 = vunpack.c.l.b16 %v2160
        %v2482 = vunpack.c.h.b16 %v2160
        %v2483 = vunpack.c.l.b16 %v2161
        %v2484 = vunpack.c.h.b16 %v2161
        %v2485 = vunpack.c.l.b16 %v2162
        %v2486 = vunpack.c.h.b16 %v2162
        %v2487 = vunpack.c.l.b16 %v2163
        %v2488 = vunpack.c.h.b16 %v2163
        %v2489 = vunpack.c.l.b16 %v2164
        %v2490 = vunpack.c.h.b16 %v2164
        %v2491 = vunpack.c.l.b16 %v2165
        %v2492 = vunpack.c.h.b16 %v2165
        %v2493 = vunpack.c.l.b16 %v2166
        %v2494 = vunpack.c.h.b16 %v2166
        %v2495 = vunpack.c.l.b16 %v2167
        %v2496 = vunpack.c.h.b16 %v2167
        %v2497 = vunpack.c.l.b16 %v2168
        %v2498 = vunpack.c.h.b16 %v2168
        %v2499 = vunpack.c.l.b16 %v2169
        %v2500 = vunpack.c.h.b16 %v2169
        %v2501 = vunpack.c.l.b16 %v2170
        %v2502 = vunpack.c.h.b16 %v2170
        %v2503 = vunpack.c.l.b16 %v2171
        %v2504 = vunpack.c.h.b16 %v2171
        %v2505 = vunpack.c.l.b16 %v2172
        %v2506 = vunpack.c.h.b16 %v2172
        %v2507 = vunpack.c.l.b16 %v2173
        %v2508 = vunpack.c.h.b16 %v2173
        %v2509 = vunpack.c.l.b16 %v2174
        %v2510 = vunpack.c.h.b16 %v2174
        %v2511 = vunpack.c.l.b16 %v2175
        %v2512 = vunpack.c.h.b16 %v2175
        %v2513 = vunpack.c.l.b16 %v2176
        %v2514 = vunpack.c.h.b16 %v2176
        %v2515 = vunpack.c.l.b16 %v2177
        %v2516 = vunpack.c.h.b16 %v2177
        %v2517 = vunpack.c.l.b16 %v2178
        %v2518 = vunpack.c.h.b16 %v2178
        %v2519 = vunpack.c.l.b16 %v2179
        %v2520 = vunpack.c.h.b16 %v2179
        %v2521 = vunpack.c.l.b16 %v2180
        %v2522 = vunpack.c.h.b16 %v2180
        %v2523 = vpack.c.b16 %v2315, %v2299
        %v2524 = vpack.c.b16 %v2316, %v2300
        %v2525 = vpack.c.b16 %v2317, %v2301
        %v2526 = vpack.c.b16 %v2318, %v2302
        %v2527 = vpack.c.b16 %v2319, %v2303
        %v2528 = vpack.c.b16 %v2320, %v2304
        %v2529 = vpack.c.b16 %v2321, %v2305
        %v2530 = vpack.c.b16 %v2322, %v2306
        %v2531 = vpack.c.b16 %v2323, %v2307
        %v2532 = vpack.c.b16 %v2324, %v2308
        %v2533 = vpack.c.b16 %v2325, %v2309
        %v2534 = vpack.c.b16 %v2326, %v2310
        %v2535 = vpack.c.b16 %v2327, %v2311
        %v2536 = vpack.c.b16 %v2328, %v2312
        %v2537 = vpack.c.b16 %v2329, %v2313
        %v2538 = vpack.c.b16 %v2330, %v2314
        %v2539 = vpack.c.b16 %v2347, %v2331
        %v2540 = vpack.c.b16 %v2348, %v2332
        %v2541 = vpack.c.b16 %v2349, %v2333
        %v2542 = vpack.c.b16 %v2350, %v2334
        %v2543 = vpack.c.b16 %v2351, %v2335
        %v2544 = vpack.c.b16 %v2352, %v2336
        %v2545 = vpack.c.b16 %v2353, %v2337
        %v2546 = vpack.c.b16 %v2354, %v2338
        %v2547 = vpack.c.b16 %v2355, %v2339
        %v2548 = vpack.c.b16 %v2356, %v2340
        %v2549 = vpack.c.b16 %v2357, %v2341
        %v2550 = vpack.c.b16 %v2358, %v2342
        %v2551 = vpack.c.b16 %v2359, %v2343
        %v2552 = vpack.c.b16 %v2360, %v2344
        %v2553 = vpack.c.b16 %v2361, %v2345
        %v2554 = vpack.c.b16 %v2362, %v2346
        %v2555 = vpack.c.b16 %v2379, %v2363
        %v2556 = vpack.c.b16 %v2380, %v2364
        %v2557 = vpack.c.b16 %v2381, %v2365
        %v2558 = vpack.c.b16 %v2382, %v2366
        %v2559 = vpack.c.b16 %v2383, %v2367
        %v2560 = vpack.c.b16 %v2384, %v2368
        %v2561 = vpack.c.b16 %v2385, %v2369
        %v2562 = vpack.c.b16 %v2386, %v2370
        %v2563 = vpack.c.b16 %v2387, %v2371
        %v2564 = vpack.c.b16 %v2388, %v2372
        %v2565 = vpack.c.b16 %v2389, %v2373
        %v2566 = vpack.c.b16 %v2390, %v2374
        %v2567 = vpack.c.b16 %v2391, %v2375
        %v2568 = vpack.c.b16 %v2392, %v2376
        %v2569 = vpack.c.b16 %v2393, %v2377
        %v2570 = vpack.c.b16 %v2394, %v2378
        %v2571 = vpack.c.b16 %v2411, %v2395
        %v2572 = vpack.c.b16 %v2412, %v2396
        %v2573 = vpack.c.b16 %v2413, %v2397
        %v2574 = vpack.c.b16 %v2414, %v2398
        %v2575 = vpack.c.b16 %v2415, %v2399
        %v2576 = vpack.c.b16 %v2416, %v2400
        %v2577 = vpack.c.b16 %v2417, %v2401
        %v2578 = vpack.c.b16 %v2418, %v2402
        %v2579 = vpack.c.b16 %v2419, %v2403
        %v2580 = vpack.c.b16 %v2420, %v2404
        %v2581 = vpack.c.b16 %v2421, %v2405
        %v2582 = vpack.c.b16 %v2422, %v2406
        %v2583 = vpack.c.b16 %v2423, %v2407
        %v2584 = vpack.c.b16 %v2424, %v2408
        %v2585 = vpack.c.b16 %v2425, %v2409
        %v2586 = vpack.c.b16 %v2426, %v2410
        %v2587 = vpack.c.b16 %v2443, %v2427
        %v2588 = vpack.c.b16 %v2444, %v2428
        %v2589 = vpack.c.b16 %v2445, %v2429
        %v2590 = vpack.c.b16 %v2446, %v2430
        %v2591 = vpack.c.b16 %v2447, %v2431
        %v2592 = vpack.c.b16 %v2448, %v2432
        %v2593 = vpack.c.b16 %v2449, %v2433
        %v2594 = vpack.c.b16 %v2450, %v2434
        %v2595 = vpack.c.b16 %v2451, %v2435
        %v2596 = vpack.c.b16 %v2452, %v2436
        %v2597 = vpack.c.b16 %v2453, %v2437
        %v2598 = vpack.c.b16 %v2454, %v2438
        %v2599 = vpack.c.b16 %v2455, %v2439
        %v2600 = vpack.c.b16 %v2456, %v2440
        %v2601 = vpack.c.b16 %v2457, %v2441
        %v2602 = vpack.c.b16 %v2458, %v2442
        %v2603 = vpack.c.b16 %v2475, %v2459
        %v2604 = vpack.c.b16 %v2476, %v2460
        %v2605 = vpack.c.b16 %v2477, %v2461
        %v2606 = vpack.c.b16 %v2478, %v2462
        %v2607 = vpack.c.b16 %v2479, %v2463
        %v2608 = vpack.c.b16 %v2480, %v2464
        %v2609 = vpack.c.b16 %v2481, %v2465
        %v2610 = vpack.c.b16 %v2482, %v2466
        %v2611 = vpack.c.b16 %v2483, %v2467
        %v2612 = vpack.c.b16 %v2484, %v2468
        %v2613 = vpack.c.b16 %v2485, %v2469
        %v2614 = vpack.c.b16 %v2486, %v2470
        %v2615 = vpack.c.b16 %v2487, %v2471
        %v2616 = vpack.c.b16 %v2488, %v2472
        %v2617 = vpack.c.b16 %v2489, %v2473
        %v2618 = vpack.c.b16 %v2490, %v2474
        %v2619 = vpack.c.b16 %v2507, %v2491
        %v2620 = vpack.c.b16 %v2508, %v2492
        %v2621 = vpack.c.b16 %v2509, %v2493
        %v2622 = vpack.c.b16 %v2510, %v2494
        %v2623 = vpack.c.b16 %v2511, %v2495
        %v2624 = vpack.c.b16 %v2512, %v2496
        %v2625 = vpack.c.b16 %v2513, %v2497
        %v2626 = vpack.c.b16 %v2514, %v2498
        %v2627 = vpack.c.b16 %v2515, %v2499
        %v2628 = vpack.c.b16 %v2516, %v2500
        %v2629 = vpack.c.b16 %v2517, %v2501
        %v2630 = vpack.c.b16 %v2518, %v2502
        %v2631 = vpack.c.b16 %v2519, %v2503
        %v2632 = vpack.c.b16 %v2520, %v2504
        %v2633 = vpack.c.b16 %v2521, %v2505
        %v2634 = vpack.c.b16 %v2522, %v2506
        %vm2731 = vcmask 883712
        %v2733 = vsel %vm2731, %v2068, 0
        %vm2735 = vcmask 1045504
        %v2737 = vsel %vm2735, %v2619, 0
        %v2740 = vsel %vm2735, %v2620, 0
        %v2743 = vsel %vm2735, %v2621, 0
        %v2746 = vsel %vm2735, %v2622, 0
        %v2749 = vsel %vm2735, %v2623, 0
        %v2752 = vsel %vm2735, %v2624, 0
        %v2755 = vsel %vm2735, %v2625, 0
        %v2758 = vsel %vm2735, %v2626, 0
        %v2761 = vsel %vm2735, %v2627, 0
        %v2764 = vsel %vm2735, %v2628, 0
        %v2767 = vsel %vm2735, %v2629, 0
        %v2770 = vsel %vm2735, %v2630, 0
        %v2773 = vsel %vm2735, %v2631, 0
        %v2776 = vsel %vm2735, %v2632, 0
        %v2779 = vsel %vm2735, %v2633, 0
        %v2782 = vsel %vm2735, %v2634, 0
        %2784 = vmatprep.subr.bf16.mxu0 %v2524
        %2785 = vmatpush1.bf16.msra.mxu0 %v2523
        %2786 = vmatprep.subr.bf16.mxu0 %v2540
        %2787 = vmatpush1.bf16.msra.mxu0 %v2539
        %2788 = vmatprep.subr.bf16.mxu0 %v2556
        %2789 = vmatpush1.bf16.msra.mxu0 %v2555
        %2790 = vmatprep.subr.bf16.mxu0 %v2572
        %2791 = vmatpush1.bf16.msra.mxu0 %v2571
        %2792 = vmatprep.subr.bf16.mxu0 %v2588
        %2793 = vmatpush1.bf16.msra.mxu0 %v2587
        %2794 = vmatprep.subr.bf16.mxu0 %v2604
        %2795 = vmatpush1.bf16.msra.mxu0 %v2603
        %2796 = vmatprep.subr.bf16.mxu0 %v2740
        %2797 = vmatpush1.bf16.msra.mxu0 %v2737
        %2798 = vmatprep.subr.bf16.mxu0 0
        %2799 = vmatpush1.bf16.msra.mxu0 0
        %2800 = vmatprep.subr.bf16.mxu0 0
        %2801 = vmatpush1.bf16.msra.mxu0 0
        %2802 = vmatprep.subr.bf16.mxu0 0
        %2803 = vmatpush1.bf16.msra.mxu0 0
        %2804 = vmatprep.subr.bf16.mxu0 0
        %2805 = vmatpush1.bf16.msra.mxu0 0
        %2806 = vmatprep.subr.bf16.mxu0 0
        %2807 = vmatpush1.bf16.msra.mxu0 0
        %2808 = vmatprep.subr.bf16.mxu0 0
        %2809 = vmatpush1.bf16.msra.mxu0 0
        %2810 = vmatprep.subr.bf16.mxu0 0
        %2811 = vmatpush1.bf16.msra.mxu0 0
        %2812 = vmatprep.subr.bf16.mxu0 0
        %2813 = vmatpush1.bf16.msra.mxu0 0
        %2814 = vmatprep.subr.bf16.mxu0 0
        %2815 = vmatpush1.bf16.msra.mxu0 0
        %2816 = vmatprep.mubr.bf16.mxu0 0
        %2817 = vmatmul.mubr.bf16.gmra.mrb[0].mxu0 %v2733
        %v2818 = vpop.f32.mrb[0].mxu0
        %v2819 = vadd.f32 %v2185, %v2818
        %v2820 = vpop.f32.mrb[0].mxu0
        %v2821 = vadd.f32 %v2185, %v2820
        %v2822 = vpop.f32.mrb[0].mxu0
        %v2823 = vpop.f32.mrb[0].mxu0
        %2824 = vdwg.mxu0
        %2825 = vmatprep.subr.bf16.mxu0 %v2526
        %2826 = vmatpush1.bf16.msra.mxu0 %v2525
        %2827 = vmatprep.subr.bf16.mxu0 %v2542
        %2828 = vmatpush1.bf16.msra.mxu0 %v2541
        %2829 = vmatprep.subr.bf16.mxu0 %v2558
        %2830 = vmatpush1.bf16.msra.mxu0 %v2557
        %2831 = vmatprep.subr.bf16.mxu0 %v2574
        %2832 = vmatpush1.bf16.msra.mxu0 %v2573
        %2833 = vmatprep.subr.bf16.mxu0 %v2590
        %2834 = vmatpush1.bf16.msra.mxu0 %v2589
        %2835 = vmatprep.subr.bf16.mxu0 %v2606
        %2836 = vmatpush1.bf16.msra.mxu0 %v2605
        %2837 = vmatprep.subr.bf16.mxu0 %v2746
        %2838 = vmatpush1.bf16.msra.mxu0 %v2743
        %2839 = vmatprep.subr.bf16.mxu0 0
        %2840 = vmatpush1.bf16.msra.mxu0 0
        %2841 = vmatprep.subr.bf16.mxu0 0
        %2842 = vmatpush1.bf16.msra.mxu0 0
        %2843 = vmatprep.subr.bf16.mxu0 0
        %2844 = vmatpush1.bf16.msra.mxu0 0
        %2845 = vmatprep.subr.bf16.mxu0 0
        %2846 = vmatpush1.bf16.msra.mxu0 0
        %2847 = vmatprep.subr.bf16.mxu0 0
        %2848 = vmatpush1.bf16.msra.mxu0 0
        %2849 = vmatprep.subr.bf16.mxu0 0
        %2850 = vmatpush1.bf16.msra.mxu0 0
        %2851 = vmatprep.subr.bf16.mxu0 0
        %2852 = vmatpush1.bf16.msra.mxu0 0
        %2853 = vmatprep.subr.bf16.mxu0 0
        %2854 = vmatpush1.bf16.msra.mxu0 0
        %2855 = vmatprep.subr.bf16.mxu0 0
        %2856 = vmatpush1.bf16.msra.mxu0 0
        %2857 = vmatprep.mubr.bf16.mxu0 0
        %2858 = vmatmul.mubr.bf16.gmra.mrb[0].mxu0 %v2733
        %v2859 = vpop.f32.mrb[0].mxu0
        %v2860 = vadd.f32 %v2185, %v2859
        %v2861 = vpop.f32.mrb[0].mxu0
        %v2862 = vadd.f32 %v2185, %v2861
        %v2863 = vpop.f32.mrb[0].mxu0
        %v2864 = vpop.f32.mrb[0].mxu0
        %2865 = vdwg.mxu0
        %2866 = vmatprep.subr.bf16.mxu0 %v2528
        %2867 = vmatpush1.bf16.msra.mxu0 %v2527
        %2868 = vmatprep.subr.bf16.mxu0 %v2544
        %2869 = vmatpush1.bf16.msra.mxu0 %v2543
        %2870 = vmatprep.subr.bf16.mxu0 %v2560
        %2871 = vmatpush1.bf16.msra.mxu0 %v2559
        %2872 = vmatprep.subr.bf16.mxu0 %v2576
        %2873 = vmatpush1.bf16.msra.mxu0 %v2575
        %2874 = vmatprep.subr.bf16.mxu0 %v2592
        %2875 = vmatpush1.bf16.msra.mxu0 %v2591
        %2876 = vmatprep.subr.bf16.mxu0 %v2608
        %2877 = vmatpush1.bf16.msra.mxu0 %v2607
        %2878 = vmatprep.subr.bf16.mxu0 %v2752
        %2879 = vmatpush1.bf16.msra.mxu0 %v2749
        %2880 = vmatprep.subr.bf16.mxu0 0
        %2881 = vmatpush1.bf16.msra.mxu0 0
        %2882 = vmatprep.subr.bf16.mxu0 0
        %2883 = vmatpush1.bf16.msra.mxu0 0
        %2884 = vmatprep.subr.bf16.mxu0 0
        %2885 = vmatpush1.bf16.msra.mxu0 0
        %2886 = vmatprep.subr.bf16.mxu0 0
        %2887 = vmatpush1.bf16.msra.mxu0 0
        %2888 = vmatprep.subr.bf16.mxu0 0
        %2889 = vmatpush1.bf16.msra.mxu0 0
        %2890 = vmatprep.subr.bf16.mxu0 0
        %2891 = vmatpush1.bf16.msra.mxu0 0
        %2892 = vmatprep.subr.bf16.mxu0 0
        %2893 = vmatpush1.bf16.msra.mxu0 0
        %2894 = vmatprep.subr.bf16.mxu0 0
        %2895 = vmatpush1.bf16.msra.mxu0 0
        %2896 = vmatprep.subr.bf16.mxu0 0
        %2897 = vmatpush1.bf16.msra.mxu0 0
        %2898 = vmatprep.mubr.bf16.mxu0 0
        %2899 = vmatmul.mubr.bf16.gmra.mrb[0].mxu0 %v2733
        %v2900 = vpop.f32.mrb[0].mxu0
        %v2901 = vadd.f32 %v2185, %v2900
        %v2902 = vpop.f32.mrb[0].mxu0
        %v2903 = vadd.f32 %v2185, %v2902
        %v2904 = vpop.f32.mrb[0].mxu0
        %v2905 = vpop.f32.mrb[0].mxu0
        %2906 = vdwg.mxu0
        %2907 = vmatprep.subr.bf16.mxu0 %v2530
        %2908 = vmatpush1.bf16.msra.mxu0 %v2529
        %2909 = vmatprep.subr.bf16.mxu0 %v2546
        %2910 = vmatpush1.bf16.msra.mxu0 %v2545
        %2911 = vmatprep.subr.bf16.mxu0 %v2562
        %2912 = vmatpush1.bf16.msra.mxu0 %v2561
        %2913 = vmatprep.subr.bf16.mxu0 %v2578
        %2914 = vmatpush1.bf16.msra.mxu0 %v2577
        %2915 = vmatprep.subr.bf16.mxu0 %v2594
        %2916 = vmatpush1.bf16.msra.mxu0 %v2593
        %2917 = vmatprep.subr.bf16.mxu0 %v2610
        %2918 = vmatpush1.bf16.msra.mxu0 %v2609
        %2919 = vmatprep.subr.bf16.mxu0 %v2758
        %2920 = vmatpush1.bf16.msra.mxu0 %v2755
        %2921 = vmatprep.subr.bf16.mxu0 0
        %2922 = vmatpush1.bf16.msra.mxu0 0
        %2923 = vmatprep.subr.bf16.mxu0 0
        %2924 = vmatpush1.bf16.msra.mxu0 0
        %2925 = vmatprep.subr.bf16.mxu0 0
        %2926 = vmatpush1.bf16.msra.mxu0 0
        %2927 = vmatprep.subr.bf16.mxu0 0
        %2928 = vmatpush1.bf16.msra.mxu0 0
        %2929 = vmatprep.subr.bf16.mxu0 0
        %2930 = vmatpush1.bf16.msra.mxu0 0
        %2931 = vmatprep.subr.bf16.mxu0 0
        %2932 = vmatpush1.bf16.msra.mxu0 0
        %2933 = vmatprep.subr.bf16.mxu0 0
        %2934 = vmatpush1.bf16.msra.mxu0 0
        %2935 = vmatprep.subr.bf16.mxu0 0
        %2936 = vmatpush1.bf16.msra.mxu0 0
        %2937 = vmatprep.subr.bf16.mxu0 0
        %2938 = vmatpush1.bf16.msra.mxu0 0
        %2939 = vmatprep.mubr.bf16.mxu0 0
        %2940 = vmatmul.mubr.bf16.gmra.mrb[0].mxu0 %v2733
        %v2941 = vpop.f32.mrb[0].mxu0
        %v2942 = vadd.f32 %v2185, %v2941
        %v2943 = vpop.f32.mrb[0].mxu0
        %v2944 = vadd.f32 %v2185, %v2943
        %v2945 = vpop.f32.mrb[0].mxu0
        %v2946 = vpop.f32.mrb[0].mxu0
        %2947 = vdwg.mxu0
        %2948 = vmatprep.subr.bf16.mxu0 %v2532
        %2949 = vmatpush1.bf16.msra.mxu0 %v2531
        %2950 = vmatprep.subr.bf16.mxu0 %v2548
        %2951 = vmatpush1.bf16.msra.mxu0 %v2547
        %2952 = vmatprep.subr.bf16.mxu0 %v2564
        %2953 = vmatpush1.bf16.msra.mxu0 %v2563
        %2954 = vmatprep.subr.bf16.mxu0 %v2580
        %2955 = vmatpush1.bf16.msra.mxu0 %v2579
        %2956 = vmatprep.subr.bf16.mxu0 %v2596
        %2957 = vmatpush1.bf16.msra.mxu0 %v2595
        %2958 = vmatprep.subr.bf16.mxu0 %v2612
        %2959 = vmatpush1.bf16.msra.mxu0 %v2611
        %2960 = vmatprep.subr.bf16.mxu0 %v2764
        %2961 = vmatpush1.bf16.msra.mxu0 %v2761
        %2962 = vmatprep.subr.bf16.mxu0 0
        %2963 = vmatpush1.bf16.msra.mxu0 0
        %2964 = vmatprep.subr.bf16.mxu0 0
        %2965 = vmatpush1.bf16.msra.mxu0 0
        %2966 = vmatprep.subr.bf16.mxu0 0
        %2967 = vmatpush1.bf16.msra.mxu0 0
        %2968 = vmatprep.subr.bf16.mxu0 0
        %2969 = vmatpush1.bf16.msra.mxu0 0
        %2970 = vmatprep.subr.bf16.mxu0 0
        %2971 = vmatpush1.bf16.msra.mxu0 0
        %2972 = vmatprep.subr.bf16.mxu0 0
        %2973 = vmatpush1.bf16.msra.mxu0 0
        %2974 = vmatprep.subr.bf16.mxu0 0
        %2975 = vmatpush1.bf16.msra.mxu0 0
        %2976 = vmatprep.subr.bf16.mxu0 0
        %2977 = vmatpush1.bf16.msra.mxu0 0
        %2978 = vmatprep.subr.bf16.mxu0 0
        %2979 = vmatpush1.bf16.msra.mxu0 0
        %2980 = vmatprep.mubr.bf16.mxu0 0
        %2981 = vmatmul.mubr.bf16.gmra.mrb[0].mxu0 %v2733
        %v2982 = vpop.f32.mrb[0].mxu0
        %v2983 = vadd.f32 %v2185, %v2982
        %v2984 = vpop.f32.mrb[0].mxu0
        %v2985 = vadd.f32 %v2185, %v2984
        %v2986 = vpop.f32.mrb[0].mxu0
        %v2987 = vpop.f32.mrb[0].mxu0
        %2988 = vdwg.mxu0
        %2989 = vmatprep.subr.bf16.mxu0 %v2534
        %2990 = vmatpush1.bf16.msra.mxu0 %v2533
        %2991 = vmatprep.subr.bf16.mxu0 %v2550
        %2992 = vmatpush1.bf16.msra.mxu0 %v2549
        %2993 = vmatprep.subr.bf16.mxu0 %v2566
        %2994 = vmatpush1.bf16.msra.mxu0 %v2565
        %2995 = vmatprep.subr.bf16.mxu0 %v2582
        %2996 = vmatpush1.bf16.msra.mxu0 %v2581
        %2997 = vmatprep.subr.bf16.mxu0 %v2598
        %2998 = vmatpush1.bf16.msra.mxu0 %v2597
        %2999 = vmatprep.subr.bf16.mxu0 %v2614
        %3000 = vmatpush1.bf16.msra.mxu0 %v2613
        %3001 = vmatprep.subr.bf16.mxu0 %v2770
        %3002 = vmatpush1.bf16.msra.mxu0 %v2767
        %3003 = vmatprep.subr.bf16.mxu0 0
        %3004 = vmatpush1.bf16.msra.mxu0 0
        %3005 = vmatprep.subr.bf16.mxu0 0
        %3006 = vmatpush1.bf16.msra.mxu0 0
        %3007 = vmatprep.subr.bf16.mxu0 0
        %3008 = vmatpush1.bf16.msra.mxu0 0
        %3009 = vmatprep.subr.bf16.mxu0 0
        %3010 = vmatpush1.bf16.msra.mxu0 0
        %3011 = vmatprep.subr.bf16.mxu0 0
        %3012 = vmatpush1.bf16.msra.mxu0 0
        %3013 = vmatprep.subr.bf16.mxu0 0
        %3014 = vmatpush1.bf16.msra.mxu0 0
        %3015 = vmatprep.subr.bf16.mxu0 0
        %3016 = vmatpush1.bf16.msra.mxu0 0
        %3017 = vmatprep.subr.bf16.mxu0 0
        %3018 = vmatpush1.bf16.msra.mxu0 0
        %3019 = vmatprep.subr.bf16.mxu0 0
        %3020 = vmatpush1.bf16.msra.mxu0 0
        %3021 = vmatprep.mubr.bf16.mxu0 0
        %3022 = vmatmul.mubr.bf16.gmra.mrb[0].mxu0 %v2733
        %v3023 = vpop.f32.mrb[0].mxu0
        %v3024 = vadd.f32 %v2185, %v3023
        %v3025 = vpop.f32.mrb[0].mxu0
        %v3026 = vadd.f32 %v2185, %v3025
        %v3027 = vpop.f32.mrb[0].mxu0
        %v3028 = vpop.f32.mrb[0].mxu0
        %3029 = vdwg.mxu0
        %3030 = vmatprep.subr.bf16.mxu0 %v2536
        %3031 = vmatpush1.bf16.msra.mxu0 %v2535
        %3032 = vmatprep.subr.bf16.mxu0 %v2552
        %3033 = vmatpush1.bf16.msra.mxu0 %v2551
        %3034 = vmatprep.subr.bf16.mxu0 %v2568
        %3035 = vmatpush1.bf16.msra.mxu0 %v2567
        %3036 = vmatprep.subr.bf16.mxu0 %v2584
        %3037 = vmatpush1.bf16.msra.mxu0 %v2583
        %3038 = vmatprep.subr.bf16.mxu0 %v2600
        %3039 = vmatpush1.bf16.msra.mxu0 %v2599
        %3040 = vmatprep.subr.bf16.mxu0 %v2616
        %3041 = vmatpush1.bf16.msra.mxu0 %v2615
        %3042 = vmatprep.subr.bf16.mxu0 %v2776
        %3043 = vmatpush1.bf16.msra.mxu0 %v2773
        %3044 = vmatprep.subr.bf16.mxu0 0
        %3045 = vmatpush1.bf16.msra.mxu0 0
        %3046 = vmatprep.subr.bf16.mxu0 0
        %3047 = vmatpush1.bf16.msra.mxu0 0
        %3048 = vmatprep.subr.bf16.mxu0 0
        %3049 = vmatpush1.bf16.msra.mxu0 0
        %3050 = vmatprep.subr.bf16.mxu0 0
        %3051 = vmatpush1.bf16.msra.mxu0 0
        %3052 = vmatprep.subr.bf16.mxu0 0
        %3053 = vmatpush1.bf16.msra.mxu0 0
        %3054 = vmatprep.subr.bf16.mxu0 0
        %3055 = vmatpush1.bf16.msra.mxu0 0
        %3056 = vmatprep.subr.bf16.mxu0 0
        %3057 = vmatpush1.bf16.msra.mxu0 0
        %3058 = vmatprep.subr.bf16.mxu0 0
        %3059 = vmatpush1.bf16.msra.mxu0 0
        %3060 = vmatprep.subr.bf16.mxu0 0
        %3061 = vmatpush1.bf16.msra.mxu0 0
        %3062 = vmatprep.mubr.bf16.mxu0 0
        %3063 = vmatmul.mubr.bf16.gmra.mrb[0].mxu0 %v2733
        %v3064 = vpop.f32.mrb[0].mxu0
        %v3065 = vadd.f32 %v2185, %v3064
        %v3066 = vpop.f32.mrb[0].mxu0
        %v3067 = vadd.f32 %v2185, %v3066
        %v3068 = vpop.f32.mrb[0].mxu0
        %v3069 = vpop.f32.mrb[0].mxu0
        %3070 = vdwg.mxu0
        %3071 = vmatprep.subr.bf16.mxu0 %v2538
        %3072 = vmatpush1.bf16.msra.mxu0 %v2537
        %3073 = vmatprep.subr.bf16.mxu0 %v2554
        %3074 = vmatpush1.bf16.msra.mxu0 %v2553
        %3075 = vmatprep.subr.bf16.mxu0 %v2570
        %3076 = vmatpush1.bf16.msra.mxu0 %v2569
        %3077 = vmatprep.subr.bf16.mxu0 %v2586
        %3078 = vmatpush1.bf16.msra.mxu0 %v2585
        %3079 = vmatprep.subr.bf16.mxu0 %v2602
        %3080 = vmatpush1.bf16.msra.mxu0 %v2601
        %3081 = vmatprep.subr.bf16.mxu0 %v2618
        %3082 = vmatpush1.bf16.msra.mxu0 %v2617
        %3083 = vmatprep.subr.bf16.mxu0 %v2782
        %3084 = vmatpush1.bf16.msra.mxu0 %v2779
        %3085 = vmatprep.subr.bf16.mxu0 0
        %3086 = vmatpush1.bf16.msra.mxu0 0
        %3087 = vmatprep.subr.bf16.mxu0 0
        %3088 = vmatpush1.bf16.msra.mxu0 0
        %3089 = vmatprep.subr.bf16.mxu0 0
        %3090 = vmatpush1.bf16.msra.mxu0 0
        %3091 = vmatprep.subr.bf16.mxu0 0
        %3092 = vmatpush1.bf16.msra.mxu0 0
        %3093 = vmatprep.subr.bf16.mxu0 0
        %3094 = vmatpush1.bf16.msra.mxu0 0
        %3095 = vmatprep.subr.bf16.mxu0 0
        %3096 = vmatpush1.bf16.msra.mxu0 0
        %3097 = vmatprep.subr.bf16.mxu0 0
        %3098 = vmatpush1.bf16.msra.mxu0 0
        %3099 = vmatprep.subr.bf16.mxu0 0
        %3100 = vmatpush1.bf16.msra.mxu0 0
        %3101 = vmatprep.subr.bf16.mxu0 0
        %3102 = vmatpush1.bf16.msra.mxu0 0
        %3103 = vmatprep.mubr.bf16.mxu0 0
        %3104 = vmatmul.mubr.bf16.gmra.mrb[0].mxu0 %v2733
        %v3105 = vpop.f32.mrb[0].mxu0
        %v3106 = vadd.f32 %v2185, %v3105
        %v3107 = vpop.f32.mrb[0].mxu0
        %v3108 = vadd.f32 %v2185, %v3107
        %v3109 = vpop.f32.mrb[0].mxu0
        %v3110 = vpop.f32.mrb[0].mxu0
        %3111 = vdwg.mxu0
        %v3112 = vmax.f32 %v2819, 0.0
        %v3113 = vmax.f32 %v2821, 0.0
        %v3114 = vmax.f32 %v2860, 0.0
        %v3115 = vmax.f32 %v2862, 0.0
        %v3116 = vmax.f32 %v2901, 0.0
        %v3117 = vmax.f32 %v2903, 0.0
        %v3118 = vmax.f32 %v2942, 0.0
        %v3119 = vmax.f32 %v2944, 0.0
        %v3120 = vmax.f32 %v2983, 0.0
        %v3121 = vmax.f32 %v2985, 0.0
        %v3122 = vmax.f32 %v3024, 0.0
        %v3123 = vmax.f32 %v3026, 0.0
        %v3124 = vmax.f32 %v3065, 0.0
        %v3125 = vmax.f32 %v3067, 0.0
        %v3126 = vmax.f32 %v3106, 0.0
        %v3127 = vmax.f32 %v3108, 0.0
        %v3144 = vcombine.low %v3112, %v3113
        %v3145 = vcombine.low %v3114, %v3115
        %v3146 = vcombine.low %v3116, %v3117
        %v3147 = vcombine.low %v3118, %v3119
        %v3148 = vcombine.low %v3120, %v3121
        %v3149 = vcombine.low %v3122, %v3123
        %v3150 = vcombine.low %v3124, %v3125
        %v3151 = vcombine.low %v3126, %v3127
        %3160 = vst [vmem:[%s282] sm:$0xff] %v3144
        %3161 = vst [vmem:[%s282 + $0x8] sm:$0xff] %v3145
        %3162 = vst [vmem:[%s282 + $0x10] sm:$0xff] %v3146
        %3163 = vst [vmem:[%s282 + $0x18] sm:$0xff] %v3147
        %3164 = vst [vmem:[%s282 + $0x20] sm:$0xff] %v3148
        %3165 = vst [vmem:[%s282 + $0x28] sm:$0xff] %v3149
        %3166 = vst [vmem:[%s282 + $0x30] sm:$0xff] %v3150
        %3167 = vst [vmem:[%s282 + $0x38] sm:$0xff] %v3151
        %v3168 = vld [vmem:[%s4] sm:$0x3]
        %v3169 = vld [vmem:[#allocation2] sm:$0xff]
        %v3170 = vld [vmem:[#allocation2 + $0x8] sm:$0xff]
        %v3171 = vld [vmem:[#allocation2 + $0x10] sm:$0xff]
        %v3172 = vld [vmem:[#allocation2 + $0x18] sm:$0xff]
        %v3173 = vld [vmem:[#allocation2 + $0x20] sm:$0xff]
        %v3174 = vld [vmem:[#allocation2 + $0x28] sm:$0xff]
        %v3175 = vld [vmem:[#allocation2 + $0x30] sm:$0xff]
        %v3176 = vld [vmem:[#allocation2 + $0x38] sm:$0xff]
        %v3177 = vld [vmem:[#allocation2 + $0x40] sm:$0xff]
        %v3178 = vld [vmem:[#allocation2 + $0x48] sm:$0xff]
        %v3179 = vld [vmem:[#allocation2 + $0x50] sm:$0xff]
        %v3180 = vld [vmem:[#allocation2 + $0x58] sm:$0xff]
        %v3181 = vld [vmem:[#allocation2 + $0x60] sm:$0xff]
        %v3182 = vld [vmem:[#allocation2 + $0x68] sm:$0xff]
        %v3183 = vld [vmem:[#allocation2 + $0x70] sm:$0xff]
        %v3184 = vld [vmem:[#allocation2 + $0x78] sm:$0xff]
        %v3185 = vld [vmem:[#allocation2 + $0x80] sm:$0xff]
        %v3186 = vld [vmem:[#allocation2 + $0x88] sm:$0xff]
        %v3187 = vld [vmem:[#allocation2 + $0x90] sm:$0xff]
        %v3188 = vld [vmem:[#allocation2 + $0x98] sm:$0xff]
        %v3189 = vld [vmem:[#allocation2 + $0xa0] sm:$0xff]
        %v3190 = vld [vmem:[#allocation2 + $0xa8] sm:$0xff]
        %v3191 = vld [vmem:[#allocation2 + $0xb0] sm:$0xff]
        %v3192 = vld [vmem:[#allocation2 + $0xb8] sm:$0xff]
        %v3193 = vld [vmem:[#allocation2 + $0xc0] sm:$0xff]
        %v3194 = vld [vmem:[#allocation2 + $0xc8] sm:$0xff]
        %v3195 = vld [vmem:[#allocation2 + $0xd0] sm:$0xff]
        %v3196 = vld [vmem:[#allocation2 + $0xd8] sm:$0xff]
        %v3197 = vld [vmem:[#allocation2 + $0xe0] sm:$0xff]
        %v3198 = vld [vmem:[#allocation2 + $0xe8] sm:$0xff]
        %v3199 = vld [vmem:[#allocation2 + $0xf0] sm:$0xff]
        %v3200 = vld [vmem:[#allocation2 + $0xf8] sm:$0xff]
        %v3201 = vld [vmem:[#allocation2 + $0x100] sm:$0x33]
        %v3202 = vld [vmem:[#allocation2 + $0x108] sm:$0x33]
        %v3203 = vld [vmem:[#allocation2 + $0x110] sm:$0x33]
        %v3204 = vld [vmem:[#allocation2 + $0x118] sm:$0x33]
        %v3205 = vld [vmem:[#allocation2 + $0x120] sm:$0x33]
        %v3206 = vld [vmem:[#allocation2 + $0x128] sm:$0x33]
        %v3207 = vld [vmem:[#allocation2 + $0x130] sm:$0x33]
        %v3208 = vld [vmem:[#allocation2 + $0x138] sm:$0x33]
        %v3209 = vld [vmem:[%s5] sm:$0xf]
        %3211 = vset.pattern.permute.xlu0 0
        %3212 = vperm.xlu0 %3211, %v3209
        %v3213 = vpop.permute.xlu0 %3212
        %v3255 = vunpack.c.l.b16 %v3169
        %v3256 = vunpack.c.h.b16 %v3169
        %v3257 = vunpack.c.l.b16 %v3170
        %v3258 = vunpack.c.h.b16 %v3170
        %v3259 = vunpack.c.l.b16 %v3171
        %v3260 = vunpack.c.h.b16 %v3171
        %v3261 = vunpack.c.l.b16 %v3172
        %v3262 = vunpack.c.h.b16 %v3172
        %v3263 = vunpack.c.l.b16 %v3173
        %v3264 = vunpack.c.h.b16 %v3173
        %v3265 = vunpack.c.l.b16 %v3174
        %v3266 = vunpack.c.h.b16 %v3174
        %v3267 = vunpack.c.l.b16 %v3175
        %v3268 = vunpack.c.h.b16 %v3175
        %v3269 = vunpack.c.l.b16 %v3176
        %v3270 = vunpack.c.h.b16 %v3176
        %v3271 = vunpack.c.l.b16 %v3177
        %v3272 = vunpack.c.h.b16 %v3177
        %v3273 = vunpack.c.l.b16 %v3178
        %v3274 = vunpack.c.h.b16 %v3178
        %v3275 = vunpack.c.l.b16 %v3179
        %v3276 = vunpack.c.h.b16 %v3179
        %v3277 = vunpack.c.l.b16 %v3180
        %v3278 = vunpack.c.h.b16 %v3180
        %v3279 = vunpack.c.l.b16 %v3181
        %v3280 = vunpack.c.h.b16 %v3181
        %v3281 = vunpack.c.l.b16 %v3182
        %v3282 = vunpack.c.h.b16 %v3182
        %v3283 = vunpack.c.l.b16 %v3183
        %v3284 = vunpack.c.h.b16 %v3183
        %v3285 = vunpack.c.l.b16 %v3184
        %v3286 = vunpack.c.h.b16 %v3184
        %v3287 = vunpack.c.l.b16 %v3185
        %v3288 = vunpack.c.h.b16 %v3185
        %v3289 = vunpack.c.l.b16 %v3186
        %v3290 = vunpack.c.h.b16 %v3186
        %v3291 = vunpack.c.l.b16 %v3187
        %v3292 = vunpack.c.h.b16 %v3187
        %v3293 = vunpack.c.l.b16 %v3188
        %v3294 = vunpack.c.h.b16 %v3188
        %v3295 = vunpack.c.l.b16 %v3189
        %v3296 = vunpack.c.h.b16 %v3189
        %v3297 = vunpack.c.l.b16 %v3190
        %v3298 = vunpack.c.h.b16 %v3190
        %v3299 = vunpack.c.l.b16 %v3191
        %v3300 = vunpack.c.h.b16 %v3191
        %v3301 = vunpack.c.l.b16 %v3192
        %v3302 = vunpack.c.h.b16 %v3192
        %v3303 = vunpack.c.l.b16 %v3193
        %v3304 = vunpack.c.h.b16 %v3193
        %v3305 = vunpack.c.l.b16 %v3194
        %v3306 = vunpack.c.h.b16 %v3194
        %v3307 = vunpack.c.l.b16 %v3195
        %v3308 = vunpack.c.h.b16 %v3195
        %v3309 = vunpack.c.l.b16 %v3196
        %v3310 = vunpack.c.h.b16 %v3196
        %v3311 = vunpack.c.l.b16 %v3197
        %v3312 = vunpack.c.h.b16 %v3197
        %v3313 = vunpack.c.l.b16 %v3198
        %v3314 = vunpack.c.h.b16 %v3198
        %v3315 = vunpack.c.l.b16 %v3199
        %v3316 = vunpack.c.h.b16 %v3199
        %v3317 = vunpack.c.l.b16 %v3200
        %v3318 = vunpack.c.h.b16 %v3200
        %v3319 = vunpack.c.l.b16 %v3201
        %v3320 = vunpack.c.h.b16 %v3201
        %v3321 = vunpack.c.l.b16 %v3202
        %v3322 = vunpack.c.h.b16 %v3202
        %v3323 = vunpack.c.l.b16 %v3203
        %v3324 = vunpack.c.h.b16 %v3203
        %v3325 = vunpack.c.l.b16 %v3204
        %v3326 = vunpack.c.h.b16 %v3204
        %v3327 = vunpack.c.l.b16 %v3205
        %v3328 = vunpack.c.h.b16 %v3205
        %v3329 = vunpack.c.l.b16 %v3206
        %v3330 = vunpack.c.h.b16 %v3206
        %v3331 = vunpack.c.l.b16 %v3207
        %v3332 = vunpack.c.h.b16 %v3207
        %v3333 = vunpack.c.l.b16 %v3208
        %v3334 = vunpack.c.h.b16 %v3208
        %v3335 = vpack.c.b16 %v3271, %v3255
        %v3336 = vpack.c.b16 %v3272, %v3256
        %v3337 = vpack.c.b16 %v3273, %v3257
        %v3338 = vpack.c.b16 %v3274, %v3258
        %v3339 = vpack.c.b16 %v3275, %v3259
        %v3340 = vpack.c.b16 %v3276, %v3260
        %v3341 = vpack.c.b16 %v3277, %v3261
        %v3342 = vpack.c.b16 %v3278, %v3262
        %v3343 = vpack.c.b16 %v3279, %v3263
        %v3344 = vpack.c.b16 %v3280, %v3264
        %v3345 = vpack.c.b16 %v3281, %v3265
        %v3346 = vpack.c.b16 %v3282, %v3266
        %v3347 = vpack.c.b16 %v3283, %v3267
        %v3348 = vpack.c.b16 %v3284, %v3268
        %v3349 = vpack.c.b16 %v3285, %v3269
        %v3350 = vpack.c.b16 %v3286, %v3270
        %v3351 = vpack.c.b16 %v3303, %v3287
        %v3352 = vpack.c.b16 %v3304, %v3288
        %v3353 = vpack.c.b16 %v3305, %v3289
        %v3354 = vpack.c.b16 %v3306, %v3290
        %v3355 = vpack.c.b16 %v3307, %v3291
        %v3356 = vpack.c.b16 %v3308, %v3292
        %v3357 = vpack.c.b16 %v3309, %v3293
        %v3358 = vpack.c.b16 %v3310, %v3294
        %v3359 = vpack.c.b16 %v3311, %v3295
        %v3360 = vpack.c.b16 %v3312, %v3296
        %v3361 = vpack.c.b16 %v3313, %v3297
        %v3362 = vpack.c.b16 %v3314, %v3298
        %v3363 = vpack.c.b16 %v3315, %v3299
        %v3364 = vpack.c.b16 %v3316, %v3300
        %v3365 = vpack.c.b16 %v3317, %v3301
        %v3366 = vpack.c.b16 %v3318, %v3302
        %v3367 = vpack.c.b16 %v3319, %v3319
        %v3368 = vpack.c.b16 %v3320, %v3320
        %v3369 = vpack.c.b16 %v3321, %v3321
        %v3370 = vpack.c.b16 %v3322, %v3322
        %v3371 = vpack.c.b16 %v3323, %v3323
        %v3372 = vpack.c.b16 %v3324, %v3324
        %v3373 = vpack.c.b16 %v3325, %v3325
        %v3374 = vpack.c.b16 %v3326, %v3326
        %v3375 = vpack.c.b16 %v3327, %v3327
        %v3376 = vpack.c.b16 %v3328, %v3328
        %v3377 = vpack.c.b16 %v3329, %v3329
        %v3378 = vpack.c.b16 %v3330, %v3330
        %v3379 = vpack.c.b16 %v3331, %v3331
        %v3380 = vpack.c.b16 %v3332, %v3332
        %v3381 = vpack.c.b16 %v3333, %v3333
        %v3382 = vpack.c.b16 %v3334, %v3334
        %vm3415 = vcmask 293888
        %v3417 = vsel %vm3415, %v3168, 0
        %vm3419 = vcmask 1041408
        %v3421 = vsel %vm3419, %v3367, 0
        %v3424 = vsel %vm3419, %v3368, 0
        %v3427 = vsel %vm3419, %v3369, 0
        %v3430 = vsel %vm3419, %v3370, 0
        %v3433 = vsel %vm3419, %v3371, 0
        %v3436 = vsel %vm3419, %v3372, 0
        %v3439 = vsel %vm3419, %v3373, 0
        %v3442 = vsel %vm3419, %v3374, 0
        %v3445 = vsel %vm3419, %v3375, 0
        %v3448 = vsel %vm3419, %v3376, 0
        %v3451 = vsel %vm3419, %v3377, 0
        %v3454 = vsel %vm3419, %v3378, 0
        %v3457 = vsel %vm3419, %v3379, 0
        %v3460 = vsel %vm3419, %v3380, 0
        %v3463 = vsel %vm3419, %v3381, 0
        %v3466 = vsel %vm3419, %v3382, 0
        %3468 = vmatprep.subr.bf16.mxu0 %v3336
        %3469 = vmatpush1.bf16.msra.mxu0 %v3335
        %3470 = vmatprep.subr.bf16.mxu0 %v3352
        %3471 = vmatpush1.bf16.msra.mxu0 %v3351
        %3472 = vmatprep.subr.bf16.mxu0 %v3424
        %3473 = vmatpush1.bf16.msra.mxu0 %v3421
        %3474 = vmatprep.subr.bf16.mxu0 0
        %3475 = vmatpush1.bf16.msra.mxu0 0
        %3476 = vmatprep.subr.bf16.mxu0 0
        %3477 = vmatpush1.bf16.msra.mxu0 0
        %3478 = vmatprep.subr.bf16.mxu0 0
        %3479 = vmatpush1.bf16.msra.mxu0 0
        %3480 = vmatprep.subr.bf16.mxu0 0
        %3481 = vmatpush1.bf16.msra.mxu0 0
        %3482 = vmatprep.subr.bf16.mxu0 0
        %3483 = vmatpush1.bf16.msra.mxu0 0
        %3484 = vmatprep.subr.bf16.mxu0 0
        %3485 = vmatpush1.bf16.msra.mxu0 0
        %3486 = vmatprep.subr.bf16.mxu0 0
        %3487 = vmatpush1.bf16.msra.mxu0 0
        %3488 = vmatprep.subr.bf16.mxu0 0
        %3489 = vmatpush1.bf16.msra.mxu0 0
        %3490 = vmatprep.subr.bf16.mxu0 0
        %3491 = vmatpush1.bf16.msra.mxu0 0
        %3492 = vmatprep.subr.bf16.mxu0 0
        %3493 = vmatpush1.bf16.msra.mxu0 0
        %3494 = vmatprep.subr.bf16.mxu0 0
        %3495 = vmatpush1.bf16.msra.mxu0 0
        %3496 = vmatprep.subr.bf16.mxu0 0
        %3497 = vmatpush1.bf16.msra.mxu0 0
        %3498 = vmatprep.subr.bf16.mxu0 0
        %3499 = vmatpush1.bf16.msra.mxu0 0
        %3500 = vmatprep.mubr.bf16.mxu0 0
        %3501 = vmatmul.mubr.bf16.gmra.mrb[0].mxu0 %v3417
        %v3502 = vpop.f32.mrb[0].mxu0
        %v3503 = vadd.f32 %v3213, %v3502
        %v3504 = vpop.f32.mrb[0].mxu0
        %v3505 = vadd.f32 %v3213, %v3504
        %v3506 = vpop.f32.mrb[0].mxu0
        %v3507 = vpop.f32.mrb[0].mxu0
        %3508 = vdwg.mxu0
        %3509 = vmatprep.subr.bf16.mxu0 %v3338
        %3510 = vmatpush1.bf16.msra.mxu0 %v3337
        %3511 = vmatprep.subr.bf16.mxu0 %v3354
        %3512 = vmatpush1.bf16.msra.mxu0 %v3353
        %3513 = vmatprep.subr.bf16.mxu0 %v3430
        %3514 = vmatpush1.bf16.msra.mxu0 %v3427
        %3515 = vmatprep.subr.bf16.mxu0 0
        %3516 = vmatpush1.bf16.msra.mxu0 0
        %3517 = vmatprep.subr.bf16.mxu0 0
        %3518 = vmatpush1.bf16.msra.mxu0 0
        %3519 = vmatprep.subr.bf16.mxu0 0
        %3520 = vmatpush1.bf16.msra.mxu0 0
        %3521 = vmatprep.subr.bf16.mxu0 0
        %3522 = vmatpush1.bf16.msra.mxu0 0
        %3523 = vmatprep.subr.bf16.mxu0 0
        %3524 = vmatpush1.bf16.msra.mxu0 0
        %3525 = vmatprep.subr.bf16.mxu0 0
        %3526 = vmatpush1.bf16.msra.mxu0 0
        %3527 = vmatprep.subr.bf16.mxu0 0
        %3528 = vmatpush1.bf16.msra.mxu0 0
        %3529 = vmatprep.subr.bf16.mxu0 0
        %3530 = vmatpush1.bf16.msra.mxu0 0
        %3531 = vmatprep.subr.bf16.mxu0 0
        %3532 = vmatpush1.bf16.msra.mxu0 0
        %3533 = vmatprep.subr.bf16.mxu0 0
        %3534 = vmatpush1.bf16.msra.mxu0 0
        %3535 = vmatprep.subr.bf16.mxu0 0
        %3536 = vmatpush1.bf16.msra.mxu0 0
        %3537 = vmatprep.subr.bf16.mxu0 0
        %3538 = vmatpush1.bf16.msra.mxu0 0
        %3539 = vmatprep.subr.bf16.mxu0 0
        %3540 = vmatpush1.bf16.msra.mxu0 0
        %3541 = vmatprep.mubr.bf16.mxu0 0
        %3542 = vmatmul.mubr.bf16.gmra.mrb[0].mxu0 %v3417
        %v3543 = vpop.f32.mrb[0].mxu0
        %v3544 = vadd.f32 %v3213, %v3543
        %v3545 = vpop.f32.mrb[0].mxu0
        %v3546 = vadd.f32 %v3213, %v3545
        %v3547 = vpop.f32.mrb[0].mxu0
        %v3548 = vpop.f32.mrb[0].mxu0
        %3549 = vdwg.mxu0
        %3550 = vmatprep.subr.bf16.mxu0 %v3340
        %3551 = vmatpush1.bf16.msra.mxu0 %v3339
        %3552 = vmatprep.subr.bf16.mxu0 %v3356
        %3553 = vmatpush1.bf16.msra.mxu0 %v3355
        %3554 = vmatprep.subr.bf16.mxu0 %v3436
        %3555 = vmatpush1.bf16.msra.mxu0 %v3433
        %3556 = vmatprep.subr.bf16.mxu0 0
        %3557 = vmatpush1.bf16.msra.mxu0 0
        %3558 = vmatprep.subr.bf16.mxu0 0
        %3559 = vmatpush1.bf16.msra.mxu0 0
        %3560 = vmatprep.subr.bf16.mxu0 0
        %3561 = vmatpush1.bf16.msra.mxu0 0
        %3562 = vmatprep.subr.bf16.mxu0 0
        %3563 = vmatpush1.bf16.msra.mxu0 0
        %3564 = vmatprep.subr.bf16.mxu0 0
        %3565 = vmatpush1.bf16.msra.mxu0 0
        %3566 = vmatprep.subr.bf16.mxu0 0
        %3567 = vmatpush1.bf16.msra.mxu0 0
        %3568 = vmatprep.subr.bf16.mxu0 0
        %3569 = vmatpush1.bf16.msra.mxu0 0
        %3570 = vmatprep.subr.bf16.mxu0 0
        %3571 = vmatpush1.bf16.msra.mxu0 0
        %3572 = vmatprep.subr.bf16.mxu0 0
        %3573 = vmatpush1.bf16.msra.mxu0 0
        %3574 = vmatprep.subr.bf16.mxu0 0
        %3575 = vmatpush1.bf16.msra.mxu0 0
        %3576 = vmatprep.subr.bf16.mxu0 0
        %3577 = vmatpush1.bf16.msra.mxu0 0
        %3578 = vmatprep.subr.bf16.mxu0 0
        %3579 = vmatpush1.bf16.msra.mxu0 0
        %3580 = vmatprep.subr.bf16.mxu0 0
        %3581 = vmatpush1.bf16.msra.mxu0 0
        %3582 = vmatprep.mubr.bf16.mxu0 0
        %3583 = vmatmul.mubr.bf16.gmra.mrb[0].mxu0 %v3417
        %v3584 = vpop.f32.mrb[0].mxu0
        %v3585 = vadd.f32 %v3213, %v3584
        %v3586 = vpop.f32.mrb[0].mxu0
        %v3587 = vadd.f32 %v3213, %v3586
        %v3588 = vpop.f32.mrb[0].mxu0
        %v3589 = vpop.f32.mrb[0].mxu0
        %3590 = vdwg.mxu0
        %3591 = vmatprep.subr.bf16.mxu0 %v3342
        %3592 = vmatpush1.bf16.msra.mxu0 %v3341
        %3593 = vmatprep.subr.bf16.mxu0 %v3358
        %3594 = vmatpush1.bf16.msra.mxu0 %v3357
        %3595 = vmatprep.subr.bf16.mxu0 %v3442
        %3596 = vmatpush1.bf16.msra.mxu0 %v3439
        %3597 = vmatprep.subr.bf16.mxu0 0
        %3598 = vmatpush1.bf16.msra.mxu0 0
        %3599 = vmatprep.subr.bf16.mxu0 0
        %3600 = vmatpush1.bf16.msra.mxu0 0
        %3601 = vmatprep.subr.bf16.mxu0 0
        %3602 = vmatpush1.bf16.msra.mxu0 0
        %3603 = vmatprep.subr.bf16.mxu0 0
        %3604 = vmatpush1.bf16.msra.mxu0 0
        %3605 = vmatprep.subr.bf16.mxu0 0
        %3606 = vmatpush1.bf16.msra.mxu0 0
        %3607 = vmatprep.subr.bf16.mxu0 0
        %3608 = vmatpush1.bf16.msra.mxu0 0
        %3609 = vmatprep.subr.bf16.mxu0 0
        %3610 = vmatpush1.bf16.msra.mxu0 0
        %3611 = vmatprep.subr.bf16.mxu0 0
        %3612 = vmatpush1.bf16.msra.mxu0 0
        %3613 = vmatprep.subr.bf16.mxu0 0
        %3614 = vmatpush1.bf16.msra.mxu0 0
        %3615 = vmatprep.subr.bf16.mxu0 0
        %3616 = vmatpush1.bf16.msra.mxu0 0
        %3617 = vmatprep.subr.bf16.mxu0 0
        %3618 = vmatpush1.bf16.msra.mxu0 0
        %3619 = vmatprep.subr.bf16.mxu0 0
        %3620 = vmatpush1.bf16.msra.mxu0 0
        %3621 = vmatprep.subr.bf16.mxu0 0
        %3622 = vmatpush1.bf16.msra.mxu0 0
        %3623 = vmatprep.mubr.bf16.mxu0 0
        %3624 = vmatmul.mubr.bf16.gmra.mrb[0].mxu0 %v3417
        %v3625 = vpop.f32.mrb[0].mxu0
        %v3626 = vadd.f32 %v3213, %v3625
        %v3627 = vpop.f32.mrb[0].mxu0
        %v3628 = vadd.f32 %v3213, %v3627
        %v3629 = vpop.f32.mrb[0].mxu0
        %v3630 = vpop.f32.mrb[0].mxu0
        %3631 = vdwg.mxu0
        %3632 = vmatprep.subr.bf16.mxu0 %v3344
        %3633 = vmatpush1.bf16.msra.mxu0 %v3343
        %3634 = vmatprep.subr.bf16.mxu0 %v3360
        %3635 = vmatpush1.bf16.msra.mxu0 %v3359
        %3636 = vmatprep.subr.bf16.mxu0 %v3448
        %3637 = vmatpush1.bf16.msra.mxu0 %v3445
        %3638 = vmatprep.subr.bf16.mxu0 0
        %3639 = vmatpush1.bf16.msra.mxu0 0
        %3640 = vmatprep.subr.bf16.mxu0 0
        %3641 = vmatpush1.bf16.msra.mxu0 0
        %3642 = vmatprep.subr.bf16.mxu0 0
        %3643 = vmatpush1.bf16.msra.mxu0 0
        %3644 = vmatprep.subr.bf16.mxu0 0
        %3645 = vmatpush1.bf16.msra.mxu0 0
        %3646 = vmatprep.subr.bf16.mxu0 0
        %3647 = vmatpush1.bf16.msra.mxu0 0
        %3648 = vmatprep.subr.bf16.mxu0 0
        %3649 = vmatpush1.bf16.msra.mxu0 0
        %3650 = vmatprep.subr.bf16.mxu0 0
        %3651 = vmatpush1.bf16.msra.mxu0 0
        %3652 = vmatprep.subr.bf16.mxu0 0
        %3653 = vmatpush1.bf16.msra.mxu0 0
        %3654 = vmatprep.subr.bf16.mxu0 0
        %3655 = vmatpush1.bf16.msra.mxu0 0
        %3656 = vmatprep.subr.bf16.mxu0 0
        %3657 = vmatpush1.bf16.msra.mxu0 0
        %3658 = vmatprep.subr.bf16.mxu0 0
        %3659 = vmatpush1.bf16.msra.mxu0 0
        %3660 = vmatprep.subr.bf16.mxu0 0
        %3661 = vmatpush1.bf16.msra.mxu0 0
        %3662 = vmatprep.subr.bf16.mxu0 0
        %3663 = vmatpush1.bf16.msra.mxu0 0
        %3664 = vmatprep.mubr.bf16.mxu0 0
        %3665 = vmatmul.mubr.bf16.gmra.mrb[0].mxu0 %v3417
        %v3666 = vpop.f32.mrb[0].mxu0
        %v3667 = vadd.f32 %v3213, %v3666
        %v3668 = vpop.f32.mrb[0].mxu0
        %v3669 = vadd.f32 %v3213, %v3668
        %v3670 = vpop.f32.mrb[0].mxu0
        %v3671 = vpop.f32.mrb[0].mxu0
        %3672 = vdwg.mxu0
        %3673 = vmatprep.subr.bf16.mxu0 %v3346
        %3674 = vmatpush1.bf16.msra.mxu0 %v3345
        %3675 = vmatprep.subr.bf16.mxu0 %v3362
        %3676 = vmatpush1.bf16.msra.mxu0 %v3361
        %3677 = vmatprep.subr.bf16.mxu0 %v3454
        %3678 = vmatpush1.bf16.msra.mxu0 %v3451
        %3679 = vmatprep.subr.bf16.mxu0 0
        %3680 = vmatpush1.bf16.msra.mxu0 0
        %3681 = vmatprep.subr.bf16.mxu0 0
        %3682 = vmatpush1.bf16.msra.mxu0 0
        %3683 = vmatprep.subr.bf16.mxu0 0
        %3684 = vmatpush1.bf16.msra.mxu0 0
        %3685 = vmatprep.subr.bf16.mxu0 0
        %3686 = vmatpush1.bf16.msra.mxu0 0
        %3687 = vmatprep.subr.bf16.mxu0 0
        %3688 = vmatpush1.bf16.msra.mxu0 0
        %3689 = vmatprep.subr.bf16.mxu0 0
        %3690 = vmatpush1.bf16.msra.mxu0 0
        %3691 = vmatprep.subr.bf16.mxu0 0
        %3692 = vmatpush1.bf16.msra.mxu0 0
        %3693 = vmatprep.subr.bf16.mxu0 0
        %3694 = vmatpush1.bf16.msra.mxu0 0
        %3695 = vmatprep.subr.bf16.mxu0 0
        %3696 = vmatpush1.bf16.msra.mxu0 0
        %3697 = vmatprep.subr.bf16.mxu0 0
        %3698 = vmatpush1.bf16.msra.mxu0 0
        %3699 = vmatprep.subr.bf16.mxu0 0
        %3700 = vmatpush1.bf16.msra.mxu0 0
        %3701 = vmatprep.subr.bf16.mxu0 0
        %3702 = vmatpush1.bf16.msra.mxu0 0
        %3703 = vmatprep.subr.bf16.mxu0 0
        %3704 = vmatpush1.bf16.msra.mxu0 0
        %3705 = vmatprep.mubr.bf16.mxu0 0
        %3706 = vmatmul.mubr.bf16.gmra.mrb[0].mxu0 %v3417
        %v3707 = vpop.f32.mrb[0].mxu0
        %v3708 = vadd.f32 %v3213, %v3707
        %v3709 = vpop.f32.mrb[0].mxu0
        %v3710 = vadd.f32 %v3213, %v3709
        %v3711 = vpop.f32.mrb[0].mxu0
        %v3712 = vpop.f32.mrb[0].mxu0
        %3713 = vdwg.mxu0
        %3714 = vmatprep.subr.bf16.mxu0 %v3348
        %3715 = vmatpush1.bf16.msra.mxu0 %v3347
        %3716 = vmatprep.subr.bf16.mxu0 %v3364
        %3717 = vmatpush1.bf16.msra.mxu0 %v3363
        %3718 = vmatprep.subr.bf16.mxu0 %v3460
        %3719 = vmatpush1.bf16.msra.mxu0 %v3457
        %3720 = vmatprep.subr.bf16.mxu0 0
        %3721 = vmatpush1.bf16.msra.mxu0 0
        %3722 = vmatprep.subr.bf16.mxu0 0
        %3723 = vmatpush1.bf16.msra.mxu0 0
        %3724 = vmatprep.subr.bf16.mxu0 0
        %3725 = vmatpush1.bf16.msra.mxu0 0
        %3726 = vmatprep.subr.bf16.mxu0 0
        %3727 = vmatpush1.bf16.msra.mxu0 0
        %3728 = vmatprep.subr.bf16.mxu0 0
        %3729 = vmatpush1.bf16.msra.mxu0 0
        %3730 = vmatprep.subr.bf16.mxu0 0
        %3731 = vmatpush1.bf16.msra.mxu0 0
        %3732 = vmatprep.subr.bf16.mxu0 0
        %3733 = vmatpush1.bf16.msra.mxu0 0
        %3734 = vmatprep.subr.bf16.mxu0 0
        %3735 = vmatpush1.bf16.msra.mxu0 0
        %3736 = vmatprep.subr.bf16.mxu0 0
        %3737 = vmatpush1.bf16.msra.mxu0 0
        %3738 = vmatprep.subr.bf16.mxu0 0
        %3739 = vmatpush1.bf16.msra.mxu0 0
        %3740 = vmatprep.subr.bf16.mxu0 0
        %3741 = vmatpush1.bf16.msra.mxu0 0
        %3742 = vmatprep.subr.bf16.mxu0 0
        %3743 = vmatpush1.bf16.msra.mxu0 0
        %3744 = vmatprep.subr.bf16.mxu0 0
        %3745 = vmatpush1.bf16.msra.mxu0 0
        %3746 = vmatprep.mubr.bf16.mxu0 0
        %3747 = vmatmul.mubr.bf16.gmra.mrb[0].mxu0 %v3417
        %v3748 = vpop.f32.mrb[0].mxu0
        %v3749 = vadd.f32 %v3213, %v3748
        %v3750 = vpop.f32.mrb[0].mxu0
        %v3751 = vadd.f32 %v3213, %v3750
        %v3752 = vpop.f32.mrb[0].mxu0
        %v3753 = vpop.f32.mrb[0].mxu0
        %3754 = vdwg.mxu0
        %3755 = vmatprep.subr.bf16.mxu0 %v3350
        %3756 = vmatpush1.bf16.msra.mxu0 %v3349
        %3757 = vmatprep.subr.bf16.mxu0 %v3366
        %3758 = vmatpush1.bf16.msra.mxu0 %v3365
        %3759 = vmatprep.subr.bf16.mxu0 %v3466
        %3760 = vmatpush1.bf16.msra.mxu0 %v3463
        %3761 = vmatprep.subr.bf16.mxu0 0
        %3762 = vmatpush1.bf16.msra.mxu0 0
        %3763 = vmatprep.subr.bf16.mxu0 0
        %3764 = vmatpush1.bf16.msra.mxu0 0
        %3765 = vmatprep.subr.bf16.mxu0 0
        %3766 = vmatpush1.bf16.msra.mxu0 0
        %3767 = vmatprep.subr.bf16.mxu0 0
        %3768 = vmatpush1.bf16.msra.mxu0 0
        %3769 = vmatprep.subr.bf16.mxu0 0
        %3770 = vmatpush1.bf16.msra.mxu0 0
        %3771 = vmatprep.subr.bf16.mxu0 0
        %3772 = vmatpush1.bf16.msra.mxu0 0
        %3773 = vmatprep.subr.bf16.mxu0 0
        %3774 = vmatpush1.bf16.msra.mxu0 0
        %3775 = vmatprep.subr.bf16.mxu0 0
        %3776 = vmatpush1.bf16.msra.mxu0 0
        %3777 = vmatprep.subr.bf16.mxu0 0
        %3778 = vmatpush1.bf16.msra.mxu0 0
        %3779 = vmatprep.subr.bf16.mxu0 0
        %3780 = vmatpush1.bf16.msra.mxu0 0
        %3781 = vmatprep.subr.bf16.mxu0 0
        %3782 = vmatpush1.bf16.msra.mxu0 0
        %3783 = vmatprep.subr.bf16.mxu0 0
        %3784 = vmatpush1.bf16.msra.mxu0 0
        %3785 = vmatprep.subr.bf16.mxu0 0
        %3786 = vmatpush1.bf16.msra.mxu0 0
        %3787 = vmatprep.mubr.bf16.mxu0 0
        %3788 = vmatmul.mubr.bf16.gmra.mrb[0].mxu0 %v3417
        %v3789 = vpop.f32.mrb[0].mxu0
        %v3790 = vadd.f32 %v3213, %v3789
        %v3791 = vpop.f32.mrb[0].mxu0
        %v3792 = vadd.f32 %v3213, %v3791
        %v3793 = vpop.f32.mrb[0].mxu0
        %v3794 = vpop.f32.mrb[0].mxu0
        %3795 = vdwg.mxu0
        %v3796 = vmax.f32 %v3503, 0.0
        %v3797 = vmax.f32 %v3505, 0.0
        %v3798 = vmax.f32 %v3544, 0.0
        %v3799 = vmax.f32 %v3546, 0.0
        %v3800 = vmax.f32 %v3585, 0.0
        %v3801 = vmax.f32 %v3587, 0.0
        %v3802 = vmax.f32 %v3626, 0.0
        %v3803 = vmax.f32 %v3628, 0.0
        %v3804 = vmax.f32 %v3667, 0.0
        %v3805 = vmax.f32 %v3669, 0.0
        %v3806 = vmax.f32 %v3708, 0.0
        %v3807 = vmax.f32 %v3710, 0.0
        %v3808 = vmax.f32 %v3749, 0.0
        %v3809 = vmax.f32 %v3751, 0.0
        %v3810 = vmax.f32 %v3790, 0.0
        %v3811 = vmax.f32 %v3792, 0.0
        %3812 = vrot.lane.b32.xlu0 %v3796, 17
        %v3813 = vpop.permute.xlu0 %3812
        %3814 = vrot.lane.b32.xlu0 %v3797, 17
        %v3815 = vpop.permute.xlu0 %3814
        %3816 = vrot.lane.b32.xlu0 %v3798, 17
        %v3817 = vpop.permute.xlu0 %3816
        %3818 = vrot.lane.b32.xlu0 %v3799, 17
        %v3819 = vpop.permute.xlu0 %3818
        %3820 = vrot.lane.b32.xlu0 %v3800, 17
        %v3821 = vpop.permute.xlu0 %3820
        %3822 = vrot.lane.b32.xlu0 %v3801, 17
        %v3823 = vpop.permute.xlu0 %3822
        %3824 = vrot.lane.b32.xlu0 %v3802, 17
        %v3825 = vpop.permute.xlu0 %3824
        %3826 = vrot.lane.b32.xlu0 %v3803, 17
        %v3827 = vpop.permute.xlu0 %3826
        %3828 = vrot.lane.b32.xlu0 %v3804, 17
        %v3829 = vpop.permute.xlu0 %3828
        %3830 = vrot.lane.b32.xlu0 %v3805, 17
        %v3831 = vpop.permute.xlu0 %3830
        %3832 = vrot.lane.b32.xlu0 %v3806, 17
        %v3833 = vpop.permute.xlu0 %3832
        %3834 = vrot.lane.b32.xlu0 %v3807, 17
        %v3835 = vpop.permute.xlu0 %3834
        %3836 = vrot.lane.b32.xlu0 %v3808, 17
        %v3837 = vpop.permute.xlu0 %3836
        %3838 = vrot.lane.b32.xlu0 %v3809, 17
        %v3839 = vpop.permute.xlu0 %3838
        %3840 = vrot.lane.b32.xlu0 %v3810, 17
        %v3841 = vpop.permute.xlu0 %3840
        %3842 = vrot.lane.b32.xlu0 %v3811, 17
        %v3843 = vpop.permute.xlu0 %3842
        %v3844 = vsel %vm365, %v3841, %v3843
        %v3845 = vsel %vm365, %v3839, %v3841
        %v3846 = vsel %vm365, %v3837, %v3839
        %v3847 = vsel %vm365, %v3835, %v3837
        %v3848 = vsel %vm365, %v3833, %v3835
        %v3849 = vsel %vm365, %v3831, %v3833
        %v3850 = vsel %vm365, %v3829, %v3831
        %v3851 = vsel %vm365, %v3827, %v3829
        %v3852 = vsel %vm365, %v3825, %v3827
        %v3853 = vsel %vm365, %v3823, %v3825
        %v3854 = vsel %vm365, %v3821, %v3823
        %v3855 = vsel %vm365, %v3819, %v3821
        %v3856 = vsel %vm365, %v3817, %v3819
        %v3857 = vsel %vm365, %v3815, %v3817
        %v3858 = vsel %vm365, %v3813, %v3815
        %v3859 = vsel %vm365, %v3843, %v3813
        %v3860 = vld [vmem:[#allocation6] sm:$0xf]
        %v3861 = vld [vmem:[#allocation6 + $0x8] sm:$0xf]
        %v3862 = vld [vmem:[#allocation6 + $0x10] sm:$0xf]
        %v3863 = vld [vmem:[#allocation6 + $0x18] sm:$0xf]
        %v3864 = vld [vmem:[#allocation6 + $0x20] sm:$0xf]
        %v3865 = vld [vmem:[#allocation6 + $0x28] sm:$0xf]
        %v3866 = vld [vmem:[#allocation6 + $0x30] sm:$0xf]
        %v3867 = vld [vmem:[#allocation6 + $0x38] sm:$0xf]
        %v3868 = vld [vmem:[#allocation6 + $0x40] sm:$0xf]
        %v3869 = vld [vmem:[#allocation6 + $0x48] sm:$0xf]
        %v3870 = vld [vmem:[#allocation6 + $0x50] sm:$0xf]
        %v3871 = vld [vmem:[#allocation6 + $0x58] sm:$0xf]
        %v3872 = vld [vmem:[#allocation6 + $0x60] sm:$0xf]
        %v3873 = vld [vmem:[#allocation6 + $0x68] sm:$0xf]
        %v3874 = vld [vmem:[#allocation6 + $0x70] sm:$0xf]
        %v3875 = vld [vmem:[#allocation6 + $0x78] sm:$0xf]
        %v3876 = vmul.f32 %v3859, %v3860
        %v3877 = vmul.f32 %v3858, %v3861
        %v3878 = vmul.f32 %v3857, %v3862
        %v3879 = vmul.f32 %v3856, %v3863
        %v3880 = vmul.f32 %v3855, %v3864
        %v3881 = vmul.f32 %v3854, %v3865
        %v3882 = vmul.f32 %v3853, %v3866
        %v3883 = vmul.f32 %v3852, %v3867
        %v3884 = vmul.f32 %v3851, %v3868
        %v3885 = vmul.f32 %v3850, %v3869
        %v3886 = vmul.f32 %v3849, %v3870
        %v3887 = vmul.f32 %v3848, %v3871
        %v3888 = vmul.f32 %v3847, %v3872
        %v3889 = vmul.f32 %v3846, %v3873
        %v3890 = vmul.f32 %v3845, %v3874
        %v3891 = vmul.f32 %v3844, %v3875
        %v3892 = vpack.c.bf16 %v3876, %v3876
        %v3893 = vpack.c.bf16 %v3877, %v3877
        %v3894 = vpack.c.bf16 %v3878, %v3878
        %v3895 = vpack.c.bf16 %v3879, %v3879
        %v3896 = vpack.c.bf16 %v3880, %v3880
        %v3897 = vpack.c.bf16 %v3881, %v3881
        %v3898 = vpack.c.bf16 %v3882, %v3882
        %v3899 = vpack.c.bf16 %v3883, %v3883
        %v3900 = vpack.c.bf16 %v3884, %v3884
        %v3901 = vpack.c.bf16 %v3885, %v3885
        %v3902 = vpack.c.bf16 %v3886, %v3886
        %v3903 = vpack.c.bf16 %v3887, %v3887
        %v3904 = vpack.c.bf16 %v3888, %v3888
        %v3905 = vpack.c.bf16 %v3889, %v3889
        %v3906 = vpack.c.bf16 %v3890, %v3890
        %v3907 = vpack.c.bf16 %v3891, %v3891
        %v3924 = vunpack.c.l.b16 %v3892
        %v3925 = vunpack.c.l.b16 %v3893
        %v3926 = vunpack.c.l.b16 %v3894
        %v3927 = vunpack.c.l.b16 %v3895
        %v3928 = vunpack.c.l.b16 %v3896
        %v3929 = vunpack.c.l.b16 %v3897
        %v3930 = vunpack.c.l.b16 %v3898
        %v3931 = vunpack.c.l.b16 %v3899
        %v3932 = vunpack.c.l.b16 %v3900
        %v3933 = vunpack.c.l.b16 %v3901
        %v3934 = vunpack.c.l.b16 %v3902
        %v3935 = vunpack.c.l.b16 %v3903
        %v3936 = vunpack.c.l.b16 %v3904
        %v3937 = vunpack.c.l.b16 %v3905
        %v3938 = vunpack.c.l.b16 %v3906
        %v3939 = vunpack.c.l.b16 %v3907
        %v3940 = vpack.c.b16 %v3925, %v3924
        %v3941 = vpack.c.b16 %v3927, %v3926
        %v3942 = vpack.c.b16 %v3929, %v3928
        %v3943 = vpack.c.b16 %v3931, %v3930
        %v3944 = vpack.c.b16 %v3933, %v3932
        %v3945 = vpack.c.b16 %v3935, %v3934
        %v3946 = vpack.c.b16 %v3937, %v3936
        %v3947 = vpack.c.b16 %v3939, %v3938
        %3956 = vst [vmem:[#allocation2] sm:$0x33] %v3940
        %3957 = vst [vmem:[#allocation2 + $0x8] sm:$0x33] %v3941
        %3958 = vst [vmem:[#allocation2 + $0x10] sm:$0x33] %v3942
        %3959 = vst [vmem:[#allocation2 + $0x18] sm:$0x33] %v3943
        %3960 = vst [vmem:[#allocation2 + $0x20] sm:$0x33] %v3944
        %3961 = vst [vmem:[#allocation2 + $0x28] sm:$0x33] %v3945
        %3962 = vst [vmem:[#allocation2 + $0x30] sm:$0x33] %v3946
        %3963 = vst [vmem:[#allocation2 + $0x38] sm:$0x33] %v3947
        %3964 = vrot.lane.b32.xlu0 %v3796, 16
        %v3965 = vpop.permute.xlu0 %3964
        %3966 = vrot.lane.b32.xlu0 %v3797, 16
        %v3967 = vpop.permute.xlu0 %3966
        %3968 = vrot.lane.b32.xlu0 %v3798, 16
        %v3969 = vpop.permute.xlu0 %3968
        %3970 = vrot.lane.b32.xlu0 %v3799, 16
        %v3971 = vpop.permute.xlu0 %3970
        %3972 = vrot.lane.b32.xlu0 %v3800, 16
        %v3973 = vpop.permute.xlu0 %3972
        %3974 = vrot.lane.b32.xlu0 %v3801, 16
        %v3975 = vpop.permute.xlu0 %3974
        %3976 = vrot.lane.b32.xlu0 %v3802, 16
        %v3977 = vpop.permute.xlu0 %3976
        %3978 = vrot.lane.b32.xlu0 %v3803, 16
        %v3979 = vpop.permute.xlu0 %3978
        %3980 = vrot.lane.b32.xlu0 %v3804, 16
        %v3981 = vpop.permute.xlu0 %3980
        %3982 = vrot.lane.b32.xlu0 %v3805, 16
        %v3983 = vpop.permute.xlu0 %3982
        %3984 = vrot.lane.b32.xlu0 %v3806, 16
        %v3985 = vpop.permute.xlu0 %3984
        %3986 = vrot.lane.b32.xlu0 %v3807, 16
        %v3987 = vpop.permute.xlu0 %3986
        %3988 = vrot.lane.b32.xlu0 %v3808, 16
        %v3989 = vpop.permute.xlu0 %3988
        %3990 = vrot.lane.b32.xlu0 %v3809, 16
        %v3991 = vpop.permute.xlu0 %3990
        %3992 = vrot.lane.b32.xlu0 %v3810, 16
        %v3993 = vpop.permute.xlu0 %3992
        %3994 = vrot.lane.b32.xlu0 %v3811, 16
        %v3995 = vpop.permute.xlu0 %3994
        %v3996 = vsel %vm545, %v3993, %v3995
        %v3997 = vsel %vm545, %v3991, %v3993
        %v3998 = vsel %vm545, %v3989, %v3991
        %v3999 = vsel %vm545, %v3987, %v3989
        %v4000 = vsel %vm545, %v3985, %v3987
        %v4001 = vsel %vm545, %v3983, %v3985
        %v4002 = vsel %vm545, %v3981, %v3983
        %v4003 = vsel %vm545, %v3979, %v3981
        %v4004 = vsel %vm545, %v3977, %v3979
        %v4005 = vsel %vm545, %v3975, %v3977
        %v4006 = vsel %vm545, %v3973, %v3975
        %v4007 = vsel %vm545, %v3971, %v3973
        %v4008 = vsel %vm545, %v3969, %v3971
        %v4009 = vsel %vm545, %v3967, %v3969
        %v4010 = vsel %vm545, %v3965, %v3967
        %v4011 = vsel %vm545, %v3995, %v3965
        %v4012 = vld [vmem:[#allocation6] sm:$0xf0]
        %v4013 = vld [vmem:[#allocation6 + $0x8] sm:$0xf0]
        %v4014 = vld [vmem:[#allocation6 + $0x10] sm:$0xf0]
        %v4015 = vld [vmem:[#allocation6 + $0x18] sm:$0xf0]
        %v4016 = vld [vmem:[#allocation6 + $0x20] sm:$0xf0]
        %v4017 = vld [vmem:[#allocation6 + $0x28] sm:$0xf0]
        %v4018 = vld [vmem:[#allocation6 + $0x30] sm:$0xf0]
        %v4019 = vld [vmem:[#allocation6 + $0x38] sm:$0xf0]
        %v4020 = vld [vmem:[#allocation6 + $0x40] sm:$0xf0]
        %v4021 = vld [vmem:[#allocation6 + $0x48] sm:$0xf0]
        %v4022 = vld [vmem:[#allocation6 + $0x50] sm:$0xf0]
        %v4023 = vld [vmem:[#allocation6 + $0x58] sm:$0xf0]
        %v4024 = vld [vmem:[#allocation6 + $0x60] sm:$0xf0]
        %v4025 = vld [vmem:[#allocation6 + $0x68] sm:$0xf0]
        %v4026 = vld [vmem:[#allocation6 + $0x70] sm:$0xf0]
        %v4027 = vld [vmem:[#allocation6 + $0x78] sm:$0xf0]
        %v4044 = vrot.slane %v4012, 4
        %v4045 = vrot.slane %v4013, 4
        %v4046 = vrot.slane %v4014, 4
        %v4047 = vrot.slane %v4015, 4
        %v4048 = vrot.slane %v4016, 4
        %v4049 = vrot.slane %v4017, 4
        %v4050 = vrot.slane %v4018, 4
        %v4051 = vrot.slane %v4019, 4
        %v4052 = vrot.slane %v4020, 4
        %v4053 = vrot.slane %v4021, 4
        %v4054 = vrot.slane %v4022, 4
        %v4055 = vrot.slane %v4023, 4
        %v4056 = vrot.slane %v4024, 4
        %v4057 = vrot.slane %v4025, 4
        %v4058 = vrot.slane %v4026, 4
        %v4059 = vrot.slane %v4027, 4
        %v4076 = vmul.f32 %v4011, %v4044
        %v4077 = vmul.f32 %v4010, %v4045
        %v4078 = vmul.f32 %v4009, %v4046
        %v4079 = vmul.f32 %v4008, %v4047
        %v4080 = vmul.f32 %v4007, %v4048
        %v4081 = vmul.f32 %v4006, %v4049
        %v4082 = vmul.f32 %v4005, %v4050
        %v4083 = vmul.f32 %v4004, %v4051
        %v4084 = vmul.f32 %v4003, %v4052
        %v4085 = vmul.f32 %v4002, %v4053
        %v4086 = vmul.f32 %v4001, %v4054
        %v4087 = vmul.f32 %v4000, %v4055
        %v4088 = vmul.f32 %v3999, %v4056
        %v4089 = vmul.f32 %v3998, %v4057
        %v4090 = vmul.f32 %v3997, %v4058
        %v4091 = vmul.f32 %v3996, %v4059
        %v4092 = vpack.c.bf16 %v4076, %v4076
        %v4093 = vpack.c.bf16 %v4077, %v4077
        %v4094 = vpack.c.bf16 %v4078, %v4078
        %v4095 = vpack.c.bf16 %v4079, %v4079
        %v4096 = vpack.c.bf16 %v4080, %v4080
        %v4097 = vpack.c.bf16 %v4081, %v4081
        %v4098 = vpack.c.bf16 %v4082, %v4082
        %v4099 = vpack.c.bf16 %v4083, %v4083
        %v4100 = vpack.c.bf16 %v4084, %v4084
        %v4101 = vpack.c.bf16 %v4085, %v4085
        %v4102 = vpack.c.bf16 %v4086, %v4086
        %v4103 = vpack.c.bf16 %v4087, %v4087
        %v4104 = vpack.c.bf16 %v4088, %v4088
        %v4105 = vpack.c.bf16 %v4089, %v4089
        %v4106 = vpack.c.bf16 %v4090, %v4090
        %v4107 = vpack.c.bf16 %v4091, %v4091
        %v4124 = vunpack.c.l.b16 %v4092
        %v4125 = vunpack.c.l.b16 %v4093
        %v4126 = vunpack.c.l.b16 %v4094
        %v4127 = vunpack.c.l.b16 %v4095
        %v4128 = vunpack.c.l.b16 %v4096
        %v4129 = vunpack.c.l.b16 %v4097
        %v4130 = vunpack.c.l.b16 %v4098
        %v4131 = vunpack.c.l.b16 %v4099
        %v4132 = vunpack.c.l.b16 %v4100
        %v4133 = vunpack.c.l.b16 %v4101
        %v4134 = vunpack.c.l.b16 %v4102
        %v4135 = vunpack.c.l.b16 %v4103
        %v4136 = vunpack.c.l.b16 %v4104
        %v4137 = vunpack.c.l.b16 %v4105
        %v4138 = vunpack.c.l.b16 %v4106
        %v4139 = vunpack.c.l.b16 %v4107
        %v4140 = vpack.c.b16 %v4125, %v4124
        %v4141 = vpack.c.b16 %v4127, %v4126
        %v4142 = vpack.c.b16 %v4129, %v4128
        %v4143 = vpack.c.b16 %v4131, %v4130
        %v4144 = vpack.c.b16 %v4133, %v4132
        %v4145 = vpack.c.b16 %v4135, %v4134
        %v4146 = vpack.c.b16 %v4137, %v4136
        %v4147 = vpack.c.b16 %v4139, %v4138
        %v4148 = vrot.slane %v4140, 6
        %v4149 = vrot.slane %v4141, 6
        %v4150 = vrot.slane %v4142, 6
        %v4151 = vrot.slane %v4143, 6
        %v4152 = vrot.slane %v4144, 6
        %v4153 = vrot.slane %v4145, 6
        %v4154 = vrot.slane %v4146, 6
        %v4155 = vrot.slane %v4147, 6
        %4164 = vst [vmem:[#allocation2] sm:$0xcc] %v4148
        %4165 = vst [vmem:[#allocation2 + $0x8] sm:$0xcc] %v4149
        %4166 = vst [vmem:[#allocation2 + $0x10] sm:$0xcc] %v4150
        %4167 = vst [vmem:[#allocation2 + $0x18] sm:$0xcc] %v4151
        %4168 = vst [vmem:[#allocation2 + $0x20] sm:$0xcc] %v4152
        %4169 = vst [vmem:[#allocation2 + $0x28] sm:$0xcc] %v4153
        %4170 = vst [vmem:[#allocation2 + $0x30] sm:$0xcc] %v4154
        %4171 = vst [vmem:[#allocation2 + $0x38] sm:$0xcc] %v4155
        %4172 = vrot.lane.b32.xlu0 %v3796, 15
        %v4173 = vpop.permute.xlu0 %4172
        %4174 = vrot.lane.b32.xlu0 %v3797, 15
        %v4175 = vpop.permute.xlu0 %4174
        %4176 = vrot.lane.b32.xlu0 %v3798, 15
        %v4177 = vpop.permute.xlu0 %4176
        %4178 = vrot.lane.b32.xlu0 %v3799, 15
        %v4179 = vpop.permute.xlu0 %4178
        %4180 = vrot.lane.b32.xlu0 %v3800, 15
        %v4181 = vpop.permute.xlu0 %4180
        %4182 = vrot.lane.b32.xlu0 %v3801, 15
        %v4183 = vpop.permute.xlu0 %4182
        %4184 = vrot.lane.b32.xlu0 %v3802, 15
        %v4185 = vpop.permute.xlu0 %4184
        %4186 = vrot.lane.b32.xlu0 %v3803, 15
        %v4187 = vpop.permute.xlu0 %4186
        %4188 = vrot.lane.b32.xlu0 %v3804, 15
        %v4189 = vpop.permute.xlu0 %4188
        %4190 = vrot.lane.b32.xlu0 %v3805, 15
        %v4191 = vpop.permute.xlu0 %4190
        %4192 = vrot.lane.b32.xlu0 %v3806, 15
        %v4193 = vpop.permute.xlu0 %4192
        %4194 = vrot.lane.b32.xlu0 %v3807, 15
        %v4195 = vpop.permute.xlu0 %4194
        %4196 = vrot.lane.b32.xlu0 %v3808, 15
        %v4197 = vpop.permute.xlu0 %4196
        %4198 = vrot.lane.b32.xlu0 %v3809, 15
        %v4199 = vpop.permute.xlu0 %4198
        %4200 = vrot.lane.b32.xlu0 %v3810, 15
        %v4201 = vpop.permute.xlu0 %4200
        %4202 = vrot.lane.b32.xlu0 %v3811, 15
        %v4203 = vpop.permute.xlu0 %4202
        %v4204 = vsel %vm774, %v4201, %v4203
        %v4205 = vsel %vm774, %v4199, %v4201
        %v4206 = vsel %vm774, %v4197, %v4199
        %v4207 = vsel %vm774, %v4195, %v4197
        %v4208 = vsel %vm774, %v4193, %v4195
        %v4209 = vsel %vm774, %v4191, %v4193
        %v4210 = vsel %vm774, %v4189, %v4191
        %v4211 = vsel %vm774, %v4187, %v4189
        %v4212 = vsel %vm774, %v4185, %v4187
        %v4213 = vsel %vm774, %v4183, %v4185
        %v4214 = vsel %vm774, %v4181, %v4183
        %v4215 = vsel %vm774, %v4179, %v4181
        %v4216 = vsel %vm774, %v4177, %v4179
        %v4217 = vsel %vm774, %v4175, %v4177
        %v4218 = vsel %vm774, %v4173, %v4175
        %v4219 = vsel %vm774, %v4203, %v4173
        %v4220 = vld [vmem:[#allocation6 + $0x80] sm:$0xf]
        %v4221 = vld [vmem:[#allocation6 + $0x88] sm:$0xf]
        %v4222 = vld [vmem:[#allocation6 + $0x90] sm:$0xf]
        %v4223 = vld [vmem:[#allocation6 + $0x98] sm:$0xf]
        %v4224 = vld [vmem:[#allocation6 + $0xa0] sm:$0xf]
        %v4225 = vld [vmem:[#allocation6 + $0xa8] sm:$0xf]
        %v4226 = vld [vmem:[#allocation6 + $0xb0] sm:$0xf]
        %v4227 = vld [vmem:[#allocation6 + $0xb8] sm:$0xf]
        %v4228 = vld [vmem:[#allocation6 + $0xc0] sm:$0xf]
        %v4229 = vld [vmem:[#allocation6 + $0xc8] sm:$0xf]
        %v4230 = vld [vmem:[#allocation6 + $0xd0] sm:$0xf]
        %v4231 = vld [vmem:[#allocation6 + $0xd8] sm:$0xf]
        %v4232 = vld [vmem:[#allocation6 + $0xe0] sm:$0xf]
        %v4233 = vld [vmem:[#allocation6 + $0xe8] sm:$0xf]
        %v4234 = vld [vmem:[#allocation6 + $0xf0] sm:$0xf]
        %v4235 = vld [vmem:[#allocation6 + $0xf8] sm:$0xf]
        %v4236 = vmul.f32 %v4219, %v4220
        %v4237 = vmul.f32 %v4218, %v4221
        %v4238 = vmul.f32 %v4217, %v4222
        %v4239 = vmul.f32 %v4216, %v4223
        %v4240 = vmul.f32 %v4215, %v4224
        %v4241 = vmul.f32 %v4214, %v4225
        %v4242 = vmul.f32 %v4213, %v4226
        %v4243 = vmul.f32 %v4212, %v4227
        %v4244 = vmul.f32 %v4211, %v4228
        %v4245 = vmul.f32 %v4210, %v4229
        %v4246 = vmul.f32 %v4209, %v4230
        %v4247 = vmul.f32 %v4208, %v4231
        %v4248 = vmul.f32 %v4207, %v4232
        %v4249 = vmul.f32 %v4206, %v4233
        %v4250 = vmul.f32 %v4205, %v4234
        %v4251 = vmul.f32 %v4204, %v4235
        %v4252 = vpack.c.bf16 %v4236, %v4236
        %v4253 = vpack.c.bf16 %v4237, %v4237
        %v4254 = vpack.c.bf16 %v4238, %v4238
        %v4255 = vpack.c.bf16 %v4239, %v4239
        %v4256 = vpack.c.bf16 %v4240, %v4240
        %v4257 = vpack.c.bf16 %v4241, %v4241
        %v4258 = vpack.c.bf16 %v4242, %v4242
        %v4259 = vpack.c.bf16 %v4243, %v4243
        %v4260 = vpack.c.bf16 %v4244, %v4244
        %v4261 = vpack.c.bf16 %v4245, %v4245
        %v4262 = vpack.c.bf16 %v4246, %v4246
        %v4263 = vpack.c.bf16 %v4247, %v4247
        %v4264 = vpack.c.bf16 %v4248, %v4248
        %v4265 = vpack.c.bf16 %v4249, %v4249
        %v4266 = vpack.c.bf16 %v4250, %v4250
        %v4267 = vpack.c.bf16 %v4251, %v4251
        %v4284 = vunpack.c.l.b16 %v4252
        %v4285 = vunpack.c.l.b16 %v4253
        %v4286 = vunpack.c.l.b16 %v4254
        %v4287 = vunpack.c.l.b16 %v4255
        %v4288 = vunpack.c.l.b16 %v4256
        %v4289 = vunpack.c.l.b16 %v4257
        %v4290 = vunpack.c.l.b16 %v4258
        %v4291 = vunpack.c.l.b16 %v4259
        %v4292 = vunpack.c.l.b16 %v4260
        %v4293 = vunpack.c.l.b16 %v4261
        %v4294 = vunpack.c.l.b16 %v4262
        %v4295 = vunpack.c.l.b16 %v4263
        %v4296 = vunpack.c.l.b16 %v4264
        %v4297 = vunpack.c.l.b16 %v4265
        %v4298 = vunpack.c.l.b16 %v4266
        %v4299 = vunpack.c.l.b16 %v4267
        %v4300 = vpack.c.b16 %v4285, %v4284
        %v4301 = vpack.c.b16 %v4287, %v4286
        %v4302 = vpack.c.b16 %v4289, %v4288
        %v4303 = vpack.c.b16 %v4291, %v4290
        %v4304 = vpack.c.b16 %v4293, %v4292
        %v4305 = vpack.c.b16 %v4295, %v4294
        %v4306 = vpack.c.b16 %v4297, %v4296
        %v4307 = vpack.c.b16 %v4299, %v4298
        %4316 = vst [vmem:[#allocation2 + $0x40] sm:$0x33] %v4300
        %4317 = vst [vmem:[#allocation2 + $0x48] sm:$0x33] %v4301
        %4318 = vst [vmem:[#allocation2 + $0x50] sm:$0x33] %v4302
        %4319 = vst [vmem:[#allocation2 + $0x58] sm:$0x33] %v4303
        %4320 = vst [vmem:[#allocation2 + $0x60] sm:$0x33] %v4304
        %4321 = vst [vmem:[#allocation2 + $0x68] sm:$0x33] %v4305
        %4322 = vst [vmem:[#allocation2 + $0x70] sm:$0x33] %v4306
        %4323 = vst [vmem:[#allocation2 + $0x78] sm:$0x33] %v4307
        %4324 = vrot.lane.b32.xlu0 %v3796, 1
        %v4325 = vpop.permute.xlu0 %4324
        %4326 = vrot.lane.b32.xlu0 %v3797, 1
        %v4327 = vpop.permute.xlu0 %4326
        %4328 = vrot.lane.b32.xlu0 %v3798, 1
        %v4329 = vpop.permute.xlu0 %4328
        %4330 = vrot.lane.b32.xlu0 %v3799, 1
        %v4331 = vpop.permute.xlu0 %4330
        %4332 = vrot.lane.b32.xlu0 %v3800, 1
        %v4333 = vpop.permute.xlu0 %4332
        %4334 = vrot.lane.b32.xlu0 %v3801, 1
        %v4335 = vpop.permute.xlu0 %4334
        %4336 = vrot.lane.b32.xlu0 %v3802, 1
        %v4337 = vpop.permute.xlu0 %4336
        %4338 = vrot.lane.b32.xlu0 %v3803, 1
        %v4339 = vpop.permute.xlu0 %4338
        %4340 = vrot.lane.b32.xlu0 %v3804, 1
        %v4341 = vpop.permute.xlu0 %4340
        %4342 = vrot.lane.b32.xlu0 %v3805, 1
        %v4343 = vpop.permute.xlu0 %4342
        %4344 = vrot.lane.b32.xlu0 %v3806, 1
        %v4345 = vpop.permute.xlu0 %4344
        %4346 = vrot.lane.b32.xlu0 %v3807, 1
        %v4347 = vpop.permute.xlu0 %4346
        %4348 = vrot.lane.b32.xlu0 %v3808, 1
        %v4349 = vpop.permute.xlu0 %4348
        %4350 = vrot.lane.b32.xlu0 %v3809, 1
        %v4351 = vpop.permute.xlu0 %4350
        %4352 = vrot.lane.b32.xlu0 %v3810, 1
        %v4353 = vpop.permute.xlu0 %4352
        %4354 = vrot.lane.b32.xlu0 %v3811, 1
        %v4355 = vpop.permute.xlu0 %4354
        %v4356 = vsel %vm954, %v4353, %v4355
        %v4357 = vsel %vm954, %v4351, %v4353
        %v4358 = vsel %vm954, %v4349, %v4351
        %v4359 = vsel %vm954, %v4347, %v4349
        %v4360 = vsel %vm954, %v4345, %v4347
        %v4361 = vsel %vm954, %v4343, %v4345
        %v4362 = vsel %vm954, %v4341, %v4343
        %v4363 = vsel %vm954, %v4339, %v4341
        %v4364 = vsel %vm954, %v4337, %v4339
        %v4365 = vsel %vm954, %v4335, %v4337
        %v4366 = vsel %vm954, %v4333, %v4335
        %v4367 = vsel %vm954, %v4331, %v4333
        %v4368 = vsel %vm954, %v4329, %v4331
        %v4369 = vsel %vm954, %v4327, %v4329
        %v4370 = vsel %vm954, %v4325, %v4327
        %v4371 = vsel %vm954, %v4355, %v4325
        %v4372 = vld [vmem:[#allocation6 + $0x80] sm:$0xf0]
        %v4373 = vld [vmem:[#allocation6 + $0x88] sm:$0xf0]
        %v4374 = vld [vmem:[#allocation6 + $0x90] sm:$0xf0]
        %v4375 = vld [vmem:[#allocation6 + $0x98] sm:$0xf0]
        %v4376 = vld [vmem:[#allocation6 + $0xa0] sm:$0xf0]
        %v4377 = vld [vmem:[#allocation6 + $0xa8] sm:$0xf0]
        %v4378 = vld [vmem:[#allocation6 + $0xb0] sm:$0xf0]
        %v4379 = vld [vmem:[#allocation6 + $0xb8] sm:$0xf0]
        %v4380 = vld [vmem:[#allocation6 + $0xc0] sm:$0xf0]
        %v4381 = vld [vmem:[#allocation6 + $0xc8] sm:$0xf0]
        %v4382 = vld [vmem:[#allocation6 + $0xd0] sm:$0xf0]
        %v4383 = vld [vmem:[#allocation6 + $0xd8] sm:$0xf0]
        %v4384 = vld [vmem:[#allocation6 + $0xe0] sm:$0xf0]
        %v4385 = vld [vmem:[#allocation6 + $0xe8] sm:$0xf0]
        %v4386 = vld [vmem:[#allocation6 + $0xf0] sm:$0xf0]
        %v4387 = vld [vmem:[#allocation6 + $0xf8] sm:$0xf0]
        %v4404 = vrot.slane %v4372, 4
        %v4405 = vrot.slane %v4373, 4
        %v4406 = vrot.slane %v4374, 4
        %v4407 = vrot.slane %v4375, 4
        %v4408 = vrot.slane %v4376, 4
        %v4409 = vrot.slane %v4377, 4
        %v4410 = vrot.slane %v4378, 4
        %v4411 = vrot.slane %v4379, 4
        %v4412 = vrot.slane %v4380, 4
        %v4413 = vrot.slane %v4381, 4
        %v4414 = vrot.slane %v4382, 4
        %v4415 = vrot.slane %v4383, 4
        %v4416 = vrot.slane %v4384, 4
        %v4417 = vrot.slane %v4385, 4
        %v4418 = vrot.slane %v4386, 4
        %v4419 = vrot.slane %v4387, 4
        %v4436 = vmul.f32 %v4371, %v4404
        %v4437 = vmul.f32 %v4370, %v4405
        %v4438 = vmul.f32 %v4369, %v4406
        %v4439 = vmul.f32 %v4368, %v4407
        %v4440 = vmul.f32 %v4367, %v4408
        %v4441 = vmul.f32 %v4366, %v4409
        %v4442 = vmul.f32 %v4365, %v4410
        %v4443 = vmul.f32 %v4364, %v4411
        %v4444 = vmul.f32 %v4363, %v4412
        %v4445 = vmul.f32 %v4362, %v4413
        %v4446 = vmul.f32 %v4361, %v4414
        %v4447 = vmul.f32 %v4360, %v4415
        %v4448 = vmul.f32 %v4359, %v4416
        %v4449 = vmul.f32 %v4358, %v4417
        %v4450 = vmul.f32 %v4357, %v4418
        %v4451 = vmul.f32 %v4356, %v4419
        %v4452 = vpack.c.bf16 %v4436, %v4436
        %v4453 = vpack.c.bf16 %v4437, %v4437
        %v4454 = vpack.c.bf16 %v4438, %v4438
        %v4455 = vpack.c.bf16 %v4439, %v4439
        %v4456 = vpack.c.bf16 %v4440, %v4440
        %v4457 = vpack.c.bf16 %v4441, %v4441
        %v4458 = vpack.c.bf16 %v4442, %v4442
        %v4459 = vpack.c.bf16 %v4443, %v4443
        %v4460 = vpack.c.bf16 %v4444, %v4444
        %v4461 = vpack.c.bf16 %v4445, %v4445
        %v4462 = vpack.c.bf16 %v4446, %v4446
        %v4463 = vpack.c.bf16 %v4447, %v4447
        %v4464 = vpack.c.bf16 %v4448, %v4448
        %v4465 = vpack.c.bf16 %v4449, %v4449
        %v4466 = vpack.c.bf16 %v4450, %v4450
        %v4467 = vpack.c.bf16 %v4451, %v4451
        %v4484 = vunpack.c.l.b16 %v4452
        %v4485 = vunpack.c.l.b16 %v4453
        %v4486 = vunpack.c.l.b16 %v4454
        %v4487 = vunpack.c.l.b16 %v4455
        %v4488 = vunpack.c.l.b16 %v4456
        %v4489 = vunpack.c.l.b16 %v4457
        %v4490 = vunpack.c.l.b16 %v4458
        %v4491 = vunpack.c.l.b16 %v4459
        %v4492 = vunpack.c.l.b16 %v4460
        %v4493 = vunpack.c.l.b16 %v4461
        %v4494 = vunpack.c.l.b16 %v4462
        %v4495 = vunpack.c.l.b16 %v4463
        %v4496 = vunpack.c.l.b16 %v4464
        %v4497 = vunpack.c.l.b16 %v4465
        %v4498 = vunpack.c.l.b16 %v4466
        %v4499 = vunpack.c.l.b16 %v4467
        %v4500 = vpack.c.b16 %v4485, %v4484
        %v4501 = vpack.c.b16 %v4487, %v4486
        %v4502 = vpack.c.b16 %v4489, %v4488
        %v4503 = vpack.c.b16 %v4491, %v4490
        %v4504 = vpack.c.b16 %v4493, %v4492
        %v4505 = vpack.c.b16 %v4495, %v4494
        %v4506 = vpack.c.b16 %v4497, %v4496
        %v4507 = vpack.c.b16 %v4499, %v4498
        %v4508 = vrot.slane %v4500, 6
        %v4509 = vrot.slane %v4501, 6
        %v4510 = vrot.slane %v4502, 6
        %v4511 = vrot.slane %v4503, 6
        %v4512 = vrot.slane %v4504, 6
        %v4513 = vrot.slane %v4505, 6
        %v4514 = vrot.slane %v4506, 6
        %v4515 = vrot.slane %v4507, 6
        %4524 = vst [vmem:[#allocation2 + $0x40] sm:$0xcc] %v4508
        %4525 = vst [vmem:[#allocation2 + $0x48] sm:$0xcc] %v4509
        %4526 = vst [vmem:[#allocation2 + $0x50] sm:$0xcc] %v4510
        %4527 = vst [vmem:[#allocation2 + $0x58] sm:$0xcc] %v4511
        %4528 = vst [vmem:[#allocation2 + $0x60] sm:$0xcc] %v4512
        %4529 = vst [vmem:[#allocation2 + $0x68] sm:$0xcc] %v4513
        %4530 = vst [vmem:[#allocation2 + $0x70] sm:$0xcc] %v4514
        %4531 = vst [vmem:[#allocation2 + $0x78] sm:$0xcc] %v4515
        %v4532 = vpack.c.bf16 %v3796, %v3796
        %v4533 = vpack.c.bf16 %v3797, %v3797
        %v4534 = vpack.c.bf16 %v3798, %v3798
        %v4535 = vpack.c.bf16 %v3799, %v3799
        %v4536 = vpack.c.bf16 %v3800, %v3800
        %v4537 = vpack.c.bf16 %v3801, %v3801
        %v4538 = vpack.c.bf16 %v3802, %v3802
        %v4539 = vpack.c.bf16 %v3803, %v3803
        %v4540 = vpack.c.bf16 %v3804, %v3804
        %v4541 = vpack.c.bf16 %v3805, %v3805
        %v4542 = vpack.c.bf16 %v3806, %v3806
        %v4543 = vpack.c.bf16 %v3807, %v3807
        %v4544 = vpack.c.bf16 %v3808, %v3808
        %v4545 = vpack.c.bf16 %v3809, %v3809
        %v4546 = vpack.c.bf16 %v3810, %v3810
        %v4547 = vpack.c.bf16 %v3811, %v3811
        %v4564 = vunpack.c.l.b16 %v4532
        %v4565 = vunpack.c.l.b16 %v4533
        %v4566 = vunpack.c.l.b16 %v4534
        %v4567 = vunpack.c.l.b16 %v4535
        %v4568 = vunpack.c.l.b16 %v4536
        %v4569 = vunpack.c.l.b16 %v4537
        %v4570 = vunpack.c.l.b16 %v4538
        %v4571 = vunpack.c.l.b16 %v4539
        %v4572 = vunpack.c.l.b16 %v4540
        %v4573 = vunpack.c.l.b16 %v4541
        %v4574 = vunpack.c.l.b16 %v4542
        %v4575 = vunpack.c.l.b16 %v4543
        %v4576 = vunpack.c.l.b16 %v4544
        %v4577 = vunpack.c.l.b16 %v4545
        %v4578 = vunpack.c.l.b16 %v4546
        %v4579 = vunpack.c.l.b16 %v4547
        %v4580 = vpack.c.b16 %v4565, %v4564
        %v4581 = vpack.c.b16 %v4567, %v4566
        %v4582 = vpack.c.b16 %v4569, %v4568
        %v4583 = vpack.c.b16 %v4571, %v4570
        %v4584 = vpack.c.b16 %v4573, %v4572
        %v4585 = vpack.c.b16 %v4575, %v4574
        %v4586 = vpack.c.b16 %v4577, %v4576
        %v4587 = vpack.c.b16 %v4579, %v4578
        %4596 = vst [vmem:[#allocation2 + $0x80] sm:$0x33] %v4580
        %4597 = vst [vmem:[#allocation2 + $0x88] sm:$0x33] %v4581
        %4598 = vst [vmem:[#allocation2 + $0x90] sm:$0x33] %v4582
        %4599 = vst [vmem:[#allocation2 + $0x98] sm:$0x33] %v4583
        %4600 = vst [vmem:[#allocation2 + $0xa0] sm:$0x33] %v4584
        %4601 = vst [vmem:[#allocation2 + $0xa8] sm:$0x33] %v4585
        %4602 = vst [vmem:[#allocation2 + $0xb0] sm:$0x33] %v4586
        %4603 = vst [vmem:[#allocation2 + $0xb8] sm:$0x33] %v4587
        %4604 = vrot.lane.b32.xlu0 %v3796, 127
        %v4605 = vpop.permute.xlu0 %4604
        %4606 = vrot.lane.b32.xlu0 %v3797, 127
        %v4607 = vpop.permute.xlu0 %4606
        %4608 = vrot.lane.b32.xlu0 %v3798, 127
        %v4609 = vpop.permute.xlu0 %4608
        %4610 = vrot.lane.b32.xlu0 %v3799, 127
        %v4611 = vpop.permute.xlu0 %4610
        %4612 = vrot.lane.b32.xlu0 %v3800, 127
        %v4613 = vpop.permute.xlu0 %4612
        %4614 = vrot.lane.b32.xlu0 %v3801, 127
        %v4615 = vpop.permute.xlu0 %4614
        %4616 = vrot.lane.b32.xlu0 %v3802, 127
        %v4617 = vpop.permute.xlu0 %4616
        %4618 = vrot.lane.b32.xlu0 %v3803, 127
        %v4619 = vpop.permute.xlu0 %4618
        %4620 = vrot.lane.b32.xlu0 %v3804, 127
        %v4621 = vpop.permute.xlu0 %4620
        %4622 = vrot.lane.b32.xlu0 %v3805, 127
        %v4623 = vpop.permute.xlu0 %4622
        %4624 = vrot.lane.b32.xlu0 %v3806, 127
        %v4625 = vpop.permute.xlu0 %4624
        %4626 = vrot.lane.b32.xlu0 %v3807, 127
        %v4627 = vpop.permute.xlu0 %4626
        %4628 = vrot.lane.b32.xlu0 %v3808, 127
        %v4629 = vpop.permute.xlu0 %4628
        %4630 = vrot.lane.b32.xlu0 %v3809, 127
        %v4631 = vpop.permute.xlu0 %4630
        %4632 = vrot.lane.b32.xlu0 %v3810, 127
        %v4633 = vpop.permute.xlu0 %4632
        %4634 = vrot.lane.b32.xlu0 %v3811, 127
        %v4635 = vpop.permute.xlu0 %4634
        %v4636 = vsel %vm1282, %v4633, %v4635
        %v4637 = vsel %vm1282, %v4631, %v4633
        %v4638 = vsel %vm1282, %v4629, %v4631
        %v4639 = vsel %vm1282, %v4627, %v4629
        %v4640 = vsel %vm1282, %v4625, %v4627
        %v4641 = vsel %vm1282, %v4623, %v4625
        %v4642 = vsel %vm1282, %v4621, %v4623
        %v4643 = vsel %vm1282, %v4619, %v4621
        %v4644 = vsel %vm1282, %v4617, %v4619
        %v4645 = vsel %vm1282, %v4615, %v4617
        %v4646 = vsel %vm1282, %v4613, %v4615
        %v4647 = vsel %vm1282, %v4611, %v4613
        %v4648 = vsel %vm1282, %v4609, %v4611
        %v4649 = vsel %vm1282, %v4607, %v4609
        %v4650 = vsel %vm1282, %v4605, %v4607
        %v4651 = vsel %vm1282, %v4635, %v4605
        %v4652 = vld [vmem:[#allocation6 + $0x100] sm:$0xf0]
        %v4653 = vld [vmem:[#allocation6 + $0x108] sm:$0xf0]
        %v4654 = vld [vmem:[#allocation6 + $0x110] sm:$0xf0]
        %v4655 = vld [vmem:[#allocation6 + $0x118] sm:$0xf0]
        %v4656 = vld [vmem:[#allocation6 + $0x120] sm:$0xf0]
        %v4657 = vld [vmem:[#allocation6 + $0x128] sm:$0xf0]
        %v4658 = vld [vmem:[#allocation6 + $0x130] sm:$0xf0]
        %v4659 = vld [vmem:[#allocation6 + $0x138] sm:$0xf0]
        %v4660 = vld [vmem:[#allocation6 + $0x140] sm:$0xf0]
        %v4661 = vld [vmem:[#allocation6 + $0x148] sm:$0xf0]
        %v4662 = vld [vmem:[#allocation6 + $0x150] sm:$0xf0]
        %v4663 = vld [vmem:[#allocation6 + $0x158] sm:$0xf0]
        %v4664 = vld [vmem:[#allocation6 + $0x160] sm:$0xf0]
        %v4665 = vld [vmem:[#allocation6 + $0x168] sm:$0xf0]
        %v4666 = vld [vmem:[#allocation6 + $0x170] sm:$0xf0]
        %v4667 = vld [vmem:[#allocation6 + $0x178] sm:$0xf0]
        %v4684 = vrot.slane %v4652, 4
        %v4685 = vrot.slane %v4653, 4
        %v4686 = vrot.slane %v4654, 4
        %v4687 = vrot.slane %v4655, 4
        %v4688 = vrot.slane %v4656, 4
        %v4689 = vrot.slane %v4657, 4
        %v4690 = vrot.slane %v4658, 4
        %v4691 = vrot.slane %v4659, 4
        %v4692 = vrot.slane %v4660, 4
        %v4693 = vrot.slane %v4661, 4
        %v4694 = vrot.slane %v4662, 4
        %v4695 = vrot.slane %v4663, 4
        %v4696 = vrot.slane %v4664, 4
        %v4697 = vrot.slane %v4665, 4
        %v4698 = vrot.slane %v4666, 4
        %v4699 = vrot.slane %v4667, 4
        %v4716 = vmul.f32 %v4650, %v4684
        %v4717 = vmul.f32 %v4649, %v4685
        %v4718 = vmul.f32 %v4648, %v4686
        %v4719 = vmul.f32 %v4647, %v4687
        %v4720 = vmul.f32 %v4646, %v4688
        %v4721 = vmul.f32 %v4645, %v4689
        %v4722 = vmul.f32 %v4644, %v4690
        %v4723 = vmul.f32 %v4643, %v4691
        %v4724 = vmul.f32 %v4642, %v4692
        %v4725 = vmul.f32 %v4641, %v4693
        %v4726 = vmul.f32 %v4640, %v4694
        %v4727 = vmul.f32 %v4639, %v4695
        %v4728 = vmul.f32 %v4638, %v4696
        %v4729 = vmul.f32 %v4637, %v4697
        %v4730 = vmul.f32 %v4636, %v4698
        %v4731 = vmul.f32 %v4651, %v4699
        %v4732 = vpack.c.bf16 %v4716, %v4716
        %v4733 = vpack.c.bf16 %v4717, %v4717
        %v4734 = vpack.c.bf16 %v4718, %v4718
        %v4735 = vpack.c.bf16 %v4719, %v4719
        %v4736 = vpack.c.bf16 %v4720, %v4720
        %v4737 = vpack.c.bf16 %v4721, %v4721
        %v4738 = vpack.c.bf16 %v4722, %v4722
        %v4739 = vpack.c.bf16 %v4723, %v4723
        %v4740 = vpack.c.bf16 %v4724, %v4724
        %v4741 = vpack.c.bf16 %v4725, %v4725
        %v4742 = vpack.c.bf16 %v4726, %v4726
        %v4743 = vpack.c.bf16 %v4727, %v4727
        %v4744 = vpack.c.bf16 %v4728, %v4728
        %v4745 = vpack.c.bf16 %v4729, %v4729
        %v4746 = vpack.c.bf16 %v4730, %v4730
        %v4747 = vpack.c.bf16 %v4731, %v4731
        %v4764 = vunpack.c.l.b16 %v4732
        %v4765 = vunpack.c.l.b16 %v4733
        %v4766 = vunpack.c.l.b16 %v4734
        %v4767 = vunpack.c.l.b16 %v4735
        %v4768 = vunpack.c.l.b16 %v4736
        %v4769 = vunpack.c.l.b16 %v4737
        %v4770 = vunpack.c.l.b16 %v4738
        %v4771 = vunpack.c.l.b16 %v4739
        %v4772 = vunpack.c.l.b16 %v4740
        %v4773 = vunpack.c.l.b16 %v4741
        %v4774 = vunpack.c.l.b16 %v4742
        %v4775 = vunpack.c.l.b16 %v4743
        %v4776 = vunpack.c.l.b16 %v4744
        %v4777 = vunpack.c.l.b16 %v4745
        %v4778 = vunpack.c.l.b16 %v4746
        %v4779 = vunpack.c.l.b16 %v4747
        %v4780 = vpack.c.b16 %v4765, %v4764
        %v4781 = vpack.c.b16 %v4767, %v4766
        %v4782 = vpack.c.b16 %v4769, %v4768
        %v4783 = vpack.c.b16 %v4771, %v4770
        %v4784 = vpack.c.b16 %v4773, %v4772
        %v4785 = vpack.c.b16 %v4775, %v4774
        %v4786 = vpack.c.b16 %v4777, %v4776
        %v4787 = vpack.c.b16 %v4779, %v4778
        %v4788 = vrot.slane %v4780, 6
        %v4789 = vrot.slane %v4781, 6
        %v4790 = vrot.slane %v4782, 6
        %v4791 = vrot.slane %v4783, 6
        %v4792 = vrot.slane %v4784, 6
        %v4793 = vrot.slane %v4785, 6
        %v4794 = vrot.slane %v4786, 6
        %v4795 = vrot.slane %v4787, 6
        %4804 = vst [vmem:[#allocation2 + $0x80] sm:$0xcc] %v4788
        %4805 = vst [vmem:[#allocation2 + $0x88] sm:$0xcc] %v4789
        %4806 = vst [vmem:[#allocation2 + $0x90] sm:$0xcc] %v4790
        %4807 = vst [vmem:[#allocation2 + $0x98] sm:$0xcc] %v4791
        %4808 = vst [vmem:[#allocation2 + $0xa0] sm:$0xcc] %v4792
        %4809 = vst [vmem:[#allocation2 + $0xa8] sm:$0xcc] %v4793
        %4810 = vst [vmem:[#allocation2 + $0xb0] sm:$0xcc] %v4794
        %4811 = vst [vmem:[#allocation2 + $0xb8] sm:$0xcc] %v4795
        %4812 = vrot.lane.b32.xlu0 %v3796, 113
        %v4813 = vpop.permute.xlu0 %4812
        %4814 = vrot.lane.b32.xlu0 %v3797, 113
        %v4815 = vpop.permute.xlu0 %4814
        %4816 = vrot.lane.b32.xlu0 %v3798, 113
        %v4817 = vpop.permute.xlu0 %4816
        %4818 = vrot.lane.b32.xlu0 %v3799, 113
        %v4819 = vpop.permute.xlu0 %4818
        %4820 = vrot.lane.b32.xlu0 %v3800, 113
        %v4821 = vpop.permute.xlu0 %4820
        %4822 = vrot.lane.b32.xlu0 %v3801, 113
        %v4823 = vpop.permute.xlu0 %4822
        %4824 = vrot.lane.b32.xlu0 %v3802, 113
        %v4825 = vpop.permute.xlu0 %4824
        %4826 = vrot.lane.b32.xlu0 %v3803, 113
        %v4827 = vpop.permute.xlu0 %4826
        %4828 = vrot.lane.b32.xlu0 %v3804, 113
        %v4829 = vpop.permute.xlu0 %4828
        %4830 = vrot.lane.b32.xlu0 %v3805, 113
        %v4831 = vpop.permute.xlu0 %4830
        %4832 = vrot.lane.b32.xlu0 %v3806, 113
        %v4833 = vpop.permute.xlu0 %4832
        %4834 = vrot.lane.b32.xlu0 %v3807, 113
        %v4835 = vpop.permute.xlu0 %4834
        %4836 = vrot.lane.b32.xlu0 %v3808, 113
        %v4837 = vpop.permute.xlu0 %4836
        %4838 = vrot.lane.b32.xlu0 %v3809, 113
        %v4839 = vpop.permute.xlu0 %4838
        %4840 = vrot.lane.b32.xlu0 %v3810, 113
        %v4841 = vpop.permute.xlu0 %4840
        %4842 = vrot.lane.b32.xlu0 %v3811, 113
        %v4843 = vpop.permute.xlu0 %4842
        %v4844 = vsel %vm1511, %v4841, %v4843
        %v4845 = vsel %vm1511, %v4839, %v4841
        %v4846 = vsel %vm1511, %v4837, %v4839
        %v4847 = vsel %vm1511, %v4835, %v4837
        %v4848 = vsel %vm1511, %v4833, %v4835
        %v4849 = vsel %vm1511, %v4831, %v4833
        %v4850 = vsel %vm1511, %v4829, %v4831
        %v4851 = vsel %vm1511, %v4827, %v4829
        %v4852 = vsel %vm1511, %v4825, %v4827
        %v4853 = vsel %vm1511, %v4823, %v4825
        %v4854 = vsel %vm1511, %v4821, %v4823
        %v4855 = vsel %vm1511, %v4819, %v4821
        %v4856 = vsel %vm1511, %v4817, %v4819
        %v4857 = vsel %vm1511, %v4815, %v4817
        %v4858 = vsel %vm1511, %v4813, %v4815
        %v4859 = vsel %vm1511, %v4843, %v4813
        %v4860 = vld [vmem:[#allocation6 + $0x180] sm:$0xf]
        %v4861 = vld [vmem:[#allocation6 + $0x188] sm:$0xf]
        %v4862 = vld [vmem:[#allocation6 + $0x190] sm:$0xf]
        %v4863 = vld [vmem:[#allocation6 + $0x198] sm:$0xf]
        %v4864 = vld [vmem:[#allocation6 + $0x1a0] sm:$0xf]
        %v4865 = vld [vmem:[#allocation6 + $0x1a8] sm:$0xf]
        %v4866 = vld [vmem:[#allocation6 + $0x1b0] sm:$0xf]
        %v4867 = vld [vmem:[#allocation6 + $0x1b8] sm:$0xf]
        %v4868 = vld [vmem:[#allocation6 + $0x1c0] sm:$0xf]
        %v4869 = vld [vmem:[#allocation6 + $0x1c8] sm:$0xf]
        %v4870 = vld [vmem:[#allocation6 + $0x1d0] sm:$0xf]
        %v4871 = vld [vmem:[#allocation6 + $0x1d8] sm:$0xf]
        %v4872 = vld [vmem:[#allocation6 + $0x1e0] sm:$0xf]
        %v4873 = vld [vmem:[#allocation6 + $0x1e8] sm:$0xf]
        %v4874 = vld [vmem:[#allocation6 + $0x1f0] sm:$0xf]
        %v4875 = vld [vmem:[#allocation6 + $0x1f8] sm:$0xf]
        %v4876 = vmul.f32 %v4858, %v4860
        %v4877 = vmul.f32 %v4857, %v4861
        %v4878 = vmul.f32 %v4856, %v4862
        %v4879 = vmul.f32 %v4855, %v4863
        %v4880 = vmul.f32 %v4854, %v4864
        %v4881 = vmul.f32 %v4853, %v4865
        %v4882 = vmul.f32 %v4852, %v4866
        %v4883 = vmul.f32 %v4851, %v4867
        %v4884 = vmul.f32 %v4850, %v4868
        %v4885 = vmul.f32 %v4849, %v4869
        %v4886 = vmul.f32 %v4848, %v4870
        %v4887 = vmul.f32 %v4847, %v4871
        %v4888 = vmul.f32 %v4846, %v4872
        %v4889 = vmul.f32 %v4845, %v4873
        %v4890 = vmul.f32 %v4844, %v4874
        %v4891 = vmul.f32 %v4859, %v4875
        %v4892 = vpack.c.bf16 %v4876, %v4876
        %v4893 = vpack.c.bf16 %v4877, %v4877
        %v4894 = vpack.c.bf16 %v4878, %v4878
        %v4895 = vpack.c.bf16 %v4879, %v4879
        %v4896 = vpack.c.bf16 %v4880, %v4880
        %v4897 = vpack.c.bf16 %v4881, %v4881
        %v4898 = vpack.c.bf16 %v4882, %v4882
        %v4899 = vpack.c.bf16 %v4883, %v4883
        %v4900 = vpack.c.bf16 %v4884, %v4884
        %v4901 = vpack.c.bf16 %v4885, %v4885
        %v4902 = vpack.c.bf16 %v4886, %v4886
        %v4903 = vpack.c.bf16 %v4887, %v4887
        %v4904 = vpack.c.bf16 %v4888, %v4888
        %v4905 = vpack.c.bf16 %v4889, %v4889
        %v4906 = vpack.c.bf16 %v4890, %v4890
        %v4907 = vpack.c.bf16 %v4891, %v4891
        %v4924 = vunpack.c.l.b16 %v4892
        %v4925 = vunpack.c.l.b16 %v4893
        %v4926 = vunpack.c.l.b16 %v4894
        %v4927 = vunpack.c.l.b16 %v4895
        %v4928 = vunpack.c.l.b16 %v4896
        %v4929 = vunpack.c.l.b16 %v4897
        %v4930 = vunpack.c.l.b16 %v4898
        %v4931 = vunpack.c.l.b16 %v4899
        %v4932 = vunpack.c.l.b16 %v4900
        %v4933 = vunpack.c.l.b16 %v4901
        %v4934 = vunpack.c.l.b16 %v4902
        %v4935 = vunpack.c.l.b16 %v4903
        %v4936 = vunpack.c.l.b16 %v4904
        %v4937 = vunpack.c.l.b16 %v4905
        %v4938 = vunpack.c.l.b16 %v4906
        %v4939 = vunpack.c.l.b16 %v4907
        %v4940 = vpack.c.b16 %v4925, %v4924
        %v4941 = vpack.c.b16 %v4927, %v4926
        %v4942 = vpack.c.b16 %v4929, %v4928
        %v4943 = vpack.c.b16 %v4931, %v4930
        %v4944 = vpack.c.b16 %v4933, %v4932
        %v4945 = vpack.c.b16 %v4935, %v4934
        %v4946 = vpack.c.b16 %v4937, %v4936
        %v4947 = vpack.c.b16 %v4939, %v4938
        %4956 = vst [vmem:[#allocation2 + $0xc0] sm:$0x33] %v4940
        %4957 = vst [vmem:[#allocation2 + $0xc8] sm:$0x33] %v4941
        %4958 = vst [vmem:[#allocation2 + $0xd0] sm:$0x33] %v4942
        %4959 = vst [vmem:[#allocation2 + $0xd8] sm:$0x33] %v4943
        %4960 = vst [vmem:[#allocation2 + $0xe0] sm:$0x33] %v4944
        %4961 = vst [vmem:[#allocation2 + $0xe8] sm:$0x33] %v4945
        %4962 = vst [vmem:[#allocation2 + $0xf0] sm:$0x33] %v4946
        %4963 = vst [vmem:[#allocation2 + $0xf8] sm:$0x33] %v4947
        %4964 = vrot.lane.b32.xlu0 %v3796, 112
        %v4965 = vpop.permute.xlu0 %4964
        %4966 = vrot.lane.b32.xlu0 %v3797, 112
        %v4967 = vpop.permute.xlu0 %4966
        %4968 = vrot.lane.b32.xlu0 %v3798, 112
        %v4969 = vpop.permute.xlu0 %4968
        %4970 = vrot.lane.b32.xlu0 %v3799, 112
        %v4971 = vpop.permute.xlu0 %4970
        %4972 = vrot.lane.b32.xlu0 %v3800, 112
        %v4973 = vpop.permute.xlu0 %4972
        %4974 = vrot.lane.b32.xlu0 %v3801, 112
        %v4975 = vpop.permute.xlu0 %4974
        %4976 = vrot.lane.b32.xlu0 %v3802, 112
        %v4977 = vpop.permute.xlu0 %4976
        %4978 = vrot.lane.b32.xlu0 %v3803, 112
        %v4979 = vpop.permute.xlu0 %4978
        %4980 = vrot.lane.b32.xlu0 %v3804, 112
        %v4981 = vpop.permute.xlu0 %4980
        %4982 = vrot.lane.b32.xlu0 %v3805, 112
        %v4983 = vpop.permute.xlu0 %4982
        %4984 = vrot.lane.b32.xlu0 %v3806, 112
        %v4985 = vpop.permute.xlu0 %4984
        %4986 = vrot.lane.b32.xlu0 %v3807, 112
        %v4987 = vpop.permute.xlu0 %4986
        %4988 = vrot.lane.b32.xlu0 %v3808, 112
        %v4989 = vpop.permute.xlu0 %4988
        %4990 = vrot.lane.b32.xlu0 %v3809, 112
        %v4991 = vpop.permute.xlu0 %4990
        %4992 = vrot.lane.b32.xlu0 %v3810, 112
        %v4993 = vpop.permute.xlu0 %4992
        %4994 = vrot.lane.b32.xlu0 %v3811, 112
        %v4995 = vpop.permute.xlu0 %4994
        %v4996 = vsel %vm1691, %v4993, %v4995
        %v4997 = vsel %vm1691, %v4991, %v4993
        %v4998 = vsel %vm1691, %v4989, %v4991
        %v4999 = vsel %vm1691, %v4987, %v4989
        %v5000 = vsel %vm1691, %v4985, %v4987
        %v5001 = vsel %vm1691, %v4983, %v4985
        %v5002 = vsel %vm1691, %v4981, %v4983
        %v5003 = vsel %vm1691, %v4979, %v4981
        %v5004 = vsel %vm1691, %v4977, %v4979
        %v5005 = vsel %vm1691, %v4975, %v4977
        %v5006 = vsel %vm1691, %v4973, %v4975
        %v5007 = vsel %vm1691, %v4971, %v4973
        %v5008 = vsel %vm1691, %v4969, %v4971
        %v5009 = vsel %vm1691, %v4967, %v4969
        %v5010 = vsel %vm1691, %v4965, %v4967
        %v5011 = vsel %vm1691, %v4995, %v4965
        %v5012 = vld [vmem:[#allocation6 + $0x180] sm:$0xf0]
        %v5013 = vld [vmem:[#allocation6 + $0x188] sm:$0xf0]
        %v5014 = vld [vmem:[#allocation6 + $0x190] sm:$0xf0]
        %v5015 = vld [vmem:[#allocation6 + $0x198] sm:$0xf0]
        %v5016 = vld [vmem:[#allocation6 + $0x1a0] sm:$0xf0]
        %v5017 = vld [vmem:[#allocation6 + $0x1a8] sm:$0xf0]
        %v5018 = vld [vmem:[#allocation6 + $0x1b0] sm:$0xf0]
        %v5019 = vld [vmem:[#allocation6 + $0x1b8] sm:$0xf0]
        %v5020 = vld [vmem:[#allocation6 + $0x1c0] sm:$0xf0]
        %v5021 = vld [vmem:[#allocation6 + $0x1c8] sm:$0xf0]
        %v5022 = vld [vmem:[#allocation6 + $0x1d0] sm:$0xf0]
        %v5023 = vld [vmem:[#allocation6 + $0x1d8] sm:$0xf0]
        %v5024 = vld [vmem:[#allocation6 + $0x1e0] sm:$0xf0]
        %v5025 = vld [vmem:[#allocation6 + $0x1e8] sm:$0xf0]
        %v5026 = vld [vmem:[#allocation6 + $0x1f0] sm:$0xf0]
        %v5027 = vld [vmem:[#allocation6 + $0x1f8] sm:$0xf0]
        %v5044 = vrot.slane %v5012, 4
        %v5045 = vrot.slane %v5013, 4
        %v5046 = vrot.slane %v5014, 4
        %v5047 = vrot.slane %v5015, 4
        %v5048 = vrot.slane %v5016, 4
        %v5049 = vrot.slane %v5017, 4
        %v5050 = vrot.slane %v5018, 4
        %v5051 = vrot.slane %v5019, 4
        %v5052 = vrot.slane %v5020, 4
        %v5053 = vrot.slane %v5021, 4
        %v5054 = vrot.slane %v5022, 4
        %v5055 = vrot.slane %v5023, 4
        %v5056 = vrot.slane %v5024, 4
        %v5057 = vrot.slane %v5025, 4
        %v5058 = vrot.slane %v5026, 4
        %v5059 = vrot.slane %v5027, 4
        %v5076 = vmul.f32 %v5010, %v5044
        %v5077 = vmul.f32 %v5009, %v5045
        %v5078 = vmul.f32 %v5008, %v5046
        %v5079 = vmul.f32 %v5007, %v5047
        %v5080 = vmul.f32 %v5006, %v5048
        %v5081 = vmul.f32 %v5005, %v5049
        %v5082 = vmul.f32 %v5004, %v5050
        %v5083 = vmul.f32 %v5003, %v5051
        %v5084 = vmul.f32 %v5002, %v5052
        %v5085 = vmul.f32 %v5001, %v5053
        %v5086 = vmul.f32 %v5000, %v5054
        %v5087 = vmul.f32 %v4999, %v5055
        %v5088 = vmul.f32 %v4998, %v5056
        %v5089 = vmul.f32 %v4997, %v5057
        %v5090 = vmul.f32 %v4996, %v5058
        %v5091 = vmul.f32 %v5011, %v5059
        %v5092 = vpack.c.bf16 %v5076, %v5076
        %v5093 = vpack.c.bf16 %v5077, %v5077
        %v5094 = vpack.c.bf16 %v5078, %v5078
        %v5095 = vpack.c.bf16 %v5079, %v5079
        %v5096 = vpack.c.bf16 %v5080, %v5080
        %v5097 = vpack.c.bf16 %v5081, %v5081
        %v5098 = vpack.c.bf16 %v5082, %v5082
        %v5099 = vpack.c.bf16 %v5083, %v5083
        %v5100 = vpack.c.bf16 %v5084, %v5084
        %v5101 = vpack.c.bf16 %v5085, %v5085
        %v5102 = vpack.c.bf16 %v5086, %v5086
        %v5103 = vpack.c.bf16 %v5087, %v5087
        %v5104 = vpack.c.bf16 %v5088, %v5088
        %v5105 = vpack.c.bf16 %v5089, %v5089
        %v5106 = vpack.c.bf16 %v5090, %v5090
        %v5107 = vpack.c.bf16 %v5091, %v5091
        %v5124 = vunpack.c.l.b16 %v5092
        %v5125 = vunpack.c.l.b16 %v5093
        %v5126 = vunpack.c.l.b16 %v5094
        %v5127 = vunpack.c.l.b16 %v5095
        %v5128 = vunpack.c.l.b16 %v5096
        %v5129 = vunpack.c.l.b16 %v5097
        %v5130 = vunpack.c.l.b16 %v5098
        %v5131 = vunpack.c.l.b16 %v5099
        %v5132 = vunpack.c.l.b16 %v5100
        %v5133 = vunpack.c.l.b16 %v5101
        %v5134 = vunpack.c.l.b16 %v5102
        %v5135 = vunpack.c.l.b16 %v5103
        %v5136 = vunpack.c.l.b16 %v5104
        %v5137 = vunpack.c.l.b16 %v5105
        %v5138 = vunpack.c.l.b16 %v5106
        %v5139 = vunpack.c.l.b16 %v5107
        %v5140 = vpack.c.b16 %v5125, %v5124
        %v5141 = vpack.c.b16 %v5127, %v5126
        %v5142 = vpack.c.b16 %v5129, %v5128
        %v5143 = vpack.c.b16 %v5131, %v5130
        %v5144 = vpack.c.b16 %v5133, %v5132
        %v5145 = vpack.c.b16 %v5135, %v5134
        %v5146 = vpack.c.b16 %v5137, %v5136
        %v5147 = vpack.c.b16 %v5139, %v5138
        %v5148 = vrot.slane %v5140, 6
        %v5149 = vrot.slane %v5141, 6
        %v5150 = vrot.slane %v5142, 6
        %v5151 = vrot.slane %v5143, 6
        %v5152 = vrot.slane %v5144, 6
        %v5153 = vrot.slane %v5145, 6
        %v5154 = vrot.slane %v5146, 6
        %v5155 = vrot.slane %v5147, 6
        %5164 = vst [vmem:[#allocation2 + $0xc0] sm:$0xcc] %v5148
        %5165 = vst [vmem:[#allocation2 + $0xc8] sm:$0xcc] %v5149
        %5166 = vst [vmem:[#allocation2 + $0xd0] sm:$0xcc] %v5150
        %5167 = vst [vmem:[#allocation2 + $0xd8] sm:$0xcc] %v5151
        %5168 = vst [vmem:[#allocation2 + $0xe0] sm:$0xcc] %v5152
        %5169 = vst [vmem:[#allocation2 + $0xe8] sm:$0xcc] %v5153
        %5170 = vst [vmem:[#allocation2 + $0xf0] sm:$0xcc] %v5154
        %5171 = vst [vmem:[#allocation2 + $0xf8] sm:$0xcc] %v5155
        %5172 = vrot.lane.b32.xlu0 %v3796, 111
        %v5173 = vpop.permute.xlu0 %5172
        %5174 = vrot.lane.b32.xlu0 %v3797, 111
        %v5175 = vpop.permute.xlu0 %5174
        %5176 = vrot.lane.b32.xlu0 %v3798, 111
        %v5177 = vpop.permute.xlu0 %5176
        %5178 = vrot.lane.b32.xlu0 %v3799, 111
        %v5179 = vpop.permute.xlu0 %5178
        %5180 = vrot.lane.b32.xlu0 %v3800, 111
        %v5181 = vpop.permute.xlu0 %5180
        %5182 = vrot.lane.b32.xlu0 %v3801, 111
        %v5183 = vpop.permute.xlu0 %5182
        %5184 = vrot.lane.b32.xlu0 %v3802, 111
        %v5185 = vpop.permute.xlu0 %5184
        %5186 = vrot.lane.b32.xlu0 %v3803, 111
        %v5187 = vpop.permute.xlu0 %5186
        %5188 = vrot.lane.b32.xlu0 %v3804, 111
        %v5189 = vpop.permute.xlu0 %5188
        %5190 = vrot.lane.b32.xlu0 %v3805, 111
        %v5191 = vpop.permute.xlu0 %5190
        %5192 = vrot.lane.b32.xlu0 %v3806, 111
        %v5193 = vpop.permute.xlu0 %5192
        %5194 = vrot.lane.b32.xlu0 %v3807, 111
        %v5195 = vpop.permute.xlu0 %5194
        %5196 = vrot.lane.b32.xlu0 %v3808, 111
        %v5197 = vpop.permute.xlu0 %5196
        %5198 = vrot.lane.b32.xlu0 %v3809, 111
        %v5199 = vpop.permute.xlu0 %5198
        %5200 = vrot.lane.b32.xlu0 %v3810, 111
        %v5201 = vpop.permute.xlu0 %5200
        %5202 = vrot.lane.b32.xlu0 %v3811, 111
        %v5203 = vpop.permute.xlu0 %5202
        %v5204 = vsel %vm1920, %v5201, %v5203
        %v5205 = vsel %vm1920, %v5199, %v5201
        %v5206 = vsel %vm1920, %v5197, %v5199
        %v5207 = vsel %vm1920, %v5195, %v5197
        %v5208 = vsel %vm1920, %v5193, %v5195
        %v5209 = vsel %vm1920, %v5191, %v5193
        %v5210 = vsel %vm1920, %v5189, %v5191
        %v5211 = vsel %vm1920, %v5187, %v5189
        %v5212 = vsel %vm1920, %v5185, %v5187
        %v5213 = vsel %vm1920, %v5183, %v5185
        %v5214 = vsel %vm1920, %v5181, %v5183
        %v5215 = vsel %vm1920, %v5179, %v5181
        %v5216 = vsel %vm1920, %v5177, %v5179
        %v5217 = vsel %vm1920, %v5175, %v5177
        %v5218 = vsel %vm1920, %v5173, %v5175
        %v5219 = vsel %vm1920, %v5203, %v5173
        %v5220 = vld [vmem:[#allocation6 + $0x200] sm:$0xf]
        %v5221 = vld [vmem:[#allocation6 + $0x208] sm:$0xf]
        %v5222 = vld [vmem:[#allocation6 + $0x210] sm:$0xf]
        %v5223 = vld [vmem:[#allocation6 + $0x218] sm:$0xf]
        %v5224 = vld [vmem:[#allocation6 + $0x220] sm:$0xf]
        %v5225 = vld [vmem:[#allocation6 + $0x228] sm:$0xf]
        %v5226 = vld [vmem:[#allocation6 + $0x230] sm:$0xf]
        %v5227 = vld [vmem:[#allocation6 + $0x238] sm:$0xf]
        %v5228 = vld [vmem:[#allocation6 + $0x240] sm:$0xf]
        %v5229 = vld [vmem:[#allocation6 + $0x248] sm:$0xf]
        %v5230 = vld [vmem:[#allocation6 + $0x250] sm:$0xf]
        %v5231 = vld [vmem:[#allocation6 + $0x258] sm:$0xf]
        %v5232 = vld [vmem:[#allocation6 + $0x260] sm:$0xf]
        %v5233 = vld [vmem:[#allocation6 + $0x268] sm:$0xf]
        %v5234 = vld [vmem:[#allocation6 + $0x270] sm:$0xf]
        %v5235 = vld [vmem:[#allocation6 + $0x278] sm:$0xf]
        %v5236 = vmul.f32 %v5218, %v5220
        %v5237 = vmul.f32 %v5217, %v5221
        %v5238 = vmul.f32 %v5216, %v5222
        %v5239 = vmul.f32 %v5215, %v5223
        %v5240 = vmul.f32 %v5214, %v5224
        %v5241 = vmul.f32 %v5213, %v5225
        %v5242 = vmul.f32 %v5212, %v5226
        %v5243 = vmul.f32 %v5211, %v5227
        %v5244 = vmul.f32 %v5210, %v5228
        %v5245 = vmul.f32 %v5209, %v5229
        %v5246 = vmul.f32 %v5208, %v5230
        %v5247 = vmul.f32 %v5207, %v5231
        %v5248 = vmul.f32 %v5206, %v5232
        %v5249 = vmul.f32 %v5205, %v5233
        %v5250 = vmul.f32 %v5204, %v5234
        %v5251 = vmul.f32 %v5219, %v5235
        %v5252 = vpack.c.bf16 %v5236, %v5236
        %v5253 = vpack.c.bf16 %v5237, %v5237
        %v5254 = vpack.c.bf16 %v5238, %v5238
        %v5255 = vpack.c.bf16 %v5239, %v5239
        %v5256 = vpack.c.bf16 %v5240, %v5240
        %v5257 = vpack.c.bf16 %v5241, %v5241
        %v5258 = vpack.c.bf16 %v5242, %v5242
        %v5259 = vpack.c.bf16 %v5243, %v5243
        %v5260 = vpack.c.bf16 %v5244, %v5244
        %v5261 = vpack.c.bf16 %v5245, %v5245
        %v5262 = vpack.c.bf16 %v5246, %v5246
        %v5263 = vpack.c.bf16 %v5247, %v5247
        %v5264 = vpack.c.bf16 %v5248, %v5248
        %v5265 = vpack.c.bf16 %v5249, %v5249
        %v5266 = vpack.c.bf16 %v5250, %v5250
        %v5267 = vpack.c.bf16 %v5251, %v5251
        %v5284 = vunpack.c.l.b16 %v5252
        %v5285 = vunpack.c.l.b16 %v5253
        %v5286 = vunpack.c.l.b16 %v5254
        %v5287 = vunpack.c.l.b16 %v5255
        %v5288 = vunpack.c.l.b16 %v5256
        %v5289 = vunpack.c.l.b16 %v5257
        %v5290 = vunpack.c.l.b16 %v5258
        %v5291 = vunpack.c.l.b16 %v5259
        %v5292 = vunpack.c.l.b16 %v5260
        %v5293 = vunpack.c.l.b16 %v5261
        %v5294 = vunpack.c.l.b16 %v5262
        %v5295 = vunpack.c.l.b16 %v5263
        %v5296 = vunpack.c.l.b16 %v5264
        %v5297 = vunpack.c.l.b16 %v5265
        %v5298 = vunpack.c.l.b16 %v5266
        %v5299 = vunpack.c.l.b16 %v5267
        %v5300 = vpack.c.b16 %v5285, %v5284
        %v5301 = vpack.c.b16 %v5287, %v5286
        %v5302 = vpack.c.b16 %v5289, %v5288
        %v5303 = vpack.c.b16 %v5291, %v5290
        %v5304 = vpack.c.b16 %v5293, %v5292
        %v5305 = vpack.c.b16 %v5295, %v5294
        %v5306 = vpack.c.b16 %v5297, %v5296
        %v5307 = vpack.c.b16 %v5299, %v5298
        %5316 = vst [vmem:[#allocation2 + $0x100] sm:$0x33] %v5300
        %5317 = vst [vmem:[#allocation2 + $0x108] sm:$0x33] %v5301
        %5318 = vst [vmem:[#allocation2 + $0x110] sm:$0x33] %v5302
        %5319 = vst [vmem:[#allocation2 + $0x118] sm:$0x33] %v5303
        %5320 = vst [vmem:[#allocation2 + $0x120] sm:$0x33] %v5304
        %5321 = vst [vmem:[#allocation2 + $0x128] sm:$0x33] %v5305
        %5322 = vst [vmem:[#allocation2 + $0x130] sm:$0x33] %v5306
        %5323 = vst [vmem:[#allocation2 + $0x138] sm:$0x33] %v5307
        %v5324 = vld [vmem:[%s282] sm:$0xff]
        %v5325 = vld [vmem:[%s282 + $0x8] sm:$0xff]
        %v5326 = vld [vmem:[%s282 + $0x10] sm:$0xff]
        %v5327 = vld [vmem:[%s282 + $0x18] sm:$0xff]
        %v5328 = vld [vmem:[%s282 + $0x20] sm:$0xff]
        %v5329 = vld [vmem:[%s282 + $0x28] sm:$0xff]
        %v5330 = vld [vmem:[%s282 + $0x30] sm:$0xff]
        %v5331 = vld [vmem:[%s282 + $0x38] sm:$0xff]
        %s5332 = scalar_lea.vmem %s4, 2
        %v5333 = vld [vmem:[%s5332] sm:$0x3]
        %v5334 = vld [vmem:[#allocation2] sm:$0xff]
        %v5335 = vld [vmem:[#allocation2 + $0x8] sm:$0xff]
        %v5336 = vld [vmem:[#allocation2 + $0x10] sm:$0xff]
        %v5337 = vld [vmem:[#allocation2 + $0x18] sm:$0xff]
        %v5338 = vld [vmem:[#allocation2 + $0x20] sm:$0xff]
        %v5339 = vld [vmem:[#allocation2 + $0x28] sm:$0xff]
        %v5340 = vld [vmem:[#allocation2 + $0x30] sm:$0xff]
        %v5341 = vld [vmem:[#allocation2 + $0x38] sm:$0xff]
        %v5342 = vld [vmem:[#allocation2 + $0x40] sm:$0xff]
        %v5343 = vld [vmem:[#allocation2 + $0x48] sm:$0xff]
        %v5344 = vld [vmem:[#allocation2 + $0x50] sm:$0xff]
        %v5345 = vld [vmem:[#allocation2 + $0x58] sm:$0xff]
        %v5346 = vld [vmem:[#allocation2 + $0x60] sm:$0xff]
        %v5347 = vld [vmem:[#allocation2 + $0x68] sm:$0xff]
        %v5348 = vld [vmem:[#allocation2 + $0x70] sm:$0xff]
        %v5349 = vld [vmem:[#allocation2 + $0x78] sm:$0xff]
        %v5350 = vld [vmem:[#allocation2 + $0x80] sm:$0xff]
        %v5351 = vld [vmem:[#allocation2 + $0x88] sm:$0xff]
        %v5352 = vld [vmem:[#allocation2 + $0x90] sm:$0xff]
        %v5353 = vld [vmem:[#allocation2 + $0x98] sm:$0xff]
        %v5354 = vld [vmem:[#allocation2 + $0xa0] sm:$0xff]
        %v5355 = vld [vmem:[#allocation2 + $0xa8] sm:$0xff]
        %v5356 = vld [vmem:[#allocation2 + $0xb0] sm:$0xff]
        %v5357 = vld [vmem:[#allocation2 + $0xb8] sm:$0xff]
        %v5358 = vld [vmem:[#allocation2 + $0xc0] sm:$0xff]
        %v5359 = vld [vmem:[#allocation2 + $0xc8] sm:$0xff]
        %v5360 = vld [vmem:[#allocation2 + $0xd0] sm:$0xff]
        %v5361 = vld [vmem:[#allocation2 + $0xd8] sm:$0xff]
        %v5362 = vld [vmem:[#allocation2 + $0xe0] sm:$0xff]
        %v5363 = vld [vmem:[#allocation2 + $0xe8] sm:$0xff]
        %v5364 = vld [vmem:[#allocation2 + $0xf0] sm:$0xff]
        %v5365 = vld [vmem:[#allocation2 + $0xf8] sm:$0xff]
        %v5366 = vld [vmem:[#allocation2 + $0x100] sm:$0x33]
        %v5367 = vld [vmem:[#allocation2 + $0x108] sm:$0x33]
        %v5368 = vld [vmem:[#allocation2 + $0x110] sm:$0x33]
        %v5369 = vld [vmem:[#allocation2 + $0x118] sm:$0x33]
        %v5370 = vld [vmem:[#allocation2 + $0x120] sm:$0x33]
        %v5371 = vld [vmem:[#allocation2 + $0x128] sm:$0x33]
        %v5372 = vld [vmem:[#allocation2 + $0x130] sm:$0x33]
        %v5373 = vld [vmem:[#allocation2 + $0x138] sm:$0x33]
        %s5374 = scalar_lea.vmem %s5, 4
        %v5375 = vld [vmem:[%s5374] sm:$0xf]
        %5377 = vset.pattern.permute.xlu0 0
        %5378 = vperm.xlu0 %5377, %v5375
        %v5379 = vpop.permute.xlu0 %5378
        %v5421 = vunpack.c.l.b16 %v5334
        %v5422 = vunpack.c.h.b16 %v5334
        %v5423 = vunpack.c.l.b16 %v5335
        %v5424 = vunpack.c.h.b16 %v5335
        %v5425 = vunpack.c.l.b16 %v5336
        %v5426 = vunpack.c.h.b16 %v5336
        %v5427 = vunpack.c.l.b16 %v5337
        %v5428 = vunpack.c.h.b16 %v5337
        %v5429 = vunpack.c.l.b16 %v5338
        %v5430 = vunpack.c.h.b16 %v5338
        %v5431 = vunpack.c.l.b16 %v5339
        %v5432 = vunpack.c.h.b16 %v5339
        %v5433 = vunpack.c.l.b16 %v5340
        %v5434 = vunpack.c.h.b16 %v5340
        %v5435 = vunpack.c.l.b16 %v5341
        %v5436 = vunpack.c.h.b16 %v5341
        %v5437 = vunpack.c.l.b16 %v5342
        %v5438 = vunpack.c.h.b16 %v5342
        %v5439 = vunpack.c.l.b16 %v5343
        %v5440 = vunpack.c.h.b16 %v5343
        %v5441 = vunpack.c.l.b16 %v5344
        %v5442 = vunpack.c.h.b16 %v5344
        %v5443 = vunpack.c.l.b16 %v5345
        %v5444 = vunpack.c.h.b16 %v5345
        %v5445 = vunpack.c.l.b16 %v5346
        %v5446 = vunpack.c.h.b16 %v5346
        %v5447 = vunpack.c.l.b16 %v5347
        %v5448 = vunpack.c.h.b16 %v5347
        %v5449 = vunpack.c.l.b16 %v5348
        %v5450 = vunpack.c.h.b16 %v5348
        %v5451 = vunpack.c.l.b16 %v5349
        %v5452 = vunpack.c.h.b16 %v5349
        %v5453 = vunpack.c.l.b16 %v5350
        %v5454 = vunpack.c.h.b16 %v5350
        %v5455 = vunpack.c.l.b16 %v5351
        %v5456 = vunpack.c.h.b16 %v5351
        %v5457 = vunpack.c.l.b16 %v5352
        %v5458 = vunpack.c.h.b16 %v5352
        %v5459 = vunpack.c.l.b16 %v5353
        %v5460 = vunpack.c.h.b16 %v5353
        %v5461 = vunpack.c.l.b16 %v5354
        %v5462 = vunpack.c.h.b16 %v5354
        %v5463 = vunpack.c.l.b16 %v5355
        %v5464 = vunpack.c.h.b16 %v5355
        %v5465 = vunpack.c.l.b16 %v5356
        %v5466 = vunpack.c.h.b16 %v5356
        %v5467 = vunpack.c.l.b16 %v5357
        %v5468 = vunpack.c.h.b16 %v5357
        %v5469 = vunpack.c.l.b16 %v5358
        %v5470 = vunpack.c.h.b16 %v5358
        %v5471 = vunpack.c.l.b16 %v5359
        %v5472 = vunpack.c.h.b16 %v5359
        %v5473 = vunpack.c.l.b16 %v5360
        %v5474 = vunpack.c.h.b16 %v5360
        %v5475 = vunpack.c.l.b16 %v5361
        %v5476 = vunpack.c.h.b16 %v5361
        %v5477 = vunpack.c.l.b16 %v5362
        %v5478 = vunpack.c.h.b16 %v5362
        %v5479 = vunpack.c.l.b16 %v5363
        %v5480 = vunpack.c.h.b16 %v5363
        %v5481 = vunpack.c.l.b16 %v5364
        %v5482 = vunpack.c.h.b16 %v5364
        %v5483 = vunpack.c.l.b16 %v5365
        %v5484 = vunpack.c.h.b16 %v5365
        %v5485 = vunpack.c.l.b16 %v5366
        %v5486 = vunpack.c.h.b16 %v5366
        %v5487 = vunpack.c.l.b16 %v5367
        %v5488 = vunpack.c.h.b16 %v5367
        %v5489 = vunpack.c.l.b16 %v5368
        %v5490 = vunpack.c.h.b16 %v5368
        %v5491 = vunpack.c.l.b16 %v5369
        %v5492 = vunpack.c.h.b16 %v5369
        %v5493 = vunpack.c.l.b16 %v5370
        %v5494 = vunpack.c.h.b16 %v5370
        %v5495 = vunpack.c.l.b16 %v5371
        %v5496 = vunpack.c.h.b16 %v5371
        %v5497 = vunpack.c.l.b16 %v5372
        %v5498 = vunpack.c.h.b16 %v5372
        %v5499 = vunpack.c.l.b16 %v5373
        %v5500 = vunpack.c.h.b16 %v5373
        %v5501 = vpack.c.b16 %v5437, %v5421
        %v5502 = vpack.c.b16 %v5438, %v5422
        %v5503 = vpack.c.b16 %v5439, %v5423
        %v5504 = vpack.c.b16 %v5440, %v5424
        %v5505 = vpack.c.b16 %v5441, %v5425
        %v5506 = vpack.c.b16 %v5442, %v5426
        %v5507 = vpack.c.b16 %v5443, %v5427
        %v5508 = vpack.c.b16 %v5444, %v5428
        %v5509 = vpack.c.b16 %v5445, %v5429
        %v5510 = vpack.c.b16 %v5446, %v5430
        %v5511 = vpack.c.b16 %v5447, %v5431
        %v5512 = vpack.c.b16 %v5448, %v5432
        %v5513 = vpack.c.b16 %v5449, %v5433
        %v5514 = vpack.c.b16 %v5450, %v5434
        %v5515 = vpack.c.b16 %v5451, %v5435
        %v5516 = vpack.c.b16 %v5452, %v5436
        %v5517 = vpack.c.b16 %v5469, %v5453
        %v5518 = vpack.c.b16 %v5470, %v5454
        %v5519 = vpack.c.b16 %v5471, %v5455
        %v5520 = vpack.c.b16 %v5472, %v5456
        %v5521 = vpack.c.b16 %v5473, %v5457
        %v5522 = vpack.c.b16 %v5474, %v5458
        %v5523 = vpack.c.b16 %v5475, %v5459
        %v5524 = vpack.c.b16 %v5476, %v5460
        %v5525 = vpack.c.b16 %v5477, %v5461
        %v5526 = vpack.c.b16 %v5478, %v5462
        %v5527 = vpack.c.b16 %v5479, %v5463
        %v5528 = vpack.c.b16 %v5480, %v5464
        %v5529 = vpack.c.b16 %v5481, %v5465
        %v5530 = vpack.c.b16 %v5482, %v5466
        %v5531 = vpack.c.b16 %v5483, %v5467
        %v5532 = vpack.c.b16 %v5484, %v5468
        %v5533 = vpack.c.b16 %v5485, %v5485
        %v5534 = vpack.c.b16 %v5486, %v5486
        %v5535 = vpack.c.b16 %v5487, %v5487
        %v5536 = vpack.c.b16 %v5488, %v5488
        %v5537 = vpack.c.b16 %v5489, %v5489
        %v5538 = vpack.c.b16 %v5490, %v5490
        %v5539 = vpack.c.b16 %v5491, %v5491
        %v5540 = vpack.c.b16 %v5492, %v5492
        %v5541 = vpack.c.b16 %v5493, %v5493
        %v5542 = vpack.c.b16 %v5494, %v5494
        %v5543 = vpack.c.b16 %v5495, %v5495
        %v5544 = vpack.c.b16 %v5496, %v5496
        %v5545 = vpack.c.b16 %v5497, %v5497
        %v5546 = vpack.c.b16 %v5498, %v5498
        %v5547 = vpack.c.b16 %v5499, %v5499
        %v5548 = vpack.c.b16 %v5500, %v5500
        %v5582 = vsel %vm3415, %v5333, 0
        %v5585 = vsel %vm3419, %v5533, 0
        %v5588 = vsel %vm3419, %v5534, 0
        %v5591 = vsel %vm3419, %v5535, 0
        %v5594 = vsel %vm3419, %v5536, 0
        %v5597 = vsel %vm3419, %v5537, 0
        %v5600 = vsel %vm3419, %v5538, 0
        %v5603 = vsel %vm3419, %v5539, 0
        %v5606 = vsel %vm3419, %v5540, 0
        %v5609 = vsel %vm3419, %v5541, 0
        %v5612 = vsel %vm3419, %v5542, 0
        %v5615 = vsel %vm3419, %v5543, 0
        %v5618 = vsel %vm3419, %v5544, 0
        %v5621 = vsel %vm3419, %v5545, 0
        %v5624 = vsel %vm3419, %v5546, 0
        %v5627 = vsel %vm3419, %v5547, 0
        %v5630 = vsel %vm3419, %v5548, 0
        %5632 = vmatprep.subr.bf16.mxu0 %v5502
        %5633 = vmatpush1.bf16.msra.mxu0 %v5501
        %5634 = vmatprep.subr.bf16.mxu0 %v5518
        %5635 = vmatpush1.bf16.msra.mxu0 %v5517
        %5636 = vmatprep.subr.bf16.mxu0 %v5588
        %5637 = vmatpush1.bf16.msra.mxu0 %v5585
        %5638 = vmatprep.subr.bf16.mxu0 0
        %5639 = vmatpush1.bf16.msra.mxu0 0
        %5640 = vmatprep.subr.bf16.mxu0 0
        %5641 = vmatpush1.bf16.msra.mxu0 0
        %5642 = vmatprep.subr.bf16.mxu0 0
        %5643 = vmatpush1.bf16.msra.mxu0 0
        %5644 = vmatprep.subr.bf16.mxu0 0
        %5645 = vmatpush1.bf16.msra.mxu0 0
        %5646 = vmatprep.subr.bf16.mxu0 0
        %5647 = vmatpush1.bf16.msra.mxu0 0
        %5648 = vmatprep.subr.bf16.mxu0 0
        %5649 = vmatpush1.bf16.msra.mxu0 0
        %5650 = vmatprep.subr.bf16.mxu0 0
        %5651 = vmatpush1.bf16.msra.mxu0 0
        %5652 = vmatprep.subr.bf16.mxu0 0
        %5653 = vmatpush1.bf16.msra.mxu0 0
        %5654 = vmatprep.subr.bf16.mxu0 0
        %5655 = vmatpush1.bf16.msra.mxu0 0
        %5656 = vmatprep.subr.bf16.mxu0 0
        %5657 = vmatpush1.bf16.msra.mxu0 0
        %5658 = vmatprep.subr.bf16.mxu0 0
        %5659 = vmatpush1.bf16.msra.mxu0 0
        %5660 = vmatprep.subr.bf16.mxu0 0
        %5661 = vmatpush1.bf16.msra.mxu0 0
        %5662 = vmatprep.subr.bf16.mxu0 0
        %5663 = vmatpush1.bf16.msra.mxu0 0
        %5664 = vmatprep.mubr.bf16.mxu0 0
        %5665 = vmatmul.mubr.bf16.gmra.mrb[0].mxu0 %v5582
        %v5666 = vpop.f32.mrb[0].mxu0
        %v5667 = vadd.f32 %v5379, %v5666
        %v5668 = vpop.f32.mrb[0].mxu0
        %v5669 = vadd.f32 %v5379, %v5668
        %v5670 = vpop.f32.mrb[0].mxu0
        %v5671 = vpop.f32.mrb[0].mxu0
        %5672 = vdwg.mxu0
        %5673 = vmatprep.subr.bf16.mxu0 %v5504
        %5674 = vmatpush1.bf16.msra.mxu0 %v5503
        %5675 = vmatprep.subr.bf16.mxu0 %v5520
        %5676 = vmatpush1.bf16.msra.mxu0 %v5519
        %5677 = vmatprep.subr.bf16.mxu0 %v5594
        %5678 = vmatpush1.bf16.msra.mxu0 %v5591
        %5679 = vmatprep.subr.bf16.mxu0 0
        %5680 = vmatpush1.bf16.msra.mxu0 0
        %5681 = vmatprep.subr.bf16.mxu0 0
        %5682 = vmatpush1.bf16.msra.mxu0 0
        %5683 = vmatprep.subr.bf16.mxu0 0
        %5684 = vmatpush1.bf16.msra.mxu0 0
        %5685 = vmatprep.subr.bf16.mxu0 0
        %5686 = vmatpush1.bf16.msra.mxu0 0
        %5687 = vmatprep.subr.bf16.mxu0 0
        %5688 = vmatpush1.bf16.msra.mxu0 0
        %5689 = vmatprep.subr.bf16.mxu0 0
        %5690 = vmatpush1.bf16.msra.mxu0 0
        %5691 = vmatprep.subr.bf16.mxu0 0
        %5692 = vmatpush1.bf16.msra.mxu0 0
        %5693 = vmatprep.subr.bf16.mxu0 0
        %5694 = vmatpush1.bf16.msra.mxu0 0
        %5695 = vmatprep.subr.bf16.mxu0 0
        %5696 = vmatpush1.bf16.msra.mxu0 0
        %5697 = vmatprep.subr.bf16.mxu0 0
        %5698 = vmatpush1.bf16.msra.mxu0 0
        %5699 = vmatprep.subr.bf16.mxu0 0
        %5700 = vmatpush1.bf16.msra.mxu0 0
        %5701 = vmatprep.subr.bf16.mxu0 0
        %5702 = vmatpush1.bf16.msra.mxu0 0
        %5703 = vmatprep.subr.bf16.mxu0 0
        %5704 = vmatpush1.bf16.msra.mxu0 0
        %5705 = vmatprep.mubr.bf16.mxu0 0
        %5706 = vmatmul.mubr.bf16.gmra.mrb[0].mxu0 %v5582
        %v5707 = vpop.f32.mrb[0].mxu0
        %v5708 = vadd.f32 %v5379, %v5707
        %v5709 = vpop.f32.mrb[0].mxu0
        %v5710 = vadd.f32 %v5379, %v5709
        %v5711 = vpop.f32.mrb[0].mxu0
        %v5712 = vpop.f32.mrb[0].mxu0
        %5713 = vdwg.mxu0
        %5714 = vmatprep.subr.bf16.mxu0 %v5506
        %5715 = vmatpush1.bf16.msra.mxu0 %v5505
        %5716 = vmatprep.subr.bf16.mxu0 %v5522
        %5717 = vmatpush1.bf16.msra.mxu0 %v5521
        %5718 = vmatprep.subr.bf16.mxu0 %v5600
        %5719 = vmatpush1.bf16.msra.mxu0 %v5597
        %5720 = vmatprep.subr.bf16.mxu0 0
        %5721 = vmatpush1.bf16.msra.mxu0 0
        %5722 = vmatprep.subr.bf16.mxu0 0
        %5723 = vmatpush1.bf16.msra.mxu0 0
        %5724 = vmatprep.subr.bf16.mxu0 0
        %5725 = vmatpush1.bf16.msra.mxu0 0
        %5726 = vmatprep.subr.bf16.mxu0 0
        %5727 = vmatpush1.bf16.msra.mxu0 0
        %5728 = vmatprep.subr.bf16.mxu0 0
        %5729 = vmatpush1.bf16.msra.mxu0 0
        %5730 = vmatprep.subr.bf16.mxu0 0
        %5731 = vmatpush1.bf16.msra.mxu0 0
        %5732 = vmatprep.subr.bf16.mxu0 0
        %5733 = vmatpush1.bf16.msra.mxu0 0
        %5734 = vmatprep.subr.bf16.mxu0 0
        %5735 = vmatpush1.bf16.msra.mxu0 0
        %5736 = vmatprep.subr.bf16.mxu0 0
        %5737 = vmatpush1.bf16.msra.mxu0 0
        %5738 = vmatprep.subr.bf16.mxu0 0
        %5739 = vmatpush1.bf16.msra.mxu0 0
        %5740 = vmatprep.subr.bf16.mxu0 0
        %5741 = vmatpush1.bf16.msra.mxu0 0
        %5742 = vmatprep.subr.bf16.mxu0 0
        %5743 = vmatpush1.bf16.msra.mxu0 0
        %5744 = vmatprep.subr.bf16.mxu0 0
        %5745 = vmatpush1.bf16.msra.mxu0 0
        %5746 = vmatprep.mubr.bf16.mxu0 0
        %5747 = vmatmul.mubr.bf16.gmra.mrb[0].mxu0 %v5582
        %v5748 = vpop.f32.mrb[0].mxu0
        %v5749 = vadd.f32 %v5379, %v5748
        %v5750 = vpop.f32.mrb[0].mxu0
        %v5751 = vadd.f32 %v5379, %v5750
        %v5752 = vpop.f32.mrb[0].mxu0
        %v5753 = vpop.f32.mrb[0].mxu0
        %5754 = vdwg.mxu0
        %5755 = vmatprep.subr.bf16.mxu0 %v5508
        %5756 = vmatpush1.bf16.msra.mxu0 %v5507
        %5757 = vmatprep.subr.bf16.mxu0 %v5524
        %5758 = vmatpush1.bf16.msra.mxu0 %v5523
        %5759 = vmatprep.subr.bf16.mxu0 %v5606
        %5760 = vmatpush1.bf16.msra.mxu0 %v5603
        %5761 = vmatprep.subr.bf16.mxu0 0
        %5762 = vmatpush1.bf16.msra.mxu0 0
        %5763 = vmatprep.subr.bf16.mxu0 0
        %5764 = vmatpush1.bf16.msra.mxu0 0
        %5765 = vmatprep.subr.bf16.mxu0 0
        %5766 = vmatpush1.bf16.msra.mxu0 0
        %5767 = vmatprep.subr.bf16.mxu0 0
        %5768 = vmatpush1.bf16.msra.mxu0 0
        %5769 = vmatprep.subr.bf16.mxu0 0
        %5770 = vmatpush1.bf16.msra.mxu0 0
        %5771 = vmatprep.subr.bf16.mxu0 0
        %5772 = vmatpush1.bf16.msra.mxu0 0
        %5773 = vmatprep.subr.bf16.mxu0 0
        %5774 = vmatpush1.bf16.msra.mxu0 0
        %5775 = vmatprep.subr.bf16.mxu0 0
        %5776 = vmatpush1.bf16.msra.mxu0 0
        %5777 = vmatprep.subr.bf16.mxu0 0
        %5778 = vmatpush1.bf16.msra.mxu0 0
        %5779 = vmatprep.subr.bf16.mxu0 0
        %5780 = vmatpush1.bf16.msra.mxu0 0
        %5781 = vmatprep.subr.bf16.mxu0 0
        %5782 = vmatpush1.bf16.msra.mxu0 0
        %5783 = vmatprep.subr.bf16.mxu0 0
        %5784 = vmatpush1.bf16.msra.mxu0 0
        %5785 = vmatprep.subr.bf16.mxu0 0
        %5786 = vmatpush1.bf16.msra.mxu0 0
        %5787 = vmatprep.mubr.bf16.mxu0 0
        %5788 = vmatmul.mubr.bf16.gmra.mrb[0].mxu0 %v5582
        %v5789 = vpop.f32.mrb[0].mxu0
        %v5790 = vadd.f32 %v5379, %v5789
        %v5791 = vpop.f32.mrb[0].mxu0
        %v5792 = vadd.f32 %v5379, %v5791
        %v5793 = vpop.f32.mrb[0].mxu0
        %v5794 = vpop.f32.mrb[0].mxu0
        %5795 = vdwg.mxu0
        %5796 = vmatprep.subr.bf16.mxu0 %v5510
        %5797 = vmatpush1.bf16.msra.mxu0 %v5509
        %5798 = vmatprep.subr.bf16.mxu0 %v5526
        %5799 = vmatpush1.bf16.msra.mxu0 %v5525
        %5800 = vmatprep.subr.bf16.mxu0 %v5612
        %5801 = vmatpush1.bf16.msra.mxu0 %v5609
        %5802 = vmatprep.subr.bf16.mxu0 0
        %5803 = vmatpush1.bf16.msra.mxu0 0
        %5804 = vmatprep.subr.bf16.mxu0 0
        %5805 = vmatpush1.bf16.msra.mxu0 0
        %5806 = vmatprep.subr.bf16.mxu0 0
        %5807 = vmatpush1.bf16.msra.mxu0 0
        %5808 = vmatprep.subr.bf16.mxu0 0
        %5809 = vmatpush1.bf16.msra.mxu0 0
        %5810 = vmatprep.subr.bf16.mxu0 0
        %5811 = vmatpush1.bf16.msra.mxu0 0
        %5812 = vmatprep.subr.bf16.mxu0 0
        %5813 = vmatpush1.bf16.msra.mxu0 0
        %5814 = vmatprep.subr.bf16.mxu0 0
        %5815 = vmatpush1.bf16.msra.mxu0 0
        %5816 = vmatprep.subr.bf16.mxu0 0
        %5817 = vmatpush1.bf16.msra.mxu0 0
        %5818 = vmatprep.subr.bf16.mxu0 0
        %5819 = vmatpush1.bf16.msra.mxu0 0
        %5820 = vmatprep.subr.bf16.mxu0 0
        %5821 = vmatpush1.bf16.msra.mxu0 0
        %5822 = vmatprep.subr.bf16.mxu0 0
        %5823 = vmatpush1.bf16.msra.mxu0 0
        %5824 = vmatprep.subr.bf16.mxu0 0
        %5825 = vmatpush1.bf16.msra.mxu0 0
        %5826 = vmatprep.subr.bf16.mxu0 0
        %5827 = vmatpush1.bf16.msra.mxu0 0
        %5828 = vmatprep.mubr.bf16.mxu0 0
        %5829 = vmatmul.mubr.bf16.gmra.mrb[0].mxu0 %v5582
        %v5830 = vpop.f32.mrb[0].mxu0
        %v5831 = vadd.f32 %v5379, %v5830
        %v5832 = vpop.f32.mrb[0].mxu0
        %v5833 = vadd.f32 %v5379, %v5832
        %v5834 = vpop.f32.mrb[0].mxu0
        %v5835 = vpop.f32.mrb[0].mxu0
        %5836 = vdwg.mxu0
        %5837 = vmatprep.subr.bf16.mxu0 %v5512
        %5838 = vmatpush1.bf16.msra.mxu0 %v5511
        %5839 = vmatprep.subr.bf16.mxu0 %v5528
        %5840 = vmatpush1.bf16.msra.mxu0 %v5527
        %5841 = vmatprep.subr.bf16.mxu0 %v5618
        %5842 = vmatpush1.bf16.msra.mxu0 %v5615
        %5843 = vmatprep.subr.bf16.mxu0 0
        %5844 = vmatpush1.bf16.msra.mxu0 0
        %5845 = vmatprep.subr.bf16.mxu0 0
        %5846 = vmatpush1.bf16.msra.mxu0 0
        %5847 = vmatprep.subr.bf16.mxu0 0
        %5848 = vmatpush1.bf16.msra.mxu0 0
        %5849 = vmatprep.subr.bf16.mxu0 0
        %5850 = vmatpush1.bf16.msra.mxu0 0
        %5851 = vmatprep.subr.bf16.mxu0 0
        %5852 = vmatpush1.bf16.msra.mxu0 0
        %5853 = vmatprep.subr.bf16.mxu0 0
        %5854 = vmatpush1.bf16.msra.mxu0 0
        %5855 = vmatprep.subr.bf16.mxu0 0
        %5856 = vmatpush1.bf16.msra.mxu0 0
        %5857 = vmatprep.subr.bf16.mxu0 0
        %5858 = vmatpush1.bf16.msra.mxu0 0
        %5859 = vmatprep.subr.bf16.mxu0 0
        %5860 = vmatpush1.bf16.msra.mxu0 0
        %5861 = vmatprep.subr.bf16.mxu0 0
        %5862 = vmatpush1.bf16.msra.mxu0 0
        %5863 = vmatprep.subr.bf16.mxu0 0
        %5864 = vmatpush1.bf16.msra.mxu0 0
        %5865 = vmatprep.subr.bf16.mxu0 0
        %5866 = vmatpush1.bf16.msra.mxu0 0
        %5867 = vmatprep.subr.bf16.mxu0 0
        %5868 = vmatpush1.bf16.msra.mxu0 0
        %5869 = vmatprep.mubr.bf16.mxu0 0
        %5870 = vmatmul.mubr.bf16.gmra.mrb[0].mxu0 %v5582
        %v5871 = vpop.f32.mrb[0].mxu0
        %v5872 = vadd.f32 %v5379, %v5871
        %v5873 = vpop.f32.mrb[0].mxu0
        %v5874 = vadd.f32 %v5379, %v5873
        %v5875 = vpop.f32.mrb[0].mxu0
        %v5876 = vpop.f32.mrb[0].mxu0
        %5877 = vdwg.mxu0
        %5878 = vmatprep.subr.bf16.mxu0 %v5514
        %5879 = vmatpush1.bf16.msra.mxu0 %v5513
        %5880 = vmatprep.subr.bf16.mxu0 %v5530
        %5881 = vmatpush1.bf16.msra.mxu0 %v5529
        %5882 = vmatprep.subr.bf16.mxu0 %v5624
        %5883 = vmatpush1.bf16.msra.mxu0 %v5621
        %5884 = vmatprep.subr.bf16.mxu0 0
        %5885 = vmatpush1.bf16.msra.mxu0 0
        %5886 = vmatprep.subr.bf16.mxu0 0
        %5887 = vmatpush1.bf16.msra.mxu0 0
        %5888 = vmatprep.subr.bf16.mxu0 0
        %5889 = vmatpush1.bf16.msra.mxu0 0
        %5890 = vmatprep.subr.bf16.mxu0 0
        %5891 = vmatpush1.bf16.msra.mxu0 0
        %5892 = vmatprep.subr.bf16.mxu0 0
        %5893 = vmatpush1.bf16.msra.mxu0 0
        %5894 = vmatprep.subr.bf16.mxu0 0
        %5895 = vmatpush1.bf16.msra.mxu0 0
        %5896 = vmatprep.subr.bf16.mxu0 0
        %5897 = vmatpush1.bf16.msra.mxu0 0
        %5898 = vmatprep.subr.bf16.mxu0 0
        %5899 = vmatpush1.bf16.msra.mxu0 0
        %5900 = vmatprep.subr.bf16.mxu0 0
        %5901 = vmatpush1.bf16.msra.mxu0 0
        %5902 = vmatprep.subr.bf16.mxu0 0
        %5903 = vmatpush1.bf16.msra.mxu0 0
        %5904 = vmatprep.subr.bf16.mxu0 0
        %5905 = vmatpush1.bf16.msra.mxu0 0
        %5906 = vmatprep.subr.bf16.mxu0 0
        %5907 = vmatpush1.bf16.msra.mxu0 0
        %5908 = vmatprep.subr.bf16.mxu0 0
        %5909 = vmatpush1.bf16.msra.mxu0 0
        %5910 = vmatprep.mubr.bf16.mxu0 0
        %5911 = vmatmul.mubr.bf16.gmra.mrb[0].mxu0 %v5582
        %v5912 = vpop.f32.mrb[0].mxu0
        %v5913 = vadd.f32 %v5379, %v5912
        %v5914 = vpop.f32.mrb[0].mxu0
        %v5915 = vadd.f32 %v5379, %v5914
        %v5916 = vpop.f32.mrb[0].mxu0
        %v5917 = vpop.f32.mrb[0].mxu0
        %5918 = vdwg.mxu0
        %5919 = vmatprep.subr.bf16.mxu0 %v5516
        %5920 = vmatpush1.bf16.msra.mxu0 %v5515
        %5921 = vmatprep.subr.bf16.mxu0 %v5532
        %5922 = vmatpush1.bf16.msra.mxu0 %v5531
        %5923 = vmatprep.subr.bf16.mxu0 %v5630
        %5924 = vmatpush1.bf16.msra.mxu0 %v5627
        %5925 = vmatprep.subr.bf16.mxu0 0
        %5926 = vmatpush1.bf16.msra.mxu0 0
        %5927 = vmatprep.subr.bf16.mxu0 0
        %5928 = vmatpush1.bf16.msra.mxu0 0
        %5929 = vmatprep.subr.bf16.mxu0 0
        %5930 = vmatpush1.bf16.msra.mxu0 0
        %5931 = vmatprep.subr.bf16.mxu0 0
        %5932 = vmatpush1.bf16.msra.mxu0 0
        %5933 = vmatprep.subr.bf16.mxu0 0
        %5934 = vmatpush1.bf16.msra.mxu0 0
        %5935 = vmatprep.subr.bf16.mxu0 0
        %5936 = vmatpush1.bf16.msra.mxu0 0
        %5937 = vmatprep.subr.bf16.mxu0 0
        %5938 = vmatpush1.bf16.msra.mxu0 0
        %5939 = vmatprep.subr.bf16.mxu0 0
        %5940 = vmatpush1.bf16.msra.mxu0 0
        %5941 = vmatprep.subr.bf16.mxu0 0
        %5942 = vmatpush1.bf16.msra.mxu0 0
        %5943 = vmatprep.subr.bf16.mxu0 0
        %5944 = vmatpush1.bf16.msra.mxu0 0
        %5945 = vmatprep.subr.bf16.mxu0 0
        %5946 = vmatpush1.bf16.msra.mxu0 0
        %5947 = vmatprep.subr.bf16.mxu0 0
        %5948 = vmatpush1.bf16.msra.mxu0 0
        %5949 = vmatprep.subr.bf16.mxu0 0
        %5950 = vmatpush1.bf16.msra.mxu0 0
        %5951 = vmatprep.mubr.bf16.mxu0 0
        %5952 = vmatmul.mubr.bf16.gmra.mrb[0].mxu0 %v5582
        %v5953 = vpop.f32.mrb[0].mxu0
        %v5954 = vadd.f32 %v5379, %v5953
        %v5955 = vpop.f32.mrb[0].mxu0
        %v5956 = vadd.f32 %v5379, %v5955
        %v5957 = vpop.f32.mrb[0].mxu0
        %v5958 = vpop.f32.mrb[0].mxu0
        %5959 = vdwg.mxu0
        %v5960 = vld [vmem:[%s250] sm:$0xff]
        %v5961 = vld [vmem:[%s250 + $0x8] sm:$0xff]
        %v5962 = vld [vmem:[%s250 + $0x10] sm:$0xff]
        %v5963 = vld [vmem:[%s250 + $0x18] sm:$0xff]
        %v5964 = vld [vmem:[%s250 + $0x20] sm:$0xff]
        %v5965 = vld [vmem:[%s250 + $0x28] sm:$0xff]
        %v5966 = vld [vmem:[%s250 + $0x30] sm:$0xff]
        %v5967 = vld [vmem:[%s250 + $0x38] sm:$0xff]
        %v5976 = vcombine.high %v5960, %v5960
        %v5977 = vcombine.high %v5961, %v5961
        %v5978 = vcombine.high %v5962, %v5962
        %v5979 = vcombine.high %v5963, %v5963
        %v5980 = vcombine.high %v5964, %v5964
        %v5981 = vcombine.high %v5965, %v5965
        %v5982 = vcombine.high %v5966, %v5966
        %v5983 = vcombine.high %v5967, %v5967
        %v5992 = vadd.f32 %v5667, %v5960
        %v5993 = vadd.f32 %v5669, %v5976
        %v5994 = vadd.f32 %v5708, %v5961
        %v5995 = vadd.f32 %v5710, %v5977
        %v5996 = vadd.f32 %v5749, %v5962
        %v5997 = vadd.f32 %v5751, %v5978
        %v5998 = vadd.f32 %v5790, %v5963
        %v5999 = vadd.f32 %v5792, %v5979
        %v6000 = vadd.f32 %v5831, %v5964
        %v6001 = vadd.f32 %v5833, %v5980
        %v6002 = vadd.f32 %v5872, %v5965
        %v6003 = vadd.f32 %v5874, %v5981
        %v6004 = vadd.f32 %v5913, %v5966
        %v6005 = vadd.f32 %v5915, %v5982
        %v6006 = vadd.f32 %v5954, %v5967
        %v6007 = vadd.f32 %v5956, %v5983
        %v6008 = vmax.f32 %v5992, 0.0
        %v6009 = vmax.f32 %v5993, 0.0
        %v6010 = vmax.f32 %v5994, 0.0
        %v6011 = vmax.f32 %v5995, 0.0
        %v6012 = vmax.f32 %v5996, 0.0
        %v6013 = vmax.f32 %v5997, 0.0
        %v6014 = vmax.f32 %v5998, 0.0
        %v6015 = vmax.f32 %v5999, 0.0
        %v6016 = vmax.f32 %v6000, 0.0
        %v6017 = vmax.f32 %v6001, 0.0
        %v6018 = vmax.f32 %v6002, 0.0
        %v6019 = vmax.f32 %v6003, 0.0
        %v6020 = vmax.f32 %v6004, 0.0
        %v6021 = vmax.f32 %v6005, 0.0
        %v6022 = vmax.f32 %v6006, 0.0
        %v6023 = vmax.f32 %v6007, 0.0
        %v6040 = vcombine.low %v6008, %v6009
        %v6041 = vcombine.low %v6010, %v6011
        %v6042 = vcombine.low %v6012, %v6013
        %v6043 = vcombine.low %v6014, %v6015
        %v6044 = vcombine.low %v6016, %v6017
        %v6045 = vcombine.low %v6018, %v6019
        %v6046 = vcombine.low %v6020, %v6021
        %v6047 = vcombine.low %v6022, %v6023
        %v6056 = vadd.f32 %v5324, %v6040
        %v6057 = vadd.f32 %v5325, %v6041
        %v6058 = vadd.f32 %v5326, %v6042
        %v6059 = vadd.f32 %v5327, %v6043
        %v6060 = vadd.f32 %v5328, %v6044
        %v6061 = vadd.f32 %v5329, %v6045
        %v6062 = vadd.f32 %v5330, %v6046
        %v6063 = vadd.f32 %v5331, %v6047
        %6064 = vst [vmem:[%s282] sm:$0xff] %v6056
        %6065 = vst [vmem:[%s282 + $0x8] sm:$0xff] %v6057
        %6066 = vst [vmem:[%s282 + $0x10] sm:$0xff] %v6058
        %6067 = vst [vmem:[%s282 + $0x18] sm:$0xff] %v6059
        %6068 = vst [vmem:[%s282 + $0x20] sm:$0xff] %v6060
        %6069 = vst [vmem:[%s282 + $0x28] sm:$0xff] %v6061
        %6070 = vst [vmem:[%s282 + $0x30] sm:$0xff] %v6062
        %6071 = vst [vmem:[%s282 + $0x38] sm:$0xff] %v6063
        %v6072 = vld [vmem:[%s282] sm:$0xff]
        %v6073 = vld [vmem:[%s282 + $0x8] sm:$0xff]
        %v6074 = vld [vmem:[%s282 + $0x10] sm:$0xff]
        %v6075 = vld [vmem:[%s282 + $0x18] sm:$0xff]
        %v6076 = vld [vmem:[%s282 + $0x20] sm:$0xff]
        %v6077 = vld [vmem:[%s282 + $0x28] sm:$0xff]
        %v6078 = vld [vmem:[%s282 + $0x30] sm:$0xff]
        %v6079 = vld [vmem:[%s282 + $0x38] sm:$0xff]
        %v6088 = vcombine.high %v6072, %v6072
        %v6089 = vcombine.high %v6073, %v6073
        %v6090 = vcombine.high %v6074, %v6074
        %v6091 = vcombine.high %v6075, %v6075
        %v6092 = vcombine.high %v6076, %v6076
        %v6093 = vcombine.high %v6077, %v6077
        %v6094 = vcombine.high %v6078, %v6078
        %v6095 = vcombine.high %v6079, %v6079
        %6104 = vrot.lane.b32.xlu0 %v6072, 17
        %v6105 = vpop.permute.xlu0 %6104
        %6106 = vrot.lane.b32.xlu0 %v6088, 17
        %v6107 = vpop.permute.xlu0 %6106
        %6108 = vrot.lane.b32.xlu0 %v6073, 17
        %v6109 = vpop.permute.xlu0 %6108
        %6110 = vrot.lane.b32.xlu0 %v6089, 17
        %v6111 = vpop.permute.xlu0 %6110
        %6112 = vrot.lane.b32.xlu0 %v6074, 17
        %v6113 = vpop.permute.xlu0 %6112
        %6114 = vrot.lane.b32.xlu0 %v6090, 17
        %v6115 = vpop.permute.xlu0 %6114
        %6116 = vrot.lane.b32.xlu0 %v6075, 17
        %v6117 = vpop.permute.xlu0 %6116
        %6118 = vrot.lane.b32.xlu0 %v6091, 17
        %v6119 = vpop.permute.xlu0 %6118
        %6120 = vrot.lane.b32.xlu0 %v6076, 17
        %v6121 = vpop.permute.xlu0 %6120
        %6122 = vrot.lane.b32.xlu0 %v6092, 17
        %v6123 = vpop.permute.xlu0 %6122
        %6124 = vrot.lane.b32.xlu0 %v6077, 17
        %v6125 = vpop.permute.xlu0 %6124
        %6126 = vrot.lane.b32.xlu0 %v6093, 17
        %v6127 = vpop.permute.xlu0 %6126
        %6128 = vrot.lane.b32.xlu0 %v6078, 17
        %v6129 = vpop.permute.xlu0 %6128
        %6130 = vrot.lane.b32.xlu0 %v6094, 17
        %v6131 = vpop.permute.xlu0 %6130
        %6132 = vrot.lane.b32.xlu0 %v6079, 17
        %v6133 = vpop.permute.xlu0 %6132
        %6134 = vrot.lane.b32.xlu0 %v6095, 17
        %v6135 = vpop.permute.xlu0 %6134
        %v6136 = vsel %vm365, %v6133, %v6135
        %v6137 = vsel %vm365, %v6131, %v6133
        %v6138 = vsel %vm365, %v6129, %v6131
        %v6139 = vsel %vm365, %v6127, %v6129
        %v6140 = vsel %vm365, %v6125, %v6127
        %v6141 = vsel %vm365, %v6123, %v6125
        %v6142 = vsel %vm365, %v6121, %v6123
        %v6143 = vsel %vm365, %v6119, %v6121
        %v6144 = vsel %vm365, %v6117, %v6119
        %v6145 = vsel %vm365, %v6115, %v6117
        %v6146 = vsel %vm365, %v6113, %v6115
        %v6147 = vsel %vm365, %v6111, %v6113
        %v6148 = vsel %vm365, %v6109, %v6111
        %v6149 = vsel %vm365, %v6107, %v6109
        %v6150 = vsel %vm365, %v6105, %v6107
        %v6151 = vsel %vm365, %v6135, %v6105
        %v6152 = vld [vmem:[#allocation6] sm:$0xf]
        %v6153 = vld [vmem:[#allocation6 + $0x8] sm:$0xf]
        %v6154 = vld [vmem:[#allocation6 + $0x10] sm:$0xf]
        %v6155 = vld [vmem:[#allocation6 + $0x18] sm:$0xf]
        %v6156 = vld [vmem:[#allocation6 + $0x20] sm:$0xf]
        %v6157 = vld [vmem:[#allocation6 + $0x28] sm:$0xf]
        %v6158 = vld [vmem:[#allocation6 + $0x30] sm:$0xf]
        %v6159 = vld [vmem:[#allocation6 + $0x38] sm:$0xf]
        %v6160 = vld [vmem:[#allocation6 + $0x40] sm:$0xf]
        %v6161 = vld [vmem:[#allocation6 + $0x48] sm:$0xf]
        %v6162 = vld [vmem:[#allocation6 + $0x50] sm:$0xf]
        %v6163 = vld [vmem:[#allocation6 + $0x58] sm:$0xf]
        %v6164 = vld [vmem:[#allocation6 + $0x60] sm:$0xf]
        %v6165 = vld [vmem:[#allocation6 + $0x68] sm:$0xf]
        %v6166 = vld [vmem:[#allocation6 + $0x70] sm:$0xf]
        %v6167 = vld [vmem:[#allocation6 + $0x78] sm:$0xf]
        %v6168 = vmul.f32 %v6151, %v6152
        %v6169 = vmul.f32 %v6150, %v6153
        %v6170 = vmul.f32 %v6149, %v6154
        %v6171 = vmul.f32 %v6148, %v6155
        %v6172 = vmul.f32 %v6147, %v6156
        %v6173 = vmul.f32 %v6146, %v6157
        %v6174 = vmul.f32 %v6145, %v6158
        %v6175 = vmul.f32 %v6144, %v6159
        %v6176 = vmul.f32 %v6143, %v6160
        %v6177 = vmul.f32 %v6142, %v6161
        %v6178 = vmul.f32 %v6141, %v6162
        %v6179 = vmul.f32 %v6140, %v6163
        %v6180 = vmul.f32 %v6139, %v6164
        %v6181 = vmul.f32 %v6138, %v6165
        %v6182 = vmul.f32 %v6137, %v6166
        %v6183 = vmul.f32 %v6136, %v6167
        %v6184 = vpack.c.bf16 %v6168, %v6168
        %v6185 = vpack.c.bf16 %v6169, %v6169
        %v6186 = vpack.c.bf16 %v6170, %v6170
        %v6187 = vpack.c.bf16 %v6171, %v6171
        %v6188 = vpack.c.bf16 %v6172, %v6172
        %v6189 = vpack.c.bf16 %v6173, %v6173
        %v6190 = vpack.c.bf16 %v6174, %v6174
        %v6191 = vpack.c.bf16 %v6175, %v6175
        %v6192 = vpack.c.bf16 %v6176, %v6176
        %v6193 = vpack.c.bf16 %v6177, %v6177
        %v6194 = vpack.c.bf16 %v6178, %v6178
        %v6195 = vpack.c.bf16 %v6179, %v6179
        %v6196 = vpack.c.bf16 %v6180, %v6180
        %v6197 = vpack.c.bf16 %v6181, %v6181
        %v6198 = vpack.c.bf16 %v6182, %v6182
        %v6199 = vpack.c.bf16 %v6183, %v6183
        %v6216 = vunpack.c.l.b16 %v6184
        %v6217 = vunpack.c.l.b16 %v6185
        %v6218 = vunpack.c.l.b16 %v6186
        %v6219 = vunpack.c.l.b16 %v6187
        %v6220 = vunpack.c.l.b16 %v6188
        %v6221 = vunpack.c.l.b16 %v6189
        %v6222 = vunpack.c.l.b16 %v6190
        %v6223 = vunpack.c.l.b16 %v6191
        %v6224 = vunpack.c.l.b16 %v6192
        %v6225 = vunpack.c.l.b16 %v6193
        %v6226 = vunpack.c.l.b16 %v6194
        %v6227 = vunpack.c.l.b16 %v6195
        %v6228 = vunpack.c.l.b16 %v6196
        %v6229 = vunpack.c.l.b16 %v6197
        %v6230 = vunpack.c.l.b16 %v6198
        %v6231 = vunpack.c.l.b16 %v6199
        %v6232 = vpack.c.b16 %v6217, %v6216
        %v6233 = vpack.c.b16 %v6219, %v6218
        %v6234 = vpack.c.b16 %v6221, %v6220
        %v6235 = vpack.c.b16 %v6223, %v6222
        %v6236 = vpack.c.b16 %v6225, %v6224
        %v6237 = vpack.c.b16 %v6227, %v6226
        %v6238 = vpack.c.b16 %v6229, %v6228
        %v6239 = vpack.c.b16 %v6231, %v6230
        %6248 = vst [vmem:[#allocation2] sm:$0x33] %v6232
        %6249 = vst [vmem:[#allocation2 + $0x8] sm:$0x33] %v6233
        %6250 = vst [vmem:[#allocation2 + $0x10] sm:$0x33] %v6234
        %6251 = vst [vmem:[#allocation2 + $0x18] sm:$0x33] %v6235
        %6252 = vst [vmem:[#allocation2 + $0x20] sm:$0x33] %v6236
        %6253 = vst [vmem:[#allocation2 + $0x28] sm:$0x33] %v6237
        %6254 = vst [vmem:[#allocation2 + $0x30] sm:$0x33] %v6238
        %6255 = vst [vmem:[#allocation2 + $0x38] sm:$0x33] %v6239
        %6256 = vrot.lane.b32.xlu0 %v6072, 16
        %v6257 = vpop.permute.xlu0 %6256
        %6258 = vrot.lane.b32.xlu0 %v6088, 16
        %v6259 = vpop.permute.xlu0 %6258
        %6260 = vrot.lane.b32.xlu0 %v6073, 16
        %v6261 = vpop.permute.xlu0 %6260
        %6262 = vrot.lane.b32.xlu0 %v6089, 16
        %v6263 = vpop.permute.xlu0 %6262
        %6264 = vrot.lane.b32.xlu0 %v6074, 16
        %v6265 = vpop.permute.xlu0 %6264
        %6266 = vrot.lane.b32.xlu0 %v6090, 16
        %v6267 = vpop.permute.xlu0 %6266
        %6268 = vrot.lane.b32.xlu0 %v6075, 16
        %v6269 = vpop.permute.xlu0 %6268
        %6270 = vrot.lane.b32.xlu0 %v6091, 16
        %v6271 = vpop.permute.xlu0 %6270
        %6272 = vrot.lane.b32.xlu0 %v6076, 16
        %v6273 = vpop.permute.xlu0 %6272
        %6274 = vrot.lane.b32.xlu0 %v6092, 16
        %v6275 = vpop.permute.xlu0 %6274
        %6276 = vrot.lane.b32.xlu0 %v6077, 16
        %v6277 = vpop.permute.xlu0 %6276
        %6278 = vrot.lane.b32.xlu0 %v6093, 16
        %v6279 = vpop.permute.xlu0 %6278
        %6280 = vrot.lane.b32.xlu0 %v6078, 16
        %v6281 = vpop.permute.xlu0 %6280
        %6282 = vrot.lane.b32.xlu0 %v6094, 16
        %v6283 = vpop.permute.xlu0 %6282
        %6284 = vrot.lane.b32.xlu0 %v6079, 16
        %v6285 = vpop.permute.xlu0 %6284
        %6286 = vrot.lane.b32.xlu0 %v6095, 16
        %v6287 = vpop.permute.xlu0 %6286
        %v6288 = vsel %vm545, %v6285, %v6287
        %v6289 = vsel %vm545, %v6283, %v6285
        %v6290 = vsel %vm545, %v6281, %v6283
        %v6291 = vsel %vm545, %v6279, %v6281
        %v6292 = vsel %vm545, %v6277, %v6279
        %v6293 = vsel %vm545, %v6275, %v6277
        %v6294 = vsel %vm545, %v6273, %v6275
        %v6295 = vsel %vm545, %v6271, %v6273
        %v6296 = vsel %vm545, %v6269, %v6271
        %v6297 = vsel %vm545, %v6267, %v6269
        %v6298 = vsel %vm545, %v6265, %v6267
        %v6299 = vsel %vm545, %v6263, %v6265
        %v6300 = vsel %vm545, %v6261, %v6263
        %v6301 = vsel %vm545, %v6259, %v6261
        %v6302 = vsel %vm545, %v6257, %v6259
        %v6303 = vsel %vm545, %v6287, %v6257
        %v6304 = vld [vmem:[#allocation6] sm:$0xf0]
        %v6305 = vld [vmem:[#allocation6 + $0x8] sm:$0xf0]
        %v6306 = vld [vmem:[#allocation6 + $0x10] sm:$0xf0]
        %v6307 = vld [vmem:[#allocation6 + $0x18] sm:$0xf0]
        %v6308 = vld [vmem:[#allocation6 + $0x20] sm:$0xf0]
        %v6309 = vld [vmem:[#allocation6 + $0x28] sm:$0xf0]
        %v6310 = vld [vmem:[#allocation6 + $0x30] sm:$0xf0]
        %v6311 = vld [vmem:[#allocation6 + $0x38] sm:$0xf0]
        %v6312 = vld [vmem:[#allocation6 + $0x40] sm:$0xf0]
        %v6313 = vld [vmem:[#allocation6 + $0x48] sm:$0xf0]
        %v6314 = vld [vmem:[#allocation6 + $0x50] sm:$0xf0]
        %v6315 = vld [vmem:[#allocation6 + $0x58] sm:$0xf0]
        %v6316 = vld [vmem:[#allocation6 + $0x60] sm:$0xf0]
        %v6317 = vld [vmem:[#allocation6 + $0x68] sm:$0xf0]
        %v6318 = vld [vmem:[#allocation6 + $0x70] sm:$0xf0]
        %v6319 = vld [vmem:[#allocation6 + $0x78] sm:$0xf0]
        %v6336 = vrot.slane %v6304, 4
        %v6337 = vrot.slane %v6305, 4
        %v6338 = vrot.slane %v6306, 4
        %v6339 = vrot.slane %v6307, 4
        %v6340 = vrot.slane %v6308, 4
        %v6341 = vrot.slane %v6309, 4
        %v6342 = vrot.slane %v6310, 4
        %v6343 = vrot.slane %v6311, 4
        %v6344 = vrot.slane %v6312, 4
        %v6345 = vrot.slane %v6313, 4
        %v6346 = vrot.slane %v6314, 4
        %v6347 = vrot.slane %v6315, 4
        %v6348 = vrot.slane %v6316, 4
        %v6349 = vrot.slane %v6317, 4
        %v6350 = vrot.slane %v6318, 4
        %v6351 = vrot.slane %v6319, 4
        %v6368 = vmul.f32 %v6303, %v6336
        %v6369 = vmul.f32 %v6302, %v6337
        %v6370 = vmul.f32 %v6301, %v6338
        %v6371 = vmul.f32 %v6300, %v6339
        %v6372 = vmul.f32 %v6299, %v6340
        %v6373 = vmul.f32 %v6298, %v6341
        %v6374 = vmul.f32 %v6297, %v6342
        %v6375 = vmul.f32 %v6296, %v6343
        %v6376 = vmul.f32 %v6295, %v6344
        %v6377 = vmul.f32 %v6294, %v6345
        %v6378 = vmul.f32 %v6293, %v6346
        %v6379 = vmul.f32 %v6292, %v6347
        %v6380 = vmul.f32 %v6291, %v6348
        %v6381 = vmul.f32 %v6290, %v6349
        %v6382 = vmul.f32 %v6289, %v6350
        %v6383 = vmul.f32 %v6288, %v6351
        %v6384 = vpack.c.bf16 %v6368, %v6368
        %v6385 = vpack.c.bf16 %v6369, %v6369
        %v6386 = vpack.c.bf16 %v6370, %v6370
        %v6387 = vpack.c.bf16 %v6371, %v6371
        %v6388 = vpack.c.bf16 %v6372, %v6372
        %v6389 = vpack.c.bf16 %v6373, %v6373
        %v6390 = vpack.c.bf16 %v6374, %v6374
        %v6391 = vpack.c.bf16 %v6375, %v6375
        %v6392 = vpack.c.bf16 %v6376, %v6376
        %v6393 = vpack.c.bf16 %v6377, %v6377
        %v6394 = vpack.c.bf16 %v6378, %v6378
        %v6395 = vpack.c.bf16 %v6379, %v6379
        %v6396 = vpack.c.bf16 %v6380, %v6380
        %v6397 = vpack.c.bf16 %v6381, %v6381
        %v6398 = vpack.c.bf16 %v6382, %v6382
        %v6399 = vpack.c.bf16 %v6383, %v6383
        %v6416 = vunpack.c.l.b16 %v6384
        %v6417 = vunpack.c.l.b16 %v6385
        %v6418 = vunpack.c.l.b16 %v6386
        %v6419 = vunpack.c.l.b16 %v6387
        %v6420 = vunpack.c.l.b16 %v6388
        %v6421 = vunpack.c.l.b16 %v6389
        %v6422 = vunpack.c.l.b16 %v6390
        %v6423 = vunpack.c.l.b16 %v6391
        %v6424 = vunpack.c.l.b16 %v6392
        %v6425 = vunpack.c.l.b16 %v6393
        %v6426 = vunpack.c.l.b16 %v6394
        %v6427 = vunpack.c.l.b16 %v6395
        %v6428 = vunpack.c.l.b16 %v6396
        %v6429 = vunpack.c.l.b16 %v6397
        %v6430 = vunpack.c.l.b16 %v6398
        %v6431 = vunpack.c.l.b16 %v6399
        %v6432 = vpack.c.b16 %v6417, %v6416
        %v6433 = vpack.c.b16 %v6419, %v6418
        %v6434 = vpack.c.b16 %v6421, %v6420
        %v6435 = vpack.c.b16 %v6423, %v6422
        %v6436 = vpack.c.b16 %v6425, %v6424
        %v6437 = vpack.c.b16 %v6427, %v6426
        %v6438 = vpack.c.b16 %v6429, %v6428
        %v6439 = vpack.c.b16 %v6431, %v6430
        %v6440 = vrot.slane %v6432, 6
        %v6441 = vrot.slane %v6433, 6
        %v6442 = vrot.slane %v6434, 6
        %v6443 = vrot.slane %v6435, 6
        %v6444 = vrot.slane %v6436, 6
        %v6445 = vrot.slane %v6437, 6
        %v6446 = vrot.slane %v6438, 6
        %v6447 = vrot.slane %v6439, 6
        %6456 = vst [vmem:[#allocation2] sm:$0xcc] %v6440
        %6457 = vst [vmem:[#allocation2 + $0x8] sm:$0xcc] %v6441
        %6458 = vst [vmem:[#allocation2 + $0x10] sm:$0xcc] %v6442
        %6459 = vst [vmem:[#allocation2 + $0x18] sm:$0xcc] %v6443
        %6460 = vst [vmem:[#allocation2 + $0x20] sm:$0xcc] %v6444
        %6461 = vst [vmem:[#allocation2 + $0x28] sm:$0xcc] %v6445
        %6462 = vst [vmem:[#allocation2 + $0x30] sm:$0xcc] %v6446
        %6463 = vst [vmem:[#allocation2 + $0x38] sm:$0xcc] %v6447
        %6464 = vrot.lane.b32.xlu0 %v6072, 15
        %v6465 = vpop.permute.xlu0 %6464
        %6466 = vrot.lane.b32.xlu0 %v6088, 15
        %v6467 = vpop.permute.xlu0 %6466
        %6468 = vrot.lane.b32.xlu0 %v6073, 15
        %v6469 = vpop.permute.xlu0 %6468
        %6470 = vrot.lane.b32.xlu0 %v6089, 15
        %v6471 = vpop.permute.xlu0 %6470
        %6472 = vrot.lane.b32.xlu0 %v6074, 15
        %v6473 = vpop.permute.xlu0 %6472
        %6474 = vrot.lane.b32.xlu0 %v6090, 15
        %v6475 = vpop.permute.xlu0 %6474
        %6476 = vrot.lane.b32.xlu0 %v6075, 15
        %v6477 = vpop.permute.xlu0 %6476
        %6478 = vrot.lane.b32.xlu0 %v6091, 15
        %v6479 = vpop.permute.xlu0 %6478
        %6480 = vrot.lane.b32.xlu0 %v6076, 15
        %v6481 = vpop.permute.xlu0 %6480
        %6482 = vrot.lane.b32.xlu0 %v6092, 15
        %v6483 = vpop.permute.xlu0 %6482
        %6484 = vrot.lane.b32.xlu0 %v6077, 15
        %v6485 = vpop.permute.xlu0 %6484
        %6486 = vrot.lane.b32.xlu0 %v6093, 15
        %v6487 = vpop.permute.xlu0 %6486
        %6488 = vrot.lane.b32.xlu0 %v6078, 15
        %v6489 = vpop.permute.xlu0 %6488
        %6490 = vrot.lane.b32.xlu0 %v6094, 15
        %v6491 = vpop.permute.xlu0 %6490
        %6492 = vrot.lane.b32.xlu0 %v6079, 15
        %v6493 = vpop.permute.xlu0 %6492
        %6494 = vrot.lane.b32.xlu0 %v6095, 15
        %v6495 = vpop.permute.xlu0 %6494
        %v6496 = vsel %vm774, %v6493, %v6495
        %v6497 = vsel %vm774, %v6491, %v6493
        %v6498 = vsel %vm774, %v6489, %v6491
        %v6499 = vsel %vm774, %v6487, %v6489
        %v6500 = vsel %vm774, %v6485, %v6487
        %v6501 = vsel %vm774, %v6483, %v6485
        %v6502 = vsel %vm774, %v6481, %v6483
        %v6503 = vsel %vm774, %v6479, %v6481
        %v6504 = vsel %vm774, %v6477, %v6479
        %v6505 = vsel %vm774, %v6475, %v6477
        %v6506 = vsel %vm774, %v6473, %v6475
        %v6507 = vsel %vm774, %v6471, %v6473
        %v6508 = vsel %vm774, %v6469, %v6471
        %v6509 = vsel %vm774, %v6467, %v6469
        %v6510 = vsel %vm774, %v6465, %v6467
        %v6511 = vsel %vm774, %v6495, %v6465
        %v6512 = vld [vmem:[#allocation6 + $0x80] sm:$0xf]
        %v6513 = vld [vmem:[#allocation6 + $0x88] sm:$0xf]
        %v6514 = vld [vmem:[#allocation6 + $0x90] sm:$0xf]
        %v6515 = vld [vmem:[#allocation6 + $0x98] sm:$0xf]
        %v6516 = vld [vmem:[#allocation6 + $0xa0] sm:$0xf]
        %v6517 = vld [vmem:[#allocation6 + $0xa8] sm:$0xf]
        %v6518 = vld [vmem:[#allocation6 + $0xb0] sm:$0xf]
        %v6519 = vld [vmem:[#allocation6 + $0xb8] sm:$0xf]
        %v6520 = vld [vmem:[#allocation6 + $0xc0] sm:$0xf]
        %v6521 = vld [vmem:[#allocation6 + $0xc8] sm:$0xf]
        %v6522 = vld [vmem:[#allocation6 + $0xd0] sm:$0xf]
        %v6523 = vld [vmem:[#allocation6 + $0xd8] sm:$0xf]
        %v6524 = vld [vmem:[#allocation6 + $0xe0] sm:$0xf]
        %v6525 = vld [vmem:[#allocation6 + $0xe8] sm:$0xf]
        %v6526 = vld [vmem:[#allocation6 + $0xf0] sm:$0xf]
        %v6527 = vld [vmem:[#allocation6 + $0xf8] sm:$0xf]
        %v6528 = vmul.f32 %v6511, %v6512
        %v6529 = vmul.f32 %v6510, %v6513
        %v6530 = vmul.f32 %v6509, %v6514
        %v6531 = vmul.f32 %v6508, %v6515
        %v6532 = vmul.f32 %v6507, %v6516
        %v6533 = vmul.f32 %v6506, %v6517
        %v6534 = vmul.f32 %v6505, %v6518
        %v6535 = vmul.f32 %v6504, %v6519
        %v6536 = vmul.f32 %v6503, %v6520
        %v6537 = vmul.f32 %v6502, %v6521
        %v6538 = vmul.f32 %v6501, %v6522
        %v6539 = vmul.f32 %v6500, %v6523
        %v6540 = vmul.f32 %v6499, %v6524
        %v6541 = vmul.f32 %v6498, %v6525
        %v6542 = vmul.f32 %v6497, %v6526
        %v6543 = vmul.f32 %v6496, %v6527
        %v6544 = vpack.c.bf16 %v6528, %v6528
        %v6545 = vpack.c.bf16 %v6529, %v6529
        %v6546 = vpack.c.bf16 %v6530, %v6530
        %v6547 = vpack.c.bf16 %v6531, %v6531
        %v6548 = vpack.c.bf16 %v6532, %v6532
        %v6549 = vpack.c.bf16 %v6533, %v6533
        %v6550 = vpack.c.bf16 %v6534, %v6534
        %v6551 = vpack.c.bf16 %v6535, %v6535
        %v6552 = vpack.c.bf16 %v6536, %v6536
        %v6553 = vpack.c.bf16 %v6537, %v6537
        %v6554 = vpack.c.bf16 %v6538, %v6538
        %v6555 = vpack.c.bf16 %v6539, %v6539
        %v6556 = vpack.c.bf16 %v6540, %v6540
        %v6557 = vpack.c.bf16 %v6541, %v6541
        %v6558 = vpack.c.bf16 %v6542, %v6542
        %v6559 = vpack.c.bf16 %v6543, %v6543
        %v6576 = vunpack.c.l.b16 %v6544
        %v6577 = vunpack.c.l.b16 %v6545
        %v6578 = vunpack.c.l.b16 %v6546
        %v6579 = vunpack.c.l.b16 %v6547
        %v6580 = vunpack.c.l.b16 %v6548
        %v6581 = vunpack.c.l.b16 %v6549
        %v6582 = vunpack.c.l.b16 %v6550
        %v6583 = vunpack.c.l.b16 %v6551
        %v6584 = vunpack.c.l.b16 %v6552
        %v6585 = vunpack.c.l.b16 %v6553
        %v6586 = vunpack.c.l.b16 %v6554
        %v6587 = vunpack.c.l.b16 %v6555
        %v6588 = vunpack.c.l.b16 %v6556
        %v6589 = vunpack.c.l.b16 %v6557
        %v6590 = vunpack.c.l.b16 %v6558
        %v6591 = vunpack.c.l.b16 %v6559
        %v6592 = vpack.c.b16 %v6577, %v6576
        %v6593 = vpack.c.b16 %v6579, %v6578
        %v6594 = vpack.c.b16 %v6581, %v6580
        %v6595 = vpack.c.b16 %v6583, %v6582
        %v6596 = vpack.c.b16 %v6585, %v6584
        %v6597 = vpack.c.b16 %v6587, %v6586
        %v6598 = vpack.c.b16 %v6589, %v6588
        %v6599 = vpack.c.b16 %v6591, %v6590
        %6608 = vst [vmem:[#allocation2 + $0x40] sm:$0x33] %v6592
        %6609 = vst [vmem:[#allocation2 + $0x48] sm:$0x33] %v6593
        %6610 = vst [vmem:[#allocation2 + $0x50] sm:$0x33] %v6594
        %6611 = vst [vmem:[#allocation2 + $0x58] sm:$0x33] %v6595
        %6612 = vst [vmem:[#allocation2 + $0x60] sm:$0x33] %v6596
        %6613 = vst [vmem:[#allocation2 + $0x68] sm:$0x33] %v6597
        %6614 = vst [vmem:[#allocation2 + $0x70] sm:$0x33] %v6598
        %6615 = vst [vmem:[#allocation2 + $0x78] sm:$0x33] %v6599
        %6616 = vrot.lane.b32.xlu0 %v6072, 1
        %v6617 = vpop.permute.xlu0 %6616
        %6618 = vrot.lane.b32.xlu0 %v6088, 1
        %v6619 = vpop.permute.xlu0 %6618
        %6620 = vrot.lane.b32.xlu0 %v6073, 1
        %v6621 = vpop.permute.xlu0 %6620
        %6622 = vrot.lane.b32.xlu0 %v6089, 1
        %v6623 = vpop.permute.xlu0 %6622
        %6624 = vrot.lane.b32.xlu0 %v6074, 1
        %v6625 = vpop.permute.xlu0 %6624
        %6626 = vrot.lane.b32.xlu0 %v6090, 1
        %v6627 = vpop.permute.xlu0 %6626
        %6628 = vrot.lane.b32.xlu0 %v6075, 1
        %v6629 = vpop.permute.xlu0 %6628
        %6630 = vrot.lane.b32.xlu0 %v6091, 1
        %v6631 = vpop.permute.xlu0 %6630
        %6632 = vrot.lane.b32.xlu0 %v6076, 1
        %v6633 = vpop.permute.xlu0 %6632
        %6634 = vrot.lane.b32.xlu0 %v6092, 1
        %v6635 = vpop.permute.xlu0 %6634
        %6636 = vrot.lane.b32.xlu0 %v6077, 1
        %v6637 = vpop.permute.xlu0 %6636
        %6638 = vrot.lane.b32.xlu0 %v6093, 1
        %v6639 = vpop.permute.xlu0 %6638
        %6640 = vrot.lane.b32.xlu0 %v6078, 1
        %v6641 = vpop.permute.xlu0 %6640
        %6642 = vrot.lane.b32.xlu0 %v6094, 1
        %v6643 = vpop.permute.xlu0 %6642
        %6644 = vrot.lane.b32.xlu0 %v6079, 1
        %v6645 = vpop.permute.xlu0 %6644
        %6646 = vrot.lane.b32.xlu0 %v6095, 1
        %v6647 = vpop.permute.xlu0 %6646
        %v6648 = vsel %vm954, %v6645, %v6647
        %v6649 = vsel %vm954, %v6643, %v6645
        %v6650 = vsel %vm954, %v6641, %v6643
        %v6651 = vsel %vm954, %v6639, %v6641
        %v6652 = vsel %vm954, %v6637, %v6639
        %v6653 = vsel %vm954, %v6635, %v6637
        %v6654 = vsel %vm954, %v6633, %v6635
        %v6655 = vsel %vm954, %v6631, %v6633
        %v6656 = vsel %vm954, %v6629, %v6631
        %v6657 = vsel %vm954, %v6627, %v6629
        %v6658 = vsel %vm954, %v6625, %v6627
        %v6659 = vsel %vm954, %v6623, %v6625
        %v6660 = vsel %vm954, %v6621, %v6623
        %v6661 = vsel %vm954, %v6619, %v6621
        %v6662 = vsel %vm954, %v6617, %v6619
        %v6663 = vsel %vm954, %v6647, %v6617
        %v6664 = vld [vmem:[#allocation6 + $0x80] sm:$0xf0]
        %v6665 = vld [vmem:[#allocation6 + $0x88] sm:$0xf0]
        %v6666 = vld [vmem:[#allocation6 + $0x90] sm:$0xf0]
        %v6667 = vld [vmem:[#allocation6 + $0x98] sm:$0xf0]
        %v6668 = vld [vmem:[#allocation6 + $0xa0] sm:$0xf0]
        %v6669 = vld [vmem:[#allocation6 + $0xa8] sm:$0xf0]
        %v6670 = vld [vmem:[#allocation6 + $0xb0] sm:$0xf0]
        %v6671 = vld [vmem:[#allocation6 + $0xb8] sm:$0xf0]
        %v6672 = vld [vmem:[#allocation6 + $0xc0] sm:$0xf0]
        %v6673 = vld [vmem:[#allocation6 + $0xc8] sm:$0xf0]
        %v6674 = vld [vmem:[#allocation6 + $0xd0] sm:$0xf0]
        %v6675 = vld [vmem:[#allocation6 + $0xd8] sm:$0xf0]
        %v6676 = vld [vmem:[#allocation6 + $0xe0] sm:$0xf0]
        %v6677 = vld [vmem:[#allocation6 + $0xe8] sm:$0xf0]
        %v6678 = vld [vmem:[#allocation6 + $0xf0] sm:$0xf0]
        %v6679 = vld [vmem:[#allocation6 + $0xf8] sm:$0xf0]
        %v6696 = vrot.slane %v6664, 4
        %v6697 = vrot.slane %v6665, 4
        %v6698 = vrot.slane %v6666, 4
        %v6699 = vrot.slane %v6667, 4
        %v6700 = vrot.slane %v6668, 4
        %v6701 = vrot.slane %v6669, 4
        %v6702 = vrot.slane %v6670, 4
        %v6703 = vrot.slane %v6671, 4
        %v6704 = vrot.slane %v6672, 4
        %v6705 = vrot.slane %v6673, 4
        %v6706 = vrot.slane %v6674, 4
        %v6707 = vrot.slane %v6675, 4
        %v6708 = vrot.slane %v6676, 4
        %v6709 = vrot.slane %v6677, 4
        %v6710 = vrot.slane %v6678, 4
        %v6711 = vrot.slane %v6679, 4
        %v6728 = vmul.f32 %v6663, %v6696
        %v6729 = vmul.f32 %v6662, %v6697
        %v6730 = vmul.f32 %v6661, %v6698
        %v6731 = vmul.f32 %v6660, %v6699
        %v6732 = vmul.f32 %v6659, %v6700
        %v6733 = vmul.f32 %v6658, %v6701
        %v6734 = vmul.f32 %v6657, %v6702
        %v6735 = vmul.f32 %v6656, %v6703
        %v6736 = vmul.f32 %v6655, %v6704
        %v6737 = vmul.f32 %v6654, %v6705
        %v6738 = vmul.f32 %v6653, %v6706
        %v6739 = vmul.f32 %v6652, %v6707
        %v6740 = vmul.f32 %v6651, %v6708
        %v6741 = vmul.f32 %v6650, %v6709
        %v6742 = vmul.f32 %v6649, %v6710
        %v6743 = vmul.f32 %v6648, %v6711
        %v6744 = vpack.c.bf16 %v6728, %v6728
        %v6745 = vpack.c.bf16 %v6729, %v6729
        %v6746 = vpack.c.bf16 %v6730, %v6730
        %v6747 = vpack.c.bf16 %v6731, %v6731
        %v6748 = vpack.c.bf16 %v6732, %v6732
        %v6749 = vpack.c.bf16 %v6733, %v6733
        %v6750 = vpack.c.bf16 %v6734, %v6734
        %v6751 = vpack.c.bf16 %v6735, %v6735
        %v6752 = vpack.c.bf16 %v6736, %v6736
        %v6753 = vpack.c.bf16 %v6737, %v6737
        %v6754 = vpack.c.bf16 %v6738, %v6738
        %v6755 = vpack.c.bf16 %v6739, %v6739
        %v6756 = vpack.c.bf16 %v6740, %v6740
        %v6757 = vpack.c.bf16 %v6741, %v6741
        %v6758 = vpack.c.bf16 %v6742, %v6742
        %v6759 = vpack.c.bf16 %v6743, %v6743
        %v6776 = vunpack.c.l.b16 %v6744
        %v6777 = vunpack.c.l.b16 %v6745
        %v6778 = vunpack.c.l.b16 %v6746
        %v6779 = vunpack.c.l.b16 %v6747
        %v6780 = vunpack.c.l.b16 %v6748
        %v6781 = vunpack.c.l.b16 %v6749
        %v6782 = vunpack.c.l.b16 %v6750
        %v6783 = vunpack.c.l.b16 %v6751
        %v6784 = vunpack.c.l.b16 %v6752
        %v6785 = vunpack.c.l.b16 %v6753
        %v6786 = vunpack.c.l.b16 %v6754
        %v6787 = vunpack.c.l.b16 %v6755
        %v6788 = vunpack.c.l.b16 %v6756
        %v6789 = vunpack.c.l.b16 %v6757
        %v6790 = vunpack.c.l.b16 %v6758
        %v6791 = vunpack.c.l.b16 %v6759
        %v6792 = vpack.c.b16 %v6777, %v6776
        %v6793 = vpack.c.b16 %v6779, %v6778
        %v6794 = vpack.c.b16 %v6781, %v6780
        %v6795 = vpack.c.b16 %v6783, %v6782
        %v6796 = vpack.c.b16 %v6785, %v6784
        %v6797 = vpack.c.b16 %v6787, %v6786
        %v6798 = vpack.c.b16 %v6789, %v6788
        %v6799 = vpack.c.b16 %v6791, %v6790
        %v6800 = vrot.slane %v6792, 6
        %v6801 = vrot.slane %v6793, 6
        %v6802 = vrot.slane %v6794, 6
        %v6803 = vrot.slane %v6795, 6
        %v6804 = vrot.slane %v6796, 6
        %v6805 = vrot.slane %v6797, 6
        %v6806 = vrot.slane %v6798, 6
        %v6807 = vrot.slane %v6799, 6
        %6816 = vst [vmem:[#allocation2 + $0x40] sm:$0xcc] %v6800
        %6817 = vst [vmem:[#allocation2 + $0x48] sm:$0xcc] %v6801
        %6818 = vst [vmem:[#allocation2 + $0x50] sm:$0xcc] %v6802
        %6819 = vst [vmem:[#allocation2 + $0x58] sm:$0xcc] %v6803
        %6820 = vst [vmem:[#allocation2 + $0x60] sm:$0xcc] %v6804
        %6821 = vst [vmem:[#allocation2 + $0x68] sm:$0xcc] %v6805
        %6822 = vst [vmem:[#allocation2 + $0x70] sm:$0xcc] %v6806
        %6823 = vst [vmem:[#allocation2 + $0x78] sm:$0xcc] %v6807
        %v6824 = vpack.c.bf16 %v6072, %v6072
        %v6825 = vpack.c.bf16 %v6088, %v6088
        %v6826 = vpack.c.bf16 %v6073, %v6073
        %v6827 = vpack.c.bf16 %v6089, %v6089
        %v6828 = vpack.c.bf16 %v6074, %v6074
        %v6829 = vpack.c.bf16 %v6090, %v6090
        %v6830 = vpack.c.bf16 %v6075, %v6075
        %v6831 = vpack.c.bf16 %v6091, %v6091
        %v6832 = vpack.c.bf16 %v6076, %v6076
        %v6833 = vpack.c.bf16 %v6092, %v6092
        %v6834 = vpack.c.bf16 %v6077, %v6077
        %v6835 = vpack.c.bf16 %v6093, %v6093
        %v6836 = vpack.c.bf16 %v6078, %v6078
        %v6837 = vpack.c.bf16 %v6094, %v6094
        %v6838 = vpack.c.bf16 %v6079, %v6079
        %v6839 = vpack.c.bf16 %v6095, %v6095
        %v6856 = vunpack.c.l.b16 %v6824
        %v6857 = vunpack.c.l.b16 %v6825
        %v6858 = vunpack.c.l.b16 %v6826
        %v6859 = vunpack.c.l.b16 %v6827
        %v6860 = vunpack.c.l.b16 %v6828
        %v6861 = vunpack.c.l.b16 %v6829
        %v6862 = vunpack.c.l.b16 %v6830
        %v6863 = vunpack.c.l.b16 %v6831
        %v6864 = vunpack.c.l.b16 %v6832
        %v6865 = vunpack.c.l.b16 %v6833
        %v6866 = vunpack.c.l.b16 %v6834
        %v6867 = vunpack.c.l.b16 %v6835
        %v6868 = vunpack.c.l.b16 %v6836
        %v6869 = vunpack.c.l.b16 %v6837
        %v6870 = vunpack.c.l.b16 %v6838
        %v6871 = vunpack.c.l.b16 %v6839
        %v6872 = vpack.c.b16 %v6857, %v6856
        %v6873 = vpack.c.b16 %v6859, %v6858
        %v6874 = vpack.c.b16 %v6861, %v6860
        %v6875 = vpack.c.b16 %v6863, %v6862
        %v6876 = vpack.c.b16 %v6865, %v6864
        %v6877 = vpack.c.b16 %v6867, %v6866
        %v6878 = vpack.c.b16 %v6869, %v6868
        %v6879 = vpack.c.b16 %v6871, %v6870
        %6888 = vst [vmem:[#allocation2 + $0x80] sm:$0x33] %v6872
        %6889 = vst [vmem:[#allocation2 + $0x88] sm:$0x33] %v6873
        %6890 = vst [vmem:[#allocation2 + $0x90] sm:$0x33] %v6874
        %6891 = vst [vmem:[#allocation2 + $0x98] sm:$0x33] %v6875
        %6892 = vst [vmem:[#allocation2 + $0xa0] sm:$0x33] %v6876
        %6893 = vst [vmem:[#allocation2 + $0xa8] sm:$0x33] %v6877
        %6894 = vst [vmem:[#allocation2 + $0xb0] sm:$0x33] %v6878
        %6895 = vst [vmem:[#allocation2 + $0xb8] sm:$0x33] %v6879
        %6896 = vrot.lane.b32.xlu0 %v6072, 127
        %v6897 = vpop.permute.xlu0 %6896
        %6898 = vrot.lane.b32.xlu0 %v6088, 127
        %v6899 = vpop.permute.xlu0 %6898
        %6900 = vrot.lane.b32.xlu0 %v6073, 127
        %v6901 = vpop.permute.xlu0 %6900
        %6902 = vrot.lane.b32.xlu0 %v6089, 127
        %v6903 = vpop.permute.xlu0 %6902
        %6904 = vrot.lane.b32.xlu0 %v6074, 127
        %v6905 = vpop.permute.xlu0 %6904
        %6906 = vrot.lane.b32.xlu0 %v6090, 127
        %v6907 = vpop.permute.xlu0 %6906
        %6908 = vrot.lane.b32.xlu0 %v6075, 127
        %v6909 = vpop.permute.xlu0 %6908
        %6910 = vrot.lane.b32.xlu0 %v6091, 127
        %v6911 = vpop.permute.xlu0 %6910
        %6912 = vrot.lane.b32.xlu0 %v6076, 127
        %v6913 = vpop.permute.xlu0 %6912
        %6914 = vrot.lane.b32.xlu0 %v6092, 127
        %v6915 = vpop.permute.xlu0 %6914
        %6916 = vrot.lane.b32.xlu0 %v6077, 127
        %v6917 = vpop.permute.xlu0 %6916
        %6918 = vrot.lane.b32.xlu0 %v6093, 127
        %v6919 = vpop.permute.xlu0 %6918
        %6920 = vrot.lane.b32.xlu0 %v6078, 127
        %v6921 = vpop.permute.xlu0 %6920
        %6922 = vrot.lane.b32.xlu0 %v6094, 127
        %v6923 = vpop.permute.xlu0 %6922
        %6924 = vrot.lane.b32.xlu0 %v6079, 127
        %v6925 = vpop.permute.xlu0 %6924
        %6926 = vrot.lane.b32.xlu0 %v6095, 127
        %v6927 = vpop.permute.xlu0 %6926
        %v6928 = vsel %vm1282, %v6925, %v6927
        %v6929 = vsel %vm1282, %v6923, %v6925
        %v6930 = vsel %vm1282, %v6921, %v6923
        %v6931 = vsel %vm1282, %v6919, %v6921
        %v6932 = vsel %vm1282, %v6917, %v6919
        %v6933 = vsel %vm1282, %v6915, %v6917
        %v6934 = vsel %vm1282, %v6913, %v6915
        %v6935 = vsel %vm1282, %v6911, %v6913
        %v6936 = vsel %vm1282, %v6909, %v6911
        %v6937 = vsel %vm1282, %v6907, %v6909
        %v6938 = vsel %vm1282, %v6905, %v6907
        %v6939 = vsel %vm1282, %v6903, %v6905
        %v6940 = vsel %vm1282, %v6901, %v6903
        %v6941 = vsel %vm1282, %v6899, %v6901
        %v6942 = vsel %vm1282, %v6897, %v6899
        %v6943 = vsel %vm1282, %v6927, %v6897
        %v6944 = vld [vmem:[#allocation6 + $0x100] sm:$0xf0]
        %v6945 = vld [vmem:[#allocation6 + $0x108] sm:$0xf0]
        %v6946 = vld [vmem:[#allocation6 + $0x110] sm:$0xf0]
        %v6947 = vld [vmem:[#allocation6 + $0x118] sm:$0xf0]
        %v6948 = vld [vmem:[#allocation6 + $0x120] sm:$0xf0]
        %v6949 = vld [vmem:[#allocation6 + $0x128] sm:$0xf0]
        %v6950 = vld [vmem:[#allocation6 + $0x130] sm:$0xf0]
        %v6951 = vld [vmem:[#allocation6 + $0x138] sm:$0xf0]
        %v6952 = vld [vmem:[#allocation6 + $0x140] sm:$0xf0]
        %v6953 = vld [vmem:[#allocation6 + $0x148] sm:$0xf0]
        %v6954 = vld [vmem:[#allocation6 + $0x150] sm:$0xf0]
        %v6955 = vld [vmem:[#allocation6 + $0x158] sm:$0xf0]
        %v6956 = vld [vmem:[#allocation6 + $0x160] sm:$0xf0]
        %v6957 = vld [vmem:[#allocation6 + $0x168] sm:$0xf0]
        %v6958 = vld [vmem:[#allocation6 + $0x170] sm:$0xf0]
        %v6959 = vld [vmem:[#allocation6 + $0x178] sm:$0xf0]
        %v6976 = vrot.slane %v6944, 4
        %v6977 = vrot.slane %v6945, 4
        %v6978 = vrot.slane %v6946, 4
        %v6979 = vrot.slane %v6947, 4
        %v6980 = vrot.slane %v6948, 4
        %v6981 = vrot.slane %v6949, 4
        %v6982 = vrot.slane %v6950, 4
        %v6983 = vrot.slane %v6951, 4
        %v6984 = vrot.slane %v6952, 4
        %v6985 = vrot.slane %v6953, 4
        %v6986 = vrot.slane %v6954, 4
        %v6987 = vrot.slane %v6955, 4
        %v6988 = vrot.slane %v6956, 4
        %v6989 = vrot.slane %v6957, 4
        %v6990 = vrot.slane %v6958, 4
        %v6991 = vrot.slane %v6959, 4
        %v7008 = vmul.f32 %v6942, %v6976
        %v7009 = vmul.f32 %v6941, %v6977
        %v7010 = vmul.f32 %v6940, %v6978
        %v7011 = vmul.f32 %v6939, %v6979
        %v7012 = vmul.f32 %v6938, %v6980
        %v7013 = vmul.f32 %v6937, %v6981
        %v7014 = vmul.f32 %v6936, %v6982
        %v7015 = vmul.f32 %v6935, %v6983
        %v7016 = vmul.f32 %v6934, %v6984
        %v7017 = vmul.f32 %v6933, %v6985
        %v7018 = vmul.f32 %v6932, %v6986
        %v7019 = vmul.f32 %v6931, %v6987
        %v7020 = vmul.f32 %v6930, %v6988
        %v7021 = vmul.f32 %v6929, %v6989
        %v7022 = vmul.f32 %v6928, %v6990
        %v7023 = vmul.f32 %v6943, %v6991
        %v7024 = vpack.c.bf16 %v7008, %v7008
        %v7025 = vpack.c.bf16 %v7009, %v7009
        %v7026 = vpack.c.bf16 %v7010, %v7010
        %v7027 = vpack.c.bf16 %v7011, %v7011
        %v7028 = vpack.c.bf16 %v7012, %v7012
        %v7029 = vpack.c.bf16 %v7013, %v7013
        %v7030 = vpack.c.bf16 %v7014, %v7014
        %v7031 = vpack.c.bf16 %v7015, %v7015
        %v7032 = vpack.c.bf16 %v7016, %v7016
        %v7033 = vpack.c.bf16 %v7017, %v7017
        %v7034 = vpack.c.bf16 %v7018, %v7018
        %v7035 = vpack.c.bf16 %v7019, %v7019
        %v7036 = vpack.c.bf16 %v7020, %v7020
        %v7037 = vpack.c.bf16 %v7021, %v7021
        %v7038 = vpack.c.bf16 %v7022, %v7022
        %v7039 = vpack.c.bf16 %v7023, %v7023
        %v7056 = vunpack.c.l.b16 %v7024
        %v7057 = vunpack.c.l.b16 %v7025
        %v7058 = vunpack.c.l.b16 %v7026
        %v7059 = vunpack.c.l.b16 %v7027
        %v7060 = vunpack.c.l.b16 %v7028
        %v7061 = vunpack.c.l.b16 %v7029
        %v7062 = vunpack.c.l.b16 %v7030
        %v7063 = vunpack.c.l.b16 %v7031
        %v7064 = vunpack.c.l.b16 %v7032
        %v7065 = vunpack.c.l.b16 %v7033
        %v7066 = vunpack.c.l.b16 %v7034
        %v7067 = vunpack.c.l.b16 %v7035
        %v7068 = vunpack.c.l.b16 %v7036
        %v7069 = vunpack.c.l.b16 %v7037
        %v7070 = vunpack.c.l.b16 %v7038
        %v7071 = vunpack.c.l.b16 %v7039
        %v7072 = vpack.c.b16 %v7057, %v7056
        %v7073 = vpack.c.b16 %v7059, %v7058
        %v7074 = vpack.c.b16 %v7061, %v7060
        %v7075 = vpack.c.b16 %v7063, %v7062
        %v7076 = vpack.c.b16 %v7065, %v7064
        %v7077 = vpack.c.b16 %v7067, %v7066
        %v7078 = vpack.c.b16 %v7069, %v7068
        %v7079 = vpack.c.b16 %v7071, %v7070
        %v7080 = vrot.slane %v7072, 6
        %v7081 = vrot.slane %v7073, 6
        %v7082 = vrot.slane %v7074, 6
        %v7083 = vrot.slane %v7075, 6
        %v7084 = vrot.slane %v7076, 6
        %v7085 = vrot.slane %v7077, 6
        %v7086 = vrot.slane %v7078, 6
        %v7087 = vrot.slane %v7079, 6
        %7096 = vst [vmem:[#allocation2 + $0x80] sm:$0xcc] %v7080
        %7097 = vst [vmem:[#allocation2 + $0x88] sm:$0xcc] %v7081
        %7098 = vst [vmem:[#allocation2 + $0x90] sm:$0xcc] %v7082
        %7099 = vst [vmem:[#allocation2 + $0x98] sm:$0xcc] %v7083
        %7100 = vst [vmem:[#allocation2 + $0xa0] sm:$0xcc] %v7084
        %7101 = vst [vmem:[#allocation2 + $0xa8] sm:$0xcc] %v7085
        %7102 = vst [vmem:[#allocation2 + $0xb0] sm:$0xcc] %v7086
        %7103 = vst [vmem:[#allocation2 + $0xb8] sm:$0xcc] %v7087
        %7104 = vrot.lane.b32.xlu0 %v6072, 113
        %v7105 = vpop.permute.xlu0 %7104
        %7106 = vrot.lane.b32.xlu0 %v6088, 113
        %v7107 = vpop.permute.xlu0 %7106
        %7108 = vrot.lane.b32.xlu0 %v6073, 113
        %v7109 = vpop.permute.xlu0 %7108
        %7110 = vrot.lane.b32.xlu0 %v6089, 113
        %v7111 = vpop.permute.xlu0 %7110
        %7112 = vrot.lane.b32.xlu0 %v6074, 113
        %v7113 = vpop.permute.xlu0 %7112
        %7114 = vrot.lane.b32.xlu0 %v6090, 113
        %v7115 = vpop.permute.xlu0 %7114
        %7116 = vrot.lane.b32.xlu0 %v6075, 113
        %v7117 = vpop.permute.xlu0 %7116
        %7118 = vrot.lane.b32.xlu0 %v6091, 113
        %v7119 = vpop.permute.xlu0 %7118
        %7120 = vrot.lane.b32.xlu0 %v6076, 113
        %v7121 = vpop.permute.xlu0 %7120
        %7122 = vrot.lane.b32.xlu0 %v6092, 113
        %v7123 = vpop.permute.xlu0 %7122
        %7124 = vrot.lane.b32.xlu0 %v6077, 113
        %v7125 = vpop.permute.xlu0 %7124
        %7126 = vrot.lane.b32.xlu0 %v6093, 113
        %v7127 = vpop.permute.xlu0 %7126
        %7128 = vrot.lane.b32.xlu0 %v6078, 113
        %v7129 = vpop.permute.xlu0 %7128
        %7130 = vrot.lane.b32.xlu0 %v6094, 113
        %v7131 = vpop.permute.xlu0 %7130
        %7132 = vrot.lane.b32.xlu0 %v6079, 113
        %v7133 = vpop.permute.xlu0 %7132
        %7134 = vrot.lane.b32.xlu0 %v6095, 113
        %v7135 = vpop.permute.xlu0 %7134
        %v7136 = vsel %vm1511, %v7133, %v7135
        %v7137 = vsel %vm1511, %v7131, %v7133
        %v7138 = vsel %vm1511, %v7129, %v7131
        %v7139 = vsel %vm1511, %v7127, %v7129
        %v7140 = vsel %vm1511, %v7125, %v7127
        %v7141 = vsel %vm1511, %v7123, %v7125
        %v7142 = vsel %vm1511, %v7121, %v7123
        %v7143 = vsel %vm1511, %v7119, %v7121
        %v7144 = vsel %vm1511, %v7117, %v7119
        %v7145 = vsel %vm1511, %v7115, %v7117
        %v7146 = vsel %vm1511, %v7113, %v7115
        %v7147 = vsel %vm1511, %v7111, %v7113
        %v7148 = vsel %vm1511, %v7109, %v7111
        %v7149 = vsel %vm1511, %v7107, %v7109
        %v7150 = vsel %vm1511, %v7105, %v7107
        %v7151 = vsel %vm1511, %v7135, %v7105
        %v7152 = vld [vmem:[#allocation6 + $0x180] sm:$0xf]
        %v7153 = vld [vmem:[#allocation6 + $0x188] sm:$0xf]
        %v7154 = vld [vmem:[#allocation6 + $0x190] sm:$0xf]
        %v7155 = vld [vmem:[#allocation6 + $0x198] sm:$0xf]
        %v7156 = vld [vmem:[#allocation6 + $0x1a0] sm:$0xf]
        %v7157 = vld [vmem:[#allocation6 + $0x1a8] sm:$0xf]
        %v7158 = vld [vmem:[#allocation6 + $0x1b0] sm:$0xf]
        %v7159 = vld [vmem:[#allocation6 + $0x1b8] sm:$0xf]
        %v7160 = vld [vmem:[#allocation6 + $0x1c0] sm:$0xf]
        %v7161 = vld [vmem:[#allocation6 + $0x1c8] sm:$0xf]
        %v7162 = vld [vmem:[#allocation6 + $0x1d0] sm:$0xf]
        %v7163 = vld [vmem:[#allocation6 + $0x1d8] sm:$0xf]
        %v7164 = vld [vmem:[#allocation6 + $0x1e0] sm:$0xf]
        %v7165 = vld [vmem:[#allocation6 + $0x1e8] sm:$0xf]
        %v7166 = vld [vmem:[#allocation6 + $0x1f0] sm:$0xf]
        %v7167 = vld [vmem:[#allocation6 + $0x1f8] sm:$0xf]
        %v7168 = vmul.f32 %v7150, %v7152
        %v7169 = vmul.f32 %v7149, %v7153
        %v7170 = vmul.f32 %v7148, %v7154
        %v7171 = vmul.f32 %v7147, %v7155
        %v7172 = vmul.f32 %v7146, %v7156
        %v7173 = vmul.f32 %v7145, %v7157
        %v7174 = vmul.f32 %v7144, %v7158
        %v7175 = vmul.f32 %v7143, %v7159
        %v7176 = vmul.f32 %v7142, %v7160
        %v7177 = vmul.f32 %v7141, %v7161
        %v7178 = vmul.f32 %v7140, %v7162
        %v7179 = vmul.f32 %v7139, %v7163
        %v7180 = vmul.f32 %v7138, %v7164
        %v7181 = vmul.f32 %v7137, %v7165
        %v7182 = vmul.f32 %v7136, %v7166
        %v7183 = vmul.f32 %v7151, %v7167
        %v7184 = vpack.c.bf16 %v7168, %v7168
        %v7185 = vpack.c.bf16 %v7169, %v7169
        %v7186 = vpack.c.bf16 %v7170, %v7170
        %v7187 = vpack.c.bf16 %v7171, %v7171
        %v7188 = vpack.c.bf16 %v7172, %v7172
        %v7189 = vpack.c.bf16 %v7173, %v7173
        %v7190 = vpack.c.bf16 %v7174, %v7174
        %v7191 = vpack.c.bf16 %v7175, %v7175
        %v7192 = vpack.c.bf16 %v7176, %v7176
        %v7193 = vpack.c.bf16 %v7177, %v7177
        %v7194 = vpack.c.bf16 %v7178, %v7178
        %v7195 = vpack.c.bf16 %v7179, %v7179
        %v7196 = vpack.c.bf16 %v7180, %v7180
        %v7197 = vpack.c.bf16 %v7181, %v7181
        %v7198 = vpack.c.bf16 %v7182, %v7182
        %v7199 = vpack.c.bf16 %v7183, %v7183
        %v7216 = vunpack.c.l.b16 %v7184
        %v7217 = vunpack.c.l.b16 %v7185
        %v7218 = vunpack.c.l.b16 %v7186
        %v7219 = vunpack.c.l.b16 %v7187
        %v7220 = vunpack.c.l.b16 %v7188
        %v7221 = vunpack.c.l.b16 %v7189
        %v7222 = vunpack.c.l.b16 %v7190
        %v7223 = vunpack.c.l.b16 %v7191
        %v7224 = vunpack.c.l.b16 %v7192
        %v7225 = vunpack.c.l.b16 %v7193
        %v7226 = vunpack.c.l.b16 %v7194
        %v7227 = vunpack.c.l.b16 %v7195
        %v7228 = vunpack.c.l.b16 %v7196
        %v7229 = vunpack.c.l.b16 %v7197
        %v7230 = vunpack.c.l.b16 %v7198
        %v7231 = vunpack.c.l.b16 %v7199
        %v7232 = vpack.c.b16 %v7217, %v7216
        %v7233 = vpack.c.b16 %v7219, %v7218
        %v7234 = vpack.c.b16 %v7221, %v7220
        %v7235 = vpack.c.b16 %v7223, %v7222
        %v7236 = vpack.c.b16 %v7225, %v7224
        %v7237 = vpack.c.b16 %v7227, %v7226
        %v7238 = vpack.c.b16 %v7229, %v7228
        %v7239 = vpack.c.b16 %v7231, %v7230
        %7248 = vst [vmem:[#allocation2 + $0xc0] sm:$0x33] %v7232
        %7249 = vst [vmem:[#allocation2 + $0xc8] sm:$0x33] %v7233
        %7250 = vst [vmem:[#allocation2 + $0xd0] sm:$0x33] %v7234
        %7251 = vst [vmem:[#allocation2 + $0xd8] sm:$0x33] %v7235
        %7252 = vst [vmem:[#allocation2 + $0xe0] sm:$0x33] %v7236
        %7253 = vst [vmem:[#allocation2 + $0xe8] sm:$0x33] %v7237
        %7254 = vst [vmem:[#allocation2 + $0xf0] sm:$0x33] %v7238
        %7255 = vst [vmem:[#allocation2 + $0xf8] sm:$0x33] %v7239
        %7256 = vrot.lane.b32.xlu0 %v6072, 112
        %v7257 = vpop.permute.xlu0 %7256
        %7258 = vrot.lane.b32.xlu0 %v6088, 112
        %v7259 = vpop.permute.xlu0 %7258
        %7260 = vrot.lane.b32.xlu0 %v6073, 112
        %v7261 = vpop.permute.xlu0 %7260
        %7262 = vrot.lane.b32.xlu0 %v6089, 112
        %v7263 = vpop.permute.xlu0 %7262
        %7264 = vrot.lane.b32.xlu0 %v6074, 112
        %v7265 = vpop.permute.xlu0 %7264
        %7266 = vrot.lane.b32.xlu0 %v6090, 112
        %v7267 = vpop.permute.xlu0 %7266
        %7268 = vrot.lane.b32.xlu0 %v6075, 112
        %v7269 = vpop.permute.xlu0 %7268
        %7270 = vrot.lane.b32.xlu0 %v6091, 112
        %v7271 = vpop.permute.xlu0 %7270
        %7272 = vrot.lane.b32.xlu0 %v6076, 112
        %v7273 = vpop.permute.xlu0 %7272
        %7274 = vrot.lane.b32.xlu0 %v6092, 112
        %v7275 = vpop.permute.xlu0 %7274
        %7276 = vrot.lane.b32.xlu0 %v6077, 112
        %v7277 = vpop.permute.xlu0 %7276
        %7278 = vrot.lane.b32.xlu0 %v6093, 112
        %v7279 = vpop.permute.xlu0 %7278
        %7280 = vrot.lane.b32.xlu0 %v6078, 112
        %v7281 = vpop.permute.xlu0 %7280
        %7282 = vrot.lane.b32.xlu0 %v6094, 112
        %v7283 = vpop.permute.xlu0 %7282
        %7284 = vrot.lane.b32.xlu0 %v6079, 112
        %v7285 = vpop.permute.xlu0 %7284
        %7286 = vrot.lane.b32.xlu0 %v6095, 112
        %v7287 = vpop.permute.xlu0 %7286
        %v7288 = vsel %vm1691, %v7285, %v7287
        %v7289 = vsel %vm1691, %v7283, %v7285
        %v7290 = vsel %vm1691, %v7281, %v7283
        %v7291 = vsel %vm1691, %v7279, %v7281
        %v7292 = vsel %vm1691, %v7277, %v7279
        %v7293 = vsel %vm1691, %v7275, %v7277
        %v7294 = vsel %vm1691, %v7273, %v7275
        %v7295 = vsel %vm1691, %v7271, %v7273
        %v7296 = vsel %vm1691, %v7269, %v7271
        %v7297 = vsel %vm1691, %v7267, %v7269
        %v7298 = vsel %vm1691, %v7265, %v7267
        %v7299 = vsel %vm1691, %v7263, %v7265
        %v7300 = vsel %vm1691, %v7261, %v7263
        %v7301 = vsel %vm1691, %v7259, %v7261
        %v7302 = vsel %vm1691, %v7257, %v7259
        %v7303 = vsel %vm1691, %v7287, %v7257
        %v7304 = vld [vmem:[#allocation6 + $0x180] sm:$0xf0]
        %v7305 = vld [vmem:[#allocation6 + $0x188] sm:$0xf0]
        %v7306 = vld [vmem:[#allocation6 + $0x190] sm:$0xf0]
        %v7307 = vld [vmem:[#allocation6 + $0x198] sm:$0xf0]
        %v7308 = vld [vmem:[#allocation6 + $0x1a0] sm:$0xf0]
        %v7309 = vld [vmem:[#allocation6 + $0x1a8] sm:$0xf0]
        %v7310 = vld [vmem:[#allocation6 + $0x1b0] sm:$0xf0]
        %v7311 = vld [vmem:[#allocation6 + $0x1b8] sm:$0xf0]
        %v7312 = vld [vmem:[#allocation6 + $0x1c0] sm:$0xf0]
        %v7313 = vld [vmem:[#allocation6 + $0x1c8] sm:$0xf0]
        %v7314 = vld [vmem:[#allocation6 + $0x1d0] sm:$0xf0]
        %v7315 = vld [vmem:[#allocation6 + $0x1d8] sm:$0xf0]
        %v7316 = vld [vmem:[#allocation6 + $0x1e0] sm:$0xf0]
        %v7317 = vld [vmem:[#allocation6 + $0x1e8] sm:$0xf0]
        %v7318 = vld [vmem:[#allocation6 + $0x1f0] sm:$0xf0]
        %v7319 = vld [vmem:[#allocation6 + $0x1f8] sm:$0xf0]
        %v7336 = vrot.slane %v7304, 4
        %v7337 = vrot.slane %v7305, 4
        %v7338 = vrot.slane %v7306, 4
        %v7339 = vrot.slane %v7307, 4
        %v7340 = vrot.slane %v7308, 4
        %v7341 = vrot.slane %v7309, 4
        %v7342 = vrot.slane %v7310, 4
        %v7343 = vrot.slane %v7311, 4
        %v7344 = vrot.slane %v7312, 4
        %v7345 = vrot.slane %v7313, 4
        %v7346 = vrot.slane %v7314, 4
        %v7347 = vrot.slane %v7315, 4
        %v7348 = vrot.slane %v7316, 4
        %v7349 = vrot.slane %v7317, 4
        %v7350 = vrot.slane %v7318, 4
        %v7351 = vrot.slane %v7319, 4
        %v7368 = vmul.f32 %v7302, %v7336
        %v7369 = vmul.f32 %v7301, %v7337
        %v7370 = vmul.f32 %v7300, %v7338
        %v7371 = vmul.f32 %v7299, %v7339
        %v7372 = vmul.f32 %v7298, %v7340
        %v7373 = vmul.f32 %v7297, %v7341
        %v7374 = vmul.f32 %v7296, %v7342
        %v7375 = vmul.f32 %v7295, %v7343
        %v7376 = vmul.f32 %v7294, %v7344
        %v7377 = vmul.f32 %v7293, %v7345
        %v7378 = vmul.f32 %v7292, %v7346
        %v7379 = vmul.f32 %v7291, %v7347
        %v7380 = vmul.f32 %v7290, %v7348
        %v7381 = vmul.f32 %v7289, %v7349
        %v7382 = vmul.f32 %v7288, %v7350
        %v7383 = vmul.f32 %v7303, %v7351
        %v7384 = vpack.c.bf16 %v7368, %v7368
        %v7385 = vpack.c.bf16 %v7369, %v7369
        %v7386 = vpack.c.bf16 %v7370, %v7370
        %v7387 = vpack.c.bf16 %v7371, %v7371
        %v7388 = vpack.c.bf16 %v7372, %v7372
        %v7389 = vpack.c.bf16 %v7373, %v7373
        %v7390 = vpack.c.bf16 %v7374, %v7374
        %v7391 = vpack.c.bf16 %v7375, %v7375
        %v7392 = vpack.c.bf16 %v7376, %v7376
        %v7393 = vpack.c.bf16 %v7377, %v7377
        %v7394 = vpack.c.bf16 %v7378, %v7378
        %v7395 = vpack.c.bf16 %v7379, %v7379
        %v7396 = vpack.c.bf16 %v7380, %v7380
        %v7397 = vpack.c.bf16 %v7381, %v7381
        %v7398 = vpack.c.bf16 %v7382, %v7382
        %v7399 = vpack.c.bf16 %v7383, %v7383
        %v7416 = vunpack.c.l.b16 %v7384
        %v7417 = vunpack.c.l.b16 %v7385
        %v7418 = vunpack.c.l.b16 %v7386
        %v7419 = vunpack.c.l.b16 %v7387
        %v7420 = vunpack.c.l.b16 %v7388
        %v7421 = vunpack.c.l.b16 %v7389
        %v7422 = vunpack.c.l.b16 %v7390
        %v7423 = vunpack.c.l.b16 %v7391
        %v7424 = vunpack.c.l.b16 %v7392
        %v7425 = vunpack.c.l.b16 %v7393
        %v7426 = vunpack.c.l.b16 %v7394
        %v7427 = vunpack.c.l.b16 %v7395
        %v7428 = vunpack.c.l.b16 %v7396
        %v7429 = vunpack.c.l.b16 %v7397
        %v7430 = vunpack.c.l.b16 %v7398
        %v7431 = vunpack.c.l.b16 %v7399
        %v7432 = vpack.c.b16 %v7417, %v7416
        %v7433 = vpack.c.b16 %v7419, %v7418
        %v7434 = vpack.c.b16 %v7421, %v7420
        %v7435 = vpack.c.b16 %v7423, %v7422
        %v7436 = vpack.c.b16 %v7425, %v7424
        %v7437 = vpack.c.b16 %v7427, %v7426
        %v7438 = vpack.c.b16 %v7429, %v7428
        %v7439 = vpack.c.b16 %v7431, %v7430
        %v7440 = vrot.slane %v7432, 6
        %v7441 = vrot.slane %v7433, 6
        %v7442 = vrot.slane %v7434, 6
        %v7443 = vrot.slane %v7435, 6
        %v7444 = vrot.slane %v7436, 6
        %v7445 = vrot.slane %v7437, 6
        %v7446 = vrot.slane %v7438, 6
        %v7447 = vrot.slane %v7439, 6
        %7456 = vst [vmem:[#allocation2 + $0xc0] sm:$0xcc] %v7440
        %7457 = vst [vmem:[#allocation2 + $0xc8] sm:$0xcc] %v7441
        %7458 = vst [vmem:[#allocation2 + $0xd0] sm:$0xcc] %v7442
        %7459 = vst [vmem:[#allocation2 + $0xd8] sm:$0xcc] %v7443
        %7460 = vst [vmem:[#allocation2 + $0xe0] sm:$0xcc] %v7444
        %7461 = vst [vmem:[#allocation2 + $0xe8] sm:$0xcc] %v7445
        %7462 = vst [vmem:[#allocation2 + $0xf0] sm:$0xcc] %v7446
        %7463 = vst [vmem:[#allocation2 + $0xf8] sm:$0xcc] %v7447
        %7464 = vrot.lane.b32.xlu0 %v6072, 111
        %v7465 = vpop.permute.xlu0 %7464
        %7466 = vrot.lane.b32.xlu0 %v6088, 111
        %v7467 = vpop.permute.xlu0 %7466
        %7468 = vrot.lane.b32.xlu0 %v6073, 111
        %v7469 = vpop.permute.xlu0 %7468
        %7470 = vrot.lane.b32.xlu0 %v6089, 111
        %v7471 = vpop.permute.xlu0 %7470
        %7472 = vrot.lane.b32.xlu0 %v6074, 111
        %v7473 = vpop.permute.xlu0 %7472
        %7474 = vrot.lane.b32.xlu0 %v6090, 111
        %v7475 = vpop.permute.xlu0 %7474
        %7476 = vrot.lane.b32.xlu0 %v6075, 111
        %v7477 = vpop.permute.xlu0 %7476
        %7478 = vrot.lane.b32.xlu0 %v6091, 111
        %v7479 = vpop.permute.xlu0 %7478
        %7480 = vrot.lane.b32.xlu0 %v6076, 111
        %v7481 = vpop.permute.xlu0 %7480
        %7482 = vrot.lane.b32.xlu0 %v6092, 111
        %v7483 = vpop.permute.xlu0 %7482
        %7484 = vrot.lane.b32.xlu0 %v6077, 111
        %v7485 = vpop.permute.xlu0 %7484
        %7486 = vrot.lane.b32.xlu0 %v6093, 111
        %v7487 = vpop.permute.xlu0 %7486
        %7488 = vrot.lane.b32.xlu0 %v6078, 111
        %v7489 = vpop.permute.xlu0 %7488
        %7490 = vrot.lane.b32.xlu0 %v6094, 111
        %v7491 = vpop.permute.xlu0 %7490
        %7492 = vrot.lane.b32.xlu0 %v6079, 111
        %v7493 = vpop.permute.xlu0 %7492
        %7494 = vrot.lane.b32.xlu0 %v6095, 111
        %v7495 = vpop.permute.xlu0 %7494
        %v7496 = vsel %vm1920, %v7493, %v7495
        %v7497 = vsel %vm1920, %v7491, %v7493
        %v7498 = vsel %vm1920, %v7489, %v7491
        %v7499 = vsel %vm1920, %v7487, %v7489
        %v7500 = vsel %vm1920, %v7485, %v7487
        %v7501 = vsel %vm1920, %v7483, %v7485
        %v7502 = vsel %vm1920, %v7481, %v7483
        %v7503 = vsel %vm1920, %v7479, %v7481
        %v7504 = vsel %vm1920, %v7477, %v7479
        %v7505 = vsel %vm1920, %v7475, %v7477
        %v7506 = vsel %vm1920, %v7473, %v7475
        %v7507 = vsel %vm1920, %v7471, %v7473
        %v7508 = vsel %vm1920, %v7469, %v7471
        %v7509 = vsel %vm1920, %v7467, %v7469
        %v7510 = vsel %vm1920, %v7465, %v7467
        %v7511 = vsel %vm1920, %v7495, %v7465
        %v7512 = vld [vmem:[#allocation6 + $0x200] sm:$0xf]
        %v7513 = vld [vmem:[#allocation6 + $0x208] sm:$0xf]
        %v7514 = vld [vmem:[#allocation6 + $0x210] sm:$0xf]
        %v7515 = vld [vmem:[#allocation6 + $0x218] sm:$0xf]
        %v7516 = vld [vmem:[#allocation6 + $0x220] sm:$0xf]
        %v7517 = vld [vmem:[#allocation6 + $0x228] sm:$0xf]
        %v7518 = vld [vmem:[#allocation6 + $0x230] sm:$0xf]
        %v7519 = vld [vmem:[#allocation6 + $0x238] sm:$0xf]
        %v7520 = vld [vmem:[#allocation6 + $0x240] sm:$0xf]
        %v7521 = vld [vmem:[#allocation6 + $0x248] sm:$0xf]
        %v7522 = vld [vmem:[#allocation6 + $0x250] sm:$0xf]
        %v7523 = vld [vmem:[#allocation6 + $0x258] sm:$0xf]
        %v7524 = vld [vmem:[#allocation6 + $0x260] sm:$0xf]
        %v7525 = vld [vmem:[#allocation6 + $0x268] sm:$0xf]
        %v7526 = vld [vmem:[#allocation6 + $0x270] sm:$0xf]
        %v7527 = vld [vmem:[#allocation6 + $0x278] sm:$0xf]
        %v7528 = vmul.f32 %v7510, %v7512
        %v7529 = vmul.f32 %v7509, %v7513
        %v7530 = vmul.f32 %v7508, %v7514
        %v7531 = vmul.f32 %v7507, %v7515
        %v7532 = vmul.f32 %v7506, %v7516
        %v7533 = vmul.f32 %v7505, %v7517
        %v7534 = vmul.f32 %v7504, %v7518
        %v7535 = vmul.f32 %v7503, %v7519
        %v7536 = vmul.f32 %v7502, %v7520
        %v7537 = vmul.f32 %v7501, %v7521
        %v7538 = vmul.f32 %v7500, %v7522
        %v7539 = vmul.f32 %v7499, %v7523
        %v7540 = vmul.f32 %v7498, %v7524
        %v7541 = vmul.f32 %v7497, %v7525
        %v7542 = vmul.f32 %v7496, %v7526
        %v7543 = vmul.f32 %v7511, %v7527
        %v7544 = vpack.c.bf16 %v7528, %v7528
        %v7545 = vpack.c.bf16 %v7529, %v7529
        %v7546 = vpack.c.bf16 %v7530, %v7530
        %v7547 = vpack.c.bf16 %v7531, %v7531
        %v7548 = vpack.c.bf16 %v7532, %v7532
        %v7549 = vpack.c.bf16 %v7533, %v7533
        %v7550 = vpack.c.bf16 %v7534, %v7534
        %v7551 = vpack.c.bf16 %v7535, %v7535
        %v7552 = vpack.c.bf16 %v7536, %v7536
        %v7553 = vpack.c.bf16 %v7537, %v7537
        %v7554 = vpack.c.bf16 %v7538, %v7538
        %v7555 = vpack.c.bf16 %v7539, %v7539
        %v7556 = vpack.c.bf16 %v7540, %v7540
        %v7557 = vpack.c.bf16 %v7541, %v7541
        %v7558 = vpack.c.bf16 %v7542, %v7542
        %v7559 = vpack.c.bf16 %v7543, %v7543
        %v7576 = vunpack.c.l.b16 %v7544
        %v7577 = vunpack.c.l.b16 %v7545
        %v7578 = vunpack.c.l.b16 %v7546
        %v7579 = vunpack.c.l.b16 %v7547
        %v7580 = vunpack.c.l.b16 %v7548
        %v7581 = vunpack.c.l.b16 %v7549
        %v7582 = vunpack.c.l.b16 %v7550
        %v7583 = vunpack.c.l.b16 %v7551
        %v7584 = vunpack.c.l.b16 %v7552
        %v7585 = vunpack.c.l.b16 %v7553
        %v7586 = vunpack.c.l.b16 %v7554
        %v7587 = vunpack.c.l.b16 %v7555
        %v7588 = vunpack.c.l.b16 %v7556
        %v7589 = vunpack.c.l.b16 %v7557
        %v7590 = vunpack.c.l.b16 %v7558
        %v7591 = vunpack.c.l.b16 %v7559
        %v7592 = vpack.c.b16 %v7577, %v7576
        %v7593 = vpack.c.b16 %v7579, %v7578
        %v7594 = vpack.c.b16 %v7581, %v7580
        %v7595 = vpack.c.b16 %v7583, %v7582
        %v7596 = vpack.c.b16 %v7585, %v7584
        %v7597 = vpack.c.b16 %v7587, %v7586
        %v7598 = vpack.c.b16 %v7589, %v7588
        %v7599 = vpack.c.b16 %v7591, %v7590
        %7608 = vst [vmem:[#allocation2 + $0x100] sm:$0x33] %v7592
        %7609 = vst [vmem:[#allocation2 + $0x108] sm:$0x33] %v7593
        %7610 = vst [vmem:[#allocation2 + $0x110] sm:$0x33] %v7594
        %7611 = vst [vmem:[#allocation2 + $0x118] sm:$0x33] %v7595
        %7612 = vst [vmem:[#allocation2 + $0x120] sm:$0x33] %v7596
        %7613 = vst [vmem:[#allocation2 + $0x128] sm:$0x33] %v7597
        %7614 = vst [vmem:[#allocation2 + $0x130] sm:$0x33] %v7598
        %7615 = vst [vmem:[#allocation2 + $0x138] sm:$0x33] %v7599
        %s7616 = scalar_lea.vmem %s4, 4
        %v7617 = vld [vmem:[%s7616] sm:$0x3]
        %v7618 = vld [vmem:[#allocation2] sm:$0xff]
        %v7619 = vld [vmem:[#allocation2 + $0x8] sm:$0xff]
        %v7620 = vld [vmem:[#allocation2 + $0x10] sm:$0xff]
        %v7621 = vld [vmem:[#allocation2 + $0x18] sm:$0xff]
        %v7622 = vld [vmem:[#allocation2 + $0x20] sm:$0xff]
        %v7623 = vld [vmem:[#allocation2 + $0x28] sm:$0xff]
        %v7624 = vld [vmem:[#allocation2 + $0x30] sm:$0xff]
        %v7625 = vld [vmem:[#allocation2 + $0x38] sm:$0xff]
        %v7626 = vld [vmem:[#allocation2 + $0x40] sm:$0xff]
        %v7627 = vld [vmem:[#allocation2 + $0x48] sm:$0xff]
        %v7628 = vld [vmem:[#allocation2 + $0x50] sm:$0xff]
        %v7629 = vld [vmem:[#allocation2 + $0x58] sm:$0xff]
        %v7630 = vld [vmem:[#allocation2 + $0x60] sm:$0xff]
        %v7631 = vld [vmem:[#allocation2 + $0x68] sm:$0xff]
        %v7632 = vld [vmem:[#allocation2 + $0x70] sm:$0xff]
        %v7633 = vld [vmem:[#allocation2 + $0x78] sm:$0xff]
        %v7634 = vld [vmem:[#allocation2 + $0x80] sm:$0xff]
        %v7635 = vld [vmem:[#allocation2 + $0x88] sm:$0xff]
        %v7636 = vld [vmem:[#allocation2 + $0x90] sm:$0xff]
        %v7637 = vld [vmem:[#allocation2 + $0x98] sm:$0xff]
        %v7638 = vld [vmem:[#allocation2 + $0xa0] sm:$0xff]
        %v7639 = vld [vmem:[#allocation2 + $0xa8] sm:$0xff]
        %v7640 = vld [vmem:[#allocation2 + $0xb0] sm:$0xff]
        %v7641 = vld [vmem:[#allocation2 + $0xb8] sm:$0xff]
        %v7642 = vld [vmem:[#allocation2 + $0xc0] sm:$0xff]
        %v7643 = vld [vmem:[#allocation2 + $0xc8] sm:$0xff]
        %v7644 = vld [vmem:[#allocation2 + $0xd0] sm:$0xff]
        %v7645 = vld [vmem:[#allocation2 + $0xd8] sm:$0xff]
        %v7646 = vld [vmem:[#allocation2 + $0xe0] sm:$0xff]
        %v7647 = vld [vmem:[#allocation2 + $0xe8] sm:$0xff]
        %v7648 = vld [vmem:[#allocation2 + $0xf0] sm:$0xff]
        %v7649 = vld [vmem:[#allocation2 + $0xf8] sm:$0xff]
        %v7650 = vld [vmem:[#allocation2 + $0x100] sm:$0x33]
        %v7651 = vld [vmem:[#allocation2 + $0x108] sm:$0x33]
        %v7652 = vld [vmem:[#allocation2 + $0x110] sm:$0x33]
        %v7653 = vld [vmem:[#allocation2 + $0x118] sm:$0x33]
        %v7654 = vld [vmem:[#allocation2 + $0x120] sm:$0x33]
        %v7655 = vld [vmem:[#allocation2 + $0x128] sm:$0x33]
        %v7656 = vld [vmem:[#allocation2 + $0x130] sm:$0x33]
        %v7657 = vld [vmem:[#allocation2 + $0x138] sm:$0x33]
        %s7658 = scalar_lea.vmem %s5, 8
        %v7659 = vld [vmem:[%s7658] sm:$0xf]
        %7661 = vset.pattern.permute.xlu0 0
        %7662 = vperm.xlu0 %7661, %v7659
        %v7663 = vpop.permute.xlu0 %7662
        %v7705 = vunpack.c.l.b16 %v7618
        %v7706 = vunpack.c.h.b16 %v7618
        %v7707 = vunpack.c.l.b16 %v7619
        %v7708 = vunpack.c.h.b16 %v7619
        %v7709 = vunpack.c.l.b16 %v7620
        %v7710 = vunpack.c.h.b16 %v7620
        %v7711 = vunpack.c.l.b16 %v7621
        %v7712 = vunpack.c.h.b16 %v7621
        %v7713 = vunpack.c.l.b16 %v7622
        %v7714 = vunpack.c.h.b16 %v7622
        %v7715 = vunpack.c.l.b16 %v7623
        %v7716 = vunpack.c.h.b16 %v7623
        %v7717 = vunpack.c.l.b16 %v7624
        %v7718 = vunpack.c.h.b16 %v7624
        %v7719 = vunpack.c.l.b16 %v7625
        %v7720 = vunpack.c.h.b16 %v7625
        %v7721 = vunpack.c.l.b16 %v7626
        %v7722 = vunpack.c.h.b16 %v7626
        %v7723 = vunpack.c.l.b16 %v7627
        %v7724 = vunpack.c.h.b16 %v7627
        %v7725 = vunpack.c.l.b16 %v7628
        %v7726 = vunpack.c.h.b16 %v7628
        %v7727 = vunpack.c.l.b16 %v7629
        %v7728 = vunpack.c.h.b16 %v7629
        %v7729 = vunpack.c.l.b16 %v7630
        %v7730 = vunpack.c.h.b16 %v7630
        %v7731 = vunpack.c.l.b16 %v7631
        %v7732 = vunpack.c.h.b16 %v7631
        %v7733 = vunpack.c.l.b16 %v7632
        %v7734 = vunpack.c.h.b16 %v7632
        %v7735 = vunpack.c.l.b16 %v7633
        %v7736 = vunpack.c.h.b16 %v7633
        %v7737 = vunpack.c.l.b16 %v7634
        %v7738 = vunpack.c.h.b16 %v7634
        %v7739 = vunpack.c.l.b16 %v7635
        %v7740 = vunpack.c.h.b16 %v7635
        %v7741 = vunpack.c.l.b16 %v7636
        %v7742 = vunpack.c.h.b16 %v7636
        %v7743 = vunpack.c.l.b16 %v7637
        %v7744 = vunpack.c.h.b16 %v7637
        %v7745 = vunpack.c.l.b16 %v7638
        %v7746 = vunpack.c.h.b16 %v7638
        %v7747 = vunpack.c.l.b16 %v7639
        %v7748 = vunpack.c.h.b16 %v7639
        %v7749 = vunpack.c.l.b16 %v7640
        %v7750 = vunpack.c.h.b16 %v7640
        %v7751 = vunpack.c.l.b16 %v7641
        %v7752 = vunpack.c.h.b16 %v7641
        %v7753 = vunpack.c.l.b16 %v7642
        %v7754 = vunpack.c.h.b16 %v7642
        %v7755 = vunpack.c.l.b16 %v7643
        %v7756 = vunpack.c.h.b16 %v7643
        %v7757 = vunpack.c.l.b16 %v7644
        %v7758 = vunpack.c.h.b16 %v7644
        %v7759 = vunpack.c.l.b16 %v7645
        %v7760 = vunpack.c.h.b16 %v7645
        %v7761 = vunpack.c.l.b16 %v7646
        %v7762 = vunpack.c.h.b16 %v7646
        %v7763 = vunpack.c.l.b16 %v7647
        %v7764 = vunpack.c.h.b16 %v7647
        %v7765 = vunpack.c.l.b16 %v7648
        %v7766 = vunpack.c.h.b16 %v7648
        %v7767 = vunpack.c.l.b16 %v7649
        %v7768 = vunpack.c.h.b16 %v7649
        %v7769 = vunpack.c.l.b16 %v7650
        %v7770 = vunpack.c.h.b16 %v7650
        %v7771 = vunpack.c.l.b16 %v7651
        %v7772 = vunpack.c.h.b16 %v7651
        %v7773 = vunpack.c.l.b16 %v7652
        %v7774 = vunpack.c.h.b16 %v7652
        %v7775 = vunpack.c.l.b16 %v7653
        %v7776 = vunpack.c.h.b16 %v7653
        %v7777 = vunpack.c.l.b16 %v7654
        %v7778 = vunpack.c.h.b16 %v7654
        %v7779 = vunpack.c.l.b16 %v7655
        %v7780 = vunpack.c.h.b16 %v7655
        %v7781 = vunpack.c.l.b16 %v7656
        %v7782 = vunpack.c.h.b16 %v7656
        %v7783 = vunpack.c.l.b16 %v7657
        %v7784 = vunpack.c.h.b16 %v7657
        %v7785 = vpack.c.b16 %v7721, %v7705
        %v7786 = vpack.c.b16 %v7722, %v7706
        %v7787 = vpack.c.b16 %v7723, %v7707
        %v7788 = vpack.c.b16 %v7724, %v7708
        %v7789 = vpack.c.b16 %v7725, %v7709
        %v7790 = vpack.c.b16 %v7726, %v7710
        %v7791 = vpack.c.b16 %v7727, %v7711
        %v7792 = vpack.c.b16 %v7728, %v7712
        %v7793 = vpack.c.b16 %v7729, %v7713
        %v7794 = vpack.c.b16 %v7730, %v7714
        %v7795 = vpack.c.b16 %v7731, %v7715
        %v7796 = vpack.c.b16 %v7732, %v7716
        %v7797 = vpack.c.b16 %v7733, %v7717
        %v7798 = vpack.c.b16 %v7734, %v7718
        %v7799 = vpack.c.b16 %v7735, %v7719
        %v7800 = vpack.c.b16 %v7736, %v7720
        %v7801 = vpack.c.b16 %v7753, %v7737
        %v7802 = vpack.c.b16 %v7754, %v7738
        %v7803 = vpack.c.b16 %v7755, %v7739
        %v7804 = vpack.c.b16 %v7756, %v7740
        %v7805 = vpack.c.b16 %v7757, %v7741
        %v7806 = vpack.c.b16 %v7758, %v7742
        %v7807 = vpack.c.b16 %v7759, %v7743
        %v7808 = vpack.c.b16 %v7760, %v7744
        %v7809 = vpack.c.b16 %v7761, %v7745
        %v7810 = vpack.c.b16 %v7762, %v7746
        %v7811 = vpack.c.b16 %v7763, %v7747
        %v7812 = vpack.c.b16 %v7764, %v7748
        %v7813 = vpack.c.b16 %v7765, %v7749
        %v7814 = vpack.c.b16 %v7766, %v7750
        %v7815 = vpack.c.b16 %v7767, %v7751
        %v7816 = vpack.c.b16 %v7768, %v7752
        %v7817 = vpack.c.b16 %v7769, %v7769
        %v7818 = vpack.c.b16 %v7770, %v7770
        %v7819 = vpack.c.b16 %v7771, %v7771
        %v7820 = vpack.c.b16 %v7772, %v7772
        %v7821 = vpack.c.b16 %v7773, %v7773
        %v7822 = vpack.c.b16 %v7774, %v7774
        %v7823 = vpack.c.b16 %v7775, %v7775
        %v7824 = vpack.c.b16 %v7776, %v7776
        %v7825 = vpack.c.b16 %v7777, %v7777
        %v7826 = vpack.c.b16 %v7778, %v7778
        %v7827 = vpack.c.b16 %v7779, %v7779
        %v7828 = vpack.c.b16 %v7780, %v7780
        %v7829 = vpack.c.b16 %v7781, %v7781
        %v7830 = vpack.c.b16 %v7782, %v7782
        %v7831 = vpack.c.b16 %v7783, %v7783
        %v7832 = vpack.c.b16 %v7784, %v7784
        %v7866 = vsel %vm3415, %v7617, 0
        %v7869 = vsel %vm3419, %v7817, 0
        %v7872 = vsel %vm3419, %v7818, 0
        %v7875 = vsel %vm3419, %v7819, 0
        %v7878 = vsel %vm3419, %v7820, 0
        %v7881 = vsel %vm3419, %v7821, 0
        %v7884 = vsel %vm3419, %v7822, 0
        %v7887 = vsel %vm3419, %v7823, 0
        %v7890 = vsel %vm3419, %v7824, 0
        %v7893 = vsel %vm3419, %v7825, 0
        %v7896 = vsel %vm3419, %v7826, 0
        %v7899 = vsel %vm3419, %v7827, 0
        %v7902 = vsel %vm3419, %v7828, 0
        %v7905 = vsel %vm3419, %v7829, 0
        %v7908 = vsel %vm3419, %v7830, 0
        %v7911 = vsel %vm3419, %v7831, 0
        %v7914 = vsel %vm3419, %v7832, 0
        %7916 = vmatprep.subr.bf16.mxu0 %v7786
        %7917 = vmatpush1.bf16.msra.mxu0 %v7785
        %7918 = vmatprep.subr.bf16.mxu0 %v7802
        %7919 = vmatpush1.bf16.msra.mxu0 %v7801
        %7920 = vmatprep.subr.bf16.mxu0 %v7872
        %7921 = vmatpush1.bf16.msra.mxu0 %v7869
        %7922 = vmatprep.subr.bf16.mxu0 0
        %7923 = vmatpush1.bf16.msra.mxu0 0
        %7924 = vmatprep.subr.bf16.mxu0 0
        %7925 = vmatpush1.bf16.msra.mxu0 0
        %7926 = vmatprep.subr.bf16.mxu0 0
        %7927 = vmatpush1.bf16.msra.mxu0 0
        %7928 = vmatprep.subr.bf16.mxu0 0
        %7929 = vmatpush1.bf16.msra.mxu0 0
        %7930 = vmatprep.subr.bf16.mxu0 0
        %7931 = vmatpush1.bf16.msra.mxu0 0
        %7932 = vmatprep.subr.bf16.mxu0 0
        %7933 = vmatpush1.bf16.msra.mxu0 0
        %7934 = vmatprep.subr.bf16.mxu0 0
        %7935 = vmatpush1.bf16.msra.mxu0 0
        %7936 = vmatprep.subr.bf16.mxu0 0
        %7937 = vmatpush1.bf16.msra.mxu0 0
        %7938 = vmatprep.subr.bf16.mxu0 0
        %7939 = vmatpush1.bf16.msra.mxu0 0
        %7940 = vmatprep.subr.bf16.mxu0 0
        %7941 = vmatpush1.bf16.msra.mxu0 0
        %7942 = vmatprep.subr.bf16.mxu0 0
        %7943 = vmatpush1.bf16.msra.mxu0 0
        %7944 = vmatprep.subr.bf16.mxu0 0
        %7945 = vmatpush1.bf16.msra.mxu0 0
        %7946 = vmatprep.subr.bf16.mxu0 0
        %7947 = vmatpush1.bf16.msra.mxu0 0
        %7948 = vmatprep.mubr.bf16.mxu0 0
        %7949 = vmatmul.mubr.bf16.gmra.mrb[0].mxu0 %v7866
        %v7950 = vpop.f32.mrb[0].mxu0
        %v7951 = vadd.f32 %v7663, %v7950
        %v7952 = vpop.f32.mrb[0].mxu0
        %v7953 = vadd.f32 %v7663, %v7952
        %v7954 = vpop.f32.mrb[0].mxu0
        %v7955 = vpop.f32.mrb[0].mxu0
        %7956 = vdwg.mxu0
        %7957 = vmatprep.subr.bf16.mxu0 %v7788
        %7958 = vmatpush1.bf16.msra.mxu0 %v7787
        %7959 = vmatprep.subr.bf16.mxu0 %v7804
        %7960 = vmatpush1.bf16.msra.mxu0 %v7803
        %7961 = vmatprep.subr.bf16.mxu0 %v7878
        %7962 = vmatpush1.bf16.msra.mxu0 %v7875
        %7963 = vmatprep.subr.bf16.mxu0 0
        %7964 = vmatpush1.bf16.msra.mxu0 0
        %7965 = vmatprep.subr.bf16.mxu0 0
        %7966 = vmatpush1.bf16.msra.mxu0 0
        %7967 = vmatprep.subr.bf16.mxu0 0
        %7968 = vmatpush1.bf16.msra.mxu0 0
        %7969 = vmatprep.subr.bf16.mxu0 0
        %7970 = vmatpush1.bf16.msra.mxu0 0
        %7971 = vmatprep.subr.bf16.mxu0 0
        %7972 = vmatpush1.bf16.msra.mxu0 0
        %7973 = vmatprep.subr.bf16.mxu0 0
        %7974 = vmatpush1.bf16.msra.mxu0 0
        %7975 = vmatprep.subr.bf16.mxu0 0
        %7976 = vmatpush1.bf16.msra.mxu0 0
        %7977 = vmatprep.subr.bf16.mxu0 0
        %7978 = vmatpush1.bf16.msra.mxu0 0
        %7979 = vmatprep.subr.bf16.mxu0 0
        %7980 = vmatpush1.bf16.msra.mxu0 0
        %7981 = vmatprep.subr.bf16.mxu0 0
        %7982 = vmatpush1.bf16.msra.mxu0 0
        %7983 = vmatprep.subr.bf16.mxu0 0
        %7984 = vmatpush1.bf16.msra.mxu0 0
        %7985 = vmatprep.subr.bf16.mxu0 0
        %7986 = vmatpush1.bf16.msra.mxu0 0
        %7987 = vmatprep.subr.bf16.mxu0 0
        %7988 = vmatpush1.bf16.msra.mxu0 0
        %7989 = vmatprep.mubr.bf16.mxu0 0
        %7990 = vmatmul.mubr.bf16.gmra.mrb[0].mxu0 %v7866
        %v7991 = vpop.f32.mrb[0].mxu0
        %v7992 = vadd.f32 %v7663, %v7991
        %v7993 = vpop.f32.mrb[0].mxu0
        %v7994 = vadd.f32 %v7663, %v7993
        %v7995 = vpop.f32.mrb[0].mxu0
        %v7996 = vpop.f32.mrb[0].mxu0
        %7997 = vdwg.mxu0
        %7998 = vmatprep.subr.bf16.mxu0 %v7790
        %7999 = vmatpush1.bf16.msra.mxu0 %v7789
        %8000 = vmatprep.subr.bf16.mxu0 %v7806
        %8001 = vmatpush1.bf16.msra.mxu0 %v7805
        %8002 = vmatprep.subr.bf16.mxu0 %v7884
        %8003 = vmatpush1.bf16.msra.mxu0 %v7881
        %8004 = vmatprep.subr.bf16.mxu0 0
        %8005 = vmatpush1.bf16.msra.mxu0 0
        %8006 = vmatprep.subr.bf16.mxu0 0
        %8007 = vmatpush1.bf16.msra.mxu0 0
        %8008 = vmatprep.subr.bf16.mxu0 0
        %8009 = vmatpush1.bf16.msra.mxu0 0
        %8010 = vmatprep.subr.bf16.mxu0 0
        %8011 = vmatpush1.bf16.msra.mxu0 0
        %8012 = vmatprep.subr.bf16.mxu0 0
        %8013 = vmatpush1.bf16.msra.mxu0 0
        %8014 = vmatprep.subr.bf16.mxu0 0
        %8015 = vmatpush1.bf16.msra.mxu0 0
        %8016 = vmatprep.subr.bf16.mxu0 0
        %8017 = vmatpush1.bf16.msra.mxu0 0
        %8018 = vmatprep.subr.bf16.mxu0 0
        %8019 = vmatpush1.bf16.msra.mxu0 0
        %8020 = vmatprep.subr.bf16.mxu0 0
        %8021 = vmatpush1.bf16.msra.mxu0 0
        %8022 = vmatprep.subr.bf16.mxu0 0
        %8023 = vmatpush1.bf16.msra.mxu0 0
        %8024 = vmatprep.subr.bf16.mxu0 0
        %8025 = vmatpush1.bf16.msra.mxu0 0
        %8026 = vmatprep.subr.bf16.mxu0 0
        %8027 = vmatpush1.bf16.msra.mxu0 0
        %8028 = vmatprep.subr.bf16.mxu0 0
        %8029 = vmatpush1.bf16.msra.mxu0 0
        %8030 = vmatprep.mubr.bf16.mxu0 0
        %8031 = vmatmul.mubr.bf16.gmra.mrb[0].mxu0 %v7866
        %v8032 = vpop.f32.mrb[0].mxu0
        %v8033 = vadd.f32 %v7663, %v8032
        %v8034 = vpop.f32.mrb[0].mxu0
        %v8035 = vadd.f32 %v7663, %v8034
        %v8036 = vpop.f32.mrb[0].mxu0
        %v8037 = vpop.f32.mrb[0].mxu0
        %8038 = vdwg.mxu0
        %8039 = vmatprep.subr.bf16.mxu0 %v7792
        %8040 = vmatpush1.bf16.msra.mxu0 %v7791
        %8041 = vmatprep.subr.bf16.mxu0 %v7808
        %8042 = vmatpush1.bf16.msra.mxu0 %v7807
        %8043 = vmatprep.subr.bf16.mxu0 %v7890
        %8044 = vmatpush1.bf16.msra.mxu0 %v7887
        %8045 = vmatprep.subr.bf16.mxu0 0
        %8046 = vmatpush1.bf16.msra.mxu0 0
        %8047 = vmatprep.subr.bf16.mxu0 0
        %8048 = vmatpush1.bf16.msra.mxu0 0
        %8049 = vmatprep.subr.bf16.mxu0 0
        %8050 = vmatpush1.bf16.msra.mxu0 0
        %8051 = vmatprep.subr.bf16.mxu0 0
        %8052 = vmatpush1.bf16.msra.mxu0 0
        %8053 = vmatprep.subr.bf16.mxu0 0
        %8054 = vmatpush1.bf16.msra.mxu0 0
        %8055 = vmatprep.subr.bf16.mxu0 0
        %8056 = vmatpush1.bf16.msra.mxu0 0
        %8057 = vmatprep.subr.bf16.mxu0 0
        %8058 = vmatpush1.bf16.msra.mxu0 0
        %8059 = vmatprep.subr.bf16.mxu0 0
        %8060 = vmatpush1.bf16.msra.mxu0 0
        %8061 = vmatprep.subr.bf16.mxu0 0
        %8062 = vmatpush1.bf16.msra.mxu0 0
        %8063 = vmatprep.subr.bf16.mxu0 0
        %8064 = vmatpush1.bf16.msra.mxu0 0
        %8065 = vmatprep.subr.bf16.mxu0 0
        %8066 = vmatpush1.bf16.msra.mxu0 0
        %8067 = vmatprep.subr.bf16.mxu0 0
        %8068 = vmatpush1.bf16.msra.mxu0 0
        %8069 = vmatprep.subr.bf16.mxu0 0
        %8070 = vmatpush1.bf16.msra.mxu0 0
        %8071 = vmatprep.mubr.bf16.mxu0 0
        %8072 = vmatmul.mubr.bf16.gmra.mrb[0].mxu0 %v7866
        %v8073 = vpop.f32.mrb[0].mxu0
        %v8074 = vadd.f32 %v7663, %v8073
        %v8075 = vpop.f32.mrb[0].mxu0
        %v8076 = vadd.f32 %v7663, %v8075
        %v8077 = vpop.f32.mrb[0].mxu0
        %v8078 = vpop.f32.mrb[0].mxu0
        %8079 = vdwg.mxu0
        %8080 = vmatprep.subr.bf16.mxu0 %v7794
        %8081 = vmatpush1.bf16.msra.mxu0 %v7793
        %8082 = vmatprep.subr.bf16.mxu0 %v7810
        %8083 = vmatpush1.bf16.msra.mxu0 %v7809
        %8084 = vmatprep.subr.bf16.mxu0 %v7896
        %8085 = vmatpush1.bf16.msra.mxu0 %v7893
        %8086 = vmatprep.subr.bf16.mxu0 0
        %8087 = vmatpush1.bf16.msra.mxu0 0
        %8088 = vmatprep.subr.bf16.mxu0 0
        %8089 = vmatpush1.bf16.msra.mxu0 0
        %8090 = vmatprep.subr.bf16.mxu0 0
        %8091 = vmatpush1.bf16.msra.mxu0 0
        %8092 = vmatprep.subr.bf16.mxu0 0
        %8093 = vmatpush1.bf16.msra.mxu0 0
        %8094 = vmatprep.subr.bf16.mxu0 0
        %8095 = vmatpush1.bf16.msra.mxu0 0
        %8096 = vmatprep.subr.bf16.mxu0 0
        %8097 = vmatpush1.bf16.msra.mxu0 0
        %8098 = vmatprep.subr.bf16.mxu0 0
        %8099 = vmatpush1.bf16.msra.mxu0 0
        %8100 = vmatprep.subr.bf16.mxu0 0
        %8101 = vmatpush1.bf16.msra.mxu0 0
        %8102 = vmatprep.subr.bf16.mxu0 0
        %8103 = vmatpush1.bf16.msra.mxu0 0
        %8104 = vmatprep.subr.bf16.mxu0 0
        %8105 = vmatpush1.bf16.msra.mxu0 0
        %8106 = vmatprep.subr.bf16.mxu0 0
        %8107 = vmatpush1.bf16.msra.mxu0 0
        %8108 = vmatprep.subr.bf16.mxu0 0
        %8109 = vmatpush1.bf16.msra.mxu0 0
        %8110 = vmatprep.subr.bf16.mxu0 0
        %8111 = vmatpush1.bf16.msra.mxu0 0
        %8112 = vmatprep.mubr.bf16.mxu0 0
        %8113 = vmatmul.mubr.bf16.gmra.mrb[0].mxu0 %v7866
        %v8114 = vpop.f32.mrb[0].mxu0
        %v8115 = vadd.f32 %v7663, %v8114
        %v8116 = vpop.f32.mrb[0].mxu0
        %v8117 = vadd.f32 %v7663, %v8116
        %v8118 = vpop.f32.mrb[0].mxu0
        %v8119 = vpop.f32.mrb[0].mxu0
        %8120 = vdwg.mxu0
        %8121 = vmatprep.subr.bf16.mxu0 %v7796
        %8122 = vmatpush1.bf16.msra.mxu0 %v7795
        %8123 = vmatprep.subr.bf16.mxu0 %v7812
        %8124 = vmatpush1.bf16.msra.mxu0 %v7811
        %8125 = vmatprep.subr.bf16.mxu0 %v7902
        %8126 = vmatpush1.bf16.msra.mxu0 %v7899
        %8127 = vmatprep.subr.bf16.mxu0 0
        %8128 = vmatpush1.bf16.msra.mxu0 0
        %8129 = vmatprep.subr.bf16.mxu0 0
        %8130 = vmatpush1.bf16.msra.mxu0 0
        %8131 = vmatprep.subr.bf16.mxu0 0
        %8132 = vmatpush1.bf16.msra.mxu0 0
        %8133 = vmatprep.subr.bf16.mxu0 0
        %8134 = vmatpush1.bf16.msra.mxu0 0
        %8135 = vmatprep.subr.bf16.mxu0 0
        %8136 = vmatpush1.bf16.msra.mxu0 0
        %8137 = vmatprep.subr.bf16.mxu0 0
        %8138 = vmatpush1.bf16.msra.mxu0 0
        %8139 = vmatprep.subr.bf16.mxu0 0
        %8140 = vmatpush1.bf16.msra.mxu0 0
        %8141 = vmatprep.subr.bf16.mxu0 0
        %8142 = vmatpush1.bf16.msra.mxu0 0
        %8143 = vmatprep.subr.bf16.mxu0 0
        %8144 = vmatpush1.bf16.msra.mxu0 0
        %8145 = vmatprep.subr.bf16.mxu0 0
        %8146 = vmatpush1.bf16.msra.mxu0 0
        %8147 = vmatprep.subr.bf16.mxu0 0
        %8148 = vmatpush1.bf16.msra.mxu0 0
        %8149 = vmatprep.subr.bf16.mxu0 0
        %8150 = vmatpush1.bf16.msra.mxu0 0
        %8151 = vmatprep.subr.bf16.mxu0 0
        %8152 = vmatpush1.bf16.msra.mxu0 0
        %8153 = vmatprep.mubr.bf16.mxu0 0
        %8154 = vmatmul.mubr.bf16.gmra.mrb[0].mxu0 %v7866
        %v8155 = vpop.f32.mrb[0].mxu0
        %v8156 = vadd.f32 %v7663, %v8155
        %v8157 = vpop.f32.mrb[0].mxu0
        %v8158 = vadd.f32 %v7663, %v8157
        %v8159 = vpop.f32.mrb[0].mxu0
        %v8160 = vpop.f32.mrb[0].mxu0
        %8161 = vdwg.mxu0
        %8162 = vmatprep.subr.bf16.mxu0 %v7798
        %8163 = vmatpush1.bf16.msra.mxu0 %v7797
        %8164 = vmatprep.subr.bf16.mxu0 %v7814
        %8165 = vmatpush1.bf16.msra.mxu0 %v7813
        %8166 = vmatprep.subr.bf16.mxu0 %v7908
        %8167 = vmatpush1.bf16.msra.mxu0 %v7905
        %8168 = vmatprep.subr.bf16.mxu0 0
        %8169 = vmatpush1.bf16.msra.mxu0 0
        %8170 = vmatprep.subr.bf16.mxu0 0
        %8171 = vmatpush1.bf16.msra.mxu0 0
        %8172 = vmatprep.subr.bf16.mxu0 0
        %8173 = vmatpush1.bf16.msra.mxu0 0
        %8174 = vmatprep.subr.bf16.mxu0 0
        %8175 = vmatpush1.bf16.msra.mxu0 0
        %8176 = vmatprep.subr.bf16.mxu0 0
        %8177 = vmatpush1.bf16.msra.mxu0 0
        %8178 = vmatprep.subr.bf16.mxu0 0
        %8179 = vmatpush1.bf16.msra.mxu0 0
        %8180 = vmatprep.subr.bf16.mxu0 0
        %8181 = vmatpush1.bf16.msra.mxu0 0
        %8182 = vmatprep.subr.bf16.mxu0 0
        %8183 = vmatpush1.bf16.msra.mxu0 0
        %8184 = vmatprep.subr.bf16.mxu0 0
        %8185 = vmatpush1.bf16.msra.mxu0 0
        %8186 = vmatprep.subr.bf16.mxu0 0
        %8187 = vmatpush1.bf16.msra.mxu0 0
        %8188 = vmatprep.subr.bf16.mxu0 0
        %8189 = vmatpush1.bf16.msra.mxu0 0
        %8190 = vmatprep.subr.bf16.mxu0 0
        %8191 = vmatpush1.bf16.msra.mxu0 0
        %8192 = vmatprep.subr.bf16.mxu0 0
        %8193 = vmatpush1.bf16.msra.mxu0 0
        %8194 = vmatprep.mubr.bf16.mxu0 0
        %8195 = vmatmul.mubr.bf16.gmra.mrb[0].mxu0 %v7866
        %v8196 = vpop.f32.mrb[0].mxu0
        %v8197 = vadd.f32 %v7663, %v8196
        %v8198 = vpop.f32.mrb[0].mxu0
        %v8199 = vadd.f32 %v7663, %v8198
        %v8200 = vpop.f32.mrb[0].mxu0
        %v8201 = vpop.f32.mrb[0].mxu0
        %8202 = vdwg.mxu0
        %8203 = vmatprep.subr.bf16.mxu0 %v7800
        %8204 = vmatpush1.bf16.msra.mxu0 %v7799
        %8205 = vmatprep.subr.bf16.mxu0 %v7816
        %8206 = vmatpush1.bf16.msra.mxu0 %v7815
        %8207 = vmatprep.subr.bf16.mxu0 %v7914
        %8208 = vmatpush1.bf16.msra.mxu0 %v7911
        %8209 = vmatprep.subr.bf16.mxu0 0
        %8210 = vmatpush1.bf16.msra.mxu0 0
        %8211 = vmatprep.subr.bf16.mxu0 0
        %8212 = vmatpush1.bf16.msra.mxu0 0
        %8213 = vmatprep.subr.bf16.mxu0 0
        %8214 = vmatpush1.bf16.msra.mxu0 0
        %8215 = vmatprep.subr.bf16.mxu0 0
        %8216 = vmatpush1.bf16.msra.mxu0 0
        %8217 = vmatprep.subr.bf16.mxu0 0
        %8218 = vmatpush1.bf16.msra.mxu0 0
        %8219 = vmatprep.subr.bf16.mxu0 0
        %8220 = vmatpush1.bf16.msra.mxu0 0
        %8221 = vmatprep.subr.bf16.mxu0 0
        %8222 = vmatpush1.bf16.msra.mxu0 0
        %8223 = vmatprep.subr.bf16.mxu0 0
        %8224 = vmatpush1.bf16.msra.mxu0 0
        %8225 = vmatprep.subr.bf16.mxu0 0
        %8226 = vmatpush1.bf16.msra.mxu0 0
        %8227 = vmatprep.subr.bf16.mxu0 0
        %8228 = vmatpush1.bf16.msra.mxu0 0
        %8229 = vmatprep.subr.bf16.mxu0 0
        %8230 = vmatpush1.bf16.msra.mxu0 0
        %8231 = vmatprep.subr.bf16.mxu0 0
        %8232 = vmatpush1.bf16.msra.mxu0 0
        %8233 = vmatprep.subr.bf16.mxu0 0
        %8234 = vmatpush1.bf16.msra.mxu0 0
        %8235 = vmatprep.mubr.bf16.mxu0 0
        %8236 = vmatmul.mubr.bf16.gmra.mrb[0].mxu0 %v7866
        %v8237 = vpop.f32.mrb[0].mxu0
        %v8238 = vadd.f32 %v7663, %v8237
        %v8239 = vpop.f32.mrb[0].mxu0
        %v8240 = vadd.f32 %v7663, %v8239
        %v8241 = vpop.f32.mrb[0].mxu0
        %v8242 = vpop.f32.mrb[0].mxu0
        %8243 = vdwg.mxu0
        %v8244 = vmax.f32 %v7951, 0.0
        %v8245 = vmax.f32 %v7953, 0.0
        %v8246 = vmax.f32 %v7992, 0.0
        %v8247 = vmax.f32 %v7994, 0.0
        %v8248 = vmax.f32 %v8033, 0.0
        %v8249 = vmax.f32 %v8035, 0.0
        %v8250 = vmax.f32 %v8074, 0.0
        %v8251 = vmax.f32 %v8076, 0.0
        %v8252 = vmax.f32 %v8115, 0.0
        %v8253 = vmax.f32 %v8117, 0.0
        %v8254 = vmax.f32 %v8156, 0.0
        %v8255 = vmax.f32 %v8158, 0.0
        %v8256 = vmax.f32 %v8197, 0.0
        %v8257 = vmax.f32 %v8199, 0.0
        %v8258 = vmax.f32 %v8238, 0.0
        %v8259 = vmax.f32 %v8240, 0.0
        %8260 = vrot.lane.b32.xlu0 %v8244, 17
        %v8261 = vpop.permute.xlu0 %8260
        %8262 = vrot.lane.b32.xlu0 %v8245, 17
        %v8263 = vpop.permute.xlu0 %8262
        %8264 = vrot.lane.b32.xlu0 %v8246, 17
        %v8265 = vpop.permute.xlu0 %8264
        %8266 = vrot.lane.b32.xlu0 %v8247, 17
        %v8267 = vpop.permute.xlu0 %8266
        %8268 = vrot.lane.b32.xlu0 %v8248, 17
        %v8269 = vpop.permute.xlu0 %8268
        %8270 = vrot.lane.b32.xlu0 %v8249, 17
        %v8271 = vpop.permute.xlu0 %8270
        %8272 = vrot.lane.b32.xlu0 %v8250, 17
        %v8273 = vpop.permute.xlu0 %8272
        %8274 = vrot.lane.b32.xlu0 %v8251, 17
        %v8275 = vpop.permute.xlu0 %8274
        %8276 = vrot.lane.b32.xlu0 %v8252, 17
        %v8277 = vpop.permute.xlu0 %8276
        %8278 = vrot.lane.b32.xlu0 %v8253, 17
        %v8279 = vpop.permute.xlu0 %8278
        %8280 = vrot.lane.b32.xlu0 %v8254, 17
        %v8281 = vpop.permute.xlu0 %8280
        %8282 = vrot.lane.b32.xlu0 %v8255, 17
        %v8283 = vpop.permute.xlu0 %8282
        %8284 = vrot.lane.b32.xlu0 %v8256, 17
        %v8285 = vpop.permute.xlu0 %8284
        %8286 = vrot.lane.b32.xlu0 %v8257, 17
        %v8287 = vpop.permute.xlu0 %8286
        %8288 = vrot.lane.b32.xlu0 %v8258, 17
        %v8289 = vpop.permute.xlu0 %8288
        %8290 = vrot.lane.b32.xlu0 %v8259, 17
        %v8291 = vpop.permute.xlu0 %8290
        %v8292 = vsel %vm365, %v8289, %v8291
        %v8293 = vsel %vm365, %v8287, %v8289
        %v8294 = vsel %vm365, %v8285, %v8287
        %v8295 = vsel %vm365, %v8283, %v8285
        %v8296 = vsel %vm365, %v8281, %v8283
        %v8297 = vsel %vm365, %v8279, %v8281
        %v8298 = vsel %vm365, %v8277, %v8279
        %v8299 = vsel %vm365, %v8275, %v8277
        %v8300 = vsel %vm365, %v8273, %v8275
        %v8301 = vsel %vm365, %v8271, %v8273
        %v8302 = vsel %vm365, %v8269, %v8271
        %v8303 = vsel %vm365, %v8267, %v8269
        %v8304 = vsel %vm365, %v8265, %v8267
        %v8305 = vsel %vm365, %v8263, %v8265
        %v8306 = vsel %vm365, %v8261, %v8263
        %v8307 = vsel %vm365, %v8291, %v8261
        %v8308 = vld [vmem:[#allocation6] sm:$0xf]
        %v8309 = vld [vmem:[#allocation6 + $0x8] sm:$0xf]
        %v8310 = vld [vmem:[#allocation6 + $0x10] sm:$0xf]
        %v8311 = vld [vmem:[#allocation6 + $0x18] sm:$0xf]
        %v8312 = vld [vmem:[#allocation6 + $0x20] sm:$0xf]
        %v8313 = vld [vmem:[#allocation6 + $0x28] sm:$0xf]
        %v8314 = vld [vmem:[#allocation6 + $0x30] sm:$0xf]
        %v8315 = vld [vmem:[#allocation6 + $0x38] sm:$0xf]
        %v8316 = vld [vmem:[#allocation6 + $0x40] sm:$0xf]
        %v8317 = vld [vmem:[#allocation6 + $0x48] sm:$0xf]
        %v8318 = vld [vmem:[#allocation6 + $0x50] sm:$0xf]
        %v8319 = vld [vmem:[#allocation6 + $0x58] sm:$0xf]
        %v8320 = vld [vmem:[#allocation6 + $0x60] sm:$0xf]
        %v8321 = vld [vmem:[#allocation6 + $0x68] sm:$0xf]
        %v8322 = vld [vmem:[#allocation6 + $0x70] sm:$0xf]
        %v8323 = vld [vmem:[#allocation6 + $0x78] sm:$0xf]
        %v8324 = vmul.f32 %v8307, %v8308
        %v8325 = vmul.f32 %v8306, %v8309
        %v8326 = vmul.f32 %v8305, %v8310
        %v8327 = vmul.f32 %v8304, %v8311
        %v8328 = vmul.f32 %v8303, %v8312
        %v8329 = vmul.f32 %v8302, %v8313
        %v8330 = vmul.f32 %v8301, %v8314
        %v8331 = vmul.f32 %v8300, %v8315
        %v8332 = vmul.f32 %v8299, %v8316
        %v8333 = vmul.f32 %v8298, %v8317
        %v8334 = vmul.f32 %v8297, %v8318
        %v8335 = vmul.f32 %v8296, %v8319
        %v8336 = vmul.f32 %v8295, %v8320
        %v8337 = vmul.f32 %v8294, %v8321
        %v8338 = vmul.f32 %v8293, %v8322
        %v8339 = vmul.f32 %v8292, %v8323
        %v8340 = vpack.c.bf16 %v8324, %v8324
        %v8341 = vpack.c.bf16 %v8325, %v8325
        %v8342 = vpack.c.bf16 %v8326, %v8326
        %v8343 = vpack.c.bf16 %v8327, %v8327
        %v8344 = vpack.c.bf16 %v8328, %v8328
        %v8345 = vpack.c.bf16 %v8329, %v8329
        %v8346 = vpack.c.bf16 %v8330, %v8330
        %v8347 = vpack.c.bf16 %v8331, %v8331
        %v8348 = vpack.c.bf16 %v8332, %v8332
        %v8349 = vpack.c.bf16 %v8333, %v8333
        %v8350 = vpack.c.bf16 %v8334, %v8334
        %v8351 = vpack.c.bf16 %v8335, %v8335
        %v8352 = vpack.c.bf16 %v8336, %v8336
        %v8353 = vpack.c.bf16 %v8337, %v8337
        %v8354 = vpack.c.bf16 %v8338, %v8338
        %v8355 = vpack.c.bf16 %v8339, %v8339
        %v8372 = vunpack.c.l.b16 %v8340
        %v8373 = vunpack.c.l.b16 %v8341
        %v8374 = vunpack.c.l.b16 %v8342
        %v8375 = vunpack.c.l.b16 %v8343
        %v8376 = vunpack.c.l.b16 %v8344
        %v8377 = vunpack.c.l.b16 %v8345
        %v8378 = vunpack.c.l.b16 %v8346
        %v8379 = vunpack.c.l.b16 %v8347
        %v8380 = vunpack.c.l.b16 %v8348
        %v8381 = vunpack.c.l.b16 %v8349
        %v8382 = vunpack.c.l.b16 %v8350
        %v8383 = vunpack.c.l.b16 %v8351
        %v8384 = vunpack.c.l.b16 %v8352
        %v8385 = vunpack.c.l.b16 %v8353
        %v8386 = vunpack.c.l.b16 %v8354
        %v8387 = vunpack.c.l.b16 %v8355
        %v8388 = vpack.c.b16 %v8373, %v8372
        %v8389 = vpack.c.b16 %v8375, %v8374
        %v8390 = vpack.c.b16 %v8377, %v8376
        %v8391 = vpack.c.b16 %v8379, %v8378
        %v8392 = vpack.c.b16 %v8381, %v8380
        %v8393 = vpack.c.b16 %v8383, %v8382
        %v8394 = vpack.c.b16 %v8385, %v8384
        %v8395 = vpack.c.b16 %v8387, %v8386
        %8404 = vst [vmem:[#allocation2] sm:$0x33] %v8388
        %8405 = vst [vmem:[#allocation2 + $0x8] sm:$0x33] %v8389
        %8406 = vst [vmem:[#allocation2 + $0x10] sm:$0x33] %v8390
        %8407 = vst [vmem:[#allocation2 + $0x18] sm:$0x33] %v8391
        %8408 = vst [vmem:[#allocation2 + $0x20] sm:$0x33] %v8392
        %8409 = vst [vmem:[#allocation2 + $0x28] sm:$0x33] %v8393
        %8410 = vst [vmem:[#allocation2 + $0x30] sm:$0x33] %v8394
        %8411 = vst [vmem:[#allocation2 + $0x38] sm:$0x33] %v8395
        %8412 = vrot.lane.b32.xlu0 %v8244, 16
        %v8413 = vpop.permute.xlu0 %8412
        %8414 = vrot.lane.b32.xlu0 %v8245, 16
        %v8415 = vpop.permute.xlu0 %8414
        %8416 = vrot.lane.b32.xlu0 %v8246, 16
        %v8417 = vpop.permute.xlu0 %8416
        %8418 = vrot.lane.b32.xlu0 %v8247, 16
        %v8419 = vpop.permute.xlu0 %8418
        %8420 = vrot.lane.b32.xlu0 %v8248, 16
        %v8421 = vpop.permute.xlu0 %8420
        %8422 = vrot.lane.b32.xlu0 %v8249, 16
        %v8423 = vpop.permute.xlu0 %8422
        %8424 = vrot.lane.b32.xlu0 %v8250, 16
        %v8425 = vpop.permute.xlu0 %8424
        %8426 = vrot.lane.b32.xlu0 %v8251, 16
        %v8427 = vpop.permute.xlu0 %8426
        %8428 = vrot.lane.b32.xlu0 %v8252, 16
        %v8429 = vpop.permute.xlu0 %8428
        %8430 = vrot.lane.b32.xlu0 %v8253, 16
        %v8431 = vpop.permute.xlu0 %8430
        %8432 = vrot.lane.b32.xlu0 %v8254, 16
        %v8433 = vpop.permute.xlu0 %8432
        %8434 = vrot.lane.b32.xlu0 %v8255, 16
        %v8435 = vpop.permute.xlu0 %8434
        %8436 = vrot.lane.b32.xlu0 %v8256, 16
        %v8437 = vpop.permute.xlu0 %8436
        %8438 = vrot.lane.b32.xlu0 %v8257, 16
        %v8439 = vpop.permute.xlu0 %8438
        %8440 = vrot.lane.b32.xlu0 %v8258, 16
        %v8441 = vpop.permute.xlu0 %8440
        %8442 = vrot.lane.b32.xlu0 %v8259, 16
        %v8443 = vpop.permute.xlu0 %8442
        %v8444 = vsel %vm545, %v8441, %v8443
        %v8445 = vsel %vm545, %v8439, %v8441
        %v8446 = vsel %vm545, %v8437, %v8439
        %v8447 = vsel %vm545, %v8435, %v8437
        %v8448 = vsel %vm545, %v8433, %v8435
        %v8449 = vsel %vm545, %v8431, %v8433
        %v8450 = vsel %vm545, %v8429, %v8431
        %v8451 = vsel %vm545, %v8427, %v8429
        %v8452 = vsel %vm545, %v8425, %v8427
        %v8453 = vsel %vm545, %v8423, %v8425
        %v8454 = vsel %vm545, %v8421, %v8423
        %v8455 = vsel %vm545, %v8419, %v8421
        %v8456 = vsel %vm545, %v8417, %v8419
        %v8457 = vsel %vm545, %v8415, %v8417
        %v8458 = vsel %vm545, %v8413, %v8415
        %v8459 = vsel %vm545, %v8443, %v8413
        %v8460 = vld [vmem:[#allocation6] sm:$0xf0]
        %v8461 = vld [vmem:[#allocation6 + $0x8] sm:$0xf0]
        %v8462 = vld [vmem:[#allocation6 + $0x10] sm:$0xf0]
        %v8463 = vld [vmem:[#allocation6 + $0x18] sm:$0xf0]
        %v8464 = vld [vmem:[#allocation6 + $0x20] sm:$0xf0]
        %v8465 = vld [vmem:[#allocation6 + $0x28] sm:$0xf0]
        %v8466 = vld [vmem:[#allocation6 + $0x30] sm:$0xf0]
        %v8467 = vld [vmem:[#allocation6 + $0x38] sm:$0xf0]
        %v8468 = vld [vmem:[#allocation6 + $0x40] sm:$0xf0]
        %v8469 = vld [vmem:[#allocation6 + $0x48] sm:$0xf0]
        %v8470 = vld [vmem:[#allocation6 + $0x50] sm:$0xf0]
        %v8471 = vld [vmem:[#allocation6 + $0x58] sm:$0xf0]
        %v8472 = vld [vmem:[#allocation6 + $0x60] sm:$0xf0]
        %v8473 = vld [vmem:[#allocation6 + $0x68] sm:$0xf0]
        %v8474 = vld [vmem:[#allocation6 + $0x70] sm:$0xf0]
        %v8475 = vld [vmem:[#allocation6 + $0x78] sm:$0xf0]
        %v8492 = vrot.slane %v8460, 4
        %v8493 = vrot.slane %v8461, 4
        %v8494 = vrot.slane %v8462, 4
        %v8495 = vrot.slane %v8463, 4
        %v8496 = vrot.slane %v8464, 4
        %v8497 = vrot.slane %v8465, 4
        %v8498 = vrot.slane %v8466, 4
        %v8499 = vrot.slane %v8467, 4
        %v8500 = vrot.slane %v8468, 4
        %v8501 = vrot.slane %v8469, 4
        %v8502 = vrot.slane %v8470, 4
        %v8503 = vrot.slane %v8471, 4
        %v8504 = vrot.slane %v8472, 4
        %v8505 = vrot.slane %v8473, 4
        %v8506 = vrot.slane %v8474, 4
        %v8507 = vrot.slane %v8475, 4
        %v8524 = vmul.f32 %v8459, %v8492
        %v8525 = vmul.f32 %v8458, %v8493
        %v8526 = vmul.f32 %v8457, %v8494
        %v8527 = vmul.f32 %v8456, %v8495
        %v8528 = vmul.f32 %v8455, %v8496
        %v8529 = vmul.f32 %v8454, %v8497
        %v8530 = vmul.f32 %v8453, %v8498
        %v8531 = vmul.f32 %v8452, %v8499
        %v8532 = vmul.f32 %v8451, %v8500
        %v8533 = vmul.f32 %v8450, %v8501
        %v8534 = vmul.f32 %v8449, %v8502
        %v8535 = vmul.f32 %v8448, %v8503
        %v8536 = vmul.f32 %v8447, %v8504
        %v8537 = vmul.f32 %v8446, %v8505
        %v8538 = vmul.f32 %v8445, %v8506
        %v8539 = vmul.f32 %v8444, %v8507
        %v8540 = vpack.c.bf16 %v8524, %v8524
        %v8541 = vpack.c.bf16 %v8525, %v8525
        %v8542 = vpack.c.bf16 %v8526, %v8526
        %v8543 = vpack.c.bf16 %v8527, %v8527
        %v8544 = vpack.c.bf16 %v8528, %v8528
        %v8545 = vpack.c.bf16 %v8529, %v8529
        %v8546 = vpack.c.bf16 %v8530, %v8530
        %v8547 = vpack.c.bf16 %v8531, %v8531
        %v8548 = vpack.c.bf16 %v8532, %v8532
        %v8549 = vpack.c.bf16 %v8533, %v8533
        %v8550 = vpack.c.bf16 %v8534, %v8534
        %v8551 = vpack.c.bf16 %v8535, %v8535
        %v8552 = vpack.c.bf16 %v8536, %v8536
        %v8553 = vpack.c.bf16 %v8537, %v8537
        %v8554 = vpack.c.bf16 %v8538, %v8538
        %v8555 = vpack.c.bf16 %v8539, %v8539
        %v8572 = vunpack.c.l.b16 %v8540
        %v8573 = vunpack.c.l.b16 %v8541
        %v8574 = vunpack.c.l.b16 %v8542
        %v8575 = vunpack.c.l.b16 %v8543
        %v8576 = vunpack.c.l.b16 %v8544
        %v8577 = vunpack.c.l.b16 %v8545
        %v8578 = vunpack.c.l.b16 %v8546
        %v8579 = vunpack.c.l.b16 %v8547
        %v8580 = vunpack.c.l.b16 %v8548
        %v8581 = vunpack.c.l.b16 %v8549
        %v8582 = vunpack.c.l.b16 %v8550
        %v8583 = vunpack.c.l.b16 %v8551
        %v8584 = vunpack.c.l.b16 %v8552
        %v8585 = vunpack.c.l.b16 %v8553
        %v8586 = vunpack.c.l.b16 %v8554
        %v8587 = vunpack.c.l.b16 %v8555
        %v8588 = vpack.c.b16 %v8573, %v8572
        %v8589 = vpack.c.b16 %v8575, %v8574
        %v8590 = vpack.c.b16 %v8577, %v8576
        %v8591 = vpack.c.b16 %v8579, %v8578
        %v8592 = vpack.c.b16 %v8581, %v8580
        %v8593 = vpack.c.b16 %v8583, %v8582
        %v8594 = vpack.c.b16 %v8585, %v8584
        %v8595 = vpack.c.b16 %v8587, %v8586
        %v8596 = vrot.slane %v8588, 6
        %v8597 = vrot.slane %v8589, 6
        %v8598 = vrot.slane %v8590, 6
        %v8599 = vrot.slane %v8591, 6
        %v8600 = vrot.slane %v8592, 6
        %v8601 = vrot.slane %v8593, 6
        %v8602 = vrot.slane %v8594, 6
        %v8603 = vrot.slane %v8595, 6
        %8612 = vst [vmem:[#allocation2] sm:$0xcc] %v8596
        %8613 = vst [vmem:[#allocation2 + $0x8] sm:$0xcc] %v8597
        %8614 = vst [vmem:[#allocation2 + $0x10] sm:$0xcc] %v8598
        %8615 = vst [vmem:[#allocation2 + $0x18] sm:$0xcc] %v8599
        %8616 = vst [vmem:[#allocation2 + $0x20] sm:$0xcc] %v8600
        %8617 = vst [vmem:[#allocation2 + $0x28] sm:$0xcc] %v8601
        %8618 = vst [vmem:[#allocation2 + $0x30] sm:$0xcc] %v8602
        %8619 = vst [vmem:[#allocation2 + $0x38] sm:$0xcc] %v8603
        %8620 = vrot.lane.b32.xlu0 %v8244, 15
        %v8621 = vpop.permute.xlu0 %8620
        %8622 = vrot.lane.b32.xlu0 %v8245, 15
        %v8623 = vpop.permute.xlu0 %8622
        %8624 = vrot.lane.b32.xlu0 %v8246, 15
        %v8625 = vpop.permute.xlu0 %8624
        %8626 = vrot.lane.b32.xlu0 %v8247, 15
        %v8627 = vpop.permute.xlu0 %8626
        %8628 = vrot.lane.b32.xlu0 %v8248, 15
        %v8629 = vpop.permute.xlu0 %8628
        %8630 = vrot.lane.b32.xlu0 %v8249, 15
        %v8631 = vpop.permute.xlu0 %8630
        %8632 = vrot.lane.b32.xlu0 %v8250, 15
        %v8633 = vpop.permute.xlu0 %8632
        %8634 = vrot.lane.b32.xlu0 %v8251, 15
        %v8635 = vpop.permute.xlu0 %8634
        %8636 = vrot.lane.b32.xlu0 %v8252, 15
        %v8637 = vpop.permute.xlu0 %8636
        %8638 = vrot.lane.b32.xlu0 %v8253, 15
        %v8639 = vpop.permute.xlu0 %8638
        %8640 = vrot.lane.b32.xlu0 %v8254, 15
        %v8641 = vpop.permute.xlu0 %8640
        %8642 = vrot.lane.b32.xlu0 %v8255, 15
        %v8643 = vpop.permute.xlu0 %8642
        %8644 = vrot.lane.b32.xlu0 %v8256, 15
        %v8645 = vpop.permute.xlu0 %8644
        %8646 = vrot.lane.b32.xlu0 %v8257, 15
        %v8647 = vpop.permute.xlu0 %8646
        %8648 = vrot.lane.b32.xlu0 %v8258, 15
        %v8649 = vpop.permute.xlu0 %8648
        %8650 = vrot.lane.b32.xlu0 %v8259, 15
        %v8651 = vpop.permute.xlu0 %8650
        %v8652 = vsel %vm774, %v8649, %v8651
        %v8653 = vsel %vm774, %v8647, %v8649
        %v8654 = vsel %vm774, %v8645, %v8647
        %v8655 = vsel %vm774, %v8643, %v8645
        %v8656 = vsel %vm774, %v8641, %v8643
        %v8657 = vsel %vm774, %v8639, %v8641
        %v8658 = vsel %vm774, %v8637, %v8639
        %v8659 = vsel %vm774, %v8635, %v8637
        %v8660 = vsel %vm774, %v8633, %v8635
        %v8661 = vsel %vm774, %v8631, %v8633
        %v8662 = vsel %vm774, %v8629, %v8631
        %v8663 = vsel %vm774, %v8627, %v8629
        %v8664 = vsel %vm774, %v8625, %v8627
        %v8665 = vsel %vm774, %v8623, %v8625
        %v8666 = vsel %vm774, %v8621, %v8623
        %v8667 = vsel %vm774, %v8651, %v8621
        %v8668 = vld [vmem:[#allocation6 + $0x80] sm:$0xf]
        %v8669 = vld [vmem:[#allocation6 + $0x88] sm:$0xf]
        %v8670 = vld [vmem:[#allocation6 + $0x90] sm:$0xf]
        %v8671 = vld [vmem:[#allocation6 + $0x98] sm:$0xf]
        %v8672 = vld [vmem:[#allocation6 + $0xa0] sm:$0xf]
        %v8673 = vld [vmem:[#allocation6 + $0xa8] sm:$0xf]
        %v8674 = vld [vmem:[#allocation6 + $0xb0] sm:$0xf]
        %v8675 = vld [vmem:[#allocation6 + $0xb8] sm:$0xf]
        %v8676 = vld [vmem:[#allocation6 + $0xc0] sm:$0xf]
        %v8677 = vld [vmem:[#allocation6 + $0xc8] sm:$0xf]
        %v8678 = vld [vmem:[#allocation6 + $0xd0] sm:$0xf]
        %v8679 = vld [vmem:[#allocation6 + $0xd8] sm:$0xf]
        %v8680 = vld [vmem:[#allocation6 + $0xe0] sm:$0xf]
        %v8681 = vld [vmem:[#allocation6 + $0xe8] sm:$0xf]
        %v8682 = vld [vmem:[#allocation6 + $0xf0] sm:$0xf]
        %v8683 = vld [vmem:[#allocation6 + $0xf8] sm:$0xf]
        %v8684 = vmul.f32 %v8667, %v8668
        %v8685 = vmul.f32 %v8666, %v8669
        %v8686 = vmul.f32 %v8665, %v8670
        %v8687 = vmul.f32 %v8664, %v8671
        %v8688 = vmul.f32 %v8663, %v8672
        %v8689 = vmul.f32 %v8662, %v8673
        %v8690 = vmul.f32 %v8661, %v8674
        %v8691 = vmul.f32 %v8660, %v8675
        %v8692 = vmul.f32 %v8659, %v8676
        %v8693 = vmul.f32 %v8658, %v8677
        %v8694 = vmul.f32 %v8657, %v8678
        %v8695 = vmul.f32 %v8656, %v8679
        %v8696 = vmul.f32 %v8655, %v8680
        %v8697 = vmul.f32 %v8654, %v8681
        %v8698 = vmul.f32 %v8653, %v8682
        %v8699 = vmul.f32 %v8652, %v8683
        %v8700 = vpack.c.bf16 %v8684, %v8684
        %v8701 = vpack.c.bf16 %v8685, %v8685
        %v8702 = vpack.c.bf16 %v8686, %v8686
        %v8703 = vpack.c.bf16 %v8687, %v8687
        %v8704 = vpack.c.bf16 %v8688, %v8688
        %v8705 = vpack.c.bf16 %v8689, %v8689
        %v8706 = vpack.c.bf16 %v8690, %v8690
        %v8707 = vpack.c.bf16 %v8691, %v8691
        %v8708 = vpack.c.bf16 %v8692, %v8692
        %v8709 = vpack.c.bf16 %v8693, %v8693
        %v8710 = vpack.c.bf16 %v8694, %v8694
        %v8711 = vpack.c.bf16 %v8695, %v8695
        %v8712 = vpack.c.bf16 %v8696, %v8696
        %v8713 = vpack.c.bf16 %v8697, %v8697
        %v8714 = vpack.c.bf16 %v8698, %v8698
        %v8715 = vpack.c.bf16 %v8699, %v8699
        %v8732 = vunpack.c.l.b16 %v8700
        %v8733 = vunpack.c.l.b16 %v8701
        %v8734 = vunpack.c.l.b16 %v8702
        %v8735 = vunpack.c.l.b16 %v8703
        %v8736 = vunpack.c.l.b16 %v8704
        %v8737 = vunpack.c.l.b16 %v8705
        %v8738 = vunpack.c.l.b16 %v8706
        %v8739 = vunpack.c.l.b16 %v8707
        %v8740 = vunpack.c.l.b16 %v8708
        %v8741 = vunpack.c.l.b16 %v8709
        %v8742 = vunpack.c.l.b16 %v8710
        %v8743 = vunpack.c.l.b16 %v8711
        %v8744 = vunpack.c.l.b16 %v8712
        %v8745 = vunpack.c.l.b16 %v8713
        %v8746 = vunpack.c.l.b16 %v8714
        %v8747 = vunpack.c.l.b16 %v8715
        %v8748 = vpack.c.b16 %v8733, %v8732
        %v8749 = vpack.c.b16 %v8735, %v8734
        %v8750 = vpack.c.b16 %v8737, %v8736
        %v8751 = vpack.c.b16 %v8739, %v8738
        %v8752 = vpack.c.b16 %v8741, %v8740
        %v8753 = vpack.c.b16 %v8743, %v8742
        %v8754 = vpack.c.b16 %v8745, %v8744
        %v8755 = vpack.c.b16 %v8747, %v8746
        %8764 = vst [vmem:[#allocation2 + $0x40] sm:$0x33] %v8748
        %8765 = vst [vmem:[#allocation2 + $0x48] sm:$0x33] %v8749
        %8766 = vst [vmem:[#allocation2 + $0x50] sm:$0x33] %v8750
        %8767 = vst [vmem:[#allocation2 + $0x58] sm:$0x33] %v8751
        %8768 = vst [vmem:[#allocation2 + $0x60] sm:$0x33] %v8752
        %8769 = vst [vmem:[#allocation2 + $0x68] sm:$0x33] %v8753
        %8770 = vst [vmem:[#allocation2 + $0x70] sm:$0x33] %v8754
        %8771 = vst [vmem:[#allocation2 + $0x78] sm:$0x33] %v8755
        %8772 = vrot.lane.b32.xlu0 %v8244, 1
        %v8773 = vpop.permute.xlu0 %8772
        %8774 = vrot.lane.b32.xlu0 %v8245, 1
        %v8775 = vpop.permute.xlu0 %8774
        %8776 = vrot.lane.b32.xlu0 %v8246, 1
        %v8777 = vpop.permute.xlu0 %8776
        %8778 = vrot.lane.b32.xlu0 %v8247, 1
        %v8779 = vpop.permute.xlu0 %8778
        %8780 = vrot.lane.b32.xlu0 %v8248, 1
        %v8781 = vpop.permute.xlu0 %8780
        %8782 = vrot.lane.b32.xlu0 %v8249, 1
        %v8783 = vpop.permute.xlu0 %8782
        %8784 = vrot.lane.b32.xlu0 %v8250, 1
        %v8785 = vpop.permute.xlu0 %8784
        %8786 = vrot.lane.b32.xlu0 %v8251, 1
        %v8787 = vpop.permute.xlu0 %8786
        %8788 = vrot.lane.b32.xlu0 %v8252, 1
        %v8789 = vpop.permute.xlu0 %8788
        %8790 = vrot.lane.b32.xlu0 %v8253, 1
        %v8791 = vpop.permute.xlu0 %8790
        %8792 = vrot.lane.b32.xlu0 %v8254, 1
        %v8793 = vpop.permute.xlu0 %8792
        %8794 = vrot.lane.b32.xlu0 %v8255, 1
        %v8795 = vpop.permute.xlu0 %8794
        %8796 = vrot.lane.b32.xlu0 %v8256, 1
        %v8797 = vpop.permute.xlu0 %8796
        %8798 = vrot.lane.b32.xlu0 %v8257, 1
        %v8799 = vpop.permute.xlu0 %8798
        %8800 = vrot.lane.b32.xlu0 %v8258, 1
        %v8801 = vpop.permute.xlu0 %8800
        %8802 = vrot.lane.b32.xlu0 %v8259, 1
        %v8803 = vpop.permute.xlu0 %8802
        %v8804 = vsel %vm954, %v8801, %v8803
        %v8805 = vsel %vm954, %v8799, %v8801
        %v8806 = vsel %vm954, %v8797, %v8799
        %v8807 = vsel %vm954, %v8795, %v8797
        %v8808 = vsel %vm954, %v8793, %v8795
        %v8809 = vsel %vm954, %v8791, %v8793
        %v8810 = vsel %vm954, %v8789, %v8791
        %v8811 = vsel %vm954, %v8787, %v8789
        %v8812 = vsel %vm954, %v8785, %v8787
        %v8813 = vsel %vm954, %v8783, %v8785
        %v8814 = vsel %vm954, %v8781, %v8783
        %v8815 = vsel %vm954, %v8779, %v8781
        %v8816 = vsel %vm954, %v8777, %v8779
        %v8817 = vsel %vm954, %v8775, %v8777
        %v8818 = vsel %vm954, %v8773, %v8775
        %v8819 = vsel %vm954, %v8803, %v8773
        %v8820 = vld [vmem:[#allocation6 + $0x80] sm:$0xf0]
        %v8821 = vld [vmem:[#allocation6 + $0x88] sm:$0xf0]
        %v8822 = vld [vmem:[#allocation6 + $0x90] sm:$0xf0]
        %v8823 = vld [vmem:[#allocation6 + $0x98] sm:$0xf0]
        %v8824 = vld [vmem:[#allocation6 + $0xa0] sm:$0xf0]
        %v8825 = vld [vmem:[#allocation6 + $0xa8] sm:$0xf0]
        %v8826 = vld [vmem:[#allocation6 + $0xb0] sm:$0xf0]
        %v8827 = vld [vmem:[#allocation6 + $0xb8] sm:$0xf0]
        %v8828 = vld [vmem:[#allocation6 + $0xc0] sm:$0xf0]
        %v8829 = vld [vmem:[#allocation6 + $0xc8] sm:$0xf0]
        %v8830 = vld [vmem:[#allocation6 + $0xd0] sm:$0xf0]
        %v8831 = vld [vmem:[#allocation6 + $0xd8] sm:$0xf0]
        %v8832 = vld [vmem:[#allocation6 + $0xe0] sm:$0xf0]
        %v8833 = vld [vmem:[#allocation6 + $0xe8] sm:$0xf0]
        %v8834 = vld [vmem:[#allocation6 + $0xf0] sm:$0xf0]
        %v8835 = vld [vmem:[#allocation6 + $0xf8] sm:$0xf0]
        %v8852 = vrot.slane %v8820, 4
        %v8853 = vrot.slane %v8821, 4
        %v8854 = vrot.slane %v8822, 4
        %v8855 = vrot.slane %v8823, 4
        %v8856 = vrot.slane %v8824, 4
        %v8857 = vrot.slane %v8825, 4
        %v8858 = vrot.slane %v8826, 4
        %v8859 = vrot.slane %v8827, 4
        %v8860 = vrot.slane %v8828, 4
        %v8861 = vrot.slane %v8829, 4
        %v8862 = vrot.slane %v8830, 4
        %v8863 = vrot.slane %v8831, 4
        %v8864 = vrot.slane %v8832, 4
        %v8865 = vrot.slane %v8833, 4
        %v8866 = vrot.slane %v8834, 4
        %v8867 = vrot.slane %v8835, 4
        %v8884 = vmul.f32 %v8819, %v8852
        %v8885 = vmul.f32 %v8818, %v8853
        %v8886 = vmul.f32 %v8817, %v8854
        %v8887 = vmul.f32 %v8816, %v8855
        %v8888 = vmul.f32 %v8815, %v8856
        %v8889 = vmul.f32 %v8814, %v8857
        %v8890 = vmul.f32 %v8813, %v8858
        %v8891 = vmul.f32 %v8812, %v8859
        %v8892 = vmul.f32 %v8811, %v8860
        %v8893 = vmul.f32 %v8810, %v8861
        %v8894 = vmul.f32 %v8809, %v8862
        %v8895 = vmul.f32 %v8808, %v8863
        %v8896 = vmul.f32 %v8807, %v8864
        %v8897 = vmul.f32 %v8806, %v8865
        %v8898 = vmul.f32 %v8805, %v8866
        %v8899 = vmul.f32 %v8804, %v8867
        %v8900 = vpack.c.bf16 %v8884, %v8884
        %v8901 = vpack.c.bf16 %v8885, %v8885
        %v8902 = vpack.c.bf16 %v8886, %v8886
        %v8903 = vpack.c.bf16 %v8887, %v8887
        %v8904 = vpack.c.bf16 %v8888, %v8888
        %v8905 = vpack.c.bf16 %v8889, %v8889
        %v8906 = vpack.c.bf16 %v8890, %v8890
        %v8907 = vpack.c.bf16 %v8891, %v8891
        %v8908 = vpack.c.bf16 %v8892, %v8892
        %v8909 = vpack.c.bf16 %v8893, %v8893
        %v8910 = vpack.c.bf16 %v8894, %v8894
        %v8911 = vpack.c.bf16 %v8895, %v8895
        %v8912 = vpack.c.bf16 %v8896, %v8896
        %v8913 = vpack.c.bf16 %v8897, %v8897
        %v8914 = vpack.c.bf16 %v8898, %v8898
        %v8915 = vpack.c.bf16 %v8899, %v8899
        %v8932 = vunpack.c.l.b16 %v8900
        %v8933 = vunpack.c.l.b16 %v8901
        %v8934 = vunpack.c.l.b16 %v8902
        %v8935 = vunpack.c.l.b16 %v8903
        %v8936 = vunpack.c.l.b16 %v8904
        %v8937 = vunpack.c.l.b16 %v8905
        %v8938 = vunpack.c.l.b16 %v8906
        %v8939 = vunpack.c.l.b16 %v8907
        %v8940 = vunpack.c.l.b16 %v8908
        %v8941 = vunpack.c.l.b16 %v8909
        %v8942 = vunpack.c.l.b16 %v8910
        %v8943 = vunpack.c.l.b16 %v8911
        %v8944 = vunpack.c.l.b16 %v8912
        %v8945 = vunpack.c.l.b16 %v8913
        %v8946 = vunpack.c.l.b16 %v8914
        %v8947 = vunpack.c.l.b16 %v8915
        %v8948 = vpack.c.b16 %v8933, %v8932
        %v8949 = vpack.c.b16 %v8935, %v8934
        %v8950 = vpack.c.b16 %v8937, %v8936
        %v8951 = vpack.c.b16 %v8939, %v8938
        %v8952 = vpack.c.b16 %v8941, %v8940
        %v8953 = vpack.c.b16 %v8943, %v8942
        %v8954 = vpack.c.b16 %v8945, %v8944
        %v8955 = vpack.c.b16 %v8947, %v8946
        %v8956 = vrot.slane %v8948, 6
        %v8957 = vrot.slane %v8949, 6
        %v8958 = vrot.slane %v8950, 6
        %v8959 = vrot.slane %v8951, 6
        %v8960 = vrot.slane %v8952, 6
        %v8961 = vrot.slane %v8953, 6
        %v8962 = vrot.slane %v8954, 6
        %v8963 = vrot.slane %v8955, 6
        %8972 = vst [vmem:[#allocation2 + $0x40] sm:$0xcc] %v8956
        %8973 = vst [vmem:[#allocation2 + $0x48] sm:$0xcc] %v8957
        %8974 = vst [vmem:[#allocation2 + $0x50] sm:$0xcc] %v8958
        %8975 = vst [vmem:[#allocation2 + $0x58] sm:$0xcc] %v8959
        %8976 = vst [vmem:[#allocation2 + $0x60] sm:$0xcc] %v8960
        %8977 = vst [vmem:[#allocation2 + $0x68] sm:$0xcc] %v8961
        %8978 = vst [vmem:[#allocation2 + $0x70] sm:$0xcc] %v8962
        %8979 = vst [vmem:[#allocation2 + $0x78] sm:$0xcc] %v8963
        %v8980 = vpack.c.bf16 %v8244, %v8244
        %v8981 = vpack.c.bf16 %v8245, %v8245
        %v8982 = vpack.c.bf16 %v8246, %v8246
        %v8983 = vpack.c.bf16 %v8247, %v8247
        %v8984 = vpack.c.bf16 %v8248, %v8248
        %v8985 = vpack.c.bf16 %v8249, %v8249
        %v8986 = vpack.c.bf16 %v8250, %v8250
        %v8987 = vpack.c.bf16 %v8251, %v8251
        %v8988 = vpack.c.bf16 %v8252, %v8252
        %v8989 = vpack.c.bf16 %v8253, %v8253
        %v8990 = vpack.c.bf16 %v8254, %v8254
        %v8991 = vpack.c.bf16 %v8255, %v8255
        %v8992 = vpack.c.bf16 %v8256, %v8256
        %v8993 = vpack.c.bf16 %v8257, %v8257
        %v8994 = vpack.c.bf16 %v8258, %v8258
        %v8995 = vpack.c.bf16 %v8259, %v8259
        %v9012 = vunpack.c.l.b16 %v8980
        %v9013 = vunpack.c.l.b16 %v8981
        %v9014 = vunpack.c.l.b16 %v8982
        %v9015 = vunpack.c.l.b16 %v8983
        %v9016 = vunpack.c.l.b16 %v8984
        %v9017 = vunpack.c.l.b16 %v8985
        %v9018 = vunpack.c.l.b16 %v8986
        %v9019 = vunpack.c.l.b16 %v8987
        %v9020 = vunpack.c.l.b16 %v8988
        %v9021 = vunpack.c.l.b16 %v8989
        %v9022 = vunpack.c.l.b16 %v8990
        %v9023 = vunpack.c.l.b16 %v8991
        %v9024 = vunpack.c.l.b16 %v8992
        %v9025 = vunpack.c.l.b16 %v8993
        %v9026 = vunpack.c.l.b16 %v8994
        %v9027 = vunpack.c.l.b16 %v8995
        %v9028 = vpack.c.b16 %v9013, %v9012
        %v9029 = vpack.c.b16 %v9015, %v9014
        %v9030 = vpack.c.b16 %v9017, %v9016
        %v9031 = vpack.c.b16 %v9019, %v9018
        %v9032 = vpack.c.b16 %v9021, %v9020
        %v9033 = vpack.c.b16 %v9023, %v9022
        %v9034 = vpack.c.b16 %v9025, %v9024
        %v9035 = vpack.c.b16 %v9027, %v9026
        %9044 = vst [vmem:[#allocation2 + $0x80] sm:$0x33] %v9028
        %9045 = vst [vmem:[#allocation2 + $0x88] sm:$0x33] %v9029
        %9046 = vst [vmem:[#allocation2 + $0x90] sm:$0x33] %v9030
        %9047 = vst [vmem:[#allocation2 + $0x98] sm:$0x33] %v9031
        %9048 = vst [vmem:[#allocation2 + $0xa0] sm:$0x33] %v9032
        %9049 = vst [vmem:[#allocation2 + $0xa8] sm:$0x33] %v9033
        %9050 = vst [vmem:[#allocation2 + $0xb0] sm:$0x33] %v9034
        %9051 = vst [vmem:[#allocation2 + $0xb8] sm:$0x33] %v9035
        %9052 = vrot.lane.b32.xlu0 %v8244, 127
        %v9053 = vpop.permute.xlu0 %9052
        %9054 = vrot.lane.b32.xlu0 %v8245, 127
        %v9055 = vpop.permute.xlu0 %9054
        %9056 = vrot.lane.b32.xlu0 %v8246, 127
        %v9057 = vpop.permute.xlu0 %9056
        %9058 = vrot.lane.b32.xlu0 %v8247, 127
        %v9059 = vpop.permute.xlu0 %9058
        %9060 = vrot.lane.b32.xlu0 %v8248, 127
        %v9061 = vpop.permute.xlu0 %9060
        %9062 = vrot.lane.b32.xlu0 %v8249, 127
        %v9063 = vpop.permute.xlu0 %9062
        %9064 = vrot.lane.b32.xlu0 %v8250, 127
        %v9065 = vpop.permute.xlu0 %9064
        %9066 = vrot.lane.b32.xlu0 %v8251, 127
        %v9067 = vpop.permute.xlu0 %9066
        %9068 = vrot.lane.b32.xlu0 %v8252, 127
        %v9069 = vpop.permute.xlu0 %9068
        %9070 = vrot.lane.b32.xlu0 %v8253, 127
        %v9071 = vpop.permute.xlu0 %9070
        %9072 = vrot.lane.b32.xlu0 %v8254, 127
        %v9073 = vpop.permute.xlu0 %9072
        %9074 = vrot.lane.b32.xlu0 %v8255, 127
        %v9075 = vpop.permute.xlu0 %9074
        %9076 = vrot.lane.b32.xlu0 %v8256, 127
        %v9077 = vpop.permute.xlu0 %9076
        %9078 = vrot.lane.b32.xlu0 %v8257, 127
        %v9079 = vpop.permute.xlu0 %9078
        %9080 = vrot.lane.b32.xlu0 %v8258, 127
        %v9081 = vpop.permute.xlu0 %9080
        %9082 = vrot.lane.b32.xlu0 %v8259, 127
        %v9083 = vpop.permute.xlu0 %9082
        %v9084 = vsel %vm1282, %v9081, %v9083
        %v9085 = vsel %vm1282, %v9079, %v9081
        %v9086 = vsel %vm1282, %v9077, %v9079
        %v9087 = vsel %vm1282, %v9075, %v9077
        %v9088 = vsel %vm1282, %v9073, %v9075
        %v9089 = vsel %vm1282, %v9071, %v9073
        %v9090 = vsel %vm1282, %v9069, %v9071
        %v9091 = vsel %vm1282, %v9067, %v9069
        %v9092 = vsel %vm1282, %v9065, %v9067
        %v9093 = vsel %vm1282, %v9063, %v9065
        %v9094 = vsel %vm1282, %v9061, %v9063
        %v9095 = vsel %vm1282, %v9059, %v9061
        %v9096 = vsel %vm1282, %v9057, %v9059
        %v9097 = vsel %vm1282, %v9055, %v9057
        %v9098 = vsel %vm1282, %v9053, %v9055
        %v9099 = vsel %vm1282, %v9083, %v9053
        %v9100 = vld [vmem:[#allocation6 + $0x100] sm:$0xf0]
        %v9101 = vld [vmem:[#allocation6 + $0x108] sm:$0xf0]
        %v9102 = vld [vmem:[#allocation6 + $0x110] sm:$0xf0]
        %v9103 = vld [vmem:[#allocation6 + $0x118] sm:$0xf0]
        %v9104 = vld [vmem:[#allocation6 + $0x120] sm:$0xf0]
        %v9105 = vld [vmem:[#allocation6 + $0x128] sm:$0xf0]
        %v9106 = vld [vmem:[#allocation6 + $0x130] sm:$0xf0]
        %v9107 = vld [vmem:[#allocation6 + $0x138] sm:$0xf0]
        %v9108 = vld [vmem:[#allocation6 + $0x140] sm:$0xf0]
        %v9109 = vld [vmem:[#allocation6 + $0x148] sm:$0xf0]
        %v9110 = vld [vmem:[#allocation6 + $0x150] sm:$0xf0]
        %v9111 = vld [vmem:[#allocation6 + $0x158] sm:$0xf0]
        %v9112 = vld [vmem:[#allocation6 + $0x160] sm:$0xf0]
        %v9113 = vld [vmem:[#allocation6 + $0x168] sm:$0xf0]
        %v9114 = vld [vmem:[#allocation6 + $0x170] sm:$0xf0]
        %v9115 = vld [vmem:[#allocation6 + $0x178] sm:$0xf0]
        %v9132 = vrot.slane %v9100, 4
        %v9133 = vrot.slane %v9101, 4
        %v9134 = vrot.slane %v9102, 4
        %v9135 = vrot.slane %v9103, 4
        %v9136 = vrot.slane %v9104, 4
        %v9137 = vrot.slane %v9105, 4
        %v9138 = vrot.slane %v9106, 4
        %v9139 = vrot.slane %v9107, 4
        %v9140 = vrot.slane %v9108, 4
        %v9141 = vrot.slane %v9109, 4
        %v9142 = vrot.slane %v9110, 4
        %v9143 = vrot.slane %v9111, 4
        %v9144 = vrot.slane %v9112, 4
        %v9145 = vrot.slane %v9113, 4
        %v9146 = vrot.slane %v9114, 4
        %v9147 = vrot.slane %v9115, 4
        %v9164 = vmul.f32 %v9098, %v9132
        %v9165 = vmul.f32 %v9097, %v9133
        %v9166 = vmul.f32 %v9096, %v9134
        %v9167 = vmul.f32 %v9095, %v9135
        %v9168 = vmul.f32 %v9094, %v9136
        %v9169 = vmul.f32 %v9093, %v9137
        %v9170 = vmul.f32 %v9092, %v9138
        %v9171 = vmul.f32 %v9091, %v9139
        %v9172 = vmul.f32 %v9090, %v9140
        %v9173 = vmul.f32 %v9089, %v9141
        %v9174 = vmul.f32 %v9088, %v9142
        %v9175 = vmul.f32 %v9087, %v9143
        %v9176 = vmul.f32 %v9086, %v9144
        %v9177 = vmul.f32 %v9085, %v9145
        %v9178 = vmul.f32 %v9084, %v9146
        %v9179 = vmul.f32 %v9099, %v9147
        %v9180 = vpack.c.bf16 %v9164, %v9164
        %v9181 = vpack.c.bf16 %v9165, %v9165
        %v9182 = vpack.c.bf16 %v9166, %v9166
        %v9183 = vpack.c.bf16 %v9167, %v9167
        %v9184 = vpack.c.bf16 %v9168, %v9168
        %v9185 = vpack.c.bf16 %v9169, %v9169
        %v9186 = vpack.c.bf16 %v9170, %v9170
        %v9187 = vpack.c.bf16 %v9171, %v9171
        %v9188 = vpack.c.bf16 %v9172, %v9172
        %v9189 = vpack.c.bf16 %v9173, %v9173
        %v9190 = vpack.c.bf16 %v9174, %v9174
        %v9191 = vpack.c.bf16 %v9175, %v9175
        %v9192 = vpack.c.bf16 %v9176, %v9176
        %v9193 = vpack.c.bf16 %v9177, %v9177
        %v9194 = vpack.c.bf16 %v9178, %v9178
        %v9195 = vpack.c.bf16 %v9179, %v9179
        %v9212 = vunpack.c.l.b16 %v9180
        %v9213 = vunpack.c.l.b16 %v9181
        %v9214 = vunpack.c.l.b16 %v9182
        %v9215 = vunpack.c.l.b16 %v9183
        %v9216 = vunpack.c.l.b16 %v9184
        %v9217 = vunpack.c.l.b16 %v9185
        %v9218 = vunpack.c.l.b16 %v9186
        %v9219 = vunpack.c.l.b16 %v9187
        %v9220 = vunpack.c.l.b16 %v9188
        %v9221 = vunpack.c.l.b16 %v9189
        %v9222 = vunpack.c.l.b16 %v9190
        %v9223 = vunpack.c.l.b16 %v9191
        %v9224 = vunpack.c.l.b16 %v9192
        %v9225 = vunpack.c.l.b16 %v9193
        %v9226 = vunpack.c.l.b16 %v9194
        %v9227 = vunpack.c.l.b16 %v9195
        %v9228 = vpack.c.b16 %v9213, %v9212
        %v9229 = vpack.c.b16 %v9215, %v9214
        %v9230 = vpack.c.b16 %v9217, %v9216
        %v9231 = vpack.c.b16 %v9219, %v9218
        %v9232 = vpack.c.b16 %v9221, %v9220
        %v9233 = vpack.c.b16 %v9223, %v9222
        %v9234 = vpack.c.b16 %v9225, %v9224
        %v9235 = vpack.c.b16 %v9227, %v9226
        %v9236 = vrot.slane %v9228, 6
        %v9237 = vrot.slane %v9229, 6
        %v9238 = vrot.slane %v9230, 6
        %v9239 = vrot.slane %v9231, 6
        %v9240 = vrot.slane %v9232, 6
        %v9241 = vrot.slane %v9233, 6
        %v9242 = vrot.slane %v9234, 6
        %v9243 = vrot.slane %v9235, 6
        %9252 = vst [vmem:[#allocation2 + $0x80] sm:$0xcc] %v9236
        %9253 = vst [vmem:[#allocation2 + $0x88] sm:$0xcc] %v9237
        %9254 = vst [vmem:[#allocation2 + $0x90] sm:$0xcc] %v9238
        %9255 = vst [vmem:[#allocation2 + $0x98] sm:$0xcc] %v9239
        %9256 = vst [vmem:[#allocation2 + $0xa0] sm:$0xcc] %v9240
        %9257 = vst [vmem:[#allocation2 + $0xa8] sm:$0xcc] %v9241
        %9258 = vst [vmem:[#allocation2 + $0xb0] sm:$0xcc] %v9242
        %9259 = vst [vmem:[#allocation2 + $0xb8] sm:$0xcc] %v9243
        %9260 = vrot.lane.b32.xlu0 %v8244, 113
        %v9261 = vpop.permute.xlu0 %9260
        %9262 = vrot.lane.b32.xlu0 %v8245, 113
        %v9263 = vpop.permute.xlu0 %9262
        %9264 = vrot.lane.b32.xlu0 %v8246, 113
        %v9265 = vpop.permute.xlu0 %9264
        %9266 = vrot.lane.b32.xlu0 %v8247, 113
        %v9267 = vpop.permute.xlu0 %9266
        %9268 = vrot.lane.b32.xlu0 %v8248, 113
        %v9269 = vpop.permute.xlu0 %9268
        %9270 = vrot.lane.b32.xlu0 %v8249, 113
        %v9271 = vpop.permute.xlu0 %9270
        %9272 = vrot.lane.b32.xlu0 %v8250, 113
        %v9273 = vpop.permute.xlu0 %9272
        %9274 = vrot.lane.b32.xlu0 %v8251, 113
        %v9275 = vpop.permute.xlu0 %9274
        %9276 = vrot.lane.b32.xlu0 %v8252, 113
        %v9277 = vpop.permute.xlu0 %9276
        %9278 = vrot.lane.b32.xlu0 %v8253, 113
        %v9279 = vpop.permute.xlu0 %9278
        %9280 = vrot.lane.b32.xlu0 %v8254, 113
        %v9281 = vpop.permute.xlu0 %9280
        %9282 = vrot.lane.b32.xlu0 %v8255, 113
        %v9283 = vpop.permute.xlu0 %9282
        %9284 = vrot.lane.b32.xlu0 %v8256, 113
        %v9285 = vpop.permute.xlu0 %9284
        %9286 = vrot.lane.b32.xlu0 %v8257, 113
        %v9287 = vpop.permute.xlu0 %9286
        %9288 = vrot.lane.b32.xlu0 %v8258, 113
        %v9289 = vpop.permute.xlu0 %9288
        %9290 = vrot.lane.b32.xlu0 %v8259, 113
        %v9291 = vpop.permute.xlu0 %9290
        %v9292 = vsel %vm1511, %v9289, %v9291
        %v9293 = vsel %vm1511, %v9287, %v9289
        %v9294 = vsel %vm1511, %v9285, %v9287
        %v9295 = vsel %vm1511, %v9283, %v9285
        %v9296 = vsel %vm1511, %v9281, %v9283
        %v9297 = vsel %vm1511, %v9279, %v9281
        %v9298 = vsel %vm1511, %v9277, %v9279
        %v9299 = vsel %vm1511, %v9275, %v9277
        %v9300 = vsel %vm1511, %v9273, %v9275
        %v9301 = vsel %vm1511, %v9271, %v9273
        %v9302 = vsel %vm1511, %v9269, %v9271
        %v9303 = vsel %vm1511, %v9267, %v9269
        %v9304 = vsel %vm1511, %v9265, %v9267
        %v9305 = vsel %vm1511, %v9263, %v9265
        %v9306 = vsel %vm1511, %v9261, %v9263
        %v9307 = vsel %vm1511, %v9291, %v9261
        %v9308 = vld [vmem:[#allocation6 + $0x180] sm:$0xf]
        %v9309 = vld [vmem:[#allocation6 + $0x188] sm:$0xf]
        %v9310 = vld [vmem:[#allocation6 + $0x190] sm:$0xf]
        %v9311 = vld [vmem:[#allocation6 + $0x198] sm:$0xf]
        %v9312 = vld [vmem:[#allocation6 + $0x1a0] sm:$0xf]
        %v9313 = vld [vmem:[#allocation6 + $0x1a8] sm:$0xf]
        %v9314 = vld [vmem:[#allocation6 + $0x1b0] sm:$0xf]
        %v9315 = vld [vmem:[#allocation6 + $0x1b8] sm:$0xf]
        %v9316 = vld [vmem:[#allocation6 + $0x1c0] sm:$0xf]
        %v9317 = vld [vmem:[#allocation6 + $0x1c8] sm:$0xf]
        %v9318 = vld [vmem:[#allocation6 + $0x1d0] sm:$0xf]
        %v9319 = vld [vmem:[#allocation6 + $0x1d8] sm:$0xf]
        %v9320 = vld [vmem:[#allocation6 + $0x1e0] sm:$0xf]
        %v9321 = vld [vmem:[#allocation6 + $0x1e8] sm:$0xf]
        %v9322 = vld [vmem:[#allocation6 + $0x1f0] sm:$0xf]
        %v9323 = vld [vmem:[#allocation6 + $0x1f8] sm:$0xf]
        %v9324 = vmul.f32 %v9306, %v9308
        %v9325 = vmul.f32 %v9305, %v9309
        %v9326 = vmul.f32 %v9304, %v9310
        %v9327 = vmul.f32 %v9303, %v9311
        %v9328 = vmul.f32 %v9302, %v9312
        %v9329 = vmul.f32 %v9301, %v9313
        %v9330 = vmul.f32 %v9300, %v9314
        %v9331 = vmul.f32 %v9299, %v9315
        %v9332 = vmul.f32 %v9298, %v9316
        %v9333 = vmul.f32 %v9297, %v9317
        %v9334 = vmul.f32 %v9296, %v9318
        %v9335 = vmul.f32 %v9295, %v9319
        %v9336 = vmul.f32 %v9294, %v9320
        %v9337 = vmul.f32 %v9293, %v9321
        %v9338 = vmul.f32 %v9292, %v9322
        %v9339 = vmul.f32 %v9307, %v9323
        %v9340 = vpack.c.bf16 %v9324, %v9324
        %v9341 = vpack.c.bf16 %v9325, %v9325
        %v9342 = vpack.c.bf16 %v9326, %v9326
        %v9343 = vpack.c.bf16 %v9327, %v9327
        %v9344 = vpack.c.bf16 %v9328, %v9328
        %v9345 = vpack.c.bf16 %v9329, %v9329
        %v9346 = vpack.c.bf16 %v9330, %v9330
        %v9347 = vpack.c.bf16 %v9331, %v9331
        %v9348 = vpack.c.bf16 %v9332, %v9332
        %v9349 = vpack.c.bf16 %v9333, %v9333
        %v9350 = vpack.c.bf16 %v9334, %v9334
        %v9351 = vpack.c.bf16 %v9335, %v9335
        %v9352 = vpack.c.bf16 %v9336, %v9336
        %v9353 = vpack.c.bf16 %v9337, %v9337
        %v9354 = vpack.c.bf16 %v9338, %v9338
        %v9355 = vpack.c.bf16 %v9339, %v9339
        %v9372 = vunpack.c.l.b16 %v9340
        %v9373 = vunpack.c.l.b16 %v9341
        %v9374 = vunpack.c.l.b16 %v9342
        %v9375 = vunpack.c.l.b16 %v9343
        %v9376 = vunpack.c.l.b16 %v9344
        %v9377 = vunpack.c.l.b16 %v9345
        %v9378 = vunpack.c.l.b16 %v9346
        %v9379 = vunpack.c.l.b16 %v9347
        %v9380 = vunpack.c.l.b16 %v9348
        %v9381 = vunpack.c.l.b16 %v9349
        %v9382 = vunpack.c.l.b16 %v9350
        %v9383 = vunpack.c.l.b16 %v9351
        %v9384 = vunpack.c.l.b16 %v9352
        %v9385 = vunpack.c.l.b16 %v9353
        %v9386 = vunpack.c.l.b16 %v9354
        %v9387 = vunpack.c.l.b16 %v9355
        %v9388 = vpack.c.b16 %v9373, %v9372
        %v9389 = vpack.c.b16 %v9375, %v9374
        %v9390 = vpack.c.b16 %v9377, %v9376
        %v9391 = vpack.c.b16 %v9379, %v9378
        %v9392 = vpack.c.b16 %v9381, %v9380
        %v9393 = vpack.c.b16 %v9383, %v9382
        %v9394 = vpack.c.b16 %v9385, %v9384
        %v9395 = vpack.c.b16 %v9387, %v9386
        %9404 = vst [vmem:[#allocation2 + $0xc0] sm:$0x33] %v9388
        %9405 = vst [vmem:[#allocation2 + $0xc8] sm:$0x33] %v9389
        %9406 = vst [vmem:[#allocation2 + $0xd0] sm:$0x33] %v9390
        %9407 = vst [vmem:[#allocation2 + $0xd8] sm:$0x33] %v9391
        %9408 = vst [vmem:[#allocation2 + $0xe0] sm:$0x33] %v9392
        %9409 = vst [vmem:[#allocation2 + $0xe8] sm:$0x33] %v9393
        %9410 = vst [vmem:[#allocation2 + $0xf0] sm:$0x33] %v9394
        %9411 = vst [vmem:[#allocation2 + $0xf8] sm:$0x33] %v9395
        %9412 = vrot.lane.b32.xlu0 %v8244, 112
        %v9413 = vpop.permute.xlu0 %9412
        %9414 = vrot.lane.b32.xlu0 %v8245, 112
        %v9415 = vpop.permute.xlu0 %9414
        %9416 = vrot.lane.b32.xlu0 %v8246, 112
        %v9417 = vpop.permute.xlu0 %9416
        %9418 = vrot.lane.b32.xlu0 %v8247, 112
        %v9419 = vpop.permute.xlu0 %9418
        %9420 = vrot.lane.b32.xlu0 %v8248, 112
        %v9421 = vpop.permute.xlu0 %9420
        %9422 = vrot.lane.b32.xlu0 %v8249, 112
        %v9423 = vpop.permute.xlu0 %9422
        %9424 = vrot.lane.b32.xlu0 %v8250, 112
        %v9425 = vpop.permute.xlu0 %9424
        %9426 = vrot.lane.b32.xlu0 %v8251, 112
        %v9427 = vpop.permute.xlu0 %9426
        %9428 = vrot.lane.b32.xlu0 %v8252, 112
        %v9429 = vpop.permute.xlu0 %9428
        %9430 = vrot.lane.b32.xlu0 %v8253, 112
        %v9431 = vpop.permute.xlu0 %9430
        %9432 = vrot.lane.b32.xlu0 %v8254, 112
        %v9433 = vpop.permute.xlu0 %9432
        %9434 = vrot.lane.b32.xlu0 %v8255, 112
        %v9435 = vpop.permute.xlu0 %9434
        %9436 = vrot.lane.b32.xlu0 %v8256, 112
        %v9437 = vpop.permute.xlu0 %9436
        %9438 = vrot.lane.b32.xlu0 %v8257, 112
        %v9439 = vpop.permute.xlu0 %9438
        %9440 = vrot.lane.b32.xlu0 %v8258, 112
        %v9441 = vpop.permute.xlu0 %9440
        %9442 = vrot.lane.b32.xlu0 %v8259, 112
        %v9443 = vpop.permute.xlu0 %9442
        %v9444 = vsel %vm1691, %v9441, %v9443
        %v9445 = vsel %vm1691, %v9439, %v9441
        %v9446 = vsel %vm1691, %v9437, %v9439
        %v9447 = vsel %vm1691, %v9435, %v9437
        %v9448 = vsel %vm1691, %v9433, %v9435
        %v9449 = vsel %vm1691, %v9431, %v9433
        %v9450 = vsel %vm1691, %v9429, %v9431
        %v9451 = vsel %vm1691, %v9427, %v9429
        %v9452 = vsel %vm1691, %v9425, %v9427
        %v9453 = vsel %vm1691, %v9423, %v9425
        %v9454 = vsel %vm1691, %v9421, %v9423
        %v9455 = vsel %vm1691, %v9419, %v9421
        %v9456 = vsel %vm1691, %v9417, %v9419
        %v9457 = vsel %vm1691, %v9415, %v9417
        %v9458 = vsel %vm1691, %v9413, %v9415
        %v9459 = vsel %vm1691, %v9443, %v9413
        %v9460 = vld [vmem:[#allocation6 + $0x180] sm:$0xf0]
        %v9461 = vld [vmem:[#allocation6 + $0x188] sm:$0xf0]
        %v9462 = vld [vmem:[#allocation6 + $0x190] sm:$0xf0]
        %v9463 = vld [vmem:[#allocation6 + $0x198] sm:$0xf0]
        %v9464 = vld [vmem:[#allocation6 + $0x1a0] sm:$0xf0]
        %v9465 = vld [vmem:[#allocation6 + $0x1a8] sm:$0xf0]
        %v9466 = vld [vmem:[#allocation6 + $0x1b0] sm:$0xf0]
        %v9467 = vld [vmem:[#allocation6 + $0x1b8] sm:$0xf0]
        %v9468 = vld [vmem:[#allocation6 + $0x1c0] sm:$0xf0]
        %v9469 = vld [vmem:[#allocation6 + $0x1c8] sm:$0xf0]
        %v9470 = vld [vmem:[#allocation6 + $0x1d0] sm:$0xf0]
        %v9471 = vld [vmem:[#allocation6 + $0x1d8] sm:$0xf0]
        %v9472 = vld [vmem:[#allocation6 + $0x1e0] sm:$0xf0]
        %v9473 = vld [vmem:[#allocation6 + $0x1e8] sm:$0xf0]
        %v9474 = vld [vmem:[#allocation6 + $0x1f0] sm:$0xf0]
        %v9475 = vld [vmem:[#allocation6 + $0x1f8] sm:$0xf0]
        %v9492 = vrot.slane %v9460, 4
        %v9493 = vrot.slane %v9461, 4
        %v9494 = vrot.slane %v9462, 4
        %v9495 = vrot.slane %v9463, 4
        %v9496 = vrot.slane %v9464, 4
        %v9497 = vrot.slane %v9465, 4
        %v9498 = vrot.slane %v9466, 4
        %v9499 = vrot.slane %v9467, 4
        %v9500 = vrot.slane %v9468, 4
        %v9501 = vrot.slane %v9469, 4
        %v9502 = vrot.slane %v9470, 4
        %v9503 = vrot.slane %v9471, 4
        %v9504 = vrot.slane %v9472, 4
        %v9505 = vrot.slane %v9473, 4
        %v9506 = vrot.slane %v9474, 4
        %v9507 = vrot.slane %v9475, 4
        %v9524 = vmul.f32 %v9458, %v9492
        %v9525 = vmul.f32 %v9457, %v9493
        %v9526 = vmul.f32 %v9456, %v9494
        %v9527 = vmul.f32 %v9455, %v9495
        %v9528 = vmul.f32 %v9454, %v9496
        %v9529 = vmul.f32 %v9453, %v9497
        %v9530 = vmul.f32 %v9452, %v9498
        %v9531 = vmul.f32 %v9451, %v9499
        %v9532 = vmul.f32 %v9450, %v9500
        %v9533 = vmul.f32 %v9449, %v9501
        %v9534 = vmul.f32 %v9448, %v9502
        %v9535 = vmul.f32 %v9447, %v9503
        %v9536 = vmul.f32 %v9446, %v9504
        %v9537 = vmul.f32 %v9445, %v9505
        %v9538 = vmul.f32 %v9444, %v9506
        %v9539 = vmul.f32 %v9459, %v9507
        %v9540 = vpack.c.bf16 %v9524, %v9524
        %v9541 = vpack.c.bf16 %v9525, %v9525
        %v9542 = vpack.c.bf16 %v9526, %v9526
        %v9543 = vpack.c.bf16 %v9527, %v9527
        %v9544 = vpack.c.bf16 %v9528, %v9528
        %v9545 = vpack.c.bf16 %v9529, %v9529
        %v9546 = vpack.c.bf16 %v9530, %v9530
        %v9547 = vpack.c.bf16 %v9531, %v9531
        %v9548 = vpack.c.bf16 %v9532, %v9532
        %v9549 = vpack.c.bf16 %v9533, %v9533
        %v9550 = vpack.c.bf16 %v9534, %v9534
        %v9551 = vpack.c.bf16 %v9535, %v9535
        %v9552 = vpack.c.bf16 %v9536, %v9536
        %v9553 = vpack.c.bf16 %v9537, %v9537
        %v9554 = vpack.c.bf16 %v9538, %v9538
        %v9555 = vpack.c.bf16 %v9539, %v9539
        %v9572 = vunpack.c.l.b16 %v9540
        %v9573 = vunpack.c.l.b16 %v9541
        %v9574 = vunpack.c.l.b16 %v9542
        %v9575 = vunpack.c.l.b16 %v9543
        %v9576 = vunpack.c.l.b16 %v9544
        %v9577 = vunpack.c.l.b16 %v9545
        %v9578 = vunpack.c.l.b16 %v9546
        %v9579 = vunpack.c.l.b16 %v9547
        %v9580 = vunpack.c.l.b16 %v9548
        %v9581 = vunpack.c.l.b16 %v9549
        %v9582 = vunpack.c.l.b16 %v9550
        %v9583 = vunpack.c.l.b16 %v9551
        %v9584 = vunpack.c.l.b16 %v9552
        %v9585 = vunpack.c.l.b16 %v9553
        %v9586 = vunpack.c.l.b16 %v9554
        %v9587 = vunpack.c.l.b16 %v9555
        %v9588 = vpack.c.b16 %v9573, %v9572
        %v9589 = vpack.c.b16 %v9575, %v9574
        %v9590 = vpack.c.b16 %v9577, %v9576
        %v9591 = vpack.c.b16 %v9579, %v9578
        %v9592 = vpack.c.b16 %v9581, %v9580
        %v9593 = vpack.c.b16 %v9583, %v9582
        %v9594 = vpack.c.b16 %v9585, %v9584
        %v9595 = vpack.c.b16 %v9587, %v9586
        %v9596 = vrot.slane %v9588, 6
        %v9597 = vrot.slane %v9589, 6
        %v9598 = vrot.slane %v9590, 6
        %v9599 = vrot.slane %v9591, 6
        %v9600 = vrot.slane %v9592, 6
        %v9601 = vrot.slane %v9593, 6
        %v9602 = vrot.slane %v9594, 6
        %v9603 = vrot.slane %v9595, 6
        %9612 = vst [vmem:[#allocation2 + $0xc0] sm:$0xcc] %v9596
        %9613 = vst [vmem:[#allocation2 + $0xc8] sm:$0xcc] %v9597
        %9614 = vst [vmem:[#allocation2 + $0xd0] sm:$0xcc] %v9598
        %9615 = vst [vmem:[#allocation2 + $0xd8] sm:$0xcc] %v9599
        %9616 = vst [vmem:[#allocation2 + $0xe0] sm:$0xcc] %v9600
        %9617 = vst [vmem:[#allocation2 + $0xe8] sm:$0xcc] %v9601
        %9618 = vst [vmem:[#allocation2 + $0xf0] sm:$0xcc] %v9602
        %9619 = vst [vmem:[#allocation2 + $0xf8] sm:$0xcc] %v9603
        %9620 = vrot.lane.b32.xlu0 %v8244, 111
        %v9621 = vpop.permute.xlu0 %9620
        %9622 = vrot.lane.b32.xlu0 %v8245, 111
        %v9623 = vpop.permute.xlu0 %9622
        %9624 = vrot.lane.b32.xlu0 %v8246, 111
        %v9625 = vpop.permute.xlu0 %9624
        %9626 = vrot.lane.b32.xlu0 %v8247, 111
        %v9627 = vpop.permute.xlu0 %9626
        %9628 = vrot.lane.b32.xlu0 %v8248, 111
        %v9629 = vpop.permute.xlu0 %9628
        %9630 = vrot.lane.b32.xlu0 %v8249, 111
        %v9631 = vpop.permute.xlu0 %9630
        %9632 = vrot.lane.b32.xlu0 %v8250, 111
        %v9633 = vpop.permute.xlu0 %9632
        %9634 = vrot.lane.b32.xlu0 %v8251, 111
        %v9635 = vpop.permute.xlu0 %9634
        %9636 = vrot.lane.b32.xlu0 %v8252, 111
        %v9637 = vpop.permute.xlu0 %9636
        %9638 = vrot.lane.b32.xlu0 %v8253, 111
        %v9639 = vpop.permute.xlu0 %9638
        %9640 = vrot.lane.b32.xlu0 %v8254, 111
        %v9641 = vpop.permute.xlu0 %9640
        %9642 = vrot.lane.b32.xlu0 %v8255, 111
        %v9643 = vpop.permute.xlu0 %9642
        %9644 = vrot.lane.b32.xlu0 %v8256, 111
        %v9645 = vpop.permute.xlu0 %9644
        %9646 = vrot.lane.b32.xlu0 %v8257, 111
        %v9647 = vpop.permute.xlu0 %9646
        %9648 = vrot.lane.b32.xlu0 %v8258, 111
        %v9649 = vpop.permute.xlu0 %9648
        %9650 = vrot.lane.b32.xlu0 %v8259, 111
        %v9651 = vpop.permute.xlu0 %9650
        %v9652 = vsel %vm1920, %v9649, %v9651
        %v9653 = vsel %vm1920, %v9647, %v9649
        %v9654 = vsel %vm1920, %v9645, %v9647
        %v9655 = vsel %vm1920, %v9643, %v9645
        %v9656 = vsel %vm1920, %v9641, %v9643
        %v9657 = vsel %vm1920, %v9639, %v9641
        %v9658 = vsel %vm1920, %v9637, %v9639
        %v9659 = vsel %vm1920, %v9635, %v9637
        %v9660 = vsel %vm1920, %v9633, %v9635
        %v9661 = vsel %vm1920, %v9631, %v9633
        %v9662 = vsel %vm1920, %v9629, %v9631
        %v9663 = vsel %vm1920, %v9627, %v9629
        %v9664 = vsel %vm1920, %v9625, %v9627
        %v9665 = vsel %vm1920, %v9623, %v9625
        %v9666 = vsel %vm1920, %v9621, %v9623
        %v9667 = vsel %vm1920, %v9651, %v9621
        %v9668 = vld [vmem:[#allocation6 + $0x200] sm:$0xf]
        %v9669 = vld [vmem:[#allocation6 + $0x208] sm:$0xf]
        %v9670 = vld [vmem:[#allocation6 + $0x210] sm:$0xf]
        %v9671 = vld [vmem:[#allocation6 + $0x218] sm:$0xf]
        %v9672 = vld [vmem:[#allocation6 + $0x220] sm:$0xf]
        %v9673 = vld [vmem:[#allocation6 + $0x228] sm:$0xf]
        %v9674 = vld [vmem:[#allocation6 + $0x230] sm:$0xf]
        %v9675 = vld [vmem:[#allocation6 + $0x238] sm:$0xf]
        %v9676 = vld [vmem:[#allocation6 + $0x240] sm:$0xf]
        %v9677 = vld [vmem:[#allocation6 + $0x248] sm:$0xf]
        %v9678 = vld [vmem:[#allocation6 + $0x250] sm:$0xf]
        %v9679 = vld [vmem:[#allocation6 + $0x258] sm:$0xf]
        %v9680 = vld [vmem:[#allocation6 + $0x260] sm:$0xf]
        %v9681 = vld [vmem:[#allocation6 + $0x268] sm:$0xf]
        %v9682 = vld [vmem:[#allocation6 + $0x270] sm:$0xf]
        %v9683 = vld [vmem:[#allocation6 + $0x278] sm:$0xf]
        %v9684 = vmul.f32 %v9666, %v9668
        %v9685 = vmul.f32 %v9665, %v9669
        %v9686 = vmul.f32 %v9664, %v9670
        %v9687 = vmul.f32 %v9663, %v9671
        %v9688 = vmul.f32 %v9662, %v9672
        %v9689 = vmul.f32 %v9661, %v9673
        %v9690 = vmul.f32 %v9660, %v9674
        %v9691 = vmul.f32 %v9659, %v9675
        %v9692 = vmul.f32 %v9658, %v9676
        %v9693 = vmul.f32 %v9657, %v9677
        %v9694 = vmul.f32 %v9656, %v9678
        %v9695 = vmul.f32 %v9655, %v9679
        %v9696 = vmul.f32 %v9654, %v9680
        %v9697 = vmul.f32 %v9653, %v9681
        %v9698 = vmul.f32 %v9652, %v9682
        %v9699 = vmul.f32 %v9667, %v9683
        %v9700 = vpack.c.bf16 %v9684, %v9684
        %v9701 = vpack.c.bf16 %v9685, %v9685
        %v9702 = vpack.c.bf16 %v9686, %v9686
        %v9703 = vpack.c.bf16 %v9687, %v9687
        %v9704 = vpack.c.bf16 %v9688, %v9688
        %v9705 = vpack.c.bf16 %v9689, %v9689
        %v9706 = vpack.c.bf16 %v9690, %v9690
        %v9707 = vpack.c.bf16 %v9691, %v9691
        %v9708 = vpack.c.bf16 %v9692, %v9692
        %v9709 = vpack.c.bf16 %v9693, %v9693
        %v9710 = vpack.c.bf16 %v9694, %v9694
        %v9711 = vpack.c.bf16 %v9695, %v9695
        %v9712 = vpack.c.bf16 %v9696, %v9696
        %v9713 = vpack.c.bf16 %v9697, %v9697
        %v9714 = vpack.c.bf16 %v9698, %v9698
        %v9715 = vpack.c.bf16 %v9699, %v9699
        %v9732 = vunpack.c.l.b16 %v9700
        %v9733 = vunpack.c.l.b16 %v9701
        %v9734 = vunpack.c.l.b16 %v9702
        %v9735 = vunpack.c.l.b16 %v9703
        %v9736 = vunpack.c.l.b16 %v9704
        %v9737 = vunpack.c.l.b16 %v9705
        %v9738 = vunpack.c.l.b16 %v9706
        %v9739 = vunpack.c.l.b16 %v9707
        %v9740 = vunpack.c.l.b16 %v9708
        %v9741 = vunpack.c.l.b16 %v9709
        %v9742 = vunpack.c.l.b16 %v9710
        %v9743 = vunpack.c.l.b16 %v9711
        %v9744 = vunpack.c.l.b16 %v9712
        %v9745 = vunpack.c.l.b16 %v9713
        %v9746 = vunpack.c.l.b16 %v9714
        %v9747 = vunpack.c.l.b16 %v9715
        %v9748 = vpack.c.b16 %v9733, %v9732
        %v9749 = vpack.c.b16 %v9735, %v9734
        %v9750 = vpack.c.b16 %v9737, %v9736
        %v9751 = vpack.c.b16 %v9739, %v9738
        %v9752 = vpack.c.b16 %v9741, %v9740
        %v9753 = vpack.c.b16 %v9743, %v9742
        %v9754 = vpack.c.b16 %v9745, %v9744
        %v9755 = vpack.c.b16 %v9747, %v9746
        %9764 = vst [vmem:[#allocation2 + $0x100] sm:$0x33] %v9748
        %9765 = vst [vmem:[#allocation2 + $0x108] sm:$0x33] %v9749
        %9766 = vst [vmem:[#allocation2 + $0x110] sm:$0x33] %v9750
        %9767 = vst [vmem:[#allocation2 + $0x118] sm:$0x33] %v9751
        %9768 = vst [vmem:[#allocation2 + $0x120] sm:$0x33] %v9752
        %9769 = vst [vmem:[#allocation2 + $0x128] sm:$0x33] %v9753
        %9770 = vst [vmem:[#allocation2 + $0x130] sm:$0x33] %v9754
        %9771 = vst [vmem:[#allocation2 + $0x138] sm:$0x33] %v9755
        %s9772 = scalar_lea.vmem %s4, 6
        %v9773 = vld [vmem:[%s9772] sm:$0x3]
        %v9774 = vld [vmem:[#allocation2] sm:$0xff]
        %v9775 = vld [vmem:[#allocation2 + $0x8] sm:$0xff]
        %v9776 = vld [vmem:[#allocation2 + $0x10] sm:$0xff]
        %v9777 = vld [vmem:[#allocation2 + $0x18] sm:$0xff]
        %v9778 = vld [vmem:[#allocation2 + $0x20] sm:$0xff]
        %v9779 = vld [vmem:[#allocation2 + $0x28] sm:$0xff]
        %v9780 = vld [vmem:[#allocation2 + $0x30] sm:$0xff]
        %v9781 = vld [vmem:[#allocation2 + $0x38] sm:$0xff]
        %v9782 = vld [vmem:[#allocation2 + $0x40] sm:$0xff]
        %v9783 = vld [vmem:[#allocation2 + $0x48] sm:$0xff]
        %v9784 = vld [vmem:[#allocation2 + $0x50] sm:$0xff]
        %v9785 = vld [vmem:[#allocation2 + $0x58] sm:$0xff]
        %v9786 = vld [vmem:[#allocation2 + $0x60] sm:$0xff]
        %v9787 = vld [vmem:[#allocation2 + $0x68] sm:$0xff]
        %v9788 = vld [vmem:[#allocation2 + $0x70] sm:$0xff]
        %v9789 = vld [vmem:[#allocation2 + $0x78] sm:$0xff]
        %v9790 = vld [vmem:[#allocation2 + $0x80] sm:$0xff]
        %v9791 = vld [vmem:[#allocation2 + $0x88] sm:$0xff]
        %v9792 = vld [vmem:[#allocation2 + $0x90] sm:$0xff]
        %v9793 = vld [vmem:[#allocation2 + $0x98] sm:$0xff]
        %v9794 = vld [vmem:[#allocation2 + $0xa0] sm:$0xff]
        %v9795 = vld [vmem:[#allocation2 + $0xa8] sm:$0xff]
        %v9796 = vld [vmem:[#allocation2 + $0xb0] sm:$0xff]
        %v9797 = vld [vmem:[#allocation2 + $0xb8] sm:$0xff]
        %v9798 = vld [vmem:[#allocation2 + $0xc0] sm:$0xff]
        %v9799 = vld [vmem:[#allocation2 + $0xc8] sm:$0xff]
        %v9800 = vld [vmem:[#allocation2 + $0xd0] sm:$0xff]
        %v9801 = vld [vmem:[#allocation2 + $0xd8] sm:$0xff]
        %v9802 = vld [vmem:[#allocation2 + $0xe0] sm:$0xff]
        %v9803 = vld [vmem:[#allocation2 + $0xe8] sm:$0xff]
        %v9804 = vld [vmem:[#allocation2 + $0xf0] sm:$0xff]
        %v9805 = vld [vmem:[#allocation2 + $0xf8] sm:$0xff]
        %v9806 = vld [vmem:[#allocation2 + $0x100] sm:$0x33]
        %v9807 = vld [vmem:[#allocation2 + $0x108] sm:$0x33]
        %v9808 = vld [vmem:[#allocation2 + $0x110] sm:$0x33]
        %v9809 = vld [vmem:[#allocation2 + $0x118] sm:$0x33]
        %v9810 = vld [vmem:[#allocation2 + $0x120] sm:$0x33]
        %v9811 = vld [vmem:[#allocation2 + $0x128] sm:$0x33]
        %v9812 = vld [vmem:[#allocation2 + $0x130] sm:$0x33]
        %v9813 = vld [vmem:[#allocation2 + $0x138] sm:$0x33]
        %s9814 = scalar_lea.vmem %s5, 12
        %v9815 = vld [vmem:[%s9814] sm:$0xf]
        %9817 = vset.pattern.permute.xlu0 0
        %9818 = vperm.xlu0 %9817, %v9815
        %v9819 = vpop.permute.xlu0 %9818
        %v9861 = vunpack.c.l.b16 %v9774
        %v9862 = vunpack.c.h.b16 %v9774
        %v9863 = vunpack.c.l.b16 %v9775
        %v9864 = vunpack.c.h.b16 %v9775
        %v9865 = vunpack.c.l.b16 %v9776
        %v9866 = vunpack.c.h.b16 %v9776
        %v9867 = vunpack.c.l.b16 %v9777
        %v9868 = vunpack.c.h.b16 %v9777
        %v9869 = vunpack.c.l.b16 %v9778
        %v9870 = vunpack.c.h.b16 %v9778
        %v9871 = vunpack.c.l.b16 %v9779
        %v9872 = vunpack.c.h.b16 %v9779
        %v9873 = vunpack.c.l.b16 %v9780
        %v9874 = vunpack.c.h.b16 %v9780
        %v9875 = vunpack.c.l.b16 %v9781
        %v9876 = vunpack.c.h.b16 %v9781
        %v9877 = vunpack.c.l.b16 %v9782
        %v9878 = vunpack.c.h.b16 %v9782
        %v9879 = vunpack.c.l.b16 %v9783
        %v9880 = vunpack.c.h.b16 %v9783
        %v9881 = vunpack.c.l.b16 %v9784
        %v9882 = vunpack.c.h.b16 %v9784
        %v9883 = vunpack.c.l.b16 %v9785
        %v9884 = vunpack.c.h.b16 %v9785
        %v9885 = vunpack.c.l.b16 %v9786
        %v9886 = vunpack.c.h.b16 %v9786
        %v9887 = vunpack.c.l.b16 %v9787
        %v9888 = vunpack.c.h.b16 %v9787
        %v9889 = vunpack.c.l.b16 %v9788
        %v9890 = vunpack.c.h.b16 %v9788
        %v9891 = vunpack.c.l.b16 %v9789
        %v9892 = vunpack.c.h.b16 %v9789
        %v9893 = vunpack.c.l.b16 %v9790
        %v9894 = vunpack.c.h.b16 %v9790
        %v9895 = vunpack.c.l.b16 %v9791
        %v9896 = vunpack.c.h.b16 %v9791
        %v9897 = vunpack.c.l.b16 %v9792
        %v9898 = vunpack.c.h.b16 %v9792
        %v9899 = vunpack.c.l.b16 %v9793
        %v9900 = vunpack.c.h.b16 %v9793
        %v9901 = vunpack.c.l.b16 %v9794
        %v9902 = vunpack.c.h.b16 %v9794
        %v9903 = vunpack.c.l.b16 %v9795
        %v9904 = vunpack.c.h.b16 %v9795
        %v9905 = vunpack.c.l.b16 %v9796
        %v9906 = vunpack.c.h.b16 %v9796
        %v9907 = vunpack.c.l.b16 %v9797
        %v9908 = vunpack.c.h.b16 %v9797
        %v9909 = vunpack.c.l.b16 %v9798
        %v9910 = vunpack.c.h.b16 %v9798
        %v9911 = vunpack.c.l.b16 %v9799
        %v9912 = vunpack.c.h.b16 %v9799
        %v9913 = vunpack.c.l.b16 %v9800
        %v9914 = vunpack.c.h.b16 %v9800
        %v9915 = vunpack.c.l.b16 %v9801
        %v9916 = vunpack.c.h.b16 %v9801
        %v9917 = vunpack.c.l.b16 %v9802
        %v9918 = vunpack.c.h.b16 %v9802
        %v9919 = vunpack.c.l.b16 %v9803
        %v9920 = vunpack.c.h.b16 %v9803
        %v9921 = vunpack.c.l.b16 %v9804
        %v9922 = vunpack.c.h.b16 %v9804
        %v9923 = vunpack.c.l.b16 %v9805
        %v9924 = vunpack.c.h.b16 %v9805
        %v9925 = vunpack.c.l.b16 %v9806
        %v9926 = vunpack.c.h.b16 %v9806
        %v9927 = vunpack.c.l.b16 %v9807
        %v9928 = vunpack.c.h.b16 %v9807
        %v9929 = vunpack.c.l.b16 %v9808
        %v9930 = vunpack.c.h.b16 %v9808
        %v9931 = vunpack.c.l.b16 %v9809
        %v9932 = vunpack.c.h.b16 %v9809
        %v9933 = vunpack.c.l.b16 %v9810
        %v9934 = vunpack.c.h.b16 %v9810
        %v9935 = vunpack.c.l.b16 %v9811
        %v9936 = vunpack.c.h.b16 %v9811
        %v9937 = vunpack.c.l.b16 %v9812
        %v9938 = vunpack.c.h.b16 %v9812
        %v9939 = vunpack.c.l.b16 %v9813
        %v9940 = vunpack.c.h.b16 %v9813
        %v9941 = vpack.c.b16 %v9877, %v9861
        %v9942 = vpack.c.b16 %v9878, %v9862
        %v9943 = vpack.c.b16 %v9879, %v9863
        %v9944 = vpack.c.b16 %v9880, %v9864
        %v9945 = vpack.c.b16 %v9881, %v9865
        %v9946 = vpack.c.b16 %v9882, %v9866
        %v9947 = vpack.c.b16 %v9883, %v9867
        %v9948 = vpack.c.b16 %v9884, %v9868
        %v9949 = vpack.c.b16 %v9885, %v9869
        %v9950 = vpack.c.b16 %v9886, %v9870
        %v9951 = vpack.c.b16 %v9887, %v9871
        %v9952 = vpack.c.b16 %v9888, %v9872
        %v9953 = vpack.c.b16 %v9889, %v9873
        %v9954 = vpack.c.b16 %v9890, %v9874
        %v9955 = vpack.c.b16 %v9891, %v9875
        %v9956 = vpack.c.b16 %v9892, %v9876
        %v9957 = vpack.c.b16 %v9909, %v9893
        %v9958 = vpack.c.b16 %v9910, %v9894
        %v9959 = vpack.c.b16 %v9911, %v9895
        %v9960 = vpack.c.b16 %v9912, %v9896
        %v9961 = vpack.c.b16 %v9913, %v9897
        %v9962 = vpack.c.b16 %v9914, %v9898
        %v9963 = vpack.c.b16 %v9915, %v9899
        %v9964 = vpack.c.b16 %v9916, %v9900
        %v9965 = vpack.c.b16 %v9917, %v9901
        %v9966 = vpack.c.b16 %v9918, %v9902
        %v9967 = vpack.c.b16 %v9919, %v9903
        %v9968 = vpack.c.b16 %v9920, %v9904
        %v9969 = vpack.c.b16 %v9921, %v9905
        %v9970 = vpack.c.b16 %v9922, %v9906
        %v9971 = vpack.c.b16 %v9923, %v9907
        %v9972 = vpack.c.b16 %v9924, %v9908
        %v9973 = vpack.c.b16 %v9925, %v9925
        %v9974 = vpack.c.b16 %v9926, %v9926
        %v9975 = vpack.c.b16 %v9927, %v9927
        %v9976 = vpack.c.b16 %v9928, %v9928
        %v9977 = vpack.c.b16 %v9929, %v9929
        %v9978 = vpack.c.b16 %v9930, %v9930
        %v9979 = vpack.c.b16 %v9931, %v9931
        %v9980 = vpack.c.b16 %v9932, %v9932
        %v9981 = vpack.c.b16 %v9933, %v9933
        %v9982 = vpack.c.b16 %v9934, %v9934
        %v9983 = vpack.c.b16 %v9935, %v9935
        %v9984 = vpack.c.b16 %v9936, %v9936
        %v9985 = vpack.c.b16 %v9937, %v9937
        %v9986 = vpack.c.b16 %v9938, %v9938
        %v9987 = vpack.c.b16 %v9939, %v9939
        %v9988 = vpack.c.b16 %v9940, %v9940
        %v10022 = vsel %vm3415, %v9773, 0
        %v10025 = vsel %vm3419, %v9973, 0
        %v10028 = vsel %vm3419, %v9974, 0
        %v10031 = vsel %vm3419, %v9975, 0
        %v10034 = vsel %vm3419, %v9976, 0
        %v10037 = vsel %vm3419, %v9977, 0
        %v10040 = vsel %vm3419, %v9978, 0
        %v10043 = vsel %vm3419, %v9979, 0
        %v10046 = vsel %vm3419, %v9980, 0
        %v10049 = vsel %vm3419, %v9981, 0
        %v10052 = vsel %vm3419, %v9982, 0
        %v10055 = vsel %vm3419, %v9983, 0
        %v10058 = vsel %vm3419, %v9984, 0
        %v10061 = vsel %vm3419, %v9985, 0
        %v10064 = vsel %vm3419, %v9986, 0
        %v10067 = vsel %vm3419, %v9987, 0
        %v10070 = vsel %vm3419, %v9988, 0
        %10072 = vmatprep.subr.bf16.mxu0 %v9942
        %10073 = vmatpush1.bf16.msra.mxu0 %v9941
        %10074 = vmatprep.subr.bf16.mxu0 %v9958
        %10075 = vmatpush1.bf16.msra.mxu0 %v9957
        %10076 = vmatprep.subr.bf16.mxu0 %v10028
        %10077 = vmatpush1.bf16.msra.mxu0 %v10025
        %10078 = vmatprep.subr.bf16.mxu0 0
        %10079 = vmatpush1.bf16.msra.mxu0 0
        %10080 = vmatprep.subr.bf16.mxu0 0
        %10081 = vmatpush1.bf16.msra.mxu0 0
        %10082 = vmatprep.subr.bf16.mxu0 0
        %10083 = vmatpush1.bf16.msra.mxu0 0
        %10084 = vmatprep.subr.bf16.mxu0 0
        %10085 = vmatpush1.bf16.msra.mxu0 0
        %10086 = vmatprep.subr.bf16.mxu0 0
        %10087 = vmatpush1.bf16.msra.mxu0 0
        %10088 = vmatprep.subr.bf16.mxu0 0
        %10089 = vmatpush1.bf16.msra.mxu0 0
        %10090 = vmatprep.subr.bf16.mxu0 0
        %10091 = vmatpush1.bf16.msra.mxu0 0
        %10092 = vmatprep.subr.bf16.mxu0 0
        %10093 = vmatpush1.bf16.msra.mxu0 0
        %10094 = vmatprep.subr.bf16.mxu0 0
        %10095 = vmatpush1.bf16.msra.mxu0 0
        %10096 = vmatprep.subr.bf16.mxu0 0
        %10097 = vmatpush1.bf16.msra.mxu0 0
        %10098 = vmatprep.subr.bf16.mxu0 0
        %10099 = vmatpush1.bf16.msra.mxu0 0
        %10100 = vmatprep.subr.bf16.mxu0 0
        %10101 = vmatpush1.bf16.msra.mxu0 0
        %10102 = vmatprep.subr.bf16.mxu0 0
        %10103 = vmatpush1.bf16.msra.mxu0 0
        %10104 = vmatprep.mubr.bf16.mxu0 0
        %10105 = vmatmul.mubr.bf16.gmra.mrb[0].mxu0 %v10022
        %v10106 = vpop.f32.mrb[0].mxu0
        %v10107 = vadd.f32 %v9819, %v10106
        %v10108 = vpop.f32.mrb[0].mxu0
        %v10109 = vadd.f32 %v9819, %v10108
        %v10110 = vpop.f32.mrb[0].mxu0
        %v10111 = vpop.f32.mrb[0].mxu0
        %10112 = vdwg.mxu0
        %10113 = vmatprep.subr.bf16.mxu0 %v9944
        %10114 = vmatpush1.bf16.msra.mxu0 %v9943
        %10115 = vmatprep.subr.bf16.mxu0 %v9960
        %10116 = vmatpush1.bf16.msra.mxu0 %v9959
        %10117 = vmatprep.subr.bf16.mxu0 %v10034
        %10118 = vmatpush1.bf16.msra.mxu0 %v10031
        %10119 = vmatprep.subr.bf16.mxu0 0
        %10120 = vmatpush1.bf16.msra.mxu0 0
        %10121 = vmatprep.subr.bf16.mxu0 0
        %10122 = vmatpush1.bf16.msra.mxu0 0
        %10123 = vmatprep.subr.bf16.mxu0 0
        %10124 = vmatpush1.bf16.msra.mxu0 0
        %10125 = vmatprep.subr.bf16.mxu0 0
        %10126 = vmatpush1.bf16.msra.mxu0 0
        %10127 = vmatprep.subr.bf16.mxu0 0
        %10128 = vmatpush1.bf16.msra.mxu0 0
        %10129 = vmatprep.subr.bf16.mxu0 0
        %10130 = vmatpush1.bf16.msra.mxu0 0
        %10131 = vmatprep.subr.bf16.mxu0 0
        %10132 = vmatpush1.bf16.msra.mxu0 0
        %10133 = vmatprep.subr.bf16.mxu0 0
        %10134 = vmatpush1.bf16.msra.mxu0 0
        %10135 = vmatprep.subr.bf16.mxu0 0
        %10136 = vmatpush1.bf16.msra.mxu0 0
        %10137 = vmatprep.subr.bf16.mxu0 0
        %10138 = vmatpush1.bf16.msra.mxu0 0
        %10139 = vmatprep.subr.bf16.mxu0 0
        %10140 = vmatpush1.bf16.msra.mxu0 0
        %10141 = vmatprep.subr.bf16.mxu0 0
        %10142 = vmatpush1.bf16.msra.mxu0 0
        %10143 = vmatprep.subr.bf16.mxu0 0
        %10144 = vmatpush1.bf16.msra.mxu0 0
        %10145 = vmatprep.mubr.bf16.mxu0 0
        %10146 = vmatmul.mubr.bf16.gmra.mrb[0].mxu0 %v10022
        %v10147 = vpop.f32.mrb[0].mxu0
        %v10148 = vadd.f32 %v9819, %v10147
        %v10149 = vpop.f32.mrb[0].mxu0
        %v10150 = vadd.f32 %v9819, %v10149
        %v10151 = vpop.f32.mrb[0].mxu0
        %v10152 = vpop.f32.mrb[0].mxu0
        %10153 = vdwg.mxu0
        %10154 = vmatprep.subr.bf16.mxu0 %v9946
        %10155 = vmatpush1.bf16.msra.mxu0 %v9945
        %10156 = vmatprep.subr.bf16.mxu0 %v9962
        %10157 = vmatpush1.bf16.msra.mxu0 %v9961
        %10158 = vmatprep.subr.bf16.mxu0 %v10040
        %10159 = vmatpush1.bf16.msra.mxu0 %v10037
        %10160 = vmatprep.subr.bf16.mxu0 0
        %10161 = vmatpush1.bf16.msra.mxu0 0
        %10162 = vmatprep.subr.bf16.mxu0 0
        %10163 = vmatpush1.bf16.msra.mxu0 0
        %10164 = vmatprep.subr.bf16.mxu0 0
        %10165 = vmatpush1.bf16.msra.mxu0 0
        %10166 = vmatprep.subr.bf16.mxu0 0
        %10167 = vmatpush1.bf16.msra.mxu0 0
        %10168 = vmatprep.subr.bf16.mxu0 0
        %10169 = vmatpush1.bf16.msra.mxu0 0
        %10170 = vmatprep.subr.bf16.mxu0 0
        %10171 = vmatpush1.bf16.msra.mxu0 0
        %10172 = vmatprep.subr.bf16.mxu0 0
        %10173 = vmatpush1.bf16.msra.mxu0 0
        %10174 = vmatprep.subr.bf16.mxu0 0
        %10175 = vmatpush1.bf16.msra.mxu0 0
        %10176 = vmatprep.subr.bf16.mxu0 0
        %10177 = vmatpush1.bf16.msra.mxu0 0
        %10178 = vmatprep.subr.bf16.mxu0 0
        %10179 = vmatpush1.bf16.msra.mxu0 0
        %10180 = vmatprep.subr.bf16.mxu0 0
        %10181 = vmatpush1.bf16.msra.mxu0 0
        %10182 = vmatprep.subr.bf16.mxu0 0
        %10183 = vmatpush1.bf16.msra.mxu0 0
        %10184 = vmatprep.subr.bf16.mxu0 0
        %10185 = vmatpush1.bf16.msra.mxu0 0
        %10186 = vmatprep.mubr.bf16.mxu0 0
        %10187 = vmatmul.mubr.bf16.gmra.mrb[0].mxu0 %v10022
        %v10188 = vpop.f32.mrb[0].mxu0
        %v10189 = vadd.f32 %v9819, %v10188
        %v10190 = vpop.f32.mrb[0].mxu0
        %v10191 = vadd.f32 %v9819, %v10190
        %v10192 = vpop.f32.mrb[0].mxu0
        %v10193 = vpop.f32.mrb[0].mxu0
        %10194 = vdwg.mxu0
        %10195 = vmatprep.subr.bf16.mxu0 %v9948
        %10196 = vmatpush1.bf16.msra.mxu0 %v9947
        %10197 = vmatprep.subr.bf16.mxu0 %v9964
        %10198 = vmatpush1.bf16.msra.mxu0 %v9963
        %10199 = vmatprep.subr.bf16.mxu0 %v10046
        %10200 = vmatpush1.bf16.msra.mxu0 %v10043
        %10201 = vmatprep.subr.bf16.mxu0 0
        %10202 = vmatpush1.bf16.msra.mxu0 0
        %10203 = vmatprep.subr.bf16.mxu0 0
        %10204 = vmatpush1.bf16.msra.mxu0 0
        %10205 = vmatprep.subr.bf16.mxu0 0
        %10206 = vmatpush1.bf16.msra.mxu0 0
        %10207 = vmatprep.subr.bf16.mxu0 0
        %10208 = vmatpush1.bf16.msra.mxu0 0
        %10209 = vmatprep.subr.bf16.mxu0 0
        %10210 = vmatpush1.bf16.msra.mxu0 0
        %10211 = vmatprep.subr.bf16.mxu0 0
        %10212 = vmatpush1.bf16.msra.mxu0 0
        %10213 = vmatprep.subr.bf16.mxu0 0
        %10214 = vmatpush1.bf16.msra.mxu0 0
        %10215 = vmatprep.subr.bf16.mxu0 0
        %10216 = vmatpush1.bf16.msra.mxu0 0
        %10217 = vmatprep.subr.bf16.mxu0 0
        %10218 = vmatpush1.bf16.msra.mxu0 0
        %10219 = vmatprep.subr.bf16.mxu0 0
        %10220 = vmatpush1.bf16.msra.mxu0 0
        %10221 = vmatprep.subr.bf16.mxu0 0
        %10222 = vmatpush1.bf16.msra.mxu0 0
        %10223 = vmatprep.subr.bf16.mxu0 0
        %10224 = vmatpush1.bf16.msra.mxu0 0
        %10225 = vmatprep.subr.bf16.mxu0 0
        %10226 = vmatpush1.bf16.msra.mxu0 0
        %10227 = vmatprep.mubr.bf16.mxu0 0
        %10228 = vmatmul.mubr.bf16.gmra.mrb[0].mxu0 %v10022
        %v10229 = vpop.f32.mrb[0].mxu0
        %v10230 = vadd.f32 %v9819, %v10229
        %v10231 = vpop.f32.mrb[0].mxu0
        %v10232 = vadd.f32 %v9819, %v10231
        %v10233 = vpop.f32.mrb[0].mxu0
        %v10234 = vpop.f32.mrb[0].mxu0
        %10235 = vdwg.mxu0
        %10236 = vmatprep.subr.bf16.mxu0 %v9950
        %10237 = vmatpush1.bf16.msra.mxu0 %v9949
        %10238 = vmatprep.subr.bf16.mxu0 %v9966
        %10239 = vmatpush1.bf16.msra.mxu0 %v9965
        %10240 = vmatprep.subr.bf16.mxu0 %v10052
        %10241 = vmatpush1.bf16.msra.mxu0 %v10049
        %10242 = vmatprep.subr.bf16.mxu0 0
        %10243 = vmatpush1.bf16.msra.mxu0 0
        %10244 = vmatprep.subr.bf16.mxu0 0
        %10245 = vmatpush1.bf16.msra.mxu0 0
        %10246 = vmatprep.subr.bf16.mxu0 0
        %10247 = vmatpush1.bf16.msra.mxu0 0
        %10248 = vmatprep.subr.bf16.mxu0 0
        %10249 = vmatpush1.bf16.msra.mxu0 0
        %10250 = vmatprep.subr.bf16.mxu0 0
        %10251 = vmatpush1.bf16.msra.mxu0 0
        %10252 = vmatprep.subr.bf16.mxu0 0
        %10253 = vmatpush1.bf16.msra.mxu0 0
        %10254 = vmatprep.subr.bf16.mxu0 0
        %10255 = vmatpush1.bf16.msra.mxu0 0
        %10256 = vmatprep.subr.bf16.mxu0 0
        %10257 = vmatpush1.bf16.msra.mxu0 0
        %10258 = vmatprep.subr.bf16.mxu0 0
        %10259 = vmatpush1.bf16.msra.mxu0 0
        %10260 = vmatprep.subr.bf16.mxu0 0
        %10261 = vmatpush1.bf16.msra.mxu0 0
        %10262 = vmatprep.subr.bf16.mxu0 0
        %10263 = vmatpush1.bf16.msra.mxu0 0
        %10264 = vmatprep.subr.bf16.mxu0 0
        %10265 = vmatpush1.bf16.msra.mxu0 0
        %10266 = vmatprep.subr.bf16.mxu0 0
        %10267 = vmatpush1.bf16.msra.mxu0 0
        %10268 = vmatprep.mubr.bf16.mxu0 0
        %10269 = vmatmul.mubr.bf16.gmra.mrb[0].mxu0 %v10022
        %v10270 = vpop.f32.mrb[0].mxu0
        %v10271 = vadd.f32 %v9819, %v10270
        %v10272 = vpop.f32.mrb[0].mxu0
        %v10273 = vadd.f32 %v9819, %v10272
        %v10274 = vpop.f32.mrb[0].mxu0
        %v10275 = vpop.f32.mrb[0].mxu0
        %10276 = vdwg.mxu0
        %10277 = vmatprep.subr.bf16.mxu0 %v9952
        %10278 = vmatpush1.bf16.msra.mxu0 %v9951
        %10279 = vmatprep.subr.bf16.mxu0 %v9968
        %10280 = vmatpush1.bf16.msra.mxu0 %v9967
        %10281 = vmatprep.subr.bf16.mxu0 %v10058
        %10282 = vmatpush1.bf16.msra.mxu0 %v10055
        %10283 = vmatprep.subr.bf16.mxu0 0
        %10284 = vmatpush1.bf16.msra.mxu0 0
        %10285 = vmatprep.subr.bf16.mxu0 0
        %10286 = vmatpush1.bf16.msra.mxu0 0
        %10287 = vmatprep.subr.bf16.mxu0 0
        %10288 = vmatpush1.bf16.msra.mxu0 0
        %10289 = vmatprep.subr.bf16.mxu0 0
        %10290 = vmatpush1.bf16.msra.mxu0 0
        %10291 = vmatprep.subr.bf16.mxu0 0
        %10292 = vmatpush1.bf16.msra.mxu0 0
        %10293 = vmatprep.subr.bf16.mxu0 0
        %10294 = vmatpush1.bf16.msra.mxu0 0
        %10295 = vmatprep.subr.bf16.mxu0 0
        %10296 = vmatpush1.bf16.msra.mxu0 0
        %10297 = vmatprep.subr.bf16.mxu0 0
        %10298 = vmatpush1.bf16.msra.mxu0 0
        %10299 = vmatprep.subr.bf16.mxu0 0
        %10300 = vmatpush1.bf16.msra.mxu0 0
        %10301 = vmatprep.subr.bf16.mxu0 0
        %10302 = vmatpush1.bf16.msra.mxu0 0
        %10303 = vmatprep.subr.bf16.mxu0 0
        %10304 = vmatpush1.bf16.msra.mxu0 0
        %10305 = vmatprep.subr.bf16.mxu0 0
        %10306 = vmatpush1.bf16.msra.mxu0 0
        %10307 = vmatprep.subr.bf16.mxu0 0
        %10308 = vmatpush1.bf16.msra.mxu0 0
        %10309 = vmatprep.mubr.bf16.mxu0 0
        %10310 = vmatmul.mubr.bf16.gmra.mrb[0].mxu0 %v10022
        %v10311 = vpop.f32.mrb[0].mxu0
        %v10312 = vadd.f32 %v9819, %v10311
        %v10313 = vpop.f32.mrb[0].mxu0
        %v10314 = vadd.f32 %v9819, %v10313
        %v10315 = vpop.f32.mrb[0].mxu0
        %v10316 = vpop.f32.mrb[0].mxu0
        %10317 = vdwg.mxu0
        %10318 = vmatprep.subr.bf16.mxu0 %v9954
        %10319 = vmatpush1.bf16.msra.mxu0 %v9953
        %10320 = vmatprep.subr.bf16.mxu0 %v9970
        %10321 = vmatpush1.bf16.msra.mxu0 %v9969
        %10322 = vmatprep.subr.bf16.mxu0 %v10064
        %10323 = vmatpush1.bf16.msra.mxu0 %v10061
        %10324 = vmatprep.subr.bf16.mxu0 0
        %10325 = vmatpush1.bf16.msra.mxu0 0
        %10326 = vmatprep.subr.bf16.mxu0 0
        %10327 = vmatpush1.bf16.msra.mxu0 0
        %10328 = vmatprep.subr.bf16.mxu0 0
        %10329 = vmatpush1.bf16.msra.mxu0 0
        %10330 = vmatprep.subr.bf16.mxu0 0
        %10331 = vmatpush1.bf16.msra.mxu0 0
        %10332 = vmatprep.subr.bf16.mxu0 0
        %10333 = vmatpush1.bf16.msra.mxu0 0
        %10334 = vmatprep.subr.bf16.mxu0 0
        %10335 = vmatpush1.bf16.msra.mxu0 0
        %10336 = vmatprep.subr.bf16.mxu0 0
        %10337 = vmatpush1.bf16.msra.mxu0 0
        %10338 = vmatprep.subr.bf16.mxu0 0
        %10339 = vmatpush1.bf16.msra.mxu0 0
        %10340 = vmatprep.subr.bf16.mxu0 0
        %10341 = vmatpush1.bf16.msra.mxu0 0
        %10342 = vmatprep.subr.bf16.mxu0 0
        %10343 = vmatpush1.bf16.msra.mxu0 0
        %10344 = vmatprep.subr.bf16.mxu0 0
        %10345 = vmatpush1.bf16.msra.mxu0 0
        %10346 = vmatprep.subr.bf16.mxu0 0
        %10347 = vmatpush1.bf16.msra.mxu0 0
        %10348 = vmatprep.subr.bf16.mxu0 0
        %10349 = vmatpush1.bf16.msra.mxu0 0
        %10350 = vmatprep.mubr.bf16.mxu0 0
        %10351 = vmatmul.mubr.bf16.gmra.mrb[0].mxu0 %v10022
        %v10352 = vpop.f32.mrb[0].mxu0
        %v10353 = vadd.f32 %v9819, %v10352
        %v10354 = vpop.f32.mrb[0].mxu0
        %v10355 = vadd.f32 %v9819, %v10354
        %v10356 = vpop.f32.mrb[0].mxu0
        %v10357 = vpop.f32.mrb[0].mxu0
        %10358 = vdwg.mxu0
        %10359 = vmatprep.subr.bf16.mxu0 %v9956
        %10360 = vmatpush1.bf16.msra.mxu0 %v9955
        %10361 = vmatprep.subr.bf16.mxu0 %v9972
        %10362 = vmatpush1.bf16.msra.mxu0 %v9971
        %10363 = vmatprep.subr.bf16.mxu0 %v10070
        %10364 = vmatpush1.bf16.msra.mxu0 %v10067
        %10365 = vmatprep.subr.bf16.mxu0 0
        %10366 = vmatpush1.bf16.msra.mxu0 0
        %10367 = vmatprep.subr.bf16.mxu0 0
        %10368 = vmatpush1.bf16.msra.mxu0 0
        %10369 = vmatprep.subr.bf16.mxu0 0
        %10370 = vmatpush1.bf16.msra.mxu0 0
        %10371 = vmatprep.subr.bf16.mxu0 0
        %10372 = vmatpush1.bf16.msra.mxu0 0
        %10373 = vmatprep.subr.bf16.mxu0 0
        %10374 = vmatpush1.bf16.msra.mxu0 0
        %10375 = vmatprep.subr.bf16.mxu0 0
        %10376 = vmatpush1.bf16.msra.mxu0 0
        %10377 = vmatprep.subr.bf16.mxu0 0
        %10378 = vmatpush1.bf16.msra.mxu0 0
        %10379 = vmatprep.subr.bf16.mxu0 0
        %10380 = vmatpush1.bf16.msra.mxu0 0
        %10381 = vmatprep.subr.bf16.mxu0 0
        %10382 = vmatpush1.bf16.msra.mxu0 0
        %10383 = vmatprep.subr.bf16.mxu0 0
        %10384 = vmatpush1.bf16.msra.mxu0 0
        %10385 = vmatprep.subr.bf16.mxu0 0
        %10386 = vmatpush1.bf16.msra.mxu0 0
        %10387 = vmatprep.subr.bf16.mxu0 0
        %10388 = vmatpush1.bf16.msra.mxu0 0
        %10389 = vmatprep.subr.bf16.mxu0 0
        %10390 = vmatpush1.bf16.msra.mxu0 0
        %10391 = vmatprep.mubr.bf16.mxu0 0
        %10392 = vmatmul.mubr.bf16.gmra.mrb[0].mxu0 %v10022
        %v10393 = vpop.f32.mrb[0].mxu0
        %v10394 = vadd.f32 %v9819, %v10393
        %v10395 = vpop.f32.mrb[0].mxu0
        %v10396 = vadd.f32 %v9819, %v10395
        %v10397 = vpop.f32.mrb[0].mxu0
        %v10398 = vpop.f32.mrb[0].mxu0
        %10399 = vdwg.mxu0
        %v10400 = vld [vmem:[%s282] sm:$0xff]
        %v10401 = vld [vmem:[%s282 + $0x8] sm:$0xff]
        %v10402 = vld [vmem:[%s282 + $0x10] sm:$0xff]
        %v10403 = vld [vmem:[%s282 + $0x18] sm:$0xff]
        %v10404 = vld [vmem:[%s282 + $0x20] sm:$0xff]
        %v10405 = vld [vmem:[%s282 + $0x28] sm:$0xff]
        %v10406 = vld [vmem:[%s282 + $0x30] sm:$0xff]
        %v10407 = vld [vmem:[%s282 + $0x38] sm:$0xff]
        %v10416 = vcombine.high %v10400, %v10400
        %v10417 = vcombine.high %v10401, %v10401
        %v10418 = vcombine.high %v10402, %v10402
        %v10419 = vcombine.high %v10403, %v10403
        %v10420 = vcombine.high %v10404, %v10404
        %v10421 = vcombine.high %v10405, %v10405
        %v10422 = vcombine.high %v10406, %v10406
        %v10423 = vcombine.high %v10407, %v10407
        %v10432 = vadd.f32 %v10107, %v10400
        %v10433 = vadd.f32 %v10109, %v10416
        %v10434 = vadd.f32 %v10148, %v10401
        %v10435 = vadd.f32 %v10150, %v10417
        %v10436 = vadd.f32 %v10189, %v10402
        %v10437 = vadd.f32 %v10191, %v10418
        %v10438 = vadd.f32 %v10230, %v10403
        %v10439 = vadd.f32 %v10232, %v10419
        %v10440 = vadd.f32 %v10271, %v10404
        %v10441 = vadd.f32 %v10273, %v10420
        %v10442 = vadd.f32 %v10312, %v10405
        %v10443 = vadd.f32 %v10314, %v10421
        %v10444 = vadd.f32 %v10353, %v10406
        %v10445 = vadd.f32 %v10355, %v10422
        %v10446 = vadd.f32 %v10394, %v10407
        %v10447 = vadd.f32 %v10396, %v10423
        %v10448 = vmax.f32 %v10432, 0.0
        %v10449 = vmax.f32 %v10433, 0.0
        %v10450 = vmax.f32 %v10434, 0.0
        %v10451 = vmax.f32 %v10435, 0.0
        %v10452 = vmax.f32 %v10436, 0.0
        %v10453 = vmax.f32 %v10437, 0.0
        %v10454 = vmax.f32 %v10438, 0.0
        %v10455 = vmax.f32 %v10439, 0.0
        %v10456 = vmax.f32 %v10440, 0.0
        %v10457 = vmax.f32 %v10441, 0.0
        %v10458 = vmax.f32 %v10442, 0.0
        %v10459 = vmax.f32 %v10443, 0.0
        %v10460 = vmax.f32 %v10444, 0.0
        %v10461 = vmax.f32 %v10445, 0.0
        %v10462 = vmax.f32 %v10446, 0.0
        %v10463 = vmax.f32 %v10447, 0.0
        %v10480 = vcombine.low %v10448, %v10449
        %v10481 = vcombine.low %v10450, %v10451
        %v10482 = vcombine.low %v10452, %v10453
        %v10483 = vcombine.low %v10454, %v10455
        %v10484 = vcombine.low %v10456, %v10457
        %v10485 = vcombine.low %v10458, %v10459
        %v10486 = vcombine.low %v10460, %v10461
        %v10487 = vcombine.low %v10462, %v10463
        %10496 = vst [vmem:[%s282] sm:$0xff] %v10480
        %10497 = vst [vmem:[%s282 + $0x8] sm:$0xff] %v10481
        %10498 = vst [vmem:[%s282 + $0x10] sm:$0xff] %v10482
        %10499 = vst [vmem:[%s282 + $0x18] sm:$0xff] %v10483
        %10500 = vst [vmem:[%s282 + $0x20] sm:$0xff] %v10484
        %10501 = vst [vmem:[%s282 + $0x28] sm:$0xff] %v10485
        %10502 = vst [vmem:[%s282 + $0x30] sm:$0xff] %v10486
        %10503 = vst [vmem:[%s282 + $0x38] sm:$0xff] %v10487
        %s10504 = sand.u32 %s163, 1
        %s10505 = scalar_lea.sflag [#allocation5], %s10504
        %s10506 = sand.u32 %s163, 1
        %s10507 = smul.addr %s10506, 64
        %s10508 = scalar_lea.vmem [#allocation8], %s10507
        // Predicated region
        $region53: #{tpu_custom_call.1} parent=43 // pred_check
          %p10509 = pneg %p173
        $region54: #{tpu_custom_call.1} parent=43 // pred_check_branch
          %10511 = sbr.rel (%p10509) target = $region56
        $region55: #{tpu_custom_call.1} parent=43 // pred_region
          %s10513 = ssub.s32 1024, 1024
          %10514 = vsyncadd %s10505, %s10513
          %s10515 = smul.addr %s24, 16
          %s10516 = smul.addr %s10515, 64
          %s10517 = scalar_lea.hbm %s6, %s10516
          %s10519 = sshll.u32 %s10508, 4
          %s10520 = int_to_ptr.vmem [resolvable:$true] %s10519
          %10522 = dma.vmem_to_hbm [thread:$0]  %s10520, 1024, %s10517, %s10505
        $region56: #{tpu_custom_call.1} parent=43 // pred_fallthru
          _
      $region44: #{tpu_custom_call.1} parent=5 // pred_fallthru
        _
      %p10523 = scmp.le.s32.totalorder 2, %s19
      // Predicated region
      $region57: #{tpu_custom_call.1} parent=5 // pred_check
        %p10524 = pneg %p10523
      $region58: #{tpu_custom_call.1} parent=5 // pred_check_branch
        %10526 = sbr.rel (%p10524) target = $region60
      $region59: #{tpu_custom_call.1} parent=5 // pred_region
        %s10527 = ssub.s32 %s19, 2
        // Predicated region
        $region61: #{tpu_custom_call.1} parent=59 // pred_check
          %p10528 = pneg %p179
        $region62: #{tpu_custom_call.1} parent=59 // pred_check_branch
          %10530 = sbr.rel (%p10528) target = $region64
        $region63: #{tpu_custom_call.1} parent=59 // pred_region
          %s10531 = sand.u32 %s164, 1
          %s10532 = scalar_lea.sflag [#allocation5], %s10531
          %s10533 = sand.u32 %s164, 1
          %s10534 = smul.addr %s10533, 64
          %s10535 = scalar_lea.vmem [#allocation8], %s10534
          %10536 = dma.done %s10532, 1024
        $region64: #{tpu_custom_call.1} parent=59 // pred_fallthru
          _
      $region60: #{tpu_custom_call.1} parent=5 // pred_fallthru
        _
    $region6: #{tpu_custom_call.1} parent=1 // loop_footer
      %s23 = sadd.s32 1, %s19
    $region7: #{tpu_custom_call.1} parent=1 // loop_footer_branch
      %18 = sbr.rel target = $region3
    $region8: #{tpu_custom_call.1} parent=1 // loop_exit
      _
    %10537 = vsyncpa [#allocation4], 1
    %s10538 = scalar_lea.sflag [#allocation4], 1
    %10539 = vsyncpa %s10538, 1
    %10540 = vsyncpa [#allocation7], 1
    %10541 = vsyncpa [#allocation5], 1
    %s10542 = scalar_lea.sflag [#allocation5], 1
    %10543 = vsyncpa %s10542, 1

</llo_original>
